<compile_context>
chip_gen: v7x
topology: tpu7x:2x2x1
jax: 0.10.0
libtpu: 0.0.40
codegen_flags: <defaults>
</compile_context>

<pallas_src>
import functools

import jax
import jax.numpy as jnp
from jax.experimental import pallas as pl
from jax.experimental.pallas import tpu as pltpu

_MIB = 1 << 20

# Older jax releases expose TPUCompilerParams instead of CompilerParams.
_CompilerParams = getattr(pltpu, "CompilerParams", None) or getattr(
    pltpu, "TPUCompilerParams", None)


def _round_up(n, m):
    return ((n + m - 1) // m) * m


# -----------------------------------------------------------------------------
# Generation-aware hardware parameters.
# -----------------------------------------------------------------------------
@functools.lru_cache(maxsize=1)
def _tpu_params():
    kind = ""
    try:
        kind = jax.devices()[0].device_kind.lower()
    except Exception:
        pass

    vmem_cap = None
    try:  # Available on recent jax; falls back to device_kind heuristics.
        vmem_cap = int(pltpu.get_tpu_info().vmem_capacity_bytes)
    except Exception:
        pass

    is_v7 = "7" in kind
    is_v5e = ("v5 lite" in kind) or ("v5e" in kind) or ("v5litepod" in kind)
    if vmem_cap is None:
        if is_v7:
            vmem_cap = 64 * _MIB          # per TensorCore
        elif any(t in kind for t in ("v4", "v5", "v6")):
            vmem_cap = 128 * _MIB
        else:
            vmem_cap = 64 * _MIB          # unknown -> conservative

    # Tile budget leaves headroom for Mosaic internal scratch / semaphores;
    # the scoped limit never requests all of physical VMEM (critical on v7x).
    tile_budget = max(16 * _MIB, min(vmem_cap - 24 * _MIB, (vmem_cap * 3) // 4))
    vmem_limit = max(32 * _MIB, vmem_cap - 16 * _MIB)

    # Parts whose grid "parallel" axis is sharded across 2 TensorCores.
    num_cores = 2 if (is_v7 or "v4" in kind or "v5p" in kind) else 1
    # MXU pass width: 128 on v5e (4x128^2), 256 on v6e/v7x (2x256^2).
    k_floor = 128 if is_v5e else 256

    return dict(tile_budget=int(tile_budget), vmem_limit=int(vmem_limit),
                num_cores=num_cores, k_floor=k_floor, is_v5e=is_v5e)


# -----------------------------------------------------------------------------
# Parameter preparation (hoist weight pad / cast out of the per-call hot path).
# -----------------------------------------------------------------------------
def prepare_ffn_params(w1, w2, *, compute_dtype=jnp.bfloat16):
    """Pad and cast the FFN weights once.

    w1: (D, inner)  == nn.Linear(dim, inner, bias=False).weight.T
    w2: (inner, D)  == nn.Linear(inner, dim, bias=False).weight.T
    """
    D, inner = w1.shape
    assert w2.shape == (inner, D)
    Dp = _round_up(D, 128)            # lane-dense activations / output
    inner_p = _round_up(inner, 256)   # allows 256-granularity reduction tiles
    if compute_dtype is not None:
        w1 = w1.astype(compute_dtype)
        w2 = w2.astype(compute_dtype)
    if (Dp, inner_p) != (D, inner):
        w1 = jnp.pad(w1, ((0, Dp - D), (0, inner_p - inner)))
        w2 = jnp.pad(w2, ((0, inner_p - inner), (0, Dp - D)))
    return {"w1": w1, "w2": w2, "dim": D, "inner": inner}


# -----------------------------------------------------------------------------
# Kernels.
# -----------------------------------------------------------------------------
def _ffn_kernel_single(x_ref, w1_ref, w2_ref, o_ref):
    # Single reduction step: W1/W2 are fully VMEM-resident, no accumulator.
    h = jnp.dot(x_ref[...], w1_ref[...], preferred_element_type=jnp.float32)
    h = jnp.maximum(h, 0.0)
    o_ref[...] = jnp.dot(h.astype(w2_ref.dtype), w2_ref[...],
                         preferred_element_type=jnp.float32).astype(o_ref.dtype)


def _ffn_kernel_multi(x_ref, w1_ref, w2_ref, o_ref, acc_ref):
    # grid = (M tiles, inner tiles); `inner` (reduction axis of the second
    # matmul) is the last, "arbitrary" axis and carries the f32 accumulator.
    k = pl.program_id(1)

    @pl.when(k == 0)
    def _():
        acc_ref[...] = jnp.zeros_like(acc_ref)

    h = jnp.dot(x_ref[...], w1_ref[...], preferred_element_type=jnp.float32)
    h = jnp.maximum(h, 0.0)
    acc_ref[...] += jnp.dot(h.astype(w2_ref.dtype), w2_ref[...],
                            preferred_element_type=jnp.float32)

    @pl.when(k == pl.num_programs(1) - 1)
    def _():
        o_ref[...] = acc_ref[...].astype(o_ref.dtype)


# -----------------------------------------------------------------------------
# VMEM footprint model and spec helpers.
# -----------------------------------------------------------------------------
def _footprint_bytes(tm, tk, dp, cdt_bytes, out_bytes, weight_bufs, with_acc):
    b = 2 * tm * dp * cdt_bytes              # x tiles (double-buffered)
    b += weight_bufs * dp * tk * cdt_bytes   # W1 tile(s)
    b += weight_bufs * tk * dp * cdt_bytes   # W2 tile(s)
    b += 2 * tm * dp * out_bytes             # output tiles
    b += tm * tk * 4                         # f32 hidden intermediate
    b += tm * tk * cdt_bytes                 # cast copy of hidden for matmul 2
    if with_acc:
        b += tm * dp * 4                     # f32 accumulator scratch
    return b


def _weight_spec(shape, index_map, buffer_count):
    """BlockSpec with explicit buffer count when supported; plain otherwise."""
    if buffer_count != 2 and hasattr(pl, "Buffered"):
        try:
            return pl.BlockSpec(shape, index_map,
                                pipeline_mode=pl.Buffered(buffer_count))
        except Exception:
            pass
    return pl.BlockSpec(shape, index_map)


# -----------------------------------------------------------------------------
# Forward pass.
# -----------------------------------------------------------------------------
def apply_feed_forward(x, params, *, tm=512, tile_budget_bytes=None,
                       xla_fallback_rows=0):
    """y = relu(x @ W1) @ W2 with pre-prepared (padded / cast) weights."""
    w1p, w2p = params["w1"], params["w2"]
    D, inner = params["dim"], params["inner"]
    Dp, inner_p = w1p.shape
    *lead, d_in = x.shape
    assert d_in == D
    out_dtype = x.dtype

    M = 1
    for s in lead:
        M *= s

    # Tiny-M shapes can't fill the MXU; optionally hand them to plain XLA.
    # (Disabled by default so the Pallas path is always exercised here.)
    if M <= xla_fallback_rows:
        h = jnp.maximum(x.astype(w1p.dtype) @ w1p[:D, :inner], 0.0)
        return (h @ w2p[:inner, :D]).astype(out_dtype)

    hw = _tpu_params()
    budget = tile_budget_bytes if tile_budget_bytes is not None else hw["tile_budget"]
    vmem_limit = hw["vmem_limit"]

    cdt = w1p.dtype
    cdt_bytes = jnp.dtype(cdt).itemsize
    out_bytes = jnp.dtype(out_dtype).itemsize
    sub = max(8, 32 // cdt_bytes)            # sublane granularity of the M axis
    has_buffered = hasattr(pl, "Buffered")

    # --- M tile ---------------------------------------------------------------
    tm_eff = min(_round_up(tm, sub), _round_up(M, sub))
    # On 2-TensorCore parts keep >=2 tiles on the "parallel" axis so both
    # cores get work (only worth it when each half still fills the MXU rows).
    if hw["num_cores"] > 1 and tm_eff >= M and M >= 512:
        tm_eff = _round_up(-(-M // 2), sub)

    # --- reduction tile: prefer a single step (weights VMEM-resident) ---------
    wb_single = 1 if has_buffered else 2
    single_step = _footprint_bytes(tm_eff, inner_p, Dp, cdt_bytes, out_bytes,
                                   wb_single, with_acc=False) <= budget
    if single_step:
        tk_eff = inner_p
        weight_bufs = wb_single
    else:
        # Deeper weight-stream buffering on v5e (slow HBM) when VMEM allows.
        weight_bufs = 3 if (hw["is_v5e"] and has_buffered) else 2
        k_floor = hw["k_floor"]
        tk_eff = inner_p

        def _fits():
            return _footprint_bytes(tm_eff, tk_eff, Dp, cdt_bytes, out_bytes,
                                    weight_bufs, with_acc=True) <= budget

        while not _fits():
            # Shrink the reduction tile first: total weight HBM traffic stays
            # constant, whereas shrinking tm re-streams W1/W2 per extra M tile.
            if tk_eff > k_floor and (tk_eff // 2) % 128 == 0:
                tk_eff //= 2
            elif tm_eff > 2 * sub:
                tm_eff = _round_up(tm_eff // 2, sub)
            elif tk_eff > 128 and (tk_eff // 2) % 128 == 0:
                tk_eff //= 2
            elif weight_bufs > 2:
                weight_bufs = 2
            else:
                break  # run as-is; the scoped VMEM limit still has headroom

    Mp = _round_up(M, tm_eff)
    grid_i = Mp // tm_eff

    # --- pad the activations (weights were padded at prepare time) ------------
    x2 = x.reshape(M, D).astype(cdt)
    if (Mp, Dp) != (M, D):
        x2 = jnp.pad(x2, ((0, Mp - M), (0, Dp - D)))

    def _run(wbufs):
        if single_step:
            grid = (grid_i,)
            in_specs = [
                pl.BlockSpec((tm_eff, Dp), lambda i: (i, 0)),
                _weight_spec((Dp, inner_p), lambda i: (0, 0), wbufs),
                _weight_spec((inner_p, Dp), lambda i: (0, 0), wbufs),
            ]
            out_spec = pl.BlockSpec((tm_eff, Dp), lambda i: (i, 0))
            kernel = _ffn_kernel_single
            scratch = ()
            dims = ("parallel",)
        else:
            grid = (grid_i, inner_p // tk_eff)
            in_specs = [
                pl.BlockSpec((tm_eff, Dp), lambda i, k: (i, 0)),
                _weight_spec((Dp, tk_eff), lambda i, k: (0, k), wbufs),
                _weight_spec((tk_eff, Dp), lambda i, k: (k, 0), wbufs),
            ]
            out_spec = pl.BlockSpec((tm_eff, Dp), lambda i, k: (i, 0))
            kernel = _ffn_kernel_multi
            scratch = (pltpu.VMEM((tm_eff, Dp), jnp.float32),)
            dims = ("parallel", "arbitrary")

        return pl.pallas_call(
            kernel,
            out_shape=jax.ShapeDtypeStruct((Mp, Dp), out_dtype),
            grid_spec=pltpu.PrefetchScalarGridSpec(
                num_scalar_prefetch=0,
                grid=grid,
                in_specs=in_specs,
                out_specs=out_spec,
                scratch_shapes=scratch,
            ),
            compiler_params=_CompilerParams(
                dimension_semantics=dims,
                vmem_limit_bytes=vmem_limit,
            ),
        )(x2, w1p, w2p)

    try:
        out2 = _run(weight_bufs)
    except Exception:
        if weight_bufs == 2:
            raise
        # Fallback for jax versions / shapes where pl.Buffered is unsupported.
        out2 = _run(2)

    if (Mp, Dp) != (M, D):
        out2 = out2[:M, :D]
    return out2.reshape(*lead, D)


def feed_forward(x, w1, w2, *, compute_dtype=jnp.bfloat16, **kwargs):
    """Convenience wrapper.  In production, call prepare_ffn_params() once at
    parameter-setup time and apply_feed_forward() per step so the weight
    pad/cast is hoisted out of the hot path."""
    params = prepare_ffn_params(w1, w2, compute_dtype=compute_dtype)
    return apply_feed_forward(x, params, **kwargs)


def feed_forward_ref(x, w1, w2):
    h = jnp.maximum(jnp.einsum("...d,di->...i", x, w1), 0.0)
    return jnp.einsum("...i,id->...d", h, w2)


if __name__ == "__main__":
    # Module defaults: dim=384, inner_dim=1536; small batch/seq for the test.
    B, T, D, INNER = 2, 8, 384, 1536

    key = jax.random.PRNGKey(0)
    kx, k1, k2 = jax.random.split(key, 3)

    x = jax.random.normal(kx, (B, T, D), dtype=jnp.float32)
    # nn.Linear(dim, inner, bias=False).weight is (inner, dim); we store the
    # transpose (dim, inner) so the kernel does x @ W1 directly.
    w1 = jax.random.normal(k1, (D, INNER), dtype=jnp.float32) * (1.0 / D) ** 0.5
    w2 = jax.random.normal(k2, (INNER, D), dtype=jnp.float32) * (1.0 / INNER) ** 0.5

    ref = feed_forward_ref(x, w1, w2)

    # 1) Default path: bf16 operands on the MXU, f32 accumulation, weights
    #    VMEM-resident (single reduction step, no accumulator scratch).
    params_bf16 = prepare_ffn_params(w1, w2, compute_dtype=jnp.bfloat16)
    out = jax.block_until_ready(apply_feed_forward(x, params_bf16))
    assert out.shape == (B, T, D) and out.dtype == x.dtype
    assert jnp.allclose(out, ref, atol=5e-2, rtol=5e-2)

    # 2) Full-f32 compute path (tight tolerance).
    params_f32 = prepare_ffn_params(w1, w2, compute_dtype=jnp.float32)
    out_f32 = jax.block_until_ready(apply_feed_forward(x, params_f32))
    assert jnp.allclose(out_f32, ref, atol=1e-3, rtol=1e-3)

    # 3) Force the multi-k-step accumulator kernel via a tiny tile budget.
    out_multi = jax.block_until_ready(
        apply_feed_forward(x, params_bf16, tile_budget_bytes=2 * _MIB))
    assert jnp.allclose(out_multi, ref, atol=5e-2, rtol=5e-2)

    print("KERNEL_OK")
</pallas_src>

<mosaic_0001>
module attributes {stable_mosaic.version = 11 : i64} {
  func.func @_ffn_kernel_single(%arg0: i32, %arg1: memref<16x384xbf16, #tpu.memory_space<vmem>>, %arg2: memref<384x1536xbf16, #tpu.memory_space<vmem>>, %arg3: memref<1536x384xbf16, #tpu.memory_space<vmem>>, %arg4: memref<16x384xf32, #tpu.memory_space<vmem>>) attributes {dimension_semantics = [#tpu.dimension_semantics<parallel>], iteration_bounds = array<i64: 1>, scalar_prefetch = 0 : i64, scratch_operands = 0 : i64, tpu.core_type = #tpu.core_type<tc>, window_params = [{transform_indices = @transform_0, window_bounds = array<i64: 16, 384>}, {pipeline_mode = #tpu.pipeline_mode<synchronous>, transform_indices = @transform_1, window_bounds = array<i64: 384, 1536>}, {pipeline_mode = #tpu.pipeline_mode<synchronous>, transform_indices = @transform_2, window_bounds = array<i64: 1536, 384>}, {transform_indices = @transform_3, window_bounds = array<i64: 16, 384>}]} {
    %c0 = arith.constant 0 : index
    %c0_0 = arith.constant 0 : index
    %0 = vector.load %arg1[%c0, %c0_0] : memref<16x384xbf16, #tpu.memory_space<vmem>>, vector<16x384xbf16>
    %c0_1 = arith.constant 0 : index
    %c0_2 = arith.constant 0 : index
    %1 = vector.load %arg2[%c0_1, %c0_2] : memref<384x1536xbf16, #tpu.memory_space<vmem>>, vector<384x1536xbf16>
    %cst = arith.constant dense<0.000000e+00> : vector<16x1536xf32>
    %2 = tpu.matmul %0, %1, %cst {dimension_numbers = #tpu.dot_dimension_numbers<[1], [0], [0], [1], [0, 0, 1, 1], [], []>} : vector<16x384xbf16>, vector<384x1536xbf16>, vector<16x1536xf32> -> vector<16x1536xf32>
    %cst_3 = arith.constant 0.000000e+00 : f32
    %3 = vector.broadcast %cst_3 : f32 to vector<16x1536xf32>
    %4 = arith.maximumf %2, %3 : vector<16x1536xf32>
    %5 = arith.truncf %4 : vector<16x1536xf32> to vector<16x1536xbf16>
    %c0_4 = arith.constant 0 : index
    %c0_5 = arith.constant 0 : index
    %6 = vector.load %arg3[%c0_4, %c0_5] : memref<1536x384xbf16, #tpu.memory_space<vmem>>, vector<1536x384xbf16>
    %cst_6 = arith.constant dense<0.000000e+00> : vector<16x384xf32>
    %7 = tpu.matmul %5, %6, %cst_6 {dimension_numbers = #tpu.dot_dimension_numbers<[1], [0], [0], [1], [0, 0, 1, 1], [], []>} : vector<16x1536xbf16>, vector<1536x384xbf16>, vector<16x384xf32> -> vector<16x384xf32>
    %c0_7 = arith.constant 0 : index
    %c0_8 = arith.constant 0 : index
    %8 = vector.load %arg4[%c0_7, %c0_8] : memref<16x384xf32, #tpu.memory_space<vmem>>, vector<16x384xf32>
    tpu.vector_store %arg4[%c0_7, %c0_8], %7 {strides = array<i32>} : memref<16x384xf32, #tpu.memory_space<vmem>>, vector<16x384xf32>,
    return
  }
  func.func @transform_0(%arg0: i32) -> (i32, i32) {
    %c0_i32 = arith.constant 0 : i32
    %c0_i32_0 = arith.constant 0 : i32
    return %arg0, %c0_i32 : i32, i32
  }
  func.func @transform_1(%arg0: i32) -> (i32, i32) {
    %c0_i32 = arith.constant 0 : i32
    %c0_i32_0 = arith.constant 0 : i32
    %c0_i32_1 = arith.constant 0 : i32
    return %c0_i32, %c0_i32_0 : i32, i32
  }
  func.func @transform_2(%arg0: i32) -> (i32, i32) {
    %c0_i32 = arith.constant 0 : i32
    %c0_i32_0 = arith.constant 0 : i32
    %c0_i32_1 = arith.constant 0 : i32
    return %c0_i32, %c0_i32_0 : i32, i32
  }
  func.func @transform_3(%arg0: i32) -> (i32, i32) {
    %c0_i32 = arith.constant 0 : i32
    %c0_i32_0 = arith.constant 0 : i32
    return %arg0, %c0_i32 : i32, i32
  }
}

module attributes {stable_mosaic.version = 11 : i64} {
  func.func @_ffn_kernel_single(%arg0: i32, %arg1: memref<16x384xbf16, #tpu.memory_space<vmem>>, %arg2: memref<384x1536xbf16, #tpu.memory_space<vmem>>, %arg3: memref<1536x384xbf16, #tpu.memory_space<vmem>>, %arg4: memref<16x384xf32, #tpu.memory_space<vmem>>) attributes {dimension_semantics = [#tpu.dimension_semantics<parallel>], iteration_bounds = array<i64: 1>, scalar_prefetch = 0 : i64, scratch_operands = 0 : i64, tpu.core_type = #tpu.core_type<tc>, window_params = [{transform_indices = @transform_0, window_bounds = array<i64: 16, 384>}, {pipeline_mode = #tpu.pipeline_mode<synchronous>, transform_indices = @transform_1, window_bounds = array<i64: 384, 1536>}, {pipeline_mode = #tpu.pipeline_mode<synchronous>, transform_indices = @transform_2, window_bounds = array<i64: 1536, 384>}, {transform_indices = @transform_3, window_bounds = array<i64: 16, 384>}]} {
    %c0 = arith.constant 0 : index
    %c0_0 = arith.constant 0 : index
    %0 = vector.load %arg1[%c0, %c0_0] : memref<16x384xbf16, #tpu.memory_space<vmem>>, vector<16x384xbf16>
    %c0_1 = arith.constant 0 : index
    %c0_2 = arith.constant 0 : index
    %1 = vector.load %arg2[%c0_1, %c0_2] : memref<384x1536xbf16, #tpu.memory_space<vmem>>, vector<384x1536xbf16>
    %cst = arith.constant dense<0.000000e+00> : vector<16x1536xf32>
    %2 = tpu.matmul %0, %1, %cst {dimension_numbers = #tpu.dot_dimension_numbers<[1], [0], [0], [1], [0, 0, 1, 1], [], []>} : vector<16x384xbf16>, vector<384x1536xbf16>, vector<16x1536xf32> -> vector<16x1536xf32>
    %cst_3 = arith.constant 0.000000e+00 : f32
    %3 = vector.broadcast %cst_3 : f32 to vector<16x1536xf32>
    %4 = arith.maximumf %2, %3 : vector<16x1536xf32>
    %5 = arith.truncf %4 : vector<16x1536xf32> to vector<16x1536xbf16>
    %c0_4 = arith.constant 0 : index
    %c0_5 = arith.constant 0 : index
    %6 = vector.load %arg3[%c0_4, %c0_5] : memref<1536x384xbf16, #tpu.memory_space<vmem>>, vector<1536x384xbf16>
    %cst_6 = arith.constant dense<0.000000e+00> : vector<16x384xf32>
    %7 = tpu.matmul %5, %6, %cst_6 {dimension_numbers = #tpu.dot_dimension_numbers<[1], [0], [0], [1], [0, 0, 1, 1], [], []>} : vector<16x1536xbf16>, vector<1536x384xbf16>, vector<16x384xf32> -> vector<16x384xf32>
    %c0_7 = arith.constant 0 : index
    %c0_8 = arith.constant 0 : index
    %8 = vector.load %arg4[%c0_7, %c0_8] : memref<16x384xf32, #tpu.memory_space<vmem>>, vector<16x384xf32>
    tpu.vector_store %arg4[%c0_7, %c0_8], %7 {strides = array<i32>} : memref<16x384xf32, #tpu.memory_space<vmem>>, vector<16x384xf32>,
    return
  }
  func.func @transform_0(%arg0: i32) -> (i32, i32) {
    %c0_i32 = arith.constant 0 : i32
    %c0_i32_0 = arith.constant 0 : i32
    return %arg0, %c0_i32 : i32, i32
  }
  func.func @transform_1(%arg0: i32) -> (i32, i32) {
    %c0_i32 = arith.constant 0 : i32
    %c0_i32_0 = arith.constant 0 : i32
    %c0_i32_1 = arith.constant 0 : i32
    return %c0_i32, %c0_i32_0 : i32, i32
  }
  func.func @transform_2(%arg0: i32) -> (i32, i32) {
    %c0_i32 = arith.constant 0 : i32
    %c0_i32_0 = arith.constant 0 : i32
    %c0_i32_1 = arith.constant 0 : i32
    return %c0_i32, %c0_i32_0 : i32, i32
  }
  func.func @transform_3(%arg0: i32) -> (i32, i32) {
    %c0_i32 = arith.constant 0 : i32
    %c0_i32_0 = arith.constant 0 : i32
    return %arg0, %c0_i32 : i32, i32
  }
}

</mosaic_0001>

<llo_original>
// kernel: tpu_custom_call.1
$region0: #{tpu_custom_call.1}
  #allocation0 [shape = 'u32[]', space=smem, size = 0x4, offset = 0x4, fixed_abs, tag = 'smem constant byte address 0x4 - core index']
  #allocation1 [shape = 'u32[144,128]{1,0:T(1,128)}', space=vmem, size = 0x12000, scoped, tag = 'internal scratch']
  %s0 = inlined_call_operand.hbm [shape: bf16[16,384], index: 0, kind: input, shape index: {}]
  %s1 = inlined_call_operand.hbm [shape: bf16[384,1536], index: 1, kind: input, shape index: {}]
  %s2 = inlined_call_operand.hbm [shape: bf16[1536,384], index: 2, kind: input, shape index: {}]
  %s3 = inlined_call_operand.hbm [shape: f32[16,384], index: 3, kind: output, shape index: {}]
  %s4 = sld [smem:[#allocation0]]
  $region34: #{tpu_custom_call.1} parent=0
    _
  %s6 = ssub.s32 1, %s4
  %s7 = scalar_select 0, %s6, %s4
  $region1: #{tpu_custom_call.1} parent=0
    #allocation2 [shape = 'u8[12288]{0}', space=vmem, size = 0x3000, scoped, tag = 'input window, operand 0, single buffered']
    #allocation3 [shape = 's32[1]{0}', space=sflag, size = 0x4, scoped, tag = 'scoped memory for tpu_custom_call.1']
    #allocation4 [shape = 's32[1]{0}', space=sflag, size = 0x4, scoped, tag = 'scoped memory for tpu_custom_call.1']
    #allocation5 [shape = 'u8[1179648]{0}', space=vmem, size = 0x120000, scoped, tag = 'input window, operand 1, single buffered']
    #allocation6 [shape = 's32[1]{0}', space=sflag, size = 0x4, scoped, tag = 'scoped memory for tpu_custom_call.1']
    #allocation7 [shape = 'u8[1179648]{0}', space=vmem, size = 0x120000, scoped, tag = 'input window, operand 2, single buffered']
    #allocation8 [shape = 'u8[24576]{0}', space=vmem, size = 0x6000, scoped, tag = 'output window, operand 0, single buffered']
    %8 = vsyncpa [#allocation3], 0
    %9 = vsyncpa [#allocation6], 0
    %10 = vsyncpa [#allocation4], 0
    // Predicated region
    $region2: #{tpu_custom_call.1} parent=1 // pred_check
      _
    $region3: #{tpu_custom_call.1} parent=1 // pred_check_branch
      %12 = sbr.rel (0) target = $region5
    $region4: #{tpu_custom_call.1} parent=1 // pred_region
      %s14 = ssub.s32 384, 384
      %15 = vsyncadd [#allocation3], %s14
      %s16 = sshll.u32 [#allocation2], 4
      %s17 = int_to_ptr.vmem [resolvable:$true] %s16
      %22 = dma.hbm_to_vmem [thread:$0]  %s0, 384, %s17, [#allocation3], 192, 192, 12
    $region5: #{tpu_custom_call.1} parent=1 // pred_fallthru
      _
    // Predicated region
    $region6: #{tpu_custom_call.1} parent=1 // pred_check
      _
    $region7: #{tpu_custom_call.1} parent=1 // pred_check_branch
      %24 = sbr.rel (0) target = $region9
    $region8: #{tpu_custom_call.1} parent=1 // pred_region
      %s26 = ssub.s32 36864, 36864
      %27 = vsyncadd [#allocation6], %s26
      %s28 = sshll.u32 [#allocation5], 4
      %s29 = int_to_ptr.vmem [resolvable:$true] %s28
      %34 = dma.hbm_to_vmem [thread:$0]  %s1, 36864, %s29, [#allocation6], 768, 768, 48
    $region9: #{tpu_custom_call.1} parent=1 // pred_fallthru
      _
    // Predicated region
    $region10: #{tpu_custom_call.1} parent=1 // pred_check
      _
    $region11: #{tpu_custom_call.1} parent=1 // pred_check_branch
      %36 = sbr.rel (0) target = $region13
    $region12: #{tpu_custom_call.1} parent=1 // pred_region
      %s38 = ssub.s32 36864, 36864
      %39 = vsyncadd [#allocation6], %s38
      %s40 = sshll.u32 [#allocation7], 4
      %s41 = int_to_ptr.vmem [resolvable:$true] %s40
      %46 = dma.hbm_to_vmem [thread:$0]  %s2, 36864, %s41, [#allocation6], 192, 192, 12
    $region13: #{tpu_custom_call.1} parent=1 // pred_fallthru
      _
    // Predicated region
    $region14: #{tpu_custom_call.1} parent=1 // pred_check
      _
    $region15: #{tpu_custom_call.1} parent=1 // pred_check_branch
      %48 = sbr.rel (0) target = $region17
    $region16: #{tpu_custom_call.1} parent=1 // pred_region
      %49 = dma.done [#allocation3], 384
    $region17: #{tpu_custom_call.1} parent=1 // pred_fallthru
      _
    // Predicated region
    $region18: #{tpu_custom_call.1} parent=1 // pred_check
      _
    $region19: #{tpu_custom_call.1} parent=1 // pred_check_branch
      %51 = sbr.rel (0) target = $region21
    $region20: #{tpu_custom_call.1} parent=1 // pred_region
      %52 = dma.done [#allocation6], 36864
    $region21: #{tpu_custom_call.1} parent=1 // pred_fallthru
      _
    // Predicated region
    $region22: #{tpu_custom_call.1} parent=1 // pred_check
      _
    $region23: #{tpu_custom_call.1} parent=1 // pred_check_branch
      %54 = sbr.rel (0) target = $region25
    $region24: #{tpu_custom_call.1} parent=1 // pred_region
      %55 = dma.done [#allocation6], 36864
    $region25: #{tpu_custom_call.1} parent=1 // pred_fallthru
      _
    %v57 = vld [vmem:[#allocation2] sm:$0xff]
    %v58 = vld [vmem:[#allocation2 + $0x8] sm:$0xf]
    %v59 = vld [vmem:[#allocation2 + $0xc] sm:$0xff]
    %v60 = vld [vmem:[#allocation2 + $0x14] sm:$0xf]
    %v61 = vld [vmem:[#allocation5] sm:$0xff]
    %v62 = vld [vmem:[#allocation5 + $0x8] sm:$0xff]
    %v63 = vld [vmem:[#allocation5 + $0x10] sm:$0xff]
    %v64 = vld [vmem:[#allocation5 + $0x18] sm:$0xff]
    %v65 = vld [vmem:[#allocation5 + $0x20] sm:$0xff]
    %v66 = vld [vmem:[#allocation5 + $0x28] sm:$0xff]
    %v67 = vld [vmem:[#allocation5 + $0x30] sm:$0xff]
    %v68 = vld [vmem:[#allocation5 + $0x38] sm:$0xff]
    %v69 = vld [vmem:[#allocation5 + $0x40] sm:$0xff]
    %v70 = vld [vmem:[#allocation5 + $0x48] sm:$0xff]
    %v71 = vld [vmem:[#allocation5 + $0x50] sm:$0xff]
    %v72 = vld [vmem:[#allocation5 + $0x58] sm:$0xff]
    %v73 = vld [vmem:[#allocation5 + $0x60] sm:$0xff]
    %v74 = vld [vmem:[#allocation5 + $0x68] sm:$0xff]
    %v75 = vld [vmem:[#allocation5 + $0x70] sm:$0xff]
    %v76 = vld [vmem:[#allocation5 + $0x78] sm:$0xff]
    %v77 = vld [vmem:[#allocation5 + $0x80] sm:$0xff]
    %v78 = vld [vmem:[#allocation5 + $0x88] sm:$0xff]
    %v79 = vld [vmem:[#allocation5 + $0x90] sm:$0xff]
    %v80 = vld [vmem:[#allocation5 + $0x98] sm:$0xff]
    %v81 = vld [vmem:[#allocation5 + $0xa0] sm:$0xff]
    %v82 = vld [vmem:[#allocation5 + $0xa8] sm:$0xff]
    %v83 = vld [vmem:[#allocation5 + $0xb0] sm:$0xff]
    %v84 = vld [vmem:[#allocation5 + $0xb8] sm:$0xff]
    %v85 = vld [vmem:[#allocation5 + $0xc0] sm:$0xff]
    %v86 = vld [vmem:[#allocation5 + $0xc8] sm:$0xff]
    %v87 = vld [vmem:[#allocation5 + $0xd0] sm:$0xff]
    %v88 = vld [vmem:[#allocation5 + $0xd8] sm:$0xff]
    %v89 = vld [vmem:[#allocation5 + $0xe0] sm:$0xff]
    %v90 = vld [vmem:[#allocation5 + $0xe8] sm:$0xff]
    %v91 = vld [vmem:[#allocation5 + $0xf0] sm:$0xff]
    %v92 = vld [vmem:[#allocation5 + $0xf8] sm:$0xff]
    %v93 = vld [vmem:[#allocation5 + $0x100] sm:$0xff]
    %v94 = vld [vmem:[#allocation5 + $0x108] sm:$0xff]
    %v95 = vld [vmem:[#allocation5 + $0x110] sm:$0xff]
    %v96 = vld [vmem:[#allocation5 + $0x118] sm:$0xff]
    %v97 = vld [vmem:[#allocation5 + $0x120] sm:$0xff]
    %v98 = vld [vmem:[#allocation5 + $0x128] sm:$0xff]
    %v99 = vld [vmem:[#allocation5 + $0x130] sm:$0xff]
    %v100 = vld [vmem:[#allocation5 + $0x138] sm:$0xff]
    %v101 = vld [vmem:[#allocation5 + $0x140] sm:$0xff]
    %v102 = vld [vmem:[#allocation5 + $0x148] sm:$0xff]
    %v103 = vld [vmem:[#allocation5 + $0x150] sm:$0xff]
    %v104 = vld [vmem:[#allocation5 + $0x158] sm:$0xff]
    %v105 = vld [vmem:[#allocation5 + $0x160] sm:$0xff]
    %v106 = vld [vmem:[#allocation5 + $0x168] sm:$0xff]
    %v107 = vld [vmem:[#allocation5 + $0x170] sm:$0xff]
    %v108 = vld [vmem:[#allocation5 + $0x178] sm:$0xff]
    %v109 = vld [vmem:[#allocation5 + $0x180] sm:$0xff]
    %v110 = vld [vmem:[#allocation5 + $0x188] sm:$0xff]
    %v111 = vld [vmem:[#allocation5 + $0x190] sm:$0xff]
    %v112 = vld [vmem:[#allocation5 + $0x198] sm:$0xff]
    %v113 = vld [vmem:[#allocation5 + $0x1a0] sm:$0xff]
    %v114 = vld [vmem:[#allocation5 + $0x1a8] sm:$0xff]
    %v115 = vld [vmem:[#allocation5 + $0x1b0] sm:$0xff]
    %v116 = vld [vmem:[#allocation5 + $0x1b8] sm:$0xff]
    %v117 = vld [vmem:[#allocation5 + $0x1c0] sm:$0xff]
    %v118 = vld [vmem:[#allocation5 + $0x1c8] sm:$0xff]
    %v119 = vld [vmem:[#allocation5 + $0x1d0] sm:$0xff]
    %v120 = vld [vmem:[#allocation5 + $0x1d8] sm:$0xff]
    %v121 = vld [vmem:[#allocation5 + $0x1e0] sm:$0xff]
    %v122 = vld [vmem:[#allocation5 + $0x1e8] sm:$0xff]
    %v123 = vld [vmem:[#allocation5 + $0x1f0] sm:$0xff]
    %v124 = vld [vmem:[#allocation5 + $0x1f8] sm:$0xff]
    %v125 = vld [vmem:[#allocation5 + $0x200] sm:$0xff]
    %v126 = vld [vmem:[#allocation5 + $0x208] sm:$0xff]
    %v127 = vld [vmem:[#allocation5 + $0x210] sm:$0xff]
    %v128 = vld [vmem:[#allocation5 + $0x218] sm:$0xff]
    %v129 = vld [vmem:[#allocation5 + $0x220] sm:$0xff]
    %v130 = vld [vmem:[#allocation5 + $0x228] sm:$0xff]
    %v131 = vld [vmem:[#allocation5 + $0x230] sm:$0xff]
    %v132 = vld [vmem:[#allocation5 + $0x238] sm:$0xff]
    %v133 = vld [vmem:[#allocation5 + $0x240] sm:$0xff]
    %v134 = vld [vmem:[#allocation5 + $0x248] sm:$0xff]
    %v135 = vld [vmem:[#allocation5 + $0x250] sm:$0xff]
    %v136 = vld [vmem:[#allocation5 + $0x258] sm:$0xff]
    %v137 = vld [vmem:[#allocation5 + $0x260] sm:$0xff]
    %v138 = vld [vmem:[#allocation5 + $0x268] sm:$0xff]
    %v139 = vld [vmem:[#allocation5 + $0x270] sm:$0xff]
    %v140 = vld [vmem:[#allocation5 + $0x278] sm:$0xff]
    %v141 = vld [vmem:[#allocation5 + $0x280] sm:$0xff]
    %v142 = vld [vmem:[#allocation5 + $0x288] sm:$0xff]
    %v143 = vld [vmem:[#allocation5 + $0x290] sm:$0xff]
    %v144 = vld [vmem:[#allocation5 + $0x298] sm:$0xff]
    %v145 = vld [vmem:[#allocation5 + $0x2a0] sm:$0xff]
    %v146 = vld [vmem:[#allocation5 + $0x2a8] sm:$0xff]
    %v147 = vld [vmem:[#allocation5 + $0x2b0] sm:$0xff]
    %v148 = vld [vmem:[#allocation5 + $0x2b8] sm:$0xff]
    %v149 = vld [vmem:[#allocation5 + $0x2c0] sm:$0xff]
    %v150 = vld [vmem:[#allocation5 + $0x2c8] sm:$0xff]
    %v151 = vld [vmem:[#allocation5 + $0x2d0] sm:$0xff]
    %v152 = vld [vmem:[#allocation5 + $0x2d8] sm:$0xff]
    %v153 = vld [vmem:[#allocation5 + $0x2e0] sm:$0xff]
    %v154 = vld [vmem:[#allocation5 + $0x2e8] sm:$0xff]
    %v155 = vld [vmem:[#allocation5 + $0x2f0] sm:$0xff]
    %v156 = vld [vmem:[#allocation5 + $0x2f8] sm:$0xff]
    %v157 = vld [vmem:[#allocation5 + $0x300] sm:$0xff]
    %v158 = vld [vmem:[#allocation5 + $0x308] sm:$0xff]
    %v159 = vld [vmem:[#allocation5 + $0x310] sm:$0xff]
    %v160 = vld [vmem:[#allocation5 + $0x318] sm:$0xff]
    %v161 = vld [vmem:[#allocation5 + $0x320] sm:$0xff]
    %v162 = vld [vmem:[#allocation5 + $0x328] sm:$0xff]
    %v163 = vld [vmem:[#allocation5 + $0x330] sm:$0xff]
    %v164 = vld [vmem:[#allocation5 + $0x338] sm:$0xff]
    %v165 = vld [vmem:[#allocation5 + $0x340] sm:$0xff]
    %v166 = vld [vmem:[#allocation5 + $0x348] sm:$0xff]
    %v167 = vld [vmem:[#allocation5 + $0x350] sm:$0xff]
    %v168 = vld [vmem:[#allocation5 + $0x358] sm:$0xff]
    %v169 = vld [vmem:[#allocation5 + $0x360] sm:$0xff]
    %v170 = vld [vmem:[#allocation5 + $0x368] sm:$0xff]
    %v171 = vld [vmem:[#allocation5 + $0x370] sm:$0xff]
    %v172 = vld [vmem:[#allocation5 + $0x378] sm:$0xff]
    %v173 = vld [vmem:[#allocation5 + $0x380] sm:$0xff]
    %v174 = vld [vmem:[#allocation5 + $0x388] sm:$0xff]
    %v175 = vld [vmem:[#allocation5 + $0x390] sm:$0xff]
    %v176 = vld [vmem:[#allocation5 + $0x398] sm:$0xff]
    %v177 = vld [vmem:[#allocation5 + $0x3a0] sm:$0xff]
    %v178 = vld [vmem:[#allocation5 + $0x3a8] sm:$0xff]
    %v179 = vld [vmem:[#allocation5 + $0x3b0] sm:$0xff]
    %v180 = vld [vmem:[#allocation5 + $0x3b8] sm:$0xff]
    %v181 = vld [vmem:[#allocation5 + $0x3c0] sm:$0xff]
    %v182 = vld [vmem:[#allocation5 + $0x3c8] sm:$0xff]
    %v183 = vld [vmem:[#allocation5 + $0x3d0] sm:$0xff]
    %v184 = vld [vmem:[#allocation5 + $0x3d8] sm:$0xff]
    %v185 = vld [vmem:[#allocation5 + $0x3e0] sm:$0xff]
    %v186 = vld [vmem:[#allocation5 + $0x3e8] sm:$0xff]
    %v187 = vld [vmem:[#allocation5 + $0x3f0] sm:$0xff]
    %v188 = vld [vmem:[#allocation5 + $0x3f8] sm:$0xff]
    %v189 = vld [vmem:[#allocation5 + $0x400] sm:$0xff]
    %v190 = vld [vmem:[#allocation5 + $0x408] sm:$0xff]
    %v191 = vld [vmem:[#allocation5 + $0x410] sm:$0xff]
    %v192 = vld [vmem:[#allocation5 + $0x418] sm:$0xff]
    %v193 = vld [vmem:[#allocation5 + $0x420] sm:$0xff]
    %v194 = vld [vmem:[#allocation5 + $0x428] sm:$0xff]
    %v195 = vld [vmem:[#allocation5 + $0x430] sm:$0xff]
    %v196 = vld [vmem:[#allocation5 + $0x438] sm:$0xff]
    %v197 = vld [vmem:[#allocation5 + $0x440] sm:$0xff]
    %v198 = vld [vmem:[#allocation5 + $0x448] sm:$0xff]
    %v199 = vld [vmem:[#allocation5 + $0x450] sm:$0xff]
    %v200 = vld [vmem:[#allocation5 + $0x458] sm:$0xff]
    %v201 = vld [vmem:[#allocation5 + $0x460] sm:$0xff]
    %v202 = vld [vmem:[#allocation5 + $0x468] sm:$0xff]
    %v203 = vld [vmem:[#allocation5 + $0x470] sm:$0xff]
    %v204 = vld [vmem:[#allocation5 + $0x478] sm:$0xff]
    %v205 = vld [vmem:[#allocation5 + $0x480] sm:$0xff]
    %v206 = vld [vmem:[#allocation5 + $0x488] sm:$0xff]
    %v207 = vld [vmem:[#allocation5 + $0x490] sm:$0xff]
    %v208 = vld [vmem:[#allocation5 + $0x498] sm:$0xff]
    %v209 = vld [vmem:[#allocation5 + $0x4a0] sm:$0xff]
    %v210 = vld [vmem:[#allocation5 + $0x4a8] sm:$0xff]
    %v211 = vld [vmem:[#allocation5 + $0x4b0] sm:$0xff]
    %v212 = vld [vmem:[#allocation5 + $0x4b8] sm:$0xff]
    %v213 = vld [vmem:[#allocation5 + $0x4c0] sm:$0xff]
    %v214 = vld [vmem:[#allocation5 + $0x4c8] sm:$0xff]
    %v215 = vld [vmem:[#allocation5 + $0x4d0] sm:$0xff]
    %v216 = vld [vmem:[#allocation5 + $0x4d8] sm:$0xff]
    %v217 = vld [vmem:[#allocation5 + $0x4e0] sm:$0xff]
    %v218 = vld [vmem:[#allocation5 + $0x4e8] sm:$0xff]
    %v219 = vld [vmem:[#allocation5 + $0x4f0] sm:$0xff]
    %v220 = vld [vmem:[#allocation5 + $0x4f8] sm:$0xff]
    %v221 = vld [vmem:[#allocation5 + $0x500] sm:$0xff]
    %v222 = vld [vmem:[#allocation5 + $0x508] sm:$0xff]
    %v223 = vld [vmem:[#allocation5 + $0x510] sm:$0xff]
    %v224 = vld [vmem:[#allocation5 + $0x518] sm:$0xff]
    %v225 = vld [vmem:[#allocation5 + $0x520] sm:$0xff]
    %v226 = vld [vmem:[#allocation5 + $0x528] sm:$0xff]
    %v227 = vld [vmem:[#allocation5 + $0x530] sm:$0xff]
    %v228 = vld [vmem:[#allocation5 + $0x538] sm:$0xff]
    %v229 = vld [vmem:[#allocation5 + $0x540] sm:$0xff]
    %v230 = vld [vmem:[#allocation5 + $0x548] sm:$0xff]
    %v231 = vld [vmem:[#allocation5 + $0x550] sm:$0xff]
    %v232 = vld [vmem:[#allocation5 + $0x558] sm:$0xff]
    %v233 = vld [vmem:[#allocation5 + $0x560] sm:$0xff]
    %v234 = vld [vmem:[#allocation5 + $0x568] sm:$0xff]
    %v235 = vld [vmem:[#allocation5 + $0x570] sm:$0xff]
    %v236 = vld [vmem:[#allocation5 + $0x578] sm:$0xff]
    %v237 = vld [vmem:[#allocation5 + $0x580] sm:$0xff]
    %v238 = vld [vmem:[#allocation5 + $0x588] sm:$0xff]
    %v239 = vld [vmem:[#allocation5 + $0x590] sm:$0xff]
    %v240 = vld [vmem:[#allocation5 + $0x598] sm:$0xff]
    %v241 = vld [vmem:[#allocation5 + $0x5a0] sm:$0xff]
    %v242 = vld [vmem:[#allocation5 + $0x5a8] sm:$0xff]
    %v243 = vld [vmem:[#allocation5 + $0x5b0] sm:$0xff]
    %v244 = vld [vmem:[#allocation5 + $0x5b8] sm:$0xff]
    %v245 = vld [vmem:[#allocation5 + $0x5c0] sm:$0xff]
    %v246 = vld [vmem:[#allocation5 + $0x5c8] sm:$0xff]
    %v247 = vld [vmem:[#allocation5 + $0x5d0] sm:$0xff]
    %v248 = vld [vmem:[#allocation5 + $0x5d8] sm:$0xff]
    %v249 = vld [vmem:[#allocation5 + $0x5e0] sm:$0xff]
    %v250 = vld [vmem:[#allocation5 + $0x5e8] sm:$0xff]
    %v251 = vld [vmem:[#allocation5 + $0x5f0] sm:$0xff]
    %v252 = vld [vmem:[#allocation5 + $0x5f8] sm:$0xff]
    %v253 = vld [vmem:[#allocation5 + $0x600] sm:$0xff]
    %v254 = vld [vmem:[#allocation5 + $0x608] sm:$0xff]
    %v255 = vld [vmem:[#allocation5 + $0x610] sm:$0xff]
    %v256 = vld [vmem:[#allocation5 + $0x618] sm:$0xff]
    %v257 = vld [vmem:[#allocation5 + $0x620] sm:$0xff]
    %v258 = vld [vmem:[#allocation5 + $0x628] sm:$0xff]
    %v259 = vld [vmem:[#allocation5 + $0x630] sm:$0xff]
    %v260 = vld [vmem:[#allocation5 + $0x638] sm:$0xff]
    %v261 = vld [vmem:[#allocation5 + $0x640] sm:$0xff]
    %v262 = vld [vmem:[#allocation5 + $0x648] sm:$0xff]
    %v263 = vld [vmem:[#allocation5 + $0x650] sm:$0xff]
    %v264 = vld [vmem:[#allocation5 + $0x658] sm:$0xff]
    %v265 = vld [vmem:[#allocation5 + $0x660] sm:$0xff]
    %v266 = vld [vmem:[#allocation5 + $0x668] sm:$0xff]
    %v267 = vld [vmem:[#allocation5 + $0x670] sm:$0xff]
    %v268 = vld [vmem:[#allocation5 + $0x678] sm:$0xff]
    %v269 = vld [vmem:[#allocation5 + $0x680] sm:$0xff]
    %v270 = vld [vmem:[#allocation5 + $0x688] sm:$0xff]
    %v271 = vld [vmem:[#allocation5 + $0x690] sm:$0xff]
    %v272 = vld [vmem:[#allocation5 + $0x698] sm:$0xff]
    %v273 = vld [vmem:[#allocation5 + $0x6a0] sm:$0xff]
    %v274 = vld [vmem:[#allocation5 + $0x6a8] sm:$0xff]
    %v275 = vld [vmem:[#allocation5 + $0x6b0] sm:$0xff]
    %v276 = vld [vmem:[#allocation5 + $0x6b8] sm:$0xff]
    %v277 = vld [vmem:[#allocation5 + $0x6c0] sm:$0xff]
    %v278 = vld [vmem:[#allocation5 + $0x6c8] sm:$0xff]
    %v279 = vld [vmem:[#allocation5 + $0x6d0] sm:$0xff]
    %v280 = vld [vmem:[#allocation5 + $0x6d8] sm:$0xff]
    %v281 = vld [vmem:[#allocation5 + $0x6e0] sm:$0xff]
    %v282 = vld [vmem:[#allocation5 + $0x6e8] sm:$0xff]
    %v283 = vld [vmem:[#allocation5 + $0x6f0] sm:$0xff]
    %v284 = vld [vmem:[#allocation5 + $0x6f8] sm:$0xff]
    %v285 = vld [vmem:[#allocation5 + $0x700] sm:$0xff]
    %v286 = vld [vmem:[#allocation5 + $0x708] sm:$0xff]
    %v287 = vld [vmem:[#allocation5 + $0x710] sm:$0xff]
    %v288 = vld [vmem:[#allocation5 + $0x718] sm:$0xff]
    %v289 = vld [vmem:[#allocation5 + $0x720] sm:$0xff]
    %v290 = vld [vmem:[#allocation5 + $0x728] sm:$0xff]
    %v291 = vld [vmem:[#allocation5 + $0x730] sm:$0xff]
    %v292 = vld [vmem:[#allocation5 + $0x738] sm:$0xff]
    %v293 = vld [vmem:[#allocation5 + $0x740] sm:$0xff]
    %v294 = vld [vmem:[#allocation5 + $0x748] sm:$0xff]
    %v295 = vld [vmem:[#allocation5 + $0x750] sm:$0xff]
    %v296 = vld [vmem:[#allocation5 + $0x758] sm:$0xff]
    %v297 = vld [vmem:[#allocation5 + $0x760] sm:$0xff]
    %v298 = vld [vmem:[#allocation5 + $0x768] sm:$0xff]
    %v299 = vld [vmem:[#allocation5 + $0x770] sm:$0xff]
    %v300 = vld [vmem:[#allocation5 + $0x778] sm:$0xff]
    %v301 = vld [vmem:[#allocation5 + $0x780] sm:$0xff]
    %v302 = vld [vmem:[#allocation5 + $0x788] sm:$0xff]
    %v303 = vld [vmem:[#allocation5 + $0x790] sm:$0xff]
    %v304 = vld [vmem:[#allocation5 + $0x798] sm:$0xff]
    %v305 = vld [vmem:[#allocation5 + $0x7a0] sm:$0xff]
    %v306 = vld [vmem:[#allocation5 + $0x7a8] sm:$0xff]
    %v307 = vld [vmem:[#allocation5 + $0x7b0] sm:$0xff]
    %v308 = vld [vmem:[#allocation5 + $0x7b8] sm:$0xff]
    %v309 = vld [vmem:[#allocation5 + $0x7c0] sm:$0xff]
    %v310 = vld [vmem:[#allocation5 + $0x7c8] sm:$0xff]
    %v311 = vld [vmem:[#allocation5 + $0x7d0] sm:$0xff]
    %v312 = vld [vmem:[#allocation5 + $0x7d8] sm:$0xff]
    %v313 = vld [vmem:[#allocation5 + $0x7e0] sm:$0xff]
    %v314 = vld [vmem:[#allocation5 + $0x7e8] sm:$0xff]
    %v315 = vld [vmem:[#allocation5 + $0x7f0] sm:$0xff]
    %v316 = vld [vmem:[#allocation5 + $0x7f8] sm:$0xff]
    %v317 = vld [vmem:[#allocation5 + $0x800] sm:$0xff]
    %v318 = vld [vmem:[#allocation5 + $0x808] sm:$0xff]
    %v319 = vld [vmem:[#allocation5 + $0x810] sm:$0xff]
    %v320 = vld [vmem:[#allocation5 + $0x818] sm:$0xff]
    %v321 = vld [vmem:[#allocation5 + $0x820] sm:$0xff]
    %v322 = vld [vmem:[#allocation5 + $0x828] sm:$0xff]
    %v323 = vld [vmem:[#allocation5 + $0x830] sm:$0xff]
    %v324 = vld [vmem:[#allocation5 + $0x838] sm:$0xff]
    %v325 = vld [vmem:[#allocation5 + $0x840] sm:$0xff]
    %v326 = vld [vmem:[#allocation5 + $0x848] sm:$0xff]
    %v327 = vld [vmem:[#allocation5 + $0x850] sm:$0xff]
    %v328 = vld [vmem:[#allocation5 + $0x858] sm:$0xff]
    %v329 = vld [vmem:[#allocation5 + $0x860] sm:$0xff]
    %v330 = vld [vmem:[#allocation5 + $0x868] sm:$0xff]
    %v331 = vld [vmem:[#allocation5 + $0x870] sm:$0xff]
    %v332 = vld [vmem:[#allocation5 + $0x878] sm:$0xff]
    %v333 = vld [vmem:[#allocation5 + $0x880] sm:$0xff]
    %v334 = vld [vmem:[#allocation5 + $0x888] sm:$0xff]
    %v335 = vld [vmem:[#allocation5 + $0x890] sm:$0xff]
    %v336 = vld [vmem:[#allocation5 + $0x898] sm:$0xff]
    %v337 = vld [vmem:[#allocation5 + $0x8a0] sm:$0xff]
    %v338 = vld [vmem:[#allocation5 + $0x8a8] sm:$0xff]
    %v339 = vld [vmem:[#allocation5 + $0x8b0] sm:$0xff]
    %v340 = vld [vmem:[#allocation5 + $0x8b8] sm:$0xff]
    %v341 = vld [vmem:[#allocation5 + $0x8c0] sm:$0xff]
    %v342 = vld [vmem:[#allocation5 + $0x8c8] sm:$0xff]
    %v343 = vld [vmem:[#allocation5 + $0x8d0] sm:$0xff]
    %v344 = vld [vmem:[#allocation5 + $0x8d8] sm:$0xff]
    %v345 = vld [vmem:[#allocation5 + $0x8e0] sm:$0xff]
    %v346 = vld [vmem:[#allocation5 + $0x8e8] sm:$0xff]
    %v347 = vld [vmem:[#allocation5 + $0x8f0] sm:$0xff]
    %v348 = vld [vmem:[#allocation5 + $0x8f8] sm:$0xff]
    %v353 = vunpack.c.l.b16 %v57
    %v354 = vunpack.c.h.b16 %v57
    %v355 = vunpack.c.l.b16 %v58
    %v356 = vunpack.c.l.b16 %v59
    %v357 = vunpack.c.h.b16 %v59
    %v358 = vunpack.c.l.b16 %v60
    %v359 = vpack.c.b16 %v356, %v353
    %v360 = vpack.c.b16 %v357, %v354
    %v361 = vpack.c.b16 %v358, %v355
    %v653 = vunpack.c.l.b16 %v61
    %v654 = vunpack.c.h.b16 %v61
    %v655 = vunpack.c.l.b16 %v62
    %v656 = vunpack.c.h.b16 %v62
    %v657 = vunpack.c.l.b16 %v63
    %v658 = vunpack.c.h.b16 %v63
    %v659 = vunpack.c.l.b16 %v64
    %v660 = vunpack.c.h.b16 %v64
    %v661 = vunpack.c.l.b16 %v65
    %v662 = vunpack.c.h.b16 %v65
    %v663 = vunpack.c.l.b16 %v66
    %v664 = vunpack.c.h.b16 %v66
    %v665 = vunpack.c.l.b16 %v67
    %v666 = vunpack.c.h.b16 %v67
    %v667 = vunpack.c.l.b16 %v68
    %v668 = vunpack.c.h.b16 %v68
    %v669 = vunpack.c.l.b16 %v69
    %v670 = vunpack.c.h.b16 %v69
    %v671 = vunpack.c.l.b16 %v70
    %v672 = vunpack.c.h.b16 %v70
    %v673 = vunpack.c.l.b16 %v71
    %v674 = vunpack.c.h.b16 %v71
    %v675 = vunpack.c.l.b16 %v72
    %v676 = vunpack.c.h.b16 %v72
    %v677 = vunpack.c.l.b16 %v73
    %v678 = vunpack.c.h.b16 %v73
    %v679 = vunpack.c.l.b16 %v74
    %v680 = vunpack.c.h.b16 %v74
    %v681 = vunpack.c.l.b16 %v75
    %v682 = vunpack.c.h.b16 %v75
    %v683 = vunpack.c.l.b16 %v76
    %v684 = vunpack.c.h.b16 %v76
    %v685 = vunpack.c.l.b16 %v77
    %v686 = vunpack.c.h.b16 %v77
    %v687 = vunpack.c.l.b16 %v78
    %v688 = vunpack.c.h.b16 %v78
    %v689 = vunpack.c.l.b16 %v79
    %v690 = vunpack.c.h.b16 %v79
    %v691 = vunpack.c.l.b16 %v80
    %v692 = vunpack.c.h.b16 %v80
    %v693 = vunpack.c.l.b16 %v81
    %v694 = vunpack.c.h.b16 %v81
    %v695 = vunpack.c.l.b16 %v82
    %v696 = vunpack.c.h.b16 %v82
    %v697 = vunpack.c.l.b16 %v83
    %v698 = vunpack.c.h.b16 %v83
    %v699 = vunpack.c.l.b16 %v84
    %v700 = vunpack.c.h.b16 %v84
    %v701 = vunpack.c.l.b16 %v85
    %v702 = vunpack.c.h.b16 %v85
    %v703 = vunpack.c.l.b16 %v86
    %v704 = vunpack.c.h.b16 %v86
    %v705 = vunpack.c.l.b16 %v87
    %v706 = vunpack.c.h.b16 %v87
    %v707 = vunpack.c.l.b16 %v88
    %v708 = vunpack.c.h.b16 %v88
    %v709 = vunpack.c.l.b16 %v89
    %v710 = vunpack.c.h.b16 %v89
    %v711 = vunpack.c.l.b16 %v90
    %v712 = vunpack.c.h.b16 %v90
    %v713 = vunpack.c.l.b16 %v91
    %v714 = vunpack.c.h.b16 %v91
    %v715 = vunpack.c.l.b16 %v92
    %v716 = vunpack.c.h.b16 %v92
    %v717 = vunpack.c.l.b16 %v93
    %v718 = vunpack.c.h.b16 %v93
    %v719 = vunpack.c.l.b16 %v94
    %v720 = vunpack.c.h.b16 %v94
    %v721 = vunpack.c.l.b16 %v95
    %v722 = vunpack.c.h.b16 %v95
    %v723 = vunpack.c.l.b16 %v96
    %v724 = vunpack.c.h.b16 %v96
    %v725 = vunpack.c.l.b16 %v97
    %v726 = vunpack.c.h.b16 %v97
    %v727 = vunpack.c.l.b16 %v98
    %v728 = vunpack.c.h.b16 %v98
    %v729 = vunpack.c.l.b16 %v99
    %v730 = vunpack.c.h.b16 %v99
    %v731 = vunpack.c.l.b16 %v100
    %v732 = vunpack.c.h.b16 %v100
    %v733 = vunpack.c.l.b16 %v101
    %v734 = vunpack.c.h.b16 %v101
    %v735 = vunpack.c.l.b16 %v102
    %v736 = vunpack.c.h.b16 %v102
    %v737 = vunpack.c.l.b16 %v103
    %v738 = vunpack.c.h.b16 %v103
    %v739 = vunpack.c.l.b16 %v104
    %v740 = vunpack.c.h.b16 %v104
    %v741 = vunpack.c.l.b16 %v105
    %v742 = vunpack.c.h.b16 %v105
    %v743 = vunpack.c.l.b16 %v106
    %v744 = vunpack.c.h.b16 %v106
    %v745 = vunpack.c.l.b16 %v107
    %v746 = vunpack.c.h.b16 %v107
    %v747 = vunpack.c.l.b16 %v108
    %v748 = vunpack.c.h.b16 %v108
    %v749 = vunpack.c.l.b16 %v109
    %v750 = vunpack.c.h.b16 %v109
    %v751 = vunpack.c.l.b16 %v110
    %v752 = vunpack.c.h.b16 %v110
    %v753 = vunpack.c.l.b16 %v111
    %v754 = vunpack.c.h.b16 %v111
    %v755 = vunpack.c.l.b16 %v112
    %v756 = vunpack.c.h.b16 %v112
    %v757 = vunpack.c.l.b16 %v113
    %v758 = vunpack.c.h.b16 %v113
    %v759 = vunpack.c.l.b16 %v114
    %v760 = vunpack.c.h.b16 %v114
    %v761 = vunpack.c.l.b16 %v115
    %v762 = vunpack.c.h.b16 %v115
    %v763 = vunpack.c.l.b16 %v116
    %v764 = vunpack.c.h.b16 %v116
    %v765 = vunpack.c.l.b16 %v117
    %v766 = vunpack.c.h.b16 %v117
    %v767 = vunpack.c.l.b16 %v118
    %v768 = vunpack.c.h.b16 %v118
    %v769 = vunpack.c.l.b16 %v119
    %v770 = vunpack.c.h.b16 %v119
    %v771 = vunpack.c.l.b16 %v120
    %v772 = vunpack.c.h.b16 %v120
    %v773 = vunpack.c.l.b16 %v121
    %v774 = vunpack.c.h.b16 %v121
    %v775 = vunpack.c.l.b16 %v122
    %v776 = vunpack.c.h.b16 %v122
    %v777 = vunpack.c.l.b16 %v123
    %v778 = vunpack.c.h.b16 %v123
    %v779 = vunpack.c.l.b16 %v124
    %v780 = vunpack.c.h.b16 %v124
    %v781 = vunpack.c.l.b16 %v125
    %v782 = vunpack.c.h.b16 %v125
    %v783 = vunpack.c.l.b16 %v126
    %v784 = vunpack.c.h.b16 %v126
    %v785 = vunpack.c.l.b16 %v127
    %v786 = vunpack.c.h.b16 %v127
    %v787 = vunpack.c.l.b16 %v128
    %v788 = vunpack.c.h.b16 %v128
    %v789 = vunpack.c.l.b16 %v129
    %v790 = vunpack.c.h.b16 %v129
    %v791 = vunpack.c.l.b16 %v130
    %v792 = vunpack.c.h.b16 %v130
    %v793 = vunpack.c.l.b16 %v131
    %v794 = vunpack.c.h.b16 %v131
    %v795 = vunpack.c.l.b16 %v132
    %v796 = vunpack.c.h.b16 %v132
    %v797 = vunpack.c.l.b16 %v133
    %v798 = vunpack.c.h.b16 %v133
    %v799 = vunpack.c.l.b16 %v134
    %v800 = vunpack.c.h.b16 %v134
    %v801 = vunpack.c.l.b16 %v135
    %v802 = vunpack.c.h.b16 %v135
    %v803 = vunpack.c.l.b16 %v136
    %v804 = vunpack.c.h.b16 %v136
    %v805 = vunpack.c.l.b16 %v137
    %v806 = vunpack.c.h.b16 %v137
    %v807 = vunpack.c.l.b16 %v138
    %v808 = vunpack.c.h.b16 %v138
    %v809 = vunpack.c.l.b16 %v139
    %v810 = vunpack.c.h.b16 %v139
    %v811 = vunpack.c.l.b16 %v140
    %v812 = vunpack.c.h.b16 %v140
    %v813 = vunpack.c.l.b16 %v141
    %v814 = vunpack.c.h.b16 %v141
    %v815 = vunpack.c.l.b16 %v142
    %v816 = vunpack.c.h.b16 %v142
    %v817 = vunpack.c.l.b16 %v143
    %v818 = vunpack.c.h.b16 %v143
    %v819 = vunpack.c.l.b16 %v144
    %v820 = vunpack.c.h.b16 %v144
    %v821 = vunpack.c.l.b16 %v145
    %v822 = vunpack.c.h.b16 %v145
    %v823 = vunpack.c.l.b16 %v146
    %v824 = vunpack.c.h.b16 %v146
    %v825 = vunpack.c.l.b16 %v147
    %v826 = vunpack.c.h.b16 %v147
    %v827 = vunpack.c.l.b16 %v148
    %v828 = vunpack.c.h.b16 %v148
    %v829 = vunpack.c.l.b16 %v149
    %v830 = vunpack.c.h.b16 %v149
    %v831 = vunpack.c.l.b16 %v150
    %v832 = vunpack.c.h.b16 %v150
    %v833 = vunpack.c.l.b16 %v151
    %v834 = vunpack.c.h.b16 %v151
    %v835 = vunpack.c.l.b16 %v152
    %v836 = vunpack.c.h.b16 %v152
    %v837 = vunpack.c.l.b16 %v153
    %v838 = vunpack.c.h.b16 %v153
    %v839 = vunpack.c.l.b16 %v154
    %v840 = vunpack.c.h.b16 %v154
    %v841 = vunpack.c.l.b16 %v155
    %v842 = vunpack.c.h.b16 %v155
    %v843 = vunpack.c.l.b16 %v156
    %v844 = vunpack.c.h.b16 %v156
    %v845 = vunpack.c.l.b16 %v157
    %v846 = vunpack.c.h.b16 %v157
    %v847 = vunpack.c.l.b16 %v158
    %v848 = vunpack.c.h.b16 %v158
    %v849 = vunpack.c.l.b16 %v159
    %v850 = vunpack.c.h.b16 %v159
    %v851 = vunpack.c.l.b16 %v160
    %v852 = vunpack.c.h.b16 %v160
    %v853 = vunpack.c.l.b16 %v161
    %v854 = vunpack.c.h.b16 %v161
    %v855 = vunpack.c.l.b16 %v162
    %v856 = vunpack.c.h.b16 %v162
    %v857 = vunpack.c.l.b16 %v163
    %v858 = vunpack.c.h.b16 %v163
    %v859 = vunpack.c.l.b16 %v164
    %v860 = vunpack.c.h.b16 %v164
    %v861 = vunpack.c.l.b16 %v165
    %v862 = vunpack.c.h.b16 %v165
    %v863 = vunpack.c.l.b16 %v166
    %v864 = vunpack.c.h.b16 %v166
    %v865 = vunpack.c.l.b16 %v167
    %v866 = vunpack.c.h.b16 %v167
    %v867 = vunpack.c.l.b16 %v168
    %v868 = vunpack.c.h.b16 %v168
    %v869 = vunpack.c.l.b16 %v169
    %v870 = vunpack.c.h.b16 %v169
    %v871 = vunpack.c.l.b16 %v170
    %v872 = vunpack.c.h.b16 %v170
    %v873 = vunpack.c.l.b16 %v171
    %v874 = vunpack.c.h.b16 %v171
    %v875 = vunpack.c.l.b16 %v172
    %v876 = vunpack.c.h.b16 %v172
    %v877 = vunpack.c.l.b16 %v173
    %v878 = vunpack.c.h.b16 %v173
    %v879 = vunpack.c.l.b16 %v174
    %v880 = vunpack.c.h.b16 %v174
    %v881 = vunpack.c.l.b16 %v175
    %v882 = vunpack.c.h.b16 %v175
    %v883 = vunpack.c.l.b16 %v176
    %v884 = vunpack.c.h.b16 %v176
    %v885 = vunpack.c.l.b16 %v177
    %v886 = vunpack.c.h.b16 %v177
    %v887 = vunpack.c.l.b16 %v178
    %v888 = vunpack.c.h.b16 %v178
    %v889 = vunpack.c.l.b16 %v179
    %v890 = vunpack.c.h.b16 %v179
    %v891 = vunpack.c.l.b16 %v180
    %v892 = vunpack.c.h.b16 %v180
    %v893 = vunpack.c.l.b16 %v181
    %v894 = vunpack.c.h.b16 %v181
    %v895 = vunpack.c.l.b16 %v182
    %v896 = vunpack.c.h.b16 %v182
    %v897 = vunpack.c.l.b16 %v183
    %v898 = vunpack.c.h.b16 %v183
    %v899 = vunpack.c.l.b16 %v184
    %v900 = vunpack.c.h.b16 %v184
    %v901 = vunpack.c.l.b16 %v185
    %v902 = vunpack.c.h.b16 %v185
    %v903 = vunpack.c.l.b16 %v186
    %v904 = vunpack.c.h.b16 %v186
    %v905 = vunpack.c.l.b16 %v187
    %v906 = vunpack.c.h.b16 %v187
    %v907 = vunpack.c.l.b16 %v188
    %v908 = vunpack.c.h.b16 %v188
    %v909 = vunpack.c.l.b16 %v189
    %v910 = vunpack.c.h.b16 %v189
    %v911 = vunpack.c.l.b16 %v190
    %v912 = vunpack.c.h.b16 %v190
    %v913 = vunpack.c.l.b16 %v191
    %v914 = vunpack.c.h.b16 %v191
    %v915 = vunpack.c.l.b16 %v192
    %v916 = vunpack.c.h.b16 %v192
    %v917 = vunpack.c.l.b16 %v193
    %v918 = vunpack.c.h.b16 %v193
    %v919 = vunpack.c.l.b16 %v194
    %v920 = vunpack.c.h.b16 %v194
    %v921 = vunpack.c.l.b16 %v195
    %v922 = vunpack.c.h.b16 %v195
    %v923 = vunpack.c.l.b16 %v196
    %v924 = vunpack.c.h.b16 %v196
    %v925 = vunpack.c.l.b16 %v197
    %v926 = vunpack.c.h.b16 %v197
    %v927 = vunpack.c.l.b16 %v198
    %v928 = vunpack.c.h.b16 %v198
    %v929 = vunpack.c.l.b16 %v199
    %v930 = vunpack.c.h.b16 %v199
    %v931 = vunpack.c.l.b16 %v200
    %v932 = vunpack.c.h.b16 %v200
    %v933 = vunpack.c.l.b16 %v201
    %v934 = vunpack.c.h.b16 %v201
    %v935 = vunpack.c.l.b16 %v202
    %v936 = vunpack.c.h.b16 %v202
    %v937 = vunpack.c.l.b16 %v203
    %v938 = vunpack.c.h.b16 %v203
    %v939 = vunpack.c.l.b16 %v204
    %v940 = vunpack.c.h.b16 %v204
    %v941 = vunpack.c.l.b16 %v205
    %v942 = vunpack.c.h.b16 %v205
    %v943 = vunpack.c.l.b16 %v206
    %v944 = vunpack.c.h.b16 %v206
    %v945 = vunpack.c.l.b16 %v207
    %v946 = vunpack.c.h.b16 %v207
    %v947 = vunpack.c.l.b16 %v208
    %v948 = vunpack.c.h.b16 %v208
    %v949 = vunpack.c.l.b16 %v209
    %v950 = vunpack.c.h.b16 %v209
    %v951 = vunpack.c.l.b16 %v210
    %v952 = vunpack.c.h.b16 %v210
    %v953 = vunpack.c.l.b16 %v211
    %v954 = vunpack.c.h.b16 %v211
    %v955 = vunpack.c.l.b16 %v212
    %v956 = vunpack.c.h.b16 %v212
    %v957 = vunpack.c.l.b16 %v213
    %v958 = vunpack.c.h.b16 %v213
    %v959 = vunpack.c.l.b16 %v214
    %v960 = vunpack.c.h.b16 %v214
    %v961 = vunpack.c.l.b16 %v215
    %v962 = vunpack.c.h.b16 %v215
    %v963 = vunpack.c.l.b16 %v216
    %v964 = vunpack.c.h.b16 %v216
    %v965 = vunpack.c.l.b16 %v217
    %v966 = vunpack.c.h.b16 %v217
    %v967 = vunpack.c.l.b16 %v218
    %v968 = vunpack.c.h.b16 %v218
    %v969 = vunpack.c.l.b16 %v219
    %v970 = vunpack.c.h.b16 %v219
    %v971 = vunpack.c.l.b16 %v220
    %v972 = vunpack.c.h.b16 %v220
    %v973 = vunpack.c.l.b16 %v221
    %v974 = vunpack.c.h.b16 %v221
    %v975 = vunpack.c.l.b16 %v222
    %v976 = vunpack.c.h.b16 %v222
    %v977 = vunpack.c.l.b16 %v223
    %v978 = vunpack.c.h.b16 %v223
    %v979 = vunpack.c.l.b16 %v224
    %v980 = vunpack.c.h.b16 %v224
    %v981 = vunpack.c.l.b16 %v225
    %v982 = vunpack.c.h.b16 %v225
    %v983 = vunpack.c.l.b16 %v226
    %v984 = vunpack.c.h.b16 %v226
    %v985 = vunpack.c.l.b16 %v227
    %v986 = vunpack.c.h.b16 %v227
    %v987 = vunpack.c.l.b16 %v228
    %v988 = vunpack.c.h.b16 %v228
    %v989 = vunpack.c.l.b16 %v229
    %v990 = vunpack.c.h.b16 %v229
    %v991 = vunpack.c.l.b16 %v230
    %v992 = vunpack.c.h.b16 %v230
    %v993 = vunpack.c.l.b16 %v231
    %v994 = vunpack.c.h.b16 %v231
    %v995 = vunpack.c.l.b16 %v232
    %v996 = vunpack.c.h.b16 %v232
    %v997 = vunpack.c.l.b16 %v233
    %v998 = vunpack.c.h.b16 %v233
    %v999 = vunpack.c.l.b16 %v234
    %v1000 = vunpack.c.h.b16 %v234
    %v1001 = vunpack.c.l.b16 %v235
    %v1002 = vunpack.c.h.b16 %v235
    %v1003 = vunpack.c.l.b16 %v236
    %v1004 = vunpack.c.h.b16 %v236
    %v1005 = vunpack.c.l.b16 %v237
    %v1006 = vunpack.c.h.b16 %v237
    %v1007 = vunpack.c.l.b16 %v238
    %v1008 = vunpack.c.h.b16 %v238
    %v1009 = vunpack.c.l.b16 %v239
    %v1010 = vunpack.c.h.b16 %v239
    %v1011 = vunpack.c.l.b16 %v240
    %v1012 = vunpack.c.h.b16 %v240
    %v1013 = vunpack.c.l.b16 %v241
    %v1014 = vunpack.c.h.b16 %v241
    %v1015 = vunpack.c.l.b16 %v242
    %v1016 = vunpack.c.h.b16 %v242
    %v1017 = vunpack.c.l.b16 %v243
    %v1018 = vunpack.c.h.b16 %v243
    %v1019 = vunpack.c.l.b16 %v244
    %v1020 = vunpack.c.h.b16 %v244
    %v1021 = vunpack.c.l.b16 %v245
    %v1022 = vunpack.c.h.b16 %v245
    %v1023 = vunpack.c.l.b16 %v246
    %v1024 = vunpack.c.h.b16 %v246
    %v1025 = vunpack.c.l.b16 %v247
    %v1026 = vunpack.c.h.b16 %v247
    %v1027 = vunpack.c.l.b16 %v248
    %v1028 = vunpack.c.h.b16 %v248
    %v1029 = vunpack.c.l.b16 %v249
    %v1030 = vunpack.c.h.b16 %v249
    %v1031 = vunpack.c.l.b16 %v250
    %v1032 = vunpack.c.h.b16 %v250
    %v1033 = vunpack.c.l.b16 %v251
    %v1034 = vunpack.c.h.b16 %v251
    %v1035 = vunpack.c.l.b16 %v252
    %v1036 = vunpack.c.h.b16 %v252
    %v1037 = vunpack.c.l.b16 %v253
    %v1038 = vunpack.c.h.b16 %v253
    %v1039 = vunpack.c.l.b16 %v254
    %v1040 = vunpack.c.h.b16 %v254
    %v1041 = vunpack.c.l.b16 %v255
    %v1042 = vunpack.c.h.b16 %v255
    %v1043 = vunpack.c.l.b16 %v256
    %v1044 = vunpack.c.h.b16 %v256
    %v1045 = vunpack.c.l.b16 %v257
    %v1046 = vunpack.c.h.b16 %v257
    %v1047 = vunpack.c.l.b16 %v258
    %v1048 = vunpack.c.h.b16 %v258
    %v1049 = vunpack.c.l.b16 %v259
    %v1050 = vunpack.c.h.b16 %v259
    %v1051 = vunpack.c.l.b16 %v260
    %v1052 = vunpack.c.h.b16 %v260
    %v1053 = vunpack.c.l.b16 %v261
    %v1054 = vunpack.c.h.b16 %v261
    %v1055 = vunpack.c.l.b16 %v262
    %v1056 = vunpack.c.h.b16 %v262
    %v1057 = vunpack.c.l.b16 %v263
    %v1058 = vunpack.c.h.b16 %v263
    %v1059 = vunpack.c.l.b16 %v264
    %v1060 = vunpack.c.h.b16 %v264
    %v1061 = vunpack.c.l.b16 %v265
    %v1062 = vunpack.c.h.b16 %v265
    %v1063 = vunpack.c.l.b16 %v266
    %v1064 = vunpack.c.h.b16 %v266
    %v1065 = vunpack.c.l.b16 %v267
    %v1066 = vunpack.c.h.b16 %v267
    %v1067 = vunpack.c.l.b16 %v268
    %v1068 = vunpack.c.h.b16 %v268
    %v1069 = vunpack.c.l.b16 %v269
    %v1070 = vunpack.c.h.b16 %v269
    %v1071 = vunpack.c.l.b16 %v270
    %v1072 = vunpack.c.h.b16 %v270
    %v1073 = vunpack.c.l.b16 %v271
    %v1074 = vunpack.c.h.b16 %v271
    %v1075 = vunpack.c.l.b16 %v272
    %v1076 = vunpack.c.h.b16 %v272
    %v1077 = vunpack.c.l.b16 %v273
    %v1078 = vunpack.c.h.b16 %v273
    %v1079 = vunpack.c.l.b16 %v274
    %v1080 = vunpack.c.h.b16 %v274
    %v1081 = vunpack.c.l.b16 %v275
    %v1082 = vunpack.c.h.b16 %v275
    %v1083 = vunpack.c.l.b16 %v276
    %v1084 = vunpack.c.h.b16 %v276
    %v1085 = vunpack.c.l.b16 %v277
    %v1086 = vunpack.c.h.b16 %v277
    %v1087 = vunpack.c.l.b16 %v278
    %v1088 = vunpack.c.h.b16 %v278
    %v1089 = vunpack.c.l.b16 %v279
    %v1090 = vunpack.c.h.b16 %v279
    %v1091 = vunpack.c.l.b16 %v280
    %v1092 = vunpack.c.h.b16 %v280
    %v1093 = vunpack.c.l.b16 %v281
    %v1094 = vunpack.c.h.b16 %v281
    %v1095 = vunpack.c.l.b16 %v282
    %v1096 = vunpack.c.h.b16 %v282
    %v1097 = vunpack.c.l.b16 %v283
    %v1098 = vunpack.c.h.b16 %v283
    %v1099 = vunpack.c.l.b16 %v284
    %v1100 = vunpack.c.h.b16 %v284
    %v1101 = vunpack.c.l.b16 %v285
    %v1102 = vunpack.c.h.b16 %v285
    %v1103 = vunpack.c.l.b16 %v286
    %v1104 = vunpack.c.h.b16 %v286
    %v1105 = vunpack.c.l.b16 %v287
    %v1106 = vunpack.c.h.b16 %v287
    %v1107 = vunpack.c.l.b16 %v288
    %v1108 = vunpack.c.h.b16 %v288
    %v1109 = vunpack.c.l.b16 %v289
    %v1110 = vunpack.c.h.b16 %v289
    %v1111 = vunpack.c.l.b16 %v290
    %v1112 = vunpack.c.h.b16 %v290
    %v1113 = vunpack.c.l.b16 %v291
    %v1114 = vunpack.c.h.b16 %v291
    %v1115 = vunpack.c.l.b16 %v292
    %v1116 = vunpack.c.h.b16 %v292
    %v1117 = vunpack.c.l.b16 %v293
    %v1118 = vunpack.c.h.b16 %v293
    %v1119 = vunpack.c.l.b16 %v294
    %v1120 = vunpack.c.h.b16 %v294
    %v1121 = vunpack.c.l.b16 %v295
    %v1122 = vunpack.c.h.b16 %v295
    %v1123 = vunpack.c.l.b16 %v296
    %v1124 = vunpack.c.h.b16 %v296
    %v1125 = vunpack.c.l.b16 %v297
    %v1126 = vunpack.c.h.b16 %v297
    %v1127 = vunpack.c.l.b16 %v298
    %v1128 = vunpack.c.h.b16 %v298
    %v1129 = vunpack.c.l.b16 %v299
    %v1130 = vunpack.c.h.b16 %v299
    %v1131 = vunpack.c.l.b16 %v300
    %v1132 = vunpack.c.h.b16 %v300
    %v1133 = vunpack.c.l.b16 %v301
    %v1134 = vunpack.c.h.b16 %v301
    %v1135 = vunpack.c.l.b16 %v302
    %v1136 = vunpack.c.h.b16 %v302
    %v1137 = vunpack.c.l.b16 %v303
    %v1138 = vunpack.c.h.b16 %v303
    %v1139 = vunpack.c.l.b16 %v304
    %v1140 = vunpack.c.h.b16 %v304
    %v1141 = vunpack.c.l.b16 %v305
    %v1142 = vunpack.c.h.b16 %v305
    %v1143 = vunpack.c.l.b16 %v306
    %v1144 = vunpack.c.h.b16 %v306
    %v1145 = vunpack.c.l.b16 %v307
    %v1146 = vunpack.c.h.b16 %v307
    %v1147 = vunpack.c.l.b16 %v308
    %v1148 = vunpack.c.h.b16 %v308
    %v1149 = vunpack.c.l.b16 %v309
    %v1150 = vunpack.c.h.b16 %v309
    %v1151 = vunpack.c.l.b16 %v310
    %v1152 = vunpack.c.h.b16 %v310
    %v1153 = vunpack.c.l.b16 %v311
    %v1154 = vunpack.c.h.b16 %v311
    %v1155 = vunpack.c.l.b16 %v312
    %v1156 = vunpack.c.h.b16 %v312
    %v1157 = vunpack.c.l.b16 %v313
    %v1158 = vunpack.c.h.b16 %v313
    %v1159 = vunpack.c.l.b16 %v314
    %v1160 = vunpack.c.h.b16 %v314
    %v1161 = vunpack.c.l.b16 %v315
    %v1162 = vunpack.c.h.b16 %v315
    %v1163 = vunpack.c.l.b16 %v316
    %v1164 = vunpack.c.h.b16 %v316
    %v1165 = vunpack.c.l.b16 %v317
    %v1166 = vunpack.c.h.b16 %v317
    %v1167 = vunpack.c.l.b16 %v318
    %v1168 = vunpack.c.h.b16 %v318
    %v1169 = vunpack.c.l.b16 %v319
    %v1170 = vunpack.c.h.b16 %v319
    %v1171 = vunpack.c.l.b16 %v320
    %v1172 = vunpack.c.h.b16 %v320
    %v1173 = vunpack.c.l.b16 %v321
    %v1174 = vunpack.c.h.b16 %v321
    %v1175 = vunpack.c.l.b16 %v322
    %v1176 = vunpack.c.h.b16 %v322
    %v1177 = vunpack.c.l.b16 %v323
    %v1178 = vunpack.c.h.b16 %v323
    %v1179 = vunpack.c.l.b16 %v324
    %v1180 = vunpack.c.h.b16 %v324
    %v1181 = vunpack.c.l.b16 %v325
    %v1182 = vunpack.c.h.b16 %v325
    %v1183 = vunpack.c.l.b16 %v326
    %v1184 = vunpack.c.h.b16 %v326
    %v1185 = vunpack.c.l.b16 %v327
    %v1186 = vunpack.c.h.b16 %v327
    %v1187 = vunpack.c.l.b16 %v328
    %v1188 = vunpack.c.h.b16 %v328
    %v1189 = vunpack.c.l.b16 %v329
    %v1190 = vunpack.c.h.b16 %v329
    %v1191 = vunpack.c.l.b16 %v330
    %v1192 = vunpack.c.h.b16 %v330
    %v1193 = vunpack.c.l.b16 %v331
    %v1194 = vunpack.c.h.b16 %v331
    %v1195 = vunpack.c.l.b16 %v332
    %v1196 = vunpack.c.h.b16 %v332
    %v1197 = vunpack.c.l.b16 %v333
    %v1198 = vunpack.c.h.b16 %v333
    %v1199 = vunpack.c.l.b16 %v334
    %v1200 = vunpack.c.h.b16 %v334
    %v1201 = vunpack.c.l.b16 %v335
    %v1202 = vunpack.c.h.b16 %v335
    %v1203 = vunpack.c.l.b16 %v336
    %v1204 = vunpack.c.h.b16 %v336
    %v1205 = vunpack.c.l.b16 %v337
    %v1206 = vunpack.c.h.b16 %v337
    %v1207 = vunpack.c.l.b16 %v338
    %v1208 = vunpack.c.h.b16 %v338
    %v1209 = vunpack.c.l.b16 %v339
    %v1210 = vunpack.c.h.b16 %v339
    %v1211 = vunpack.c.l.b16 %v340
    %v1212 = vunpack.c.h.b16 %v340
    %v1213 = vunpack.c.l.b16 %v341
    %v1214 = vunpack.c.h.b16 %v341
    %v1215 = vunpack.c.l.b16 %v342
    %v1216 = vunpack.c.h.b16 %v342
    %v1217 = vunpack.c.l.b16 %v343
    %v1218 = vunpack.c.h.b16 %v343
    %v1219 = vunpack.c.l.b16 %v344
    %v1220 = vunpack.c.h.b16 %v344
    %v1221 = vunpack.c.l.b16 %v345
    %v1222 = vunpack.c.h.b16 %v345
    %v1223 = vunpack.c.l.b16 %v346
    %v1224 = vunpack.c.h.b16 %v346
    %v1225 = vunpack.c.l.b16 %v347
    %v1226 = vunpack.c.h.b16 %v347
    %v1227 = vunpack.c.l.b16 %v348
    %v1228 = vunpack.c.h.b16 %v348
    %v1229 = vpack.c.b16 %v665, %v653
    %v1230 = vpack.c.b16 %v666, %v654
    %v1231 = vpack.c.b16 %v667, %v655
    %v1232 = vpack.c.b16 %v668, %v656
    %v1233 = vpack.c.b16 %v669, %v657
    %v1234 = vpack.c.b16 %v670, %v658
    %v1235 = vpack.c.b16 %v671, %v659
    %v1236 = vpack.c.b16 %v672, %v660
    %v1237 = vpack.c.b16 %v673, %v661
    %v1238 = vpack.c.b16 %v674, %v662
    %v1239 = vpack.c.b16 %v675, %v663
    %v1240 = vpack.c.b16 %v676, %v664
    %v1241 = vpack.c.b16 %v689, %v677
    %v1242 = vpack.c.b16 %v690, %v678
    %v1243 = vpack.c.b16 %v691, %v679
    %v1244 = vpack.c.b16 %v692, %v680
    %v1245 = vpack.c.b16 %v693, %v681
    %v1246 = vpack.c.b16 %v694, %v682
    %v1247 = vpack.c.b16 %v695, %v683
    %v1248 = vpack.c.b16 %v696, %v684
    %v1249 = vpack.c.b16 %v697, %v685
    %v1250 = vpack.c.b16 %v698, %v686
    %v1251 = vpack.c.b16 %v699, %v687
    %v1252 = vpack.c.b16 %v700, %v688
    %v1253 = vpack.c.b16 %v713, %v701
    %v1254 = vpack.c.b16 %v714, %v702
    %v1255 = vpack.c.b16 %v715, %v703
    %v1256 = vpack.c.b16 %v716, %v704
    %v1257 = vpack.c.b16 %v717, %v705
    %v1258 = vpack.c.b16 %v718, %v706
    %v1259 = vpack.c.b16 %v719, %v707
    %v1260 = vpack.c.b16 %v720, %v708
    %v1261 = vpack.c.b16 %v721, %v709
    %v1262 = vpack.c.b16 %v722, %v710
    %v1263 = vpack.c.b16 %v723, %v711
    %v1264 = vpack.c.b16 %v724, %v712
    %v1265 = vpack.c.b16 %v737, %v725
    %v1266 = vpack.c.b16 %v738, %v726
    %v1267 = vpack.c.b16 %v739, %v727
    %v1268 = vpack.c.b16 %v740, %v728
    %v1269 = vpack.c.b16 %v741, %v729
    %v1270 = vpack.c.b16 %v742, %v730
    %v1271 = vpack.c.b16 %v743, %v731
    %v1272 = vpack.c.b16 %v744, %v732
    %v1273 = vpack.c.b16 %v745, %v733
    %v1274 = vpack.c.b16 %v746, %v734
    %v1275 = vpack.c.b16 %v747, %v735
    %v1276 = vpack.c.b16 %v748, %v736
    %v1277 = vpack.c.b16 %v761, %v749
    %v1278 = vpack.c.b16 %v762, %v750
    %v1279 = vpack.c.b16 %v763, %v751
    %v1280 = vpack.c.b16 %v764, %v752
    %v1281 = vpack.c.b16 %v765, %v753
    %v1282 = vpack.c.b16 %v766, %v754
    %v1283 = vpack.c.b16 %v767, %v755
    %v1284 = vpack.c.b16 %v768, %v756
    %v1285 = vpack.c.b16 %v769, %v757
    %v1286 = vpack.c.b16 %v770, %v758
    %v1287 = vpack.c.b16 %v771, %v759
    %v1288 = vpack.c.b16 %v772, %v760
    %v1289 = vpack.c.b16 %v785, %v773
    %v1290 = vpack.c.b16 %v786, %v774
    %v1291 = vpack.c.b16 %v787, %v775
    %v1292 = vpack.c.b16 %v788, %v776
    %v1293 = vpack.c.b16 %v789, %v777
    %v1294 = vpack.c.b16 %v790, %v778
    %v1295 = vpack.c.b16 %v791, %v779
    %v1296 = vpack.c.b16 %v792, %v780
    %v1297 = vpack.c.b16 %v793, %v781
    %v1298 = vpack.c.b16 %v794, %v782
    %v1299 = vpack.c.b16 %v795, %v783
    %v1300 = vpack.c.b16 %v796, %v784
    %v1301 = vpack.c.b16 %v809, %v797
    %v1302 = vpack.c.b16 %v810, %v798
    %v1303 = vpack.c.b16 %v811, %v799
    %v1304 = vpack.c.b16 %v812, %v800
    %v1305 = vpack.c.b16 %v813, %v801
    %v1306 = vpack.c.b16 %v814, %v802
    %v1307 = vpack.c.b16 %v815, %v803
    %v1308 = vpack.c.b16 %v816, %v804
    %v1309 = vpack.c.b16 %v817, %v805
    %v1310 = vpack.c.b16 %v818, %v806
    %v1311 = vpack.c.b16 %v819, %v807
    %v1312 = vpack.c.b16 %v820, %v808
    %v1313 = vpack.c.b16 %v833, %v821
    %v1314 = vpack.c.b16 %v834, %v822
    %v1315 = vpack.c.b16 %v835, %v823
    %v1316 = vpack.c.b16 %v836, %v824
    %v1317 = vpack.c.b16 %v837, %v825
    %v1318 = vpack.c.b16 %v838, %v826
    %v1319 = vpack.c.b16 %v839, %v827
    %v1320 = vpack.c.b16 %v840, %v828
    %v1321 = vpack.c.b16 %v841, %v829
    %v1322 = vpack.c.b16 %v842, %v830
    %v1323 = vpack.c.b16 %v843, %v831
    %v1324 = vpack.c.b16 %v844, %v832
    %v1325 = vpack.c.b16 %v857, %v845
    %v1326 = vpack.c.b16 %v858, %v846
    %v1327 = vpack.c.b16 %v859, %v847
    %v1328 = vpack.c.b16 %v860, %v848
    %v1329 = vpack.c.b16 %v861, %v849
    %v1330 = vpack.c.b16 %v862, %v850
    %v1331 = vpack.c.b16 %v863, %v851
    %v1332 = vpack.c.b16 %v864, %v852
    %v1333 = vpack.c.b16 %v865, %v853
    %v1334 = vpack.c.b16 %v866, %v854
    %v1335 = vpack.c.b16 %v867, %v855
    %v1336 = vpack.c.b16 %v868, %v856
    %v1337 = vpack.c.b16 %v881, %v869
    %v1338 = vpack.c.b16 %v882, %v870
    %v1339 = vpack.c.b16 %v883, %v871
    %v1340 = vpack.c.b16 %v884, %v872
    %v1341 = vpack.c.b16 %v885, %v873
    %v1342 = vpack.c.b16 %v886, %v874
    %v1343 = vpack.c.b16 %v887, %v875
    %v1344 = vpack.c.b16 %v888, %v876
    %v1345 = vpack.c.b16 %v889, %v877
    %v1346 = vpack.c.b16 %v890, %v878
    %v1347 = vpack.c.b16 %v891, %v879
    %v1348 = vpack.c.b16 %v892, %v880
    %v1349 = vpack.c.b16 %v905, %v893
    %v1350 = vpack.c.b16 %v906, %v894
    %v1351 = vpack.c.b16 %v907, %v895
    %v1352 = vpack.c.b16 %v908, %v896
    %v1353 = vpack.c.b16 %v909, %v897
    %v1354 = vpack.c.b16 %v910, %v898
    %v1355 = vpack.c.b16 %v911, %v899
    %v1356 = vpack.c.b16 %v912, %v900
    %v1357 = vpack.c.b16 %v913, %v901
    %v1358 = vpack.c.b16 %v914, %v902
    %v1359 = vpack.c.b16 %v915, %v903
    %v1360 = vpack.c.b16 %v916, %v904
    %v1361 = vpack.c.b16 %v929, %v917
    %v1362 = vpack.c.b16 %v930, %v918
    %v1363 = vpack.c.b16 %v931, %v919
    %v1364 = vpack.c.b16 %v932, %v920
    %v1365 = vpack.c.b16 %v933, %v921
    %v1366 = vpack.c.b16 %v934, %v922
    %v1367 = vpack.c.b16 %v935, %v923
    %v1368 = vpack.c.b16 %v936, %v924
    %v1369 = vpack.c.b16 %v937, %v925
    %v1370 = vpack.c.b16 %v938, %v926
    %v1371 = vpack.c.b16 %v939, %v927
    %v1372 = vpack.c.b16 %v940, %v928
    %v1373 = vpack.c.b16 %v953, %v941
    %v1374 = vpack.c.b16 %v954, %v942
    %v1375 = vpack.c.b16 %v955, %v943
    %v1376 = vpack.c.b16 %v956, %v944
    %v1377 = vpack.c.b16 %v957, %v945
    %v1378 = vpack.c.b16 %v958, %v946
    %v1379 = vpack.c.b16 %v959, %v947
    %v1380 = vpack.c.b16 %v960, %v948
    %v1381 = vpack.c.b16 %v961, %v949
    %v1382 = vpack.c.b16 %v962, %v950
    %v1383 = vpack.c.b16 %v963, %v951
    %v1384 = vpack.c.b16 %v964, %v952
    %v1385 = vpack.c.b16 %v977, %v965
    %v1386 = vpack.c.b16 %v978, %v966
    %v1387 = vpack.c.b16 %v979, %v967
    %v1388 = vpack.c.b16 %v980, %v968
    %v1389 = vpack.c.b16 %v981, %v969
    %v1390 = vpack.c.b16 %v982, %v970
    %v1391 = vpack.c.b16 %v983, %v971
    %v1392 = vpack.c.b16 %v984, %v972
    %v1393 = vpack.c.b16 %v985, %v973
    %v1394 = vpack.c.b16 %v986, %v974
    %v1395 = vpack.c.b16 %v987, %v975
    %v1396 = vpack.c.b16 %v988, %v976
    %v1397 = vpack.c.b16 %v1001, %v989
    %v1398 = vpack.c.b16 %v1002, %v990
    %v1399 = vpack.c.b16 %v1003, %v991
    %v1400 = vpack.c.b16 %v1004, %v992
    %v1401 = vpack.c.b16 %v1005, %v993
    %v1402 = vpack.c.b16 %v1006, %v994
    %v1403 = vpack.c.b16 %v1007, %v995
    %v1404 = vpack.c.b16 %v1008, %v996
    %v1405 = vpack.c.b16 %v1009, %v997
    %v1406 = vpack.c.b16 %v1010, %v998
    %v1407 = vpack.c.b16 %v1011, %v999
    %v1408 = vpack.c.b16 %v1012, %v1000
    %v1409 = vpack.c.b16 %v1025, %v1013
    %v1410 = vpack.c.b16 %v1026, %v1014
    %v1411 = vpack.c.b16 %v1027, %v1015
    %v1412 = vpack.c.b16 %v1028, %v1016
    %v1413 = vpack.c.b16 %v1029, %v1017
    %v1414 = vpack.c.b16 %v1030, %v1018
    %v1415 = vpack.c.b16 %v1031, %v1019
    %v1416 = vpack.c.b16 %v1032, %v1020
    %v1417 = vpack.c.b16 %v1033, %v1021
    %v1418 = vpack.c.b16 %v1034, %v1022
    %v1419 = vpack.c.b16 %v1035, %v1023
    %v1420 = vpack.c.b16 %v1036, %v1024
    %v1421 = vpack.c.b16 %v1049, %v1037
    %v1422 = vpack.c.b16 %v1050, %v1038
    %v1423 = vpack.c.b16 %v1051, %v1039
    %v1424 = vpack.c.b16 %v1052, %v1040
    %v1425 = vpack.c.b16 %v1053, %v1041
    %v1426 = vpack.c.b16 %v1054, %v1042
    %v1427 = vpack.c.b16 %v1055, %v1043
    %v1428 = vpack.c.b16 %v1056, %v1044
    %v1429 = vpack.c.b16 %v1057, %v1045
    %v1430 = vpack.c.b16 %v1058, %v1046
    %v1431 = vpack.c.b16 %v1059, %v1047
    %v1432 = vpack.c.b16 %v1060, %v1048
    %v1433 = vpack.c.b16 %v1073, %v1061
    %v1434 = vpack.c.b16 %v1074, %v1062
    %v1435 = vpack.c.b16 %v1075, %v1063
    %v1436 = vpack.c.b16 %v1076, %v1064
    %v1437 = vpack.c.b16 %v1077, %v1065
    %v1438 = vpack.c.b16 %v1078, %v1066
    %v1439 = vpack.c.b16 %v1079, %v1067
    %v1440 = vpack.c.b16 %v1080, %v1068
    %v1441 = vpack.c.b16 %v1081, %v1069
    %v1442 = vpack.c.b16 %v1082, %v1070
    %v1443 = vpack.c.b16 %v1083, %v1071
    %v1444 = vpack.c.b16 %v1084, %v1072
    %v1445 = vpack.c.b16 %v1097, %v1085
    %v1446 = vpack.c.b16 %v1098, %v1086
    %v1447 = vpack.c.b16 %v1099, %v1087
    %v1448 = vpack.c.b16 %v1100, %v1088
    %v1449 = vpack.c.b16 %v1101, %v1089
    %v1450 = vpack.c.b16 %v1102, %v1090
    %v1451 = vpack.c.b16 %v1103, %v1091
    %v1452 = vpack.c.b16 %v1104, %v1092
    %v1453 = vpack.c.b16 %v1105, %v1093
    %v1454 = vpack.c.b16 %v1106, %v1094
    %v1455 = vpack.c.b16 %v1107, %v1095
    %v1456 = vpack.c.b16 %v1108, %v1096
    %v1457 = vpack.c.b16 %v1121, %v1109
    %v1458 = vpack.c.b16 %v1122, %v1110
    %v1459 = vpack.c.b16 %v1123, %v1111
    %v1460 = vpack.c.b16 %v1124, %v1112
    %v1461 = vpack.c.b16 %v1125, %v1113
    %v1462 = vpack.c.b16 %v1126, %v1114
    %v1463 = vpack.c.b16 %v1127, %v1115
    %v1464 = vpack.c.b16 %v1128, %v1116
    %v1465 = vpack.c.b16 %v1129, %v1117
    %v1466 = vpack.c.b16 %v1130, %v1118
    %v1467 = vpack.c.b16 %v1131, %v1119
    %v1468 = vpack.c.b16 %v1132, %v1120
    %v1469 = vpack.c.b16 %v1145, %v1133
    %v1470 = vpack.c.b16 %v1146, %v1134
    %v1471 = vpack.c.b16 %v1147, %v1135
    %v1472 = vpack.c.b16 %v1148, %v1136
    %v1473 = vpack.c.b16 %v1149, %v1137
    %v1474 = vpack.c.b16 %v1150, %v1138
    %v1475 = vpack.c.b16 %v1151, %v1139
    %v1476 = vpack.c.b16 %v1152, %v1140
    %v1477 = vpack.c.b16 %v1153, %v1141
    %v1478 = vpack.c.b16 %v1154, %v1142
    %v1479 = vpack.c.b16 %v1155, %v1143
    %v1480 = vpack.c.b16 %v1156, %v1144
    %v1481 = vpack.c.b16 %v1169, %v1157
    %v1482 = vpack.c.b16 %v1170, %v1158
    %v1483 = vpack.c.b16 %v1171, %v1159
    %v1484 = vpack.c.b16 %v1172, %v1160
    %v1485 = vpack.c.b16 %v1173, %v1161
    %v1486 = vpack.c.b16 %v1174, %v1162
    %v1487 = vpack.c.b16 %v1175, %v1163
    %v1488 = vpack.c.b16 %v1176, %v1164
    %v1489 = vpack.c.b16 %v1177, %v1165
    %v1490 = vpack.c.b16 %v1178, %v1166
    %v1491 = vpack.c.b16 %v1179, %v1167
    %v1492 = vpack.c.b16 %v1180, %v1168
    %v1493 = vpack.c.b16 %v1193, %v1181
    %v1494 = vpack.c.b16 %v1194, %v1182
    %v1495 = vpack.c.b16 %v1195, %v1183
    %v1496 = vpack.c.b16 %v1196, %v1184
    %v1497 = vpack.c.b16 %v1197, %v1185
    %v1498 = vpack.c.b16 %v1198, %v1186
    %v1499 = vpack.c.b16 %v1199, %v1187
    %v1500 = vpack.c.b16 %v1200, %v1188
    %v1501 = vpack.c.b16 %v1201, %v1189
    %v1502 = vpack.c.b16 %v1202, %v1190
    %v1503 = vpack.c.b16 %v1203, %v1191
    %v1504 = vpack.c.b16 %v1204, %v1192
    %v1505 = vpack.c.b16 %v1217, %v1205
    %v1506 = vpack.c.b16 %v1218, %v1206
    %v1507 = vpack.c.b16 %v1219, %v1207
    %v1508 = vpack.c.b16 %v1220, %v1208
    %v1509 = vpack.c.b16 %v1221, %v1209
    %v1510 = vpack.c.b16 %v1222, %v1210
    %v1511 = vpack.c.b16 %v1223, %v1211
    %v1512 = vpack.c.b16 %v1224, %v1212
    %v1513 = vpack.c.b16 %v1225, %v1213
    %v1514 = vpack.c.b16 %v1226, %v1214
    %v1515 = vpack.c.b16 %v1227, %v1215
    %v1516 = vpack.c.b16 %v1228, %v1216
    %1805 = vmatprep.subr.bf16.mxu0 %v1230
    %1806 = vmatpush1.bf16.msra.mxu0 %v1229
    %1807 = vmatprep.subr.bf16.mxu0 %v1242
    %1808 = vmatpush1.bf16.msra.mxu0 %v1241
    %1809 = vmatprep.subr.bf16.mxu0 %v1254
    %1810 = vmatpush1.bf16.msra.mxu0 %v1253
    %1811 = vmatprep.subr.bf16.mxu0 %v1266
    %1812 = vmatpush1.bf16.msra.mxu0 %v1265
    %1813 = vmatprep.subr.bf16.mxu0 %v1278
    %1814 = vmatpush1.bf16.msra.mxu0 %v1277
    %1815 = vmatprep.subr.bf16.mxu0 %v1290
    %1816 = vmatpush1.bf16.msra.mxu0 %v1289
    %1817 = vmatprep.subr.bf16.mxu0 %v1302
    %1818 = vmatpush1.bf16.msra.mxu0 %v1301
    %1819 = vmatprep.subr.bf16.mxu0 %v1314
    %1820 = vmatpush1.bf16.msra.mxu0 %v1313
    %1821 = vmatprep.subr.bf16.mxu0 %v1326
    %1822 = vmatpush1.bf16.msra.mxu0 %v1325
    %1823 = vmatprep.subr.bf16.mxu0 %v1338
    %1824 = vmatpush1.bf16.msra.mxu0 %v1337
    %1825 = vmatprep.subr.bf16.mxu0 %v1350
    %1826 = vmatpush1.bf16.msra.mxu0 %v1349
    %1827 = vmatprep.subr.bf16.mxu0 %v1362
    %1828 = vmatpush1.bf16.msra.mxu0 %v1361
    %1829 = vmatprep.subr.bf16.mxu0 %v1374
    %1830 = vmatpush1.bf16.msra.mxu0 %v1373
    %1831 = vmatprep.subr.bf16.mxu0 %v1386
    %1832 = vmatpush1.bf16.msra.mxu0 %v1385
    %1833 = vmatprep.subr.bf16.mxu0 %v1398
    %1834 = vmatpush1.bf16.msra.mxu0 %v1397
    %1835 = vmatprep.subr.bf16.mxu0 %v1410
    %1836 = vmatpush1.bf16.msra.mxu0 %v1409
    %1837 = vmatprep.mubr.bf16.mxu0 %v360
    %1838 = vmatmul.mubr.bf16.gmra.mrb[0].mxu0 %v359
    %v1839 = vpop.f32.mrb[0].mxu0
    %v1840 = vadd.f32 0.0, %v1839
    %v1841 = vpop.f32.mrb[0].mxu0
    %v1842 = vadd.f32 0.0, %v1841
    %v1843 = vpop.f32.mrb[0].mxu0
    %v1844 = vadd.f32 0.0, %v1843
    %v1845 = vpop.f32.mrb[0].mxu0
    %v1846 = vadd.f32 0.0, %v1845
    %1847 = vdwg.mxu0
    %1848 = vmatprep.subr.bf16.mxu0 %v1422
    %1849 = vmatpush1.bf16.msra.mxu0 %v1421
    %1850 = vmatprep.subr.bf16.mxu0 %v1434
    %1851 = vmatpush1.bf16.msra.mxu0 %v1433
    %1852 = vmatprep.subr.bf16.mxu0 %v1446
    %1853 = vmatpush1.bf16.msra.mxu0 %v1445
    %1854 = vmatprep.subr.bf16.mxu0 %v1458
    %1855 = vmatpush1.bf16.msra.mxu0 %v1457
    %1856 = vmatprep.subr.bf16.mxu0 %v1470
    %1857 = vmatpush1.bf16.msra.mxu0 %v1469
    %1858 = vmatprep.subr.bf16.mxu0 %v1482
    %1859 = vmatpush1.bf16.msra.mxu0 %v1481
    %1860 = vmatprep.subr.bf16.mxu0 %v1494
    %1861 = vmatpush1.bf16.msra.mxu0 %v1493
    %1862 = vmatprep.subr.bf16.mxu0 %v1506
    %1863 = vmatpush1.bf16.msra.mxu0 %v1505
    %1864 = vmatprep.subr.bf16.mxu0 0
    %1865 = vmatpush1.bf16.msra.mxu0 0
    %1866 = vmatprep.subr.bf16.mxu0 0
    %1867 = vmatpush1.bf16.msra.mxu0 0
    %1868 = vmatprep.subr.bf16.mxu0 0
    %1869 = vmatpush1.bf16.msra.mxu0 0
    %1870 = vmatprep.subr.bf16.mxu0 0
    %1871 = vmatpush1.bf16.msra.mxu0 0
    %1872 = vmatprep.subr.bf16.mxu0 0
    %1873 = vmatpush1.bf16.msra.mxu0 0
    %1874 = vmatprep.subr.bf16.mxu0 0
    %1875 = vmatpush1.bf16.msra.mxu0 0
    %1876 = vmatprep.subr.bf16.mxu0 0
    %1877 = vmatpush1.bf16.msra.mxu0 0
    %1878 = vmatprep.subr.bf16.mxu0 0
    %1879 = vmatpush1.bf16.msra.mxu0 0
    %1880 = vmatprep.mubr.bf16.mxu0 0
    %1881 = vmatmul.mubr.bf16.gmra.mrb[0].mxu0 %v361
    %v1882 = vpop.f32.mrb[0].mxu0
    %v1883 = vadd.f32 %v1840, %v1882
    %v1884 = vpop.f32.mrb[0].mxu0
    %v1885 = vadd.f32 %v1842, %v1884
    %v1886 = vpop.f32.mrb[0].mxu0
    %v1887 = vadd.f32 %v1844, %v1886
    %v1888 = vpop.f32.mrb[0].mxu0
    %v1889 = vadd.f32 %v1846, %v1888
    %1890 = vdwg.mxu0
    %1891 = vmatprep.subr.bf16.mxu0 %v1232
    %1892 = vmatpush1.bf16.msra.mxu0 %v1231
    %1893 = vmatprep.subr.bf16.mxu0 %v1244
    %1894 = vmatpush1.bf16.msra.mxu0 %v1243
    %1895 = vmatprep.subr.bf16.mxu0 %v1256
    %1896 = vmatpush1.bf16.msra.mxu0 %v1255
    %1897 = vmatprep.subr.bf16.mxu0 %v1268
    %1898 = vmatpush1.bf16.msra.mxu0 %v1267
    %1899 = vmatprep.subr.bf16.mxu0 %v1280
    %1900 = vmatpush1.bf16.msra.mxu0 %v1279
    %1901 = vmatprep.subr.bf16.mxu0 %v1292
    %1902 = vmatpush1.bf16.msra.mxu0 %v1291
    %1903 = vmatprep.subr.bf16.mxu0 %v1304
    %1904 = vmatpush1.bf16.msra.mxu0 %v1303
    %1905 = vmatprep.subr.bf16.mxu0 %v1316
    %1906 = vmatpush1.bf16.msra.mxu0 %v1315
    %1907 = vmatprep.subr.bf16.mxu0 %v1328
    %1908 = vmatpush1.bf16.msra.mxu0 %v1327
    %1909 = vmatprep.subr.bf16.mxu0 %v1340
    %1910 = vmatpush1.bf16.msra.mxu0 %v1339
    %1911 = vmatprep.subr.bf16.mxu0 %v1352
    %1912 = vmatpush1.bf16.msra.mxu0 %v1351
    %1913 = vmatprep.subr.bf16.mxu0 %v1364
    %1914 = vmatpush1.bf16.msra.mxu0 %v1363
    %1915 = vmatprep.subr.bf16.mxu0 %v1376
    %1916 = vmatpush1.bf16.msra.mxu0 %v1375
    %1917 = vmatprep.subr.bf16.mxu0 %v1388
    %1918 = vmatpush1.bf16.msra.mxu0 %v1387
    %1919 = vmatprep.subr.bf16.mxu0 %v1400
    %1920 = vmatpush1.bf16.msra.mxu0 %v1399
    %1921 = vmatprep.subr.bf16.mxu0 %v1412
    %1922 = vmatpush1.bf16.msra.mxu0 %v1411
    %1923 = vmatprep.mubr.bf16.mxu0 %v360
    %1924 = vmatmul.mubr.bf16.gmra.mrb[0].mxu0 %v359
    %v1925 = vpop.f32.mrb[0].mxu0
    %v1926 = vadd.f32 0.0, %v1925
    %v1927 = vpop.f32.mrb[0].mxu0
    %v1928 = vadd.f32 0.0, %v1927
    %v1929 = vpop.f32.mrb[0].mxu0
    %v1930 = vadd.f32 0.0, %v1929
    %v1931 = vpop.f32.mrb[0].mxu0
    %v1932 = vadd.f32 0.0, %v1931
    %1933 = vdwg.mxu0
    %1934 = vmatprep.subr.bf16.mxu0 %v1424
    %1935 = vmatpush1.bf16.msra.mxu0 %v1423
    %1936 = vmatprep.subr.bf16.mxu0 %v1436
    %1937 = vmatpush1.bf16.msra.mxu0 %v1435
    %1938 = vmatprep.subr.bf16.mxu0 %v1448
    %1939 = vmatpush1.bf16.msra.mxu0 %v1447
    %1940 = vmatprep.subr.bf16.mxu0 %v1460
    %1941 = vmatpush1.bf16.msra.mxu0 %v1459
    %1942 = vmatprep.subr.bf16.mxu0 %v1472
    %1943 = vmatpush1.bf16.msra.mxu0 %v1471
    %1944 = vmatprep.subr.bf16.mxu0 %v1484
    %1945 = vmatpush1.bf16.msra.mxu0 %v1483
    %1946 = vmatprep.subr.bf16.mxu0 %v1496
    %1947 = vmatpush1.bf16.msra.mxu0 %v1495
    %1948 = vmatprep.subr.bf16.mxu0 %v1508
    %1949 = vmatpush1.bf16.msra.mxu0 %v1507
    %1950 = vmatprep.subr.bf16.mxu0 0
    %1951 = vmatpush1.bf16.msra.mxu0 0
    %1952 = vmatprep.subr.bf16.mxu0 0
    %1953 = vmatpush1.bf16.msra.mxu0 0
    %1954 = vmatprep.subr.bf16.mxu0 0
    %1955 = vmatpush1.bf16.msra.mxu0 0
    %1956 = vmatprep.subr.bf16.mxu0 0
    %1957 = vmatpush1.bf16.msra.mxu0 0
    %1958 = vmatprep.subr.bf16.mxu0 0
    %1959 = vmatpush1.bf16.msra.mxu0 0
    %1960 = vmatprep.subr.bf16.mxu0 0
    %1961 = vmatpush1.bf16.msra.mxu0 0
    %1962 = vmatprep.subr.bf16.mxu0 0
    %1963 = vmatpush1.bf16.msra.mxu0 0
    %1964 = vmatprep.subr.bf16.mxu0 0
    %1965 = vmatpush1.bf16.msra.mxu0 0
    %1966 = vmatprep.mubr.bf16.mxu0 0
    %1967 = vmatmul.mubr.bf16.gmra.mrb[0].mxu0 %v361
    %v1968 = vpop.f32.mrb[0].mxu0
    %v1969 = vadd.f32 %v1926, %v1968
    %v1970 = vpop.f32.mrb[0].mxu0
    %v1971 = vadd.f32 %v1928, %v1970
    %v1972 = vpop.f32.mrb[0].mxu0
    %v1973 = vadd.f32 %v1930, %v1972
    %v1974 = vpop.f32.mrb[0].mxu0
    %v1975 = vadd.f32 %v1932, %v1974
    %1976 = vdwg.mxu0
    %1977 = vmatprep.subr.bf16.mxu0 %v1234
    %1978 = vmatpush1.bf16.msra.mxu0 %v1233
    %1979 = vmatprep.subr.bf16.mxu0 %v1246
    %1980 = vmatpush1.bf16.msra.mxu0 %v1245
    %1981 = vmatprep.subr.bf16.mxu0 %v1258
    %1982 = vmatpush1.bf16.msra.mxu0 %v1257
    %1983 = vmatprep.subr.bf16.mxu0 %v1270
    %1984 = vmatpush1.bf16.msra.mxu0 %v1269
    %1985 = vmatprep.subr.bf16.mxu0 %v1282
    %1986 = vmatpush1.bf16.msra.mxu0 %v1281
    %1987 = vmatprep.subr.bf16.mxu0 %v1294
    %1988 = vmatpush1.bf16.msra.mxu0 %v1293
    %1989 = vmatprep.subr.bf16.mxu0 %v1306
    %1990 = vmatpush1.bf16.msra.mxu0 %v1305
    %1991 = vmatprep.subr.bf16.mxu0 %v1318
    %1992 = vmatpush1.bf16.msra.mxu0 %v1317
    %1993 = vmatprep.subr.bf16.mxu0 %v1330
    %1994 = vmatpush1.bf16.msra.mxu0 %v1329
    %1995 = vmatprep.subr.bf16.mxu0 %v1342
    %1996 = vmatpush1.bf16.msra.mxu0 %v1341
    %1997 = vmatprep.subr.bf16.mxu0 %v1354
    %1998 = vmatpush1.bf16.msra.mxu0 %v1353
    %1999 = vmatprep.subr.bf16.mxu0 %v1366
    %2000 = vmatpush1.bf16.msra.mxu0 %v1365
    %2001 = vmatprep.subr.bf16.mxu0 %v1378
    %2002 = vmatpush1.bf16.msra.mxu0 %v1377
    %2003 = vmatprep.subr.bf16.mxu0 %v1390
    %2004 = vmatpush1.bf16.msra.mxu0 %v1389
    %2005 = vmatprep.subr.bf16.mxu0 %v1402
    %2006 = vmatpush1.bf16.msra.mxu0 %v1401
    %2007 = vmatprep.subr.bf16.mxu0 %v1414
    %2008 = vmatpush1.bf16.msra.mxu0 %v1413
    %2009 = vmatprep.mubr.bf16.mxu0 %v360
    %2010 = vmatmul.mubr.bf16.gmra.mrb[0].mxu0 %v359
    %v2011 = vpop.f32.mrb[0].mxu0
    %v2012 = vadd.f32 0.0, %v2011
    %v2013 = vpop.f32.mrb[0].mxu0
    %v2014 = vadd.f32 0.0, %v2013
    %v2015 = vpop.f32.mrb[0].mxu0
    %v2016 = vadd.f32 0.0, %v2015
    %v2017 = vpop.f32.mrb[0].mxu0
    %v2018 = vadd.f32 0.0, %v2017
    %2019 = vdwg.mxu0
    %2020 = vmatprep.subr.bf16.mxu0 %v1426
    %2021 = vmatpush1.bf16.msra.mxu0 %v1425
    %2022 = vmatprep.subr.bf16.mxu0 %v1438
    %2023 = vmatpush1.bf16.msra.mxu0 %v1437
    %2024 = vmatprep.subr.bf16.mxu0 %v1450
    %2025 = vmatpush1.bf16.msra.mxu0 %v1449
    %2026 = vmatprep.subr.bf16.mxu0 %v1462
    %2027 = vmatpush1.bf16.msra.mxu0 %v1461
    %2028 = vmatprep.subr.bf16.mxu0 %v1474
    %2029 = vmatpush1.bf16.msra.mxu0 %v1473
    %2030 = vmatprep.subr.bf16.mxu0 %v1486
    %2031 = vmatpush1.bf16.msra.mxu0 %v1485
    %2032 = vmatprep.subr.bf16.mxu0 %v1498
    %2033 = vmatpush1.bf16.msra.mxu0 %v1497
    %2034 = vmatprep.subr.bf16.mxu0 %v1510
    %2035 = vmatpush1.bf16.msra.mxu0 %v1509
    %2036 = vmatprep.subr.bf16.mxu0 0
    %2037 = vmatpush1.bf16.msra.mxu0 0
    %2038 = vmatprep.subr.bf16.mxu0 0
    %2039 = vmatpush1.bf16.msra.mxu0 0
    %2040 = vmatprep.subr.bf16.mxu0 0
    %2041 = vmatpush1.bf16.msra.mxu0 0
    %2042 = vmatprep.subr.bf16.mxu0 0
    %2043 = vmatpush1.bf16.msra.mxu0 0
    %2044 = vmatprep.subr.bf16.mxu0 0
    %2045 = vmatpush1.bf16.msra.mxu0 0
    %2046 = vmatprep.subr.bf16.mxu0 0
    %2047 = vmatpush1.bf16.msra.mxu0 0
    %2048 = vmatprep.subr.bf16.mxu0 0
    %2049 = vmatpush1.bf16.msra.mxu0 0
    %2050 = vmatprep.subr.bf16.mxu0 0
    %2051 = vmatpush1.bf16.msra.mxu0 0
    %2052 = vmatprep.mubr.bf16.mxu0 0
    %2053 = vmatmul.mubr.bf16.gmra.mrb[0].mxu0 %v361
    %v2054 = vpop.f32.mrb[0].mxu0
    %v2055 = vadd.f32 %v2012, %v2054
    %v2056 = vpop.f32.mrb[0].mxu0
    %v2057 = vadd.f32 %v2014, %v2056
    %v2058 = vpop.f32.mrb[0].mxu0
    %v2059 = vadd.f32 %v2016, %v2058
    %v2060 = vpop.f32.mrb[0].mxu0
    %v2061 = vadd.f32 %v2018, %v2060
    %2062 = vdwg.mxu0
    %2063 = vmatprep.subr.bf16.mxu0 %v1236
    %2064 = vmatpush1.bf16.msra.mxu0 %v1235
    %2065 = vmatprep.subr.bf16.mxu0 %v1248
    %2066 = vmatpush1.bf16.msra.mxu0 %v1247
    %2067 = vmatprep.subr.bf16.mxu0 %v1260
    %2068 = vmatpush1.bf16.msra.mxu0 %v1259
    %2069 = vmatprep.subr.bf16.mxu0 %v1272
    %2070 = vmatpush1.bf16.msra.mxu0 %v1271
    %2071 = vmatprep.subr.bf16.mxu0 %v1284
    %2072 = vmatpush1.bf16.msra.mxu0 %v1283
    %2073 = vmatprep.subr.bf16.mxu0 %v1296
    %2074 = vmatpush1.bf16.msra.mxu0 %v1295
    %2075 = vmatprep.subr.bf16.mxu0 %v1308
    %2076 = vmatpush1.bf16.msra.mxu0 %v1307
    %2077 = vmatprep.subr.bf16.mxu0 %v1320
    %2078 = vmatpush1.bf16.msra.mxu0 %v1319
    %2079 = vmatprep.subr.bf16.mxu0 %v1332
    %2080 = vmatpush1.bf16.msra.mxu0 %v1331
    %2081 = vmatprep.subr.bf16.mxu0 %v1344
    %2082 = vmatpush1.bf16.msra.mxu0 %v1343
    %2083 = vmatprep.subr.bf16.mxu0 %v1356
    %2084 = vmatpush1.bf16.msra.mxu0 %v1355
    %2085 = vmatprep.subr.bf16.mxu0 %v1368
    %2086 = vmatpush1.bf16.msra.mxu0 %v1367
    %2087 = vmatprep.subr.bf16.mxu0 %v1380
    %2088 = vmatpush1.bf16.msra.mxu0 %v1379
    %2089 = vmatprep.subr.bf16.mxu0 %v1392
    %2090 = vmatpush1.bf16.msra.mxu0 %v1391
    %2091 = vmatprep.subr.bf16.mxu0 %v1404
    %2092 = vmatpush1.bf16.msra.mxu0 %v1403
    %2093 = vmatprep.subr.bf16.mxu0 %v1416
    %2094 = vmatpush1.bf16.msra.mxu0 %v1415
    %2095 = vmatprep.mubr.bf16.mxu0 %v360
    %2096 = vmatmul.mubr.bf16.gmra.mrb[0].mxu0 %v359
    %v2097 = vpop.f32.mrb[0].mxu0
    %v2098 = vadd.f32 0.0, %v2097
    %v2099 = vpop.f32.mrb[0].mxu0
    %v2100 = vadd.f32 0.0, %v2099
    %v2101 = vpop.f32.mrb[0].mxu0
    %v2102 = vadd.f32 0.0, %v2101
    %v2103 = vpop.f32.mrb[0].mxu0
    %v2104 = vadd.f32 0.0, %v2103
    %2105 = vdwg.mxu0
    %2106 = vmatprep.subr.bf16.mxu0 %v1428
    %2107 = vmatpush1.bf16.msra.mxu0 %v1427
    %2108 = vmatprep.subr.bf16.mxu0 %v1440
    %2109 = vmatpush1.bf16.msra.mxu0 %v1439
    %2110 = vmatprep.subr.bf16.mxu0 %v1452
    %2111 = vmatpush1.bf16.msra.mxu0 %v1451
    %2112 = vmatprep.subr.bf16.mxu0 %v1464
    %2113 = vmatpush1.bf16.msra.mxu0 %v1463
    %2114 = vmatprep.subr.bf16.mxu0 %v1476
    %2115 = vmatpush1.bf16.msra.mxu0 %v1475
    %2116 = vmatprep.subr.bf16.mxu0 %v1488
    %2117 = vmatpush1.bf16.msra.mxu0 %v1487
    %2118 = vmatprep.subr.bf16.mxu0 %v1500
    %2119 = vmatpush1.bf16.msra.mxu0 %v1499
    %2120 = vmatprep.subr.bf16.mxu0 %v1512
    %2121 = vmatpush1.bf16.msra.mxu0 %v1511
    %2122 = vmatprep.subr.bf16.mxu0 0
    %2123 = vmatpush1.bf16.msra.mxu0 0
    %2124 = vmatprep.subr.bf16.mxu0 0
    %2125 = vmatpush1.bf16.msra.mxu0 0
    %2126 = vmatprep.subr.bf16.mxu0 0
    %2127 = vmatpush1.bf16.msra.mxu0 0
    %2128 = vmatprep.subr.bf16.mxu0 0
    %2129 = vmatpush1.bf16.msra.mxu0 0
    %2130 = vmatprep.subr.bf16.mxu0 0
    %2131 = vmatpush1.bf16.msra.mxu0 0
    %2132 = vmatprep.subr.bf16.mxu0 0
    %2133 = vmatpush1.bf16.msra.mxu0 0
    %2134 = vmatprep.subr.bf16.mxu0 0
    %2135 = vmatpush1.bf16.msra.mxu0 0
    %2136 = vmatprep.subr.bf16.mxu0 0
    %2137 = vmatpush1.bf16.msra.mxu0 0
    %2138 = vmatprep.mubr.bf16.mxu0 0
    %2139 = vmatmul.mubr.bf16.gmra.mrb[0].mxu0 %v361
    %v2140 = vpop.f32.mrb[0].mxu0
    %v2141 = vadd.f32 %v2098, %v2140
    %v2142 = vpop.f32.mrb[0].mxu0
    %v2143 = vadd.f32 %v2100, %v2142
    %v2144 = vpop.f32.mrb[0].mxu0
    %v2145 = vadd.f32 %v2102, %v2144
    %v2146 = vpop.f32.mrb[0].mxu0
    %v2147 = vadd.f32 %v2104, %v2146
    %2148 = vdwg.mxu0
    %2149 = vmatprep.subr.bf16.mxu0 %v1238
    %2150 = vmatpush1.bf16.msra.mxu0 %v1237
    %2151 = vmatprep.subr.bf16.mxu0 %v1250
    %2152 = vmatpush1.bf16.msra.mxu0 %v1249
    %2153 = vmatprep.subr.bf16.mxu0 %v1262
    %2154 = vmatpush1.bf16.msra.mxu0 %v1261
    %2155 = vmatprep.subr.bf16.mxu0 %v1274
    %2156 = vmatpush1.bf16.msra.mxu0 %v1273
    %2157 = vmatprep.subr.bf16.mxu0 %v1286
    %2158 = vmatpush1.bf16.msra.mxu0 %v1285
    %2159 = vmatprep.subr.bf16.mxu0 %v1298
    %2160 = vmatpush1.bf16.msra.mxu0 %v1297
    %2161 = vmatprep.subr.bf16.mxu0 %v1310
    %2162 = vmatpush1.bf16.msra.mxu0 %v1309
    %2163 = vmatprep.subr.bf16.mxu0 %v1322
    %2164 = vmatpush1.bf16.msra.mxu0 %v1321
    %2165 = vmatprep.subr.bf16.mxu0 %v1334
    %2166 = vmatpush1.bf16.msra.mxu0 %v1333
    %2167 = vmatprep.subr.bf16.mxu0 %v1346
    %2168 = vmatpush1.bf16.msra.mxu0 %v1345
    %2169 = vmatprep.subr.bf16.mxu0 %v1358
    %2170 = vmatpush1.bf16.msra.mxu0 %v1357
    %2171 = vmatprep.subr.bf16.mxu0 %v1370
    %2172 = vmatpush1.bf16.msra.mxu0 %v1369
    %2173 = vmatprep.subr.bf16.mxu0 %v1382
    %2174 = vmatpush1.bf16.msra.mxu0 %v1381
    %2175 = vmatprep.subr.bf16.mxu0 %v1394
    %2176 = vmatpush1.bf16.msra.mxu0 %v1393
    %2177 = vmatprep.subr.bf16.mxu0 %v1406
    %2178 = vmatpush1.bf16.msra.mxu0 %v1405
    %2179 = vmatprep.subr.bf16.mxu0 %v1418
    %2180 = vmatpush1.bf16.msra.mxu0 %v1417
    %2181 = vmatprep.mubr.bf16.mxu0 %v360
    %2182 = vmatmul.mubr.bf16.gmra.mrb[0].mxu0 %v359
    %v2183 = vpop.f32.mrb[0].mxu0
    %v2184 = vadd.f32 0.0, %v2183
    %v2185 = vpop.f32.mrb[0].mxu0
    %v2186 = vadd.f32 0.0, %v2185
    %v2187 = vpop.f32.mrb[0].mxu0
    %v2188 = vadd.f32 0.0, %v2187
    %v2189 = vpop.f32.mrb[0].mxu0
    %v2190 = vadd.f32 0.0, %v2189
    %2191 = vdwg.mxu0
    %2192 = vmatprep.subr.bf16.mxu0 %v1430
    %2193 = vmatpush1.bf16.msra.mxu0 %v1429
    %2194 = vmatprep.subr.bf16.mxu0 %v1442
    %2195 = vmatpush1.bf16.msra.mxu0 %v1441
    %2196 = vmatprep.subr.bf16.mxu0 %v1454
    %2197 = vmatpush1.bf16.msra.mxu0 %v1453
    %2198 = vmatprep.subr.bf16.mxu0 %v1466
    %2199 = vmatpush1.bf16.msra.mxu0 %v1465
    %2200 = vmatprep.subr.bf16.mxu0 %v1478
    %2201 = vmatpush1.bf16.msra.mxu0 %v1477
    %2202 = vmatprep.subr.bf16.mxu0 %v1490
    %2203 = vmatpush1.bf16.msra.mxu0 %v1489
    %2204 = vmatprep.subr.bf16.mxu0 %v1502
    %2205 = vmatpush1.bf16.msra.mxu0 %v1501
    %2206 = vmatprep.subr.bf16.mxu0 %v1514
    %2207 = vmatpush1.bf16.msra.mxu0 %v1513
    %2208 = vmatprep.subr.bf16.mxu0 0
    %2209 = vmatpush1.bf16.msra.mxu0 0
    %2210 = vmatprep.subr.bf16.mxu0 0
    %2211 = vmatpush1.bf16.msra.mxu0 0
    %2212 = vmatprep.subr.bf16.mxu0 0
    %2213 = vmatpush1.bf16.msra.mxu0 0
    %2214 = vmatprep.subr.bf16.mxu0 0
    %2215 = vmatpush1.bf16.msra.mxu0 0
    %2216 = vmatprep.subr.bf16.mxu0 0
    %2217 = vmatpush1.bf16.msra.mxu0 0
    %2218 = vmatprep.subr.bf16.mxu0 0
    %2219 = vmatpush1.bf16.msra.mxu0 0
    %2220 = vmatprep.subr.bf16.mxu0 0
    %2221 = vmatpush1.bf16.msra.mxu0 0
    %2222 = vmatprep.subr.bf16.mxu0 0
    %2223 = vmatpush1.bf16.msra.mxu0 0
    %2224 = vmatprep.mubr.bf16.mxu0 0
    %2225 = vmatmul.mubr.bf16.gmra.mrb[0].mxu0 %v361
    %v2226 = vpop.f32.mrb[0].mxu0
    %v2227 = vadd.f32 %v2184, %v2226
    %v2228 = vpop.f32.mrb[0].mxu0
    %v2229 = vadd.f32 %v2186, %v2228
    %v2230 = vpop.f32.mrb[0].mxu0
    %v2231 = vadd.f32 %v2188, %v2230
    %v2232 = vpop.f32.mrb[0].mxu0
    %v2233 = vadd.f32 %v2190, %v2232
    %2234 = vdwg.mxu0
    %2235 = vmatprep.subr.bf16.mxu0 %v1240
    %2236 = vmatpush1.bf16.msra.mxu0 %v1239
    %2237 = vmatprep.subr.bf16.mxu0 %v1252
    %2238 = vmatpush1.bf16.msra.mxu0 %v1251
    %2239 = vmatprep.subr.bf16.mxu0 %v1264
    %2240 = vmatpush1.bf16.msra.mxu0 %v1263
    %2241 = vmatprep.subr.bf16.mxu0 %v1276
    %2242 = vmatpush1.bf16.msra.mxu0 %v1275
    %2243 = vmatprep.subr.bf16.mxu0 %v1288
    %2244 = vmatpush1.bf16.msra.mxu0 %v1287
    %2245 = vmatprep.subr.bf16.mxu0 %v1300
    %2246 = vmatpush1.bf16.msra.mxu0 %v1299
    %2247 = vmatprep.subr.bf16.mxu0 %v1312
    %2248 = vmatpush1.bf16.msra.mxu0 %v1311
    %2249 = vmatprep.subr.bf16.mxu0 %v1324
    %2250 = vmatpush1.bf16.msra.mxu0 %v1323
    %2251 = vmatprep.subr.bf16.mxu0 %v1336
    %2252 = vmatpush1.bf16.msra.mxu0 %v1335
    %2253 = vmatprep.subr.bf16.mxu0 %v1348
    %2254 = vmatpush1.bf16.msra.mxu0 %v1347
    %2255 = vmatprep.subr.bf16.mxu0 %v1360
    %2256 = vmatpush1.bf16.msra.mxu0 %v1359
    %2257 = vmatprep.subr.bf16.mxu0 %v1372
    %2258 = vmatpush1.bf16.msra.mxu0 %v1371
    %2259 = vmatprep.subr.bf16.mxu0 %v1384
    %2260 = vmatpush1.bf16.msra.mxu0 %v1383
    %2261 = vmatprep.subr.bf16.mxu0 %v1396
    %2262 = vmatpush1.bf16.msra.mxu0 %v1395
    %2263 = vmatprep.subr.bf16.mxu0 %v1408
    %2264 = vmatpush1.bf16.msra.mxu0 %v1407
    %2265 = vmatprep.subr.bf16.mxu0 %v1420
    %2266 = vmatpush1.bf16.msra.mxu0 %v1419
    %2267 = vmatprep.mubr.bf16.mxu0 %v360
    %2268 = vmatmul.mubr.bf16.gmra.mrb[0].mxu0 %v359
    %v2269 = vpop.f32.mrb[0].mxu0
    %v2270 = vadd.f32 0.0, %v2269
    %v2271 = vpop.f32.mrb[0].mxu0
    %v2272 = vadd.f32 0.0, %v2271
    %v2273 = vpop.f32.mrb[0].mxu0
    %v2274 = vadd.f32 0.0, %v2273
    %v2275 = vpop.f32.mrb[0].mxu0
    %v2276 = vadd.f32 0.0, %v2275
    %2277 = vdwg.mxu0
    %2278 = vmatprep.subr.bf16.mxu0 %v1432
    %2279 = vmatpush1.bf16.msra.mxu0 %v1431
    %2280 = vmatprep.subr.bf16.mxu0 %v1444
    %2281 = vmatpush1.bf16.msra.mxu0 %v1443
    %2282 = vmatprep.subr.bf16.mxu0 %v1456
    %2283 = vmatpush1.bf16.msra.mxu0 %v1455
    %2284 = vmatprep.subr.bf16.mxu0 %v1468
    %2285 = vmatpush1.bf16.msra.mxu0 %v1467
    %2286 = vmatprep.subr.bf16.mxu0 %v1480
    %2287 = vmatpush1.bf16.msra.mxu0 %v1479
    %2288 = vmatprep.subr.bf16.mxu0 %v1492
    %2289 = vmatpush1.bf16.msra.mxu0 %v1491
    %2290 = vmatprep.subr.bf16.mxu0 %v1504
    %2291 = vmatpush1.bf16.msra.mxu0 %v1503
    %2292 = vmatprep.subr.bf16.mxu0 %v1516
    %2293 = vmatpush1.bf16.msra.mxu0 %v1515
    %2294 = vmatprep.subr.bf16.mxu0 0
    %2295 = vmatpush1.bf16.msra.mxu0 0
    %2296 = vmatprep.subr.bf16.mxu0 0
    %2297 = vmatpush1.bf16.msra.mxu0 0
    %2298 = vmatprep.subr.bf16.mxu0 0
    %2299 = vmatpush1.bf16.msra.mxu0 0
    %2300 = vmatprep.subr.bf16.mxu0 0
    %2301 = vmatpush1.bf16.msra.mxu0 0
    %2302 = vmatprep.subr.bf16.mxu0 0
    %2303 = vmatpush1.bf16.msra.mxu0 0
    %2304 = vmatprep.subr.bf16.mxu0 0
    %2305 = vmatpush1.bf16.msra.mxu0 0
    %2306 = vmatprep.subr.bf16.mxu0 0
    %2307 = vmatpush1.bf16.msra.mxu0 0
    %2308 = vmatprep.subr.bf16.mxu0 0
    %2309 = vmatpush1.bf16.msra.mxu0 0
    %2310 = vmatprep.mubr.bf16.mxu0 0
    %2311 = vmatmul.mubr.bf16.gmra.mrb[0].mxu0 %v361
    %v2312 = vpop.f32.mrb[0].mxu0
    %v2313 = vadd.f32 %v2270, %v2312
    %v2314 = vpop.f32.mrb[0].mxu0
    %v2315 = vadd.f32 %v2272, %v2314
    %v2316 = vpop.f32.mrb[0].mxu0
    %v2317 = vadd.f32 %v2274, %v2316
    %v2318 = vpop.f32.mrb[0].mxu0
    %v2319 = vadd.f32 %v2276, %v2318
    %2320 = vdwg.mxu0
    %v2321 = vmax.f32 %v1883, 0.0
    %v2322 = vmax.f32 %v1885, 0.0
    %v2323 = vmax.f32 %v1969, 0.0
    %v2324 = vmax.f32 %v1971, 0.0
    %v2325 = vmax.f32 %v2055, 0.0
    %v2326 = vmax.f32 %v2057, 0.0
    %v2327 = vmax.f32 %v2141, 0.0
    %v2328 = vmax.f32 %v2143, 0.0
    %v2329 = vmax.f32 %v2227, 0.0
    %v2330 = vmax.f32 %v2229, 0.0
    %v2331 = vmax.f32 %v2313, 0.0
    %v2332 = vmax.f32 %v2315, 0.0
    %v2333 = vmax.f32 %v1887, 0.0
    %v2334 = vmax.f32 %v1889, 0.0
    %v2335 = vmax.f32 %v1973, 0.0
    %v2336 = vmax.f32 %v1975, 0.0
    %v2337 = vmax.f32 %v2059, 0.0
    %v2338 = vmax.f32 %v2061, 0.0
    %v2339 = vmax.f32 %v2145, 0.0
    %v2340 = vmax.f32 %v2147, 0.0
    %v2341 = vmax.f32 %v2231, 0.0
    %v2342 = vmax.f32 %v2233, 0.0
    %v2343 = vmax.f32 %v2317, 0.0
    %v2344 = vmax.f32 %v2319, 0.0
    %v2345 = vpack.c.bf16 %v2333, %v2321
    %v2346 = vpack.c.bf16 %v2334, %v2322
    %v2347 = vpack.c.bf16 %v2335, %v2323
    %v2348 = vpack.c.bf16 %v2336, %v2324
    %v2349 = vpack.c.bf16 %v2337, %v2325
    %v2350 = vpack.c.bf16 %v2338, %v2326
    %v2351 = vpack.c.bf16 %v2339, %v2327
    %v2352 = vpack.c.bf16 %v2340, %v2328
    %v2353 = vpack.c.bf16 %v2341, %v2329
    %v2354 = vpack.c.bf16 %v2342, %v2330
    %v2355 = vpack.c.bf16 %v2343, %v2331
    %v2356 = vpack.c.bf16 %v2344, %v2332
    %v2357 = vld [vmem:[#allocation7] sm:$0xff]
    %v2358 = vld [vmem:[#allocation7 + $0x8] sm:$0xf]
    %v2359 = vld [vmem:[#allocation7 + $0xc] sm:$0xff]
    %v2360 = vld [vmem:[#allocation7 + $0x14] sm:$0xf]
    %v2361 = vld [vmem:[#allocation7 + $0x18] sm:$0xff]
    %v2362 = vld [vmem:[#allocation7 + $0x20] sm:$0xf]
    %v2363 = vld [vmem:[#allocation7 + $0x24] sm:$0xff]
    %v2364 = vld [vmem:[#allocation7 + $0x2c] sm:$0xf]
    %v2365 = vld [vmem:[#allocation7 + $0x30] sm:$0xff]
    %v2366 = vld [vmem:[#allocation7 + $0x38] sm:$0xf]
    %v2367 = vld [vmem:[#allocation7 + $0x3c] sm:$0xff]
    %v2368 = vld [vmem:[#allocation7 + $0x44] sm:$0xf]
    %v2369 = vld [vmem:[#allocation7 + $0x48] sm:$0xff]
    %v2370 = vld [vmem:[#allocation7 + $0x50] sm:$0xf]
    %v2371 = vld [vmem:[#allocation7 + $0x54] sm:$0xff]
    %v2372 = vld [vmem:[#allocation7 + $0x5c] sm:$0xf]
    %v2373 = vld [vmem:[#allocation7 + $0x60] sm:$0xff]
    %v2374 = vld [vmem:[#allocation7 + $0x68] sm:$0xf]
    %v2375 = vld [vmem:[#allocation7 + $0x6c] sm:$0xff]
    %v2376 = vld [vmem:[#allocation7 + $0x74] sm:$0xf]
    %v2377 = vld [vmem:[#allocation7 + $0x78] sm:$0xff]
    %v2378 = vld [vmem:[#allocation7 + $0x80] sm:$0xf]
    %v2379 = vld [vmem:[#allocation7 + $0x84] sm:$0xff]
    %v2380 = vld [vmem:[#allocation7 + $0x8c] sm:$0xf]
    %v2381 = vld [vmem:[#allocation7 + $0x90] sm:$0xff]
    %v2382 = vld [vmem:[#allocation7 + $0x98] sm:$0xf]
    %v2383 = vld [vmem:[#allocation7 + $0x9c] sm:$0xff]
    %v2384 = vld [vmem:[#allocation7 + $0xa4] sm:$0xf]
    %v2385 = vld [vmem:[#allocation7 + $0xa8] sm:$0xff]
    %v2386 = vld [vmem:[#allocation7 + $0xb0] sm:$0xf]
    %v2387 = vld [vmem:[#allocation7 + $0xb4] sm:$0xff]
    %v2388 = vld [vmem:[#allocation7 + $0xbc] sm:$0xf]
    %v2389 = vld [vmem:[#allocation7 + $0xc0] sm:$0xff]
    %v2390 = vld [vmem:[#allocation7 + $0xc8] sm:$0xf]
    %v2391 = vld [vmem:[#allocation7 + $0xcc] sm:$0xff]
    %v2392 = vld [vmem:[#allocation7 + $0xd4] sm:$0xf]
    %v2393 = vld [vmem:[#allocation7 + $0xd8] sm:$0xff]
    %v2394 = vld [vmem:[#allocation7 + $0xe0] sm:$0xf]
    %v2395 = vld [vmem:[#allocation7 + $0xe4] sm:$0xff]
    %v2396 = vld [vmem:[#allocation7 + $0xec] sm:$0xf]
    %v2397 = vld [vmem:[#allocation7 + $0xf0] sm:$0xff]
    %v2398 = vld [vmem:[#allocation7 + $0xf8] sm:$0xf]
    %v2399 = vld [vmem:[#allocation7 + $0xfc] sm:$0xff]
    %v2400 = vld [vmem:[#allocation7 + $0x104] sm:$0xf]
    %v2401 = vld [vmem:[#allocation7 + $0x108] sm:$0xff]
    %v2402 = vld [vmem:[#allocation7 + $0x110] sm:$0xf]
    %v2403 = vld [vmem:[#allocation7 + $0x114] sm:$0xff]
    %v2404 = vld [vmem:[#allocation7 + $0x11c] sm:$0xf]
    %v2405 = vld [vmem:[#allocation7 + $0x120] sm:$0xff]
    %v2406 = vld [vmem:[#allocation7 + $0x128] sm:$0xf]
    %v2407 = vld [vmem:[#allocation7 + $0x12c] sm:$0xff]
    %v2408 = vld [vmem:[#allocation7 + $0x134] sm:$0xf]
    %v2409 = vld [vmem:[#allocation7 + $0x138] sm:$0xff]
    %v2410 = vld [vmem:[#allocation7 + $0x140] sm:$0xf]
    %v2411 = vld [vmem:[#allocation7 + $0x144] sm:$0xff]
    %v2412 = vld [vmem:[#allocation7 + $0x14c] sm:$0xf]
    %v2413 = vld [vmem:[#allocation7 + $0x150] sm:$0xff]
    %v2414 = vld [vmem:[#allocation7 + $0x158] sm:$0xf]
    %v2415 = vld [vmem:[#allocation7 + $0x15c] sm:$0xff]
    %v2416 = vld [vmem:[#allocation7 + $0x164] sm:$0xf]
    %v2417 = vld [vmem:[#allocation7 + $0x168] sm:$0xff]
    %v2418 = vld [vmem:[#allocation7 + $0x170] sm:$0xf]
    %v2419 = vld [vmem:[#allocation7 + $0x174] sm:$0xff]
    %v2420 = vld [vmem:[#allocation7 + $0x17c] sm:$0xf]
    %v2421 = vld [vmem:[#allocation7 + $0x180] sm:$0xff]
    %v2422 = vld [vmem:[#allocation7 + $0x188] sm:$0xf]
    %v2423 = vld [vmem:[#allocation7 + $0x18c] sm:$0xff]
    %v2424 = vld [vmem:[#allocation7 + $0x194] sm:$0xf]
    %v2425 = vld [vmem:[#allocation7 + $0x198] sm:$0xff]
    %v2426 = vld [vmem:[#allocation7 + $0x1a0] sm:$0xf]
    %v2427 = vld [vmem:[#allocation7 + $0x1a4] sm:$0xff]
    %v2428 = vld [vmem:[#allocation7 + $0x1ac] sm:$0xf]
    %v2429 = vld [vmem:[#allocation7 + $0x1b0] sm:$0xff]
    %v2430 = vld [vmem:[#allocation7 + $0x1b8] sm:$0xf]
    %v2431 = vld [vmem:[#allocation7 + $0x1bc] sm:$0xff]
    %v2432 = vld [vmem:[#allocation7 + $0x1c4] sm:$0xf]
    %v2433 = vld [vmem:[#allocation7 + $0x1c8] sm:$0xff]
    %v2434 = vld [vmem:[#allocation7 + $0x1d0] sm:$0xf]
    %v2435 = vld [vmem:[#allocation7 + $0x1d4] sm:$0xff]
    %v2436 = vld [vmem:[#allocation7 + $0x1dc] sm:$0xf]
    %v2437 = vld [vmem:[#allocation7 + $0x1e0] sm:$0xff]
    %v2438 = vld [vmem:[#allocation7 + $0x1e8] sm:$0xf]
    %v2439 = vld [vmem:[#allocation7 + $0x1ec] sm:$0xff]
    %v2440 = vld [vmem:[#allocation7 + $0x1f4] sm:$0xf]
    %v2441 = vld [vmem:[#allocation7 + $0x1f8] sm:$0xff]
    %v2442 = vld [vmem:[#allocation7 + $0x200] sm:$0xf]
    %v2443 = vld [vmem:[#allocation7 + $0x204] sm:$0xff]
    %v2444 = vld [vmem:[#allocation7 + $0x20c] sm:$0xf]
    %v2445 = vld [vmem:[#allocation7 + $0x210] sm:$0xff]
    %v2446 = vld [vmem:[#allocation7 + $0x218] sm:$0xf]
    %v2447 = vld [vmem:[#allocation7 + $0x21c] sm:$0xff]
    %v2448 = vld [vmem:[#allocation7 + $0x224] sm:$0xf]
    %v2449 = vld [vmem:[#allocation7 + $0x228] sm:$0xff]
    %v2450 = vld [vmem:[#allocation7 + $0x230] sm:$0xf]
    %v2451 = vld [vmem:[#allocation7 + $0x234] sm:$0xff]
    %v2452 = vld [vmem:[#allocation7 + $0x23c] sm:$0xf]
    %v2453 = vld [vmem:[#allocation7 + $0x240] sm:$0xff]
    %v2454 = vld [vmem:[#allocation7 + $0x248] sm:$0xf]
    %v2455 = vld [vmem:[#allocation7 + $0x24c] sm:$0xff]
    %v2456 = vld [vmem:[#allocation7 + $0x254] sm:$0xf]
    %v2457 = vld [vmem:[#allocation7 + $0x258] sm:$0xff]
    %v2458 = vld [vmem:[#allocation7 + $0x260] sm:$0xf]
    %v2459 = vld [vmem:[#allocation7 + $0x264] sm:$0xff]
    %v2460 = vld [vmem:[#allocation7 + $0x26c] sm:$0xf]
    %v2461 = vld [vmem:[#allocation7 + $0x270] sm:$0xff]
    %v2462 = vld [vmem:[#allocation7 + $0x278] sm:$0xf]
    %v2463 = vld [vmem:[#allocation7 + $0x27c] sm:$0xff]
    %v2464 = vld [vmem:[#allocation7 + $0x284] sm:$0xf]
    %v2465 = vld [vmem:[#allocation7 + $0x288] sm:$0xff]
    %v2466 = vld [vmem:[#allocation7 + $0x290] sm:$0xf]
    %v2467 = vld [vmem:[#allocation7 + $0x294] sm:$0xff]
    %v2468 = vld [vmem:[#allocation7 + $0x29c] sm:$0xf]
    %v2469 = vld [vmem:[#allocation7 + $0x2a0] sm:$0xff]
    %v2470 = vld [vmem:[#allocation7 + $0x2a8] sm:$0xf]
    %v2471 = vld [vmem:[#allocation7 + $0x2ac] sm:$0xff]
    %v2472 = vld [vmem:[#allocation7 + $0x2b4] sm:$0xf]
    %v2473 = vld [vmem:[#allocation7 + $0x2b8] sm:$0xff]
    %v2474 = vld [vmem:[#allocation7 + $0x2c0] sm:$0xf]
    %v2475 = vld [vmem:[#allocation7 + $0x2c4] sm:$0xff]
    %v2476 = vld [vmem:[#allocation7 + $0x2cc] sm:$0xf]
    %v2477 = vld [vmem:[#allocation7 + $0x2d0] sm:$0xff]
    %v2478 = vld [vmem:[#allocation7 + $0x2d8] sm:$0xf]
    %v2479 = vld [vmem:[#allocation7 + $0x2dc] sm:$0xff]
    %v2480 = vld [vmem:[#allocation7 + $0x2e4] sm:$0xf]
    %v2481 = vld [vmem:[#allocation7 + $0x2e8] sm:$0xff]
    %v2482 = vld [vmem:[#allocation7 + $0x2f0] sm:$0xf]
    %v2483 = vld [vmem:[#allocation7 + $0x2f4] sm:$0xff]
    %v2484 = vld [vmem:[#allocation7 + $0x2fc] sm:$0xf]
    %v2485 = vld [vmem:[#allocation7 + $0x300] sm:$0xff]
    %v2486 = vld [vmem:[#allocation7 + $0x308] sm:$0xf]
    %v2487 = vld [vmem:[#allocation7 + $0x30c] sm:$0xff]
    %v2488 = vld [vmem:[#allocation7 + $0x314] sm:$0xf]
    %v2489 = vld [vmem:[#allocation7 + $0x318] sm:$0xff]
    %v2490 = vld [vmem:[#allocation7 + $0x320] sm:$0xf]
    %v2491 = vld [vmem:[#allocation7 + $0x324] sm:$0xff]
    %v2492 = vld [vmem:[#allocation7 + $0x32c] sm:$0xf]
    %v2493 = vld [vmem:[#allocation7 + $0x330] sm:$0xff]
    %v2494 = vld [vmem:[#allocation7 + $0x338] sm:$0xf]
    %v2495 = vld [vmem:[#allocation7 + $0x33c] sm:$0xff]
    %v2496 = vld [vmem:[#allocation7 + $0x344] sm:$0xf]
    %v2497 = vld [vmem:[#allocation7 + $0x348] sm:$0xff]
    %v2498 = vld [vmem:[#allocation7 + $0x350] sm:$0xf]
    %v2499 = vld [vmem:[#allocation7 + $0x354] sm:$0xff]
    %v2500 = vld [vmem:[#allocation7 + $0x35c] sm:$0xf]
    %v2501 = vld [vmem:[#allocation7 + $0x360] sm:$0xff]
    %v2502 = vld [vmem:[#allocation7 + $0x368] sm:$0xf]
    %v2503 = vld [vmem:[#allocation7 + $0x36c] sm:$0xff]
    %v2504 = vld [vmem:[#allocation7 + $0x374] sm:$0xf]
    %v2505 = vld [vmem:[#allocation7 + $0x378] sm:$0xff]
    %v2506 = vld [vmem:[#allocation7 + $0x380] sm:$0xf]
    %v2507 = vld [vmem:[#allocation7 + $0x384] sm:$0xff]
    %v2508 = vld [vmem:[#allocation7 + $0x38c] sm:$0xf]
    %v2509 = vld [vmem:[#allocation7 + $0x390] sm:$0xff]
    %v2510 = vld [vmem:[#allocation7 + $0x398] sm:$0xf]
    %v2511 = vld [vmem:[#allocation7 + $0x39c] sm:$0xff]
    %v2512 = vld [vmem:[#allocation7 + $0x3a4] sm:$0xf]
    %v2513 = vld [vmem:[#allocation7 + $0x3a8] sm:$0xff]
    %v2514 = vld [vmem:[#allocation7 + $0x3b0] sm:$0xf]
    %v2515 = vld [vmem:[#allocation7 + $0x3b4] sm:$0xff]
    %v2516 = vld [vmem:[#allocation7 + $0x3bc] sm:$0xf]
    %v2517 = vld [vmem:[#allocation7 + $0x3c0] sm:$0xff]
    %v2518 = vld [vmem:[#allocation7 + $0x3c8] sm:$0xf]
    %v2519 = vld [vmem:[#allocation7 + $0x3cc] sm:$0xff]
    %v2520 = vld [vmem:[#allocation7 + $0x3d4] sm:$0xf]
    %v2521 = vld [vmem:[#allocation7 + $0x3d8] sm:$0xff]
    %v2522 = vld [vmem:[#allocation7 + $0x3e0] sm:$0xf]
    %v2523 = vld [vmem:[#allocation7 + $0x3e4] sm:$0xff]
    %v2524 = vld [vmem:[#allocation7 + $0x3ec] sm:$0xf]
    %v2525 = vld [vmem:[#allocation7 + $0x3f0] sm:$0xff]
    %v2526 = vld [vmem:[#allocation7 + $0x3f8] sm:$0xf]
    %v2527 = vld [vmem:[#allocation7 + $0x3fc] sm:$0xff]
    %v2528 = vld [vmem:[#allocation7 + $0x404] sm:$0xf]
    %v2529 = vld [vmem:[#allocation7 + $0x408] sm:$0xff]
    %v2530 = vld [vmem:[#allocation7 + $0x410] sm:$0xf]
    %v2531 = vld [vmem:[#allocation7 + $0x414] sm:$0xff]
    %v2532 = vld [vmem:[#allocation7 + $0x41c] sm:$0xf]
    %v2533 = vld [vmem:[#allocation7 + $0x420] sm:$0xff]
    %v2534 = vld [vmem:[#allocation7 + $0x428] sm:$0xf]
    %v2535 = vld [vmem:[#allocation7 + $0x42c] sm:$0xff]
    %v2536 = vld [vmem:[#allocation7 + $0x434] sm:$0xf]
    %v2537 = vld [vmem:[#allocation7 + $0x438] sm:$0xff]
    %v2538 = vld [vmem:[#allocation7 + $0x440] sm:$0xf]
    %v2539 = vld [vmem:[#allocation7 + $0x444] sm:$0xff]
    %v2540 = vld [vmem:[#allocation7 + $0x44c] sm:$0xf]
    %v2541 = vld [vmem:[#allocation7 + $0x450] sm:$0xff]
    %v2542 = vld [vmem:[#allocation7 + $0x458] sm:$0xf]
    %v2543 = vld [vmem:[#allocation7 + $0x45c] sm:$0xff]
    %v2544 = vld [vmem:[#allocation7 + $0x464] sm:$0xf]
    %v2545 = vld [vmem:[#allocation7 + $0x468] sm:$0xff]
    %v2546 = vld [vmem:[#allocation7 + $0x470] sm:$0xf]
    %v2547 = vld [vmem:[#allocation7 + $0x474] sm:$0xff]
    %v2548 = vld [vmem:[#allocation7 + $0x47c] sm:$0xf]
    %v2549 = vld [vmem:[#allocation7 + $0x480] sm:$0xff]
    %v2550 = vld [vmem:[#allocation7 + $0x488] sm:$0xf]
    %v2551 = vld [vmem:[#allocation7 + $0x48c] sm:$0xff]
    %v2552 = vld [vmem:[#allocation7 + $0x494] sm:$0xf]
    %v2553 = vld [vmem:[#allocation7 + $0x498] sm:$0xff]
    %v2554 = vld [vmem:[#allocation7 + $0x4a0] sm:$0xf]
    %v2555 = vld [vmem:[#allocation7 + $0x4a4] sm:$0xff]
    %v2556 = vld [vmem:[#allocation7 + $0x4ac] sm:$0xf]
    %v2557 = vld [vmem:[#allocation7 + $0x4b0] sm:$0xff]
    %v2558 = vld [vmem:[#allocation7 + $0x4b8] sm:$0xf]
    %v2559 = vld [vmem:[#allocation7 + $0x4bc] sm:$0xff]
    %v2560 = vld [vmem:[#allocation7 + $0x4c4] sm:$0xf]
    %v2561 = vld [vmem:[#allocation7 + $0x4c8] sm:$0xff]
    %v2562 = vld [vmem:[#allocation7 + $0x4d0] sm:$0xf]
    %v2563 = vld [vmem:[#allocation7 + $0x4d4] sm:$0xff]
    %v2564 = vld [vmem:[#allocation7 + $0x4dc] sm:$0xf]
    %v2565 = vld [vmem:[#allocation7 + $0x4e0] sm:$0xff]
    %v2566 = vld [vmem:[#allocation7 + $0x4e8] sm:$0xf]
    %v2567 = vld [vmem:[#allocation7 + $0x4ec] sm:$0xff]
    %v2568 = vld [vmem:[#allocation7 + $0x4f4] sm:$0xf]
    %v2569 = vld [vmem:[#allocation7 + $0x4f8] sm:$0xff]
    %v2570 = vld [vmem:[#allocation7 + $0x500] sm:$0xf]
    %v2571 = vld [vmem:[#allocation7 + $0x504] sm:$0xff]
    %v2572 = vld [vmem:[#allocation7 + $0x50c] sm:$0xf]
    %v2573 = vld [vmem:[#allocation7 + $0x510] sm:$0xff]
    %v2574 = vld [vmem:[#allocation7 + $0x518] sm:$0xf]
    %v2575 = vld [vmem:[#allocation7 + $0x51c] sm:$0xff]
    %v2576 = vld [vmem:[#allocation7 + $0x524] sm:$0xf]
    %v2577 = vld [vmem:[#allocation7 + $0x528] sm:$0xff]
    %v2578 = vld [vmem:[#allocation7 + $0x530] sm:$0xf]
    %v2579 = vld [vmem:[#allocation7 + $0x534] sm:$0xff]
    %v2580 = vld [vmem:[#allocation7 + $0x53c] sm:$0xf]
    %v2581 = vld [vmem:[#allocation7 + $0x540] sm:$0xff]
    %v2582 = vld [vmem:[#allocation7 + $0x548] sm:$0xf]
    %v2583 = vld [vmem:[#allocation7 + $0x54c] sm:$0xff]
    %v2584 = vld [vmem:[#allocation7 + $0x554] sm:$0xf]
    %v2585 = vld [vmem:[#allocation7 + $0x558] sm:$0xff]
    %v2586 = vld [vmem:[#allocation7 + $0x560] sm:$0xf]
    %v2587 = vld [vmem:[#allocation7 + $0x564] sm:$0xff]
    %v2588 = vld [vmem:[#allocation7 + $0x56c] sm:$0xf]
    %v2589 = vld [vmem:[#allocation7 + $0x570] sm:$0xff]
    %v2590 = vld [vmem:[#allocation7 + $0x578] sm:$0xf]
    %v2591 = vld [vmem:[#allocation7 + $0x57c] sm:$0xff]
    %v2592 = vld [vmem:[#allocation7 + $0x584] sm:$0xf]
    %v2593 = vld [vmem:[#allocation7 + $0x588] sm:$0xff]
    %v2594 = vld [vmem:[#allocation7 + $0x590] sm:$0xf]
    %v2595 = vld [vmem:[#allocation7 + $0x594] sm:$0xff]
    %v2596 = vld [vmem:[#allocation7 + $0x59c] sm:$0xf]
    %v2597 = vld [vmem:[#allocation7 + $0x5a0] sm:$0xff]
    %v2598 = vld [vmem:[#allocation7 + $0x5a8] sm:$0xf]
    %v2599 = vld [vmem:[#allocation7 + $0x5ac] sm:$0xff]
    %v2600 = vld [vmem:[#allocation7 + $0x5b4] sm:$0xf]
    %v2601 = vld [vmem:[#allocation7 + $0x5b8] sm:$0xff]
    %v2602 = vld [vmem:[#allocation7 + $0x5c0] sm:$0xf]
    %v2603 = vld [vmem:[#allocation7 + $0x5c4] sm:$0xff]
    %v2604 = vld [vmem:[#allocation7 + $0x5cc] sm:$0xf]
    %v2605 = vld [vmem:[#allocation7 + $0x5d0] sm:$0xff]
    %v2606 = vld [vmem:[#allocation7 + $0x5d8] sm:$0xf]
    %v2607 = vld [vmem:[#allocation7 + $0x5dc] sm:$0xff]
    %v2608 = vld [vmem:[#allocation7 + $0x5e4] sm:$0xf]
    %v2609 = vld [vmem:[#allocation7 + $0x5e8] sm:$0xff]
    %v2610 = vld [vmem:[#allocation7 + $0x5f0] sm:$0xf]
    %v2611 = vld [vmem:[#allocation7 + $0x5f4] sm:$0xff]
    %v2612 = vld [vmem:[#allocation7 + $0x5fc] sm:$0xf]
    %v2613 = vld [vmem:[#allocation7 + $0x600] sm:$0xff]
    %v2614 = vld [vmem:[#allocation7 + $0x608] sm:$0xf]
    %v2615 = vld [vmem:[#allocation7 + $0x60c] sm:$0xff]
    %v2616 = vld [vmem:[#allocation7 + $0x614] sm:$0xf]
    %v2617 = vld [vmem:[#allocation7 + $0x618] sm:$0xff]
    %v2618 = vld [vmem:[#allocation7 + $0x620] sm:$0xf]
    %v2619 = vld [vmem:[#allocation7 + $0x624] sm:$0xff]
    %v2620 = vld [vmem:[#allocation7 + $0x62c] sm:$0xf]
    %v2621 = vld [vmem:[#allocation7 + $0x630] sm:$0xff]
    %v2622 = vld [vmem:[#allocation7 + $0x638] sm:$0xf]
    %v2623 = vld [vmem:[#allocation7 + $0x63c] sm:$0xff]
    %v2624 = vld [vmem:[#allocation7 + $0x644] sm:$0xf]
    %v2625 = vld [vmem:[#allocation7 + $0x648] sm:$0xff]
    %v2626 = vld [vmem:[#allocation7 + $0x650] sm:$0xf]
    %v2627 = vld [vmem:[#allocation7 + $0x654] sm:$0xff]
    %v2628 = vld [vmem:[#allocation7 + $0x65c] sm:$0xf]
    %v2629 = vld [vmem:[#allocation7 + $0x660] sm:$0xff]
    %v2630 = vld [vmem:[#allocation7 + $0x668] sm:$0xf]
    %v2631 = vld [vmem:[#allocation7 + $0x66c] sm:$0xff]
    %v2632 = vld [vmem:[#allocation7 + $0x674] sm:$0xf]
    %v2633 = vld [vmem:[#allocation7 + $0x678] sm:$0xff]
    %v2634 = vld [vmem:[#allocation7 + $0x680] sm:$0xf]
    %v2635 = vld [vmem:[#allocation7 + $0x684] sm:$0xff]
    %v2636 = vld [vmem:[#allocation7 + $0x68c] sm:$0xf]
    %v2637 = vld [vmem:[#allocation7 + $0x690] sm:$0xff]
    %v2638 = vld [vmem:[#allocation7 + $0x698] sm:$0xf]
    %v2639 = vld [vmem:[#allocation7 + $0x69c] sm:$0xff]
    %v2640 = vld [vmem:[#allocation7 + $0x6a4] sm:$0xf]
    %v2641 = vld [vmem:[#allocation7 + $0x6a8] sm:$0xff]
    %v2642 = vld [vmem:[#allocation7 + $0x6b0] sm:$0xf]
    %v2643 = vld [vmem:[#allocation7 + $0x6b4] sm:$0xff]
    %v2644 = vld [vmem:[#allocation7 + $0x6bc] sm:$0xf]
    %v2645 = vld [vmem:[#allocation7 + $0x6c0] sm:$0xff]
    %v2646 = vld [vmem:[#allocation7 + $0x6c8] sm:$0xf]
    %v2647 = vld [vmem:[#allocation7 + $0x6cc] sm:$0xff]
    %v2648 = vld [vmem:[#allocation7 + $0x6d4] sm:$0xf]
    %v2649 = vld [vmem:[#allocation7 + $0x6d8] sm:$0xff]
    %v2650 = vld [vmem:[#allocation7 + $0x6e0] sm:$0xf]
    %v2651 = vld [vmem:[#allocation7 + $0x6e4] sm:$0xff]
    %v2652 = vld [vmem:[#allocation7 + $0x6ec] sm:$0xf]
    %v2653 = vld [vmem:[#allocation7 + $0x6f0] sm:$0xff]
    %v2654 = vld [vmem:[#allocation7 + $0x6f8] sm:$0xf]
    %v2655 = vld [vmem:[#allocation7 + $0x6fc] sm:$0xff]
    %v2656 = vld [vmem:[#allocation7 + $0x704] sm:$0xf]
    %v2657 = vld [vmem:[#allocation7 + $0x708] sm:$0xff]
    %v2658 = vld [vmem:[#allocation7 + $0x710] sm:$0xf]
    %v2659 = vld [vmem:[#allocation7 + $0x714] sm:$0xff]
    %v2660 = vld [vmem:[#allocation7 + $0x71c] sm:$0xf]
    %v2661 = vld [vmem:[#allocation7 + $0x720] sm:$0xff]
    %v2662 = vld [vmem:[#allocation7 + $0x728] sm:$0xf]
    %v2663 = vld [vmem:[#allocation7 + $0x72c] sm:$0xff]
    %v2664 = vld [vmem:[#allocation7 + $0x734] sm:$0xf]
    %v2665 = vld [vmem:[#allocation7 + $0x738] sm:$0xff]
    %v2666 = vld [vmem:[#allocation7 + $0x740] sm:$0xf]
    %v2667 = vld [vmem:[#allocation7 + $0x744] sm:$0xff]
    %v2668 = vld [vmem:[#allocation7 + $0x74c] sm:$0xf]
    %v2669 = vld [vmem:[#allocation7 + $0x750] sm:$0xff]
    %v2670 = vld [vmem:[#allocation7 + $0x758] sm:$0xf]
    %v2671 = vld [vmem:[#allocation7 + $0x75c] sm:$0xff]
    %v2672 = vld [vmem:[#allocation7 + $0x764] sm:$0xf]
    %v2673 = vld [vmem:[#allocation7 + $0x768] sm:$0xff]
    %v2674 = vld [vmem:[#allocation7 + $0x770] sm:$0xf]
    %v2675 = vld [vmem:[#allocation7 + $0x774] sm:$0xff]
    %v2676 = vld [vmem:[#allocation7 + $0x77c] sm:$0xf]
    %v2677 = vld [vmem:[#allocation7 + $0x780] sm:$0xff]
    %v2678 = vld [vmem:[#allocation7 + $0x788] sm:$0xf]
    %v2679 = vld [vmem:[#allocation7 + $0x78c] sm:$0xff]
    %v2680 = vld [vmem:[#allocation7 + $0x794] sm:$0xf]
    %v2681 = vld [vmem:[#allocation7 + $0x798] sm:$0xff]
    %v2682 = vld [vmem:[#allocation7 + $0x7a0] sm:$0xf]
    %v2683 = vld [vmem:[#allocation7 + $0x7a4] sm:$0xff]
    %v2684 = vld [vmem:[#allocation7 + $0x7ac] sm:$0xf]
    %v2685 = vld [vmem:[#allocation7 + $0x7b0] sm:$0xff]
    %v2686 = vld [vmem:[#allocation7 + $0x7b8] sm:$0xf]
    %v2687 = vld [vmem:[#allocation7 + $0x7bc] sm:$0xff]
    %v2688 = vld [vmem:[#allocation7 + $0x7c4] sm:$0xf]
    %v2689 = vld [vmem:[#allocation7 + $0x7c8] sm:$0xff]
    %v2690 = vld [vmem:[#allocation7 + $0x7d0] sm:$0xf]
    %v2691 = vld [vmem:[#allocation7 + $0x7d4] sm:$0xff]
    %v2692 = vld [vmem:[#allocation7 + $0x7dc] sm:$0xf]
    %v2693 = vld [vmem:[#allocation7 + $0x7e0] sm:$0xff]
    %v2694 = vld [vmem:[#allocation7 + $0x7e8] sm:$0xf]
    %v2695 = vld [vmem:[#allocation7 + $0x7ec] sm:$0xff]
    %v2696 = vld [vmem:[#allocation7 + $0x7f4] sm:$0xf]
    %v2697 = vld [vmem:[#allocation7 + $0x7f8] sm:$0xff]
    %v2698 = vld [vmem:[#allocation7 + $0x800] sm:$0xf]
    %v2699 = vld [vmem:[#allocation7 + $0x804] sm:$0xff]
    %v2700 = vld [vmem:[#allocation7 + $0x80c] sm:$0xf]
    %v2701 = vld [vmem:[#allocation7 + $0x810] sm:$0xff]
    %v2702 = vld [vmem:[#allocation7 + $0x818] sm:$0xf]
    %v2703 = vld [vmem:[#allocation7 + $0x81c] sm:$0xff]
    %v2704 = vld [vmem:[#allocation7 + $0x824] sm:$0xf]
    %v2705 = vld [vmem:[#allocation7 + $0x828] sm:$0xff]
    %v2706 = vld [vmem:[#allocation7 + $0x830] sm:$0xf]
    %v2707 = vld [vmem:[#allocation7 + $0x834] sm:$0xff]
    %v2708 = vld [vmem:[#allocation7 + $0x83c] sm:$0xf]
    %v2709 = vld [vmem:[#allocation7 + $0x840] sm:$0xff]
    %v2710 = vld [vmem:[#allocation7 + $0x848] sm:$0xf]
    %v2711 = vld [vmem:[#allocation7 + $0x84c] sm:$0xff]
    %v2712 = vld [vmem:[#allocation7 + $0x854] sm:$0xf]
    %v2713 = vld [vmem:[#allocation7 + $0x858] sm:$0xff]
    %v2714 = vld [vmem:[#allocation7 + $0x860] sm:$0xf]
    %v2715 = vld [vmem:[#allocation7 + $0x864] sm:$0xff]
    %v2716 = vld [vmem:[#allocation7 + $0x86c] sm:$0xf]
    %v2717 = vld [vmem:[#allocation7 + $0x870] sm:$0xff]
    %v2718 = vld [vmem:[#allocation7 + $0x878] sm:$0xf]
    %v2719 = vld [vmem:[#allocation7 + $0x87c] sm:$0xff]
    %v2720 = vld [vmem:[#allocation7 + $0x884] sm:$0xf]
    %v2721 = vld [vmem:[#allocation7 + $0x888] sm:$0xff]
    %v2722 = vld [vmem:[#allocation7 + $0x890] sm:$0xf]
    %v2723 = vld [vmem:[#allocation7 + $0x894] sm:$0xff]
    %v2724 = vld [vmem:[#allocation7 + $0x89c] sm:$0xf]
    %v2725 = vld [vmem:[#allocation7 + $0x8a0] sm:$0xff]
    %v2726 = vld [vmem:[#allocation7 + $0x8a8] sm:$0xf]
    %v2727 = vld [vmem:[#allocation7 + $0x8ac] sm:$0xff]
    %v2728 = vld [vmem:[#allocation7 + $0x8b4] sm:$0xf]
    %v2729 = vld [vmem:[#allocation7 + $0x8b8] sm:$0xff]
    %v2730 = vld [vmem:[#allocation7 + $0x8c0] sm:$0xf]
    %v2731 = vld [vmem:[#allocation7 + $0x8c4] sm:$0xff]
    %v2732 = vld [vmem:[#allocation7 + $0x8cc] sm:$0xf]
    %v2733 = vld [vmem:[#allocation7 + $0x8d0] sm:$0xff]
    %v2734 = vld [vmem:[#allocation7 + $0x8d8] sm:$0xf]
    %v2735 = vld [vmem:[#allocation7 + $0x8dc] sm:$0xff]
    %v2736 = vld [vmem:[#allocation7 + $0x8e4] sm:$0xf]
    %v2737 = vld [vmem:[#allocation7 + $0x8e8] sm:$0xff]
    %v2738 = vld [vmem:[#allocation7 + $0x8f0] sm:$0xf]
    %v2739 = vld [vmem:[#allocation7 + $0x8f4] sm:$0xff]
    %v2740 = vld [vmem:[#allocation7 + $0x8fc] sm:$0xf]
    %v3125 = vunpack.c.l.b16 %v2357
    %v3126 = vunpack.c.h.b16 %v2357
    %v3127 = vunpack.c.l.b16 %v2358
    %v3128 = vunpack.c.l.b16 %v2359
    %v3129 = vunpack.c.h.b16 %v2359
    %v3130 = vunpack.c.l.b16 %v2360
    %v3131 = vunpack.c.l.b16 %v2361
    %v3132 = vunpack.c.h.b16 %v2361
    %v3133 = vunpack.c.l.b16 %v2362
    %v3134 = vunpack.c.l.b16 %v2363
    %v3135 = vunpack.c.h.b16 %v2363
    %v3136 = vunpack.c.l.b16 %v2364
    %v3137 = vunpack.c.l.b16 %v2365
    %v3138 = vunpack.c.h.b16 %v2365
    %v3139 = vunpack.c.l.b16 %v2366
    %v3140 = vunpack.c.l.b16 %v2367
    %v3141 = vunpack.c.h.b16 %v2367
    %v3142 = vunpack.c.l.b16 %v2368
    %v3143 = vunpack.c.l.b16 %v2369
    %v3144 = vunpack.c.h.b16 %v2369
    %v3145 = vunpack.c.l.b16 %v2370
    %v3146 = vunpack.c.l.b16 %v2371
    %v3147 = vunpack.c.h.b16 %v2371
    %v3148 = vunpack.c.l.b16 %v2372
    %v3149 = vunpack.c.l.b16 %v2373
    %v3150 = vunpack.c.h.b16 %v2373
    %v3151 = vunpack.c.l.b16 %v2374
    %v3152 = vunpack.c.l.b16 %v2375
    %v3153 = vunpack.c.h.b16 %v2375
    %v3154 = vunpack.c.l.b16 %v2376
    %v3155 = vunpack.c.l.b16 %v2377
    %v3156 = vunpack.c.h.b16 %v2377
    %v3157 = vunpack.c.l.b16 %v2378
    %v3158 = vunpack.c.l.b16 %v2379
    %v3159 = vunpack.c.h.b16 %v2379
    %v3160 = vunpack.c.l.b16 %v2380
    %v3161 = vunpack.c.l.b16 %v2381
    %v3162 = vunpack.c.h.b16 %v2381
    %v3163 = vunpack.c.l.b16 %v2382
    %v3164 = vunpack.c.l.b16 %v2383
    %v3165 = vunpack.c.h.b16 %v2383
    %v3166 = vunpack.c.l.b16 %v2384
    %v3167 = vunpack.c.l.b16 %v2385
    %v3168 = vunpack.c.h.b16 %v2385
    %v3169 = vunpack.c.l.b16 %v2386
    %v3170 = vunpack.c.l.b16 %v2387
    %v3171 = vunpack.c.h.b16 %v2387
    %v3172 = vunpack.c.l.b16 %v2388
    %v3173 = vunpack.c.l.b16 %v2389
    %v3174 = vunpack.c.h.b16 %v2389
    %v3175 = vunpack.c.l.b16 %v2390
    %v3176 = vunpack.c.l.b16 %v2391
    %v3177 = vunpack.c.h.b16 %v2391
    %v3178 = vunpack.c.l.b16 %v2392
    %v3179 = vunpack.c.l.b16 %v2393
    %v3180 = vunpack.c.h.b16 %v2393
    %v3181 = vunpack.c.l.b16 %v2394
    %v3182 = vunpack.c.l.b16 %v2395
    %v3183 = vunpack.c.h.b16 %v2395
    %v3184 = vunpack.c.l.b16 %v2396
    %v3185 = vunpack.c.l.b16 %v2397
    %v3186 = vunpack.c.h.b16 %v2397
    %v3187 = vunpack.c.l.b16 %v2398
    %v3188 = vunpack.c.l.b16 %v2399
    %v3189 = vunpack.c.h.b16 %v2399
    %v3190 = vunpack.c.l.b16 %v2400
    %v3191 = vunpack.c.l.b16 %v2401
    %v3192 = vunpack.c.h.b16 %v2401
    %v3193 = vunpack.c.l.b16 %v2402
    %v3194 = vunpack.c.l.b16 %v2403
    %v3195 = vunpack.c.h.b16 %v2403
    %v3196 = vunpack.c.l.b16 %v2404
    %v3197 = vunpack.c.l.b16 %v2405
    %v3198 = vunpack.c.h.b16 %v2405
    %v3199 = vunpack.c.l.b16 %v2406
    %v3200 = vunpack.c.l.b16 %v2407
    %v3201 = vunpack.c.h.b16 %v2407
    %v3202 = vunpack.c.l.b16 %v2408
    %v3203 = vunpack.c.l.b16 %v2409
    %v3204 = vunpack.c.h.b16 %v2409
    %v3205 = vunpack.c.l.b16 %v2410
    %v3206 = vunpack.c.l.b16 %v2411
    %v3207 = vunpack.c.h.b16 %v2411
    %v3208 = vunpack.c.l.b16 %v2412
    %v3209 = vunpack.c.l.b16 %v2413
    %v3210 = vunpack.c.h.b16 %v2413
    %v3211 = vunpack.c.l.b16 %v2414
    %v3212 = vunpack.c.l.b16 %v2415
    %v3213 = vunpack.c.h.b16 %v2415
    %v3214 = vunpack.c.l.b16 %v2416
    %v3215 = vunpack.c.l.b16 %v2417
    %v3216 = vunpack.c.h.b16 %v2417
    %v3217 = vunpack.c.l.b16 %v2418
    %v3218 = vunpack.c.l.b16 %v2419
    %v3219 = vunpack.c.h.b16 %v2419
    %v3220 = vunpack.c.l.b16 %v2420
    %v3221 = vunpack.c.l.b16 %v2421
    %v3222 = vunpack.c.h.b16 %v2421
    %v3223 = vunpack.c.l.b16 %v2422
    %v3224 = vunpack.c.l.b16 %v2423
    %v3225 = vunpack.c.h.b16 %v2423
    %v3226 = vunpack.c.l.b16 %v2424
    %v3227 = vunpack.c.l.b16 %v2425
    %v3228 = vunpack.c.h.b16 %v2425
    %v3229 = vunpack.c.l.b16 %v2426
    %v3230 = vunpack.c.l.b16 %v2427
    %v3231 = vunpack.c.h.b16 %v2427
    %v3232 = vunpack.c.l.b16 %v2428
    %v3233 = vunpack.c.l.b16 %v2429
    %v3234 = vunpack.c.h.b16 %v2429
    %v3235 = vunpack.c.l.b16 %v2430
    %v3236 = vunpack.c.l.b16 %v2431
    %v3237 = vunpack.c.h.b16 %v2431
    %v3238 = vunpack.c.l.b16 %v2432
    %v3239 = vunpack.c.l.b16 %v2433
    %v3240 = vunpack.c.h.b16 %v2433
    %v3241 = vunpack.c.l.b16 %v2434
    %v3242 = vunpack.c.l.b16 %v2435
    %v3243 = vunpack.c.h.b16 %v2435
    %v3244 = vunpack.c.l.b16 %v2436
    %v3245 = vunpack.c.l.b16 %v2437
    %v3246 = vunpack.c.h.b16 %v2437
    %v3247 = vunpack.c.l.b16 %v2438
    %v3248 = vunpack.c.l.b16 %v2439
    %v3249 = vunpack.c.h.b16 %v2439
    %v3250 = vunpack.c.l.b16 %v2440
    %v3251 = vunpack.c.l.b16 %v2441
    %v3252 = vunpack.c.h.b16 %v2441
    %v3253 = vunpack.c.l.b16 %v2442
    %v3254 = vunpack.c.l.b16 %v2443
    %v3255 = vunpack.c.h.b16 %v2443
    %v3256 = vunpack.c.l.b16 %v2444
    %v3257 = vunpack.c.l.b16 %v2445
    %v3258 = vunpack.c.h.b16 %v2445
    %v3259 = vunpack.c.l.b16 %v2446
    %v3260 = vunpack.c.l.b16 %v2447
    %v3261 = vunpack.c.h.b16 %v2447
    %v3262 = vunpack.c.l.b16 %v2448
    %v3263 = vunpack.c.l.b16 %v2449
    %v3264 = vunpack.c.h.b16 %v2449
    %v3265 = vunpack.c.l.b16 %v2450
    %v3266 = vunpack.c.l.b16 %v2451
    %v3267 = vunpack.c.h.b16 %v2451
    %v3268 = vunpack.c.l.b16 %v2452
    %v3269 = vunpack.c.l.b16 %v2453
    %v3270 = vunpack.c.h.b16 %v2453
    %v3271 = vunpack.c.l.b16 %v2454
    %v3272 = vunpack.c.l.b16 %v2455
    %v3273 = vunpack.c.h.b16 %v2455
    %v3274 = vunpack.c.l.b16 %v2456
    %v3275 = vunpack.c.l.b16 %v2457
    %v3276 = vunpack.c.h.b16 %v2457
    %v3277 = vunpack.c.l.b16 %v2458
    %v3278 = vunpack.c.l.b16 %v2459
    %v3279 = vunpack.c.h.b16 %v2459
    %v3280 = vunpack.c.l.b16 %v2460
    %v3281 = vunpack.c.l.b16 %v2461
    %v3282 = vunpack.c.h.b16 %v2461
    %v3283 = vunpack.c.l.b16 %v2462
    %v3284 = vunpack.c.l.b16 %v2463
    %v3285 = vunpack.c.h.b16 %v2463
    %v3286 = vunpack.c.l.b16 %v2464
    %v3287 = vunpack.c.l.b16 %v2465
    %v3288 = vunpack.c.h.b16 %v2465
    %v3289 = vunpack.c.l.b16 %v2466
    %v3290 = vunpack.c.l.b16 %v2467
    %v3291 = vunpack.c.h.b16 %v2467
    %v3292 = vunpack.c.l.b16 %v2468
    %v3293 = vunpack.c.l.b16 %v2469
    %v3294 = vunpack.c.h.b16 %v2469
    %v3295 = vunpack.c.l.b16 %v2470
    %v3296 = vunpack.c.l.b16 %v2471
    %v3297 = vunpack.c.h.b16 %v2471
    %v3298 = vunpack.c.l.b16 %v2472
    %v3299 = vunpack.c.l.b16 %v2473
    %v3300 = vunpack.c.h.b16 %v2473
    %v3301 = vunpack.c.l.b16 %v2474
    %v3302 = vunpack.c.l.b16 %v2475
    %v3303 = vunpack.c.h.b16 %v2475
    %v3304 = vunpack.c.l.b16 %v2476
    %v3305 = vunpack.c.l.b16 %v2477
    %v3306 = vunpack.c.h.b16 %v2477
    %v3307 = vunpack.c.l.b16 %v2478
    %v3308 = vunpack.c.l.b16 %v2479
    %v3309 = vunpack.c.h.b16 %v2479
    %v3310 = vunpack.c.l.b16 %v2480
    %v3311 = vunpack.c.l.b16 %v2481
    %v3312 = vunpack.c.h.b16 %v2481
    %v3313 = vunpack.c.l.b16 %v2482
    %v3314 = vunpack.c.l.b16 %v2483
    %v3315 = vunpack.c.h.b16 %v2483
    %v3316 = vunpack.c.l.b16 %v2484
    %v3317 = vunpack.c.l.b16 %v2485
    %v3318 = vunpack.c.h.b16 %v2485
    %v3319 = vunpack.c.l.b16 %v2486
    %v3320 = vunpack.c.l.b16 %v2487
    %v3321 = vunpack.c.h.b16 %v2487
    %v3322 = vunpack.c.l.b16 %v2488
    %v3323 = vunpack.c.l.b16 %v2489
    %v3324 = vunpack.c.h.b16 %v2489
    %v3325 = vunpack.c.l.b16 %v2490
    %v3326 = vunpack.c.l.b16 %v2491
    %v3327 = vunpack.c.h.b16 %v2491
    %v3328 = vunpack.c.l.b16 %v2492
    %v3329 = vunpack.c.l.b16 %v2493
    %v3330 = vunpack.c.h.b16 %v2493
    %v3331 = vunpack.c.l.b16 %v2494
    %v3332 = vunpack.c.l.b16 %v2495
    %v3333 = vunpack.c.h.b16 %v2495
    %v3334 = vunpack.c.l.b16 %v2496
    %v3335 = vunpack.c.l.b16 %v2497
    %v3336 = vunpack.c.h.b16 %v2497
    %v3337 = vunpack.c.l.b16 %v2498
    %v3338 = vunpack.c.l.b16 %v2499
    %v3339 = vunpack.c.h.b16 %v2499
    %v3340 = vunpack.c.l.b16 %v2500
    %v3341 = vunpack.c.l.b16 %v2501
    %v3342 = vunpack.c.h.b16 %v2501
    %v3343 = vunpack.c.l.b16 %v2502
    %v3344 = vunpack.c.l.b16 %v2503
    %v3345 = vunpack.c.h.b16 %v2503
    %v3346 = vunpack.c.l.b16 %v2504
    %v3347 = vunpack.c.l.b16 %v2505
    %v3348 = vunpack.c.h.b16 %v2505
    %v3349 = vunpack.c.l.b16 %v2506
    %v3350 = vunpack.c.l.b16 %v2507
    %v3351 = vunpack.c.h.b16 %v2507
    %v3352 = vunpack.c.l.b16 %v2508
    %v3353 = vunpack.c.l.b16 %v2509
    %v3354 = vunpack.c.h.b16 %v2509
    %v3355 = vunpack.c.l.b16 %v2510
    %v3356 = vunpack.c.l.b16 %v2511
    %v3357 = vunpack.c.h.b16 %v2511
    %v3358 = vunpack.c.l.b16 %v2512
    %v3359 = vunpack.c.l.b16 %v2513
    %v3360 = vunpack.c.h.b16 %v2513
    %v3361 = vunpack.c.l.b16 %v2514
    %v3362 = vunpack.c.l.b16 %v2515
    %v3363 = vunpack.c.h.b16 %v2515
    %v3364 = vunpack.c.l.b16 %v2516
    %v3365 = vunpack.c.l.b16 %v2517
    %v3366 = vunpack.c.h.b16 %v2517
    %v3367 = vunpack.c.l.b16 %v2518
    %v3368 = vunpack.c.l.b16 %v2519
    %v3369 = vunpack.c.h.b16 %v2519
    %v3370 = vunpack.c.l.b16 %v2520
    %v3371 = vunpack.c.l.b16 %v2521
    %v3372 = vunpack.c.h.b16 %v2521
    %v3373 = vunpack.c.l.b16 %v2522
    %v3374 = vunpack.c.l.b16 %v2523
    %v3375 = vunpack.c.h.b16 %v2523
    %v3376 = vunpack.c.l.b16 %v2524
    %v3377 = vunpack.c.l.b16 %v2525
    %v3378 = vunpack.c.h.b16 %v2525
    %v3379 = vunpack.c.l.b16 %v2526
    %v3380 = vunpack.c.l.b16 %v2527
    %v3381 = vunpack.c.h.b16 %v2527
    %v3382 = vunpack.c.l.b16 %v2528
    %v3383 = vunpack.c.l.b16 %v2529
    %v3384 = vunpack.c.h.b16 %v2529
    %v3385 = vunpack.c.l.b16 %v2530
    %v3386 = vunpack.c.l.b16 %v2531
    %v3387 = vunpack.c.h.b16 %v2531
    %v3388 = vunpack.c.l.b16 %v2532
    %v3389 = vunpack.c.l.b16 %v2533
    %v3390 = vunpack.c.h.b16 %v2533
    %v3391 = vunpack.c.l.b16 %v2534
    %v3392 = vunpack.c.l.b16 %v2535
    %v3393 = vunpack.c.h.b16 %v2535
    %v3394 = vunpack.c.l.b16 %v2536
    %v3395 = vunpack.c.l.b16 %v2537
    %v3396 = vunpack.c.h.b16 %v2537
    %v3397 = vunpack.c.l.b16 %v2538
    %v3398 = vunpack.c.l.b16 %v2539
    %v3399 = vunpack.c.h.b16 %v2539
    %v3400 = vunpack.c.l.b16 %v2540
    %v3401 = vunpack.c.l.b16 %v2541
    %v3402 = vunpack.c.h.b16 %v2541
    %v3403 = vunpack.c.l.b16 %v2542
    %v3404 = vunpack.c.l.b16 %v2543
    %v3405 = vunpack.c.h.b16 %v2543
    %v3406 = vunpack.c.l.b16 %v2544
    %v3407 = vunpack.c.l.b16 %v2545
    %v3408 = vunpack.c.h.b16 %v2545
    %v3409 = vunpack.c.l.b16 %v2546
    %v3410 = vunpack.c.l.b16 %v2547
    %v3411 = vunpack.c.h.b16 %v2547
    %v3412 = vunpack.c.l.b16 %v2548
    %v3413 = vunpack.c.l.b16 %v2549
    %v3414 = vunpack.c.h.b16 %v2549
    %v3415 = vunpack.c.l.b16 %v2550
    %v3416 = vunpack.c.l.b16 %v2551
    %v3417 = vunpack.c.h.b16 %v2551
    %v3418 = vunpack.c.l.b16 %v2552
    %v3419 = vunpack.c.l.b16 %v2553
    %v3420 = vunpack.c.h.b16 %v2553
    %v3421 = vunpack.c.l.b16 %v2554
    %v3422 = vunpack.c.l.b16 %v2555
    %v3423 = vunpack.c.h.b16 %v2555
    %v3424 = vunpack.c.l.b16 %v2556
    %v3425 = vunpack.c.l.b16 %v2557
    %v3426 = vunpack.c.h.b16 %v2557
    %v3427 = vunpack.c.l.b16 %v2558
    %v3428 = vunpack.c.l.b16 %v2559
    %v3429 = vunpack.c.h.b16 %v2559
    %v3430 = vunpack.c.l.b16 %v2560
    %v3431 = vunpack.c.l.b16 %v2561
    %v3432 = vunpack.c.h.b16 %v2561
    %v3433 = vunpack.c.l.b16 %v2562
    %v3434 = vunpack.c.l.b16 %v2563
    %v3435 = vunpack.c.h.b16 %v2563
    %v3436 = vunpack.c.l.b16 %v2564
    %v3437 = vunpack.c.l.b16 %v2565
    %v3438 = vunpack.c.h.b16 %v2565
    %v3439 = vunpack.c.l.b16 %v2566
    %v3440 = vunpack.c.l.b16 %v2567
    %v3441 = vunpack.c.h.b16 %v2567
    %v3442 = vunpack.c.l.b16 %v2568
    %v3443 = vunpack.c.l.b16 %v2569
    %v3444 = vunpack.c.h.b16 %v2569
    %v3445 = vunpack.c.l.b16 %v2570
    %v3446 = vunpack.c.l.b16 %v2571
    %v3447 = vunpack.c.h.b16 %v2571
    %v3448 = vunpack.c.l.b16 %v2572
    %v3449 = vunpack.c.l.b16 %v2573
    %v3450 = vunpack.c.h.b16 %v2573
    %v3451 = vunpack.c.l.b16 %v2574
    %v3452 = vunpack.c.l.b16 %v2575
    %v3453 = vunpack.c.h.b16 %v2575
    %v3454 = vunpack.c.l.b16 %v2576
    %v3455 = vunpack.c.l.b16 %v2577
    %v3456 = vunpack.c.h.b16 %v2577
    %v3457 = vunpack.c.l.b16 %v2578
    %v3458 = vunpack.c.l.b16 %v2579
    %v3459 = vunpack.c.h.b16 %v2579
    %v3460 = vunpack.c.l.b16 %v2580
    %v3461 = vunpack.c.l.b16 %v2581
    %v3462 = vunpack.c.h.b16 %v2581
    %v3463 = vunpack.c.l.b16 %v2582
    %v3464 = vunpack.c.l.b16 %v2583
    %v3465 = vunpack.c.h.b16 %v2583
    %v3466 = vunpack.c.l.b16 %v2584
    %v3467 = vunpack.c.l.b16 %v2585
    %v3468 = vunpack.c.h.b16 %v2585
    %v3469 = vunpack.c.l.b16 %v2586
    %v3470 = vunpack.c.l.b16 %v2587
    %v3471 = vunpack.c.h.b16 %v2587
    %v3472 = vunpack.c.l.b16 %v2588
    %v3473 = vunpack.c.l.b16 %v2589
    %v3474 = vunpack.c.h.b16 %v2589
    %v3475 = vunpack.c.l.b16 %v2590
    %v3476 = vunpack.c.l.b16 %v2591
    %v3477 = vunpack.c.h.b16 %v2591
    %v3478 = vunpack.c.l.b16 %v2592
    %v3479 = vunpack.c.l.b16 %v2593
    %v3480 = vunpack.c.h.b16 %v2593
    %v3481 = vunpack.c.l.b16 %v2594
    %v3482 = vunpack.c.l.b16 %v2595
    %v3483 = vunpack.c.h.b16 %v2595
    %v3484 = vunpack.c.l.b16 %v2596
    %v3485 = vunpack.c.l.b16 %v2597
    %v3486 = vunpack.c.h.b16 %v2597
    %v3487 = vunpack.c.l.b16 %v2598
    %v3488 = vunpack.c.l.b16 %v2599
    %v3489 = vunpack.c.h.b16 %v2599
    %v3490 = vunpack.c.l.b16 %v2600
    %v3491 = vunpack.c.l.b16 %v2601
    %v3492 = vunpack.c.h.b16 %v2601
    %v3493 = vunpack.c.l.b16 %v2602
    %v3494 = vunpack.c.l.b16 %v2603
    %v3495 = vunpack.c.h.b16 %v2603
    %v3496 = vunpack.c.l.b16 %v2604
    %v3497 = vunpack.c.l.b16 %v2605
    %v3498 = vunpack.c.h.b16 %v2605
    %v3499 = vunpack.c.l.b16 %v2606
    %v3500 = vunpack.c.l.b16 %v2607
    %v3501 = vunpack.c.h.b16 %v2607
    %v3502 = vunpack.c.l.b16 %v2608
    %v3503 = vunpack.c.l.b16 %v2609
    %v3504 = vunpack.c.h.b16 %v2609
    %v3505 = vunpack.c.l.b16 %v2610
    %v3506 = vunpack.c.l.b16 %v2611
    %v3507 = vunpack.c.h.b16 %v2611
    %v3508 = vunpack.c.l.b16 %v2612
    %v3509 = vunpack.c.l.b16 %v2613
    %v3510 = vunpack.c.h.b16 %v2613
    %v3511 = vunpack.c.l.b16 %v2614
    %v3512 = vunpack.c.l.b16 %v2615
    %v3513 = vunpack.c.h.b16 %v2615
    %v3514 = vunpack.c.l.b16 %v2616
    %v3515 = vunpack.c.l.b16 %v2617
    %v3516 = vunpack.c.h.b16 %v2617
    %v3517 = vunpack.c.l.b16 %v2618
    %v3518 = vunpack.c.l.b16 %v2619
    %v3519 = vunpack.c.h.b16 %v2619
    %v3520 = vunpack.c.l.b16 %v2620
    %v3521 = vunpack.c.l.b16 %v2621
    %v3522 = vunpack.c.h.b16 %v2621
    %v3523 = vunpack.c.l.b16 %v2622
    %v3524 = vunpack.c.l.b16 %v2623
    %v3525 = vunpack.c.h.b16 %v2623
    %v3526 = vunpack.c.l.b16 %v2624
    %v3527 = vunpack.c.l.b16 %v2625
    %v3528 = vunpack.c.h.b16 %v2625
    %v3529 = vunpack.c.l.b16 %v2626
    %v3530 = vunpack.c.l.b16 %v2627
    %v3531 = vunpack.c.h.b16 %v2627
    %v3532 = vunpack.c.l.b16 %v2628
    %v3533 = vunpack.c.l.b16 %v2629
    %v3534 = vunpack.c.h.b16 %v2629
    %v3535 = vunpack.c.l.b16 %v2630
    %v3536 = vunpack.c.l.b16 %v2631
    %v3537 = vunpack.c.h.b16 %v2631
    %v3538 = vunpack.c.l.b16 %v2632
    %v3539 = vunpack.c.l.b16 %v2633
    %v3540 = vunpack.c.h.b16 %v2633
    %v3541 = vunpack.c.l.b16 %v2634
    %v3542 = vunpack.c.l.b16 %v2635
    %v3543 = vunpack.c.h.b16 %v2635
    %v3544 = vunpack.c.l.b16 %v2636
    %v3545 = vunpack.c.l.b16 %v2637
    %v3546 = vunpack.c.h.b16 %v2637
    %v3547 = vunpack.c.l.b16 %v2638
    %v3548 = vunpack.c.l.b16 %v2639
    %v3549 = vunpack.c.h.b16 %v2639
    %v3550 = vunpack.c.l.b16 %v2640
    %v3551 = vunpack.c.l.b16 %v2641
    %v3552 = vunpack.c.h.b16 %v2641
    %v3553 = vunpack.c.l.b16 %v2642
    %v3554 = vunpack.c.l.b16 %v2643
    %v3555 = vunpack.c.h.b16 %v2643
    %v3556 = vunpack.c.l.b16 %v2644
    %v3557 = vunpack.c.l.b16 %v2645
    %v3558 = vunpack.c.h.b16 %v2645
    %v3559 = vunpack.c.l.b16 %v2646
    %v3560 = vunpack.c.l.b16 %v2647
    %v3561 = vunpack.c.h.b16 %v2647
    %v3562 = vunpack.c.l.b16 %v2648
    %v3563 = vunpack.c.l.b16 %v2649
    %v3564 = vunpack.c.h.b16 %v2649
    %v3565 = vunpack.c.l.b16 %v2650
    %v3566 = vunpack.c.l.b16 %v2651
    %v3567 = vunpack.c.h.b16 %v2651
    %v3568 = vunpack.c.l.b16 %v2652
    %v3569 = vunpack.c.l.b16 %v2653
    %v3570 = vunpack.c.h.b16 %v2653
    %v3571 = vunpack.c.l.b16 %v2654
    %v3572 = vunpack.c.l.b16 %v2655
    %v3573 = vunpack.c.h.b16 %v2655
    %v3574 = vunpack.c.l.b16 %v2656
    %v3575 = vunpack.c.l.b16 %v2657
    %v3576 = vunpack.c.h.b16 %v2657
    %v3577 = vunpack.c.l.b16 %v2658
    %v3578 = vunpack.c.l.b16 %v2659
    %v3579 = vunpack.c.h.b16 %v2659
    %v3580 = vunpack.c.l.b16 %v2660
    %v3581 = vunpack.c.l.b16 %v2661
    %v3582 = vunpack.c.h.b16 %v2661
    %v3583 = vunpack.c.l.b16 %v2662
    %v3584 = vunpack.c.l.b16 %v2663
    %v3585 = vunpack.c.h.b16 %v2663
    %v3586 = vunpack.c.l.b16 %v2664
    %v3587 = vunpack.c.l.b16 %v2665
    %v3588 = vunpack.c.h.b16 %v2665
    %v3589 = vunpack.c.l.b16 %v2666
    %v3590 = vunpack.c.l.b16 %v2667
    %v3591 = vunpack.c.h.b16 %v2667
    %v3592 = vunpack.c.l.b16 %v2668
    %v3593 = vunpack.c.l.b16 %v2669
    %v3594 = vunpack.c.h.b16 %v2669
    %v3595 = vunpack.c.l.b16 %v2670
    %v3596 = vunpack.c.l.b16 %v2671
    %v3597 = vunpack.c.h.b16 %v2671
    %v3598 = vunpack.c.l.b16 %v2672
    %v3599 = vunpack.c.l.b16 %v2673
    %v3600 = vunpack.c.h.b16 %v2673
    %v3601 = vunpack.c.l.b16 %v2674
    %v3602 = vunpack.c.l.b16 %v2675
    %v3603 = vunpack.c.h.b16 %v2675
    %v3604 = vunpack.c.l.b16 %v2676
    %v3605 = vunpack.c.l.b16 %v2677
    %v3606 = vunpack.c.h.b16 %v2677
    %v3607 = vunpack.c.l.b16 %v2678
    %v3608 = vunpack.c.l.b16 %v2679
    %v3609 = vunpack.c.h.b16 %v2679
    %v3610 = vunpack.c.l.b16 %v2680
    %v3611 = vunpack.c.l.b16 %v2681
    %v3612 = vunpack.c.h.b16 %v2681
    %v3613 = vunpack.c.l.b16 %v2682
    %v3614 = vunpack.c.l.b16 %v2683
    %v3615 = vunpack.c.h.b16 %v2683
    %v3616 = vunpack.c.l.b16 %v2684
    %v3617 = vunpack.c.l.b16 %v2685
    %v3618 = vunpack.c.h.b16 %v2685
    %v3619 = vunpack.c.l.b16 %v2686
    %v3620 = vunpack.c.l.b16 %v2687
    %v3621 = vunpack.c.h.b16 %v2687
    %v3622 = vunpack.c.l.b16 %v2688
    %v3623 = vunpack.c.l.b16 %v2689
    %v3624 = vunpack.c.h.b16 %v2689
    %v3625 = vunpack.c.l.b16 %v2690
    %v3626 = vunpack.c.l.b16 %v2691
    %v3627 = vunpack.c.h.b16 %v2691
    %v3628 = vunpack.c.l.b16 %v2692
    %v3629 = vunpack.c.l.b16 %v2693
    %v3630 = vunpack.c.h.b16 %v2693
    %v3631 = vunpack.c.l.b16 %v2694
    %v3632 = vunpack.c.l.b16 %v2695
    %v3633 = vunpack.c.h.b16 %v2695
    %v3634 = vunpack.c.l.b16 %v2696
    %v3635 = vunpack.c.l.b16 %v2697
    %v3636 = vunpack.c.h.b16 %v2697
    %v3637 = vunpack.c.l.b16 %v2698
    %v3638 = vunpack.c.l.b16 %v2699
    %v3639 = vunpack.c.h.b16 %v2699
    %v3640 = vunpack.c.l.b16 %v2700
    %v3641 = vunpack.c.l.b16 %v2701
    %v3642 = vunpack.c.h.b16 %v2701
    %v3643 = vunpack.c.l.b16 %v2702
    %v3644 = vunpack.c.l.b16 %v2703
    %v3645 = vunpack.c.h.b16 %v2703
    %v3646 = vunpack.c.l.b16 %v2704
    %v3647 = vunpack.c.l.b16 %v2705
    %v3648 = vunpack.c.h.b16 %v2705
    %v3649 = vunpack.c.l.b16 %v2706
    %v3650 = vunpack.c.l.b16 %v2707
    %v3651 = vunpack.c.h.b16 %v2707
    %v3652 = vunpack.c.l.b16 %v2708
    %v3653 = vunpack.c.l.b16 %v2709
    %v3654 = vunpack.c.h.b16 %v2709
    %v3655 = vunpack.c.l.b16 %v2710
    %v3656 = vunpack.c.l.b16 %v2711
    %v3657 = vunpack.c.h.b16 %v2711
    %v3658 = vunpack.c.l.b16 %v2712
    %v3659 = vunpack.c.l.b16 %v2713
    %v3660 = vunpack.c.h.b16 %v2713
    %v3661 = vunpack.c.l.b16 %v2714
    %v3662 = vunpack.c.l.b16 %v2715
    %v3663 = vunpack.c.h.b16 %v2715
    %v3664 = vunpack.c.l.b16 %v2716
    %v3665 = vunpack.c.l.b16 %v2717
    %v3666 = vunpack.c.h.b16 %v2717
    %v3667 = vunpack.c.l.b16 %v2718
    %v3668 = vunpack.c.l.b16 %v2719
    %v3669 = vunpack.c.h.b16 %v2719
    %v3670 = vunpack.c.l.b16 %v2720
    %v3671 = vunpack.c.l.b16 %v2721
    %v3672 = vunpack.c.h.b16 %v2721
    %v3673 = vunpack.c.l.b16 %v2722
    %v3674 = vunpack.c.l.b16 %v2723
    %v3675 = vunpack.c.h.b16 %v2723
    %v3676 = vunpack.c.l.b16 %v2724
    %v3677 = vunpack.c.l.b16 %v2725
    %v3678 = vunpack.c.h.b16 %v2725
    %v3679 = vunpack.c.l.b16 %v2726
    %v3680 = vunpack.c.l.b16 %v2727
    %v3681 = vunpack.c.h.b16 %v2727
    %v3682 = vunpack.c.l.b16 %v2728
    %v3683 = vunpack.c.l.b16 %v2729
    %v3684 = vunpack.c.h.b16 %v2729
    %v3685 = vunpack.c.l.b16 %v2730
    %v3686 = vunpack.c.l.b16 %v2731
    %v3687 = vunpack.c.h.b16 %v2731
    %v3688 = vunpack.c.l.b16 %v2732
    %v3689 = vunpack.c.l.b16 %v2733
    %v3690 = vunpack.c.h.b16 %v2733
    %v3691 = vunpack.c.l.b16 %v2734
    %v3692 = vunpack.c.l.b16 %v2735
    %v3693 = vunpack.c.h.b16 %v2735
    %v3694 = vunpack.c.l.b16 %v2736
    %v3695 = vunpack.c.l.b16 %v2737
    %v3696 = vunpack.c.h.b16 %v2737
    %v3697 = vunpack.c.l.b16 %v2738
    %v3698 = vunpack.c.l.b16 %v2739
    %v3699 = vunpack.c.h.b16 %v2739
    %v3700 = vunpack.c.l.b16 %v2740
    %v3701 = vpack.c.b16 %v3128, %v3125
    %v3702 = vpack.c.b16 %v3129, %v3126
    %v3703 = vpack.c.b16 %v3130, %v3127
    %v3704 = vpack.c.b16 %v3134, %v3131
    %v3705 = vpack.c.b16 %v3135, %v3132
    %v3706 = vpack.c.b16 %v3136, %v3133
    %v3707 = vpack.c.b16 %v3140, %v3137
    %v3708 = vpack.c.b16 %v3141, %v3138
    %v3709 = vpack.c.b16 %v3142, %v3139
    %v3710 = vpack.c.b16 %v3146, %v3143
    %v3711 = vpack.c.b16 %v3147, %v3144
    %v3712 = vpack.c.b16 %v3148, %v3145
    %v3713 = vpack.c.b16 %v3152, %v3149
    %v3714 = vpack.c.b16 %v3153, %v3150
    %v3715 = vpack.c.b16 %v3154, %v3151
    %v3716 = vpack.c.b16 %v3158, %v3155
    %v3717 = vpack.c.b16 %v3159, %v3156
    %v3718 = vpack.c.b16 %v3160, %v3157
    %v3719 = vpack.c.b16 %v3164, %v3161
    %v3720 = vpack.c.b16 %v3165, %v3162
    %v3721 = vpack.c.b16 %v3166, %v3163
    %v3722 = vpack.c.b16 %v3170, %v3167
    %v3723 = vpack.c.b16 %v3171, %v3168
    %v3724 = vpack.c.b16 %v3172, %v3169
    %v3725 = vpack.c.b16 %v3176, %v3173
    %v3726 = vpack.c.b16 %v3177, %v3174
    %v3727 = vpack.c.b16 %v3178, %v3175
    %v3728 = vpack.c.b16 %v3182, %v3179
    %v3729 = vpack.c.b16 %v3183, %v3180
    %v3730 = vpack.c.b16 %v3184, %v3181
    %v3731 = vpack.c.b16 %v3188, %v3185
    %v3732 = vpack.c.b16 %v3189, %v3186
    %v3733 = vpack.c.b16 %v3190, %v3187
    %v3734 = vpack.c.b16 %v3194, %v3191
    %v3735 = vpack.c.b16 %v3195, %v3192
    %v3736 = vpack.c.b16 %v3196, %v3193
    %v3737 = vpack.c.b16 %v3200, %v3197
    %v3738 = vpack.c.b16 %v3201, %v3198
    %v3739 = vpack.c.b16 %v3202, %v3199
    %v3740 = vpack.c.b16 %v3206, %v3203
    %v3741 = vpack.c.b16 %v3207, %v3204
    %v3742 = vpack.c.b16 %v3208, %v3205
    %v3743 = vpack.c.b16 %v3212, %v3209
    %v3744 = vpack.c.b16 %v3213, %v3210
    %v3745 = vpack.c.b16 %v3214, %v3211
    %v3746 = vpack.c.b16 %v3218, %v3215
    %v3747 = vpack.c.b16 %v3219, %v3216
    %v3748 = vpack.c.b16 %v3220, %v3217
    %v3749 = vpack.c.b16 %v3224, %v3221
    %v3750 = vpack.c.b16 %v3225, %v3222
    %v3751 = vpack.c.b16 %v3226, %v3223
    %v3752 = vpack.c.b16 %v3230, %v3227
    %v3753 = vpack.c.b16 %v3231, %v3228
    %v3754 = vpack.c.b16 %v3232, %v3229
    %v3755 = vpack.c.b16 %v3236, %v3233
    %v3756 = vpack.c.b16 %v3237, %v3234
    %v3757 = vpack.c.b16 %v3238, %v3235
    %v3758 = vpack.c.b16 %v3242, %v3239
    %v3759 = vpack.c.b16 %v3243, %v3240
    %v3760 = vpack.c.b16 %v3244, %v3241
    %v3761 = vpack.c.b16 %v3248, %v3245
    %v3762 = vpack.c.b16 %v3249, %v3246
    %v3763 = vpack.c.b16 %v3250, %v3247
    %v3764 = vpack.c.b16 %v3254, %v3251
    %v3765 = vpack.c.b16 %v3255, %v3252
    %v3766 = vpack.c.b16 %v3256, %v3253
    %v3767 = vpack.c.b16 %v3260, %v3257
    %v3768 = vpack.c.b16 %v3261, %v3258
    %v3769 = vpack.c.b16 %v3262, %v3259
    %v3770 = vpack.c.b16 %v3266, %v3263
    %v3771 = vpack.c.b16 %v3267, %v3264
    %v3772 = vpack.c.b16 %v3268, %v3265
    %v3773 = vpack.c.b16 %v3272, %v3269
    %v3774 = vpack.c.b16 %v3273, %v3270
    %v3775 = vpack.c.b16 %v3274, %v3271
    %v3776 = vpack.c.b16 %v3278, %v3275
    %v3777 = vpack.c.b16 %v3279, %v3276
    %v3778 = vpack.c.b16 %v3280, %v3277
    %v3779 = vpack.c.b16 %v3284, %v3281
    %v3780 = vpack.c.b16 %v3285, %v3282
    %v3781 = vpack.c.b16 %v3286, %v3283
    %v3782 = vpack.c.b16 %v3290, %v3287
    %v3783 = vpack.c.b16 %v3291, %v3288
    %v3784 = vpack.c.b16 %v3292, %v3289
    %v3785 = vpack.c.b16 %v3296, %v3293
    %v3786 = vpack.c.b16 %v3297, %v3294
    %v3787 = vpack.c.b16 %v3298, %v3295
    %v3788 = vpack.c.b16 %v3302, %v3299
    %v3789 = vpack.c.b16 %v3303, %v3300
    %v3790 = vpack.c.b16 %v3304, %v3301
    %v3791 = vpack.c.b16 %v3308, %v3305
    %v3792 = vpack.c.b16 %v3309, %v3306
    %v3793 = vpack.c.b16 %v3310, %v3307
    %v3794 = vpack.c.b16 %v3314, %v3311
    %v3795 = vpack.c.b16 %v3315, %v3312
    %v3796 = vpack.c.b16 %v3316, %v3313
    %v3797 = vpack.c.b16 %v3320, %v3317
    %v3798 = vpack.c.b16 %v3321, %v3318
    %v3799 = vpack.c.b16 %v3322, %v3319
    %v3800 = vpack.c.b16 %v3326, %v3323
    %v3801 = vpack.c.b16 %v3327, %v3324
    %v3802 = vpack.c.b16 %v3328, %v3325
    %v3803 = vpack.c.b16 %v3332, %v3329
    %v3804 = vpack.c.b16 %v3333, %v3330
    %v3805 = vpack.c.b16 %v3334, %v3331
    %v3806 = vpack.c.b16 %v3338, %v3335
    %v3807 = vpack.c.b16 %v3339, %v3336
    %v3808 = vpack.c.b16 %v3340, %v3337
    %v3809 = vpack.c.b16 %v3344, %v3341
    %v3810 = vpack.c.b16 %v3345, %v3342
    %v3811 = vpack.c.b16 %v3346, %v3343
    %v3812 = vpack.c.b16 %v3350, %v3347
    %v3813 = vpack.c.b16 %v3351, %v3348
    %v3814 = vpack.c.b16 %v3352, %v3349
    %v3815 = vpack.c.b16 %v3356, %v3353
    %v3816 = vpack.c.b16 %v3357, %v3354
    %v3817 = vpack.c.b16 %v3358, %v3355
    %v3818 = vpack.c.b16 %v3362, %v3359
    %v3819 = vpack.c.b16 %v3363, %v3360
    %v3820 = vpack.c.b16 %v3364, %v3361
    %v3821 = vpack.c.b16 %v3368, %v3365
    %v3822 = vpack.c.b16 %v3369, %v3366
    %v3823 = vpack.c.b16 %v3370, %v3367
    %v3824 = vpack.c.b16 %v3374, %v3371
    %v3825 = vpack.c.b16 %v3375, %v3372
    %v3826 = vpack.c.b16 %v3376, %v3373
    %v3827 = vpack.c.b16 %v3380, %v3377
    %v3828 = vpack.c.b16 %v3381, %v3378
    %v3829 = vpack.c.b16 %v3382, %v3379
    %v3830 = vpack.c.b16 %v3386, %v3383
    %v3831 = vpack.c.b16 %v3387, %v3384
    %v3832 = vpack.c.b16 %v3388, %v3385
    %v3833 = vpack.c.b16 %v3392, %v3389
    %v3834 = vpack.c.b16 %v3393, %v3390
    %v3835 = vpack.c.b16 %v3394, %v3391
    %v3836 = vpack.c.b16 %v3398, %v3395
    %v3837 = vpack.c.b16 %v3399, %v3396
    %v3838 = vpack.c.b16 %v3400, %v3397
    %v3839 = vpack.c.b16 %v3404, %v3401
    %v3840 = vpack.c.b16 %v3405, %v3402
    %v3841 = vpack.c.b16 %v3406, %v3403
    %v3842 = vpack.c.b16 %v3410, %v3407
    %v3843 = vpack.c.b16 %v3411, %v3408
    %v3844 = vpack.c.b16 %v3412, %v3409
    %v3845 = vpack.c.b16 %v3416, %v3413
    %v3846 = vpack.c.b16 %v3417, %v3414
    %v3847 = vpack.c.b16 %v3418, %v3415
    %v3848 = vpack.c.b16 %v3422, %v3419
    %v3849 = vpack.c.b16 %v3423, %v3420
    %v3850 = vpack.c.b16 %v3424, %v3421
    %v3851 = vpack.c.b16 %v3428, %v3425
    %v3852 = vpack.c.b16 %v3429, %v3426
    %v3853 = vpack.c.b16 %v3430, %v3427
    %v3854 = vpack.c.b16 %v3434, %v3431
    %v3855 = vpack.c.b16 %v3435, %v3432
    %v3856 = vpack.c.b16 %v3436, %v3433
    %v3857 = vpack.c.b16 %v3440, %v3437
    %v3858 = vpack.c.b16 %v3441, %v3438
    %v3859 = vpack.c.b16 %v3442, %v3439
    %v3860 = vpack.c.b16 %v3446, %v3443
    %v3861 = vpack.c.b16 %v3447, %v3444
    %v3862 = vpack.c.b16 %v3448, %v3445
    %v3863 = vpack.c.b16 %v3452, %v3449
    %v3864 = vpack.c.b16 %v3453, %v3450
    %v3865 = vpack.c.b16 %v3454, %v3451
    %v3866 = vpack.c.b16 %v3458, %v3455
    %v3867 = vpack.c.b16 %v3459, %v3456
    %v3868 = vpack.c.b16 %v3460, %v3457
    %v3869 = vpack.c.b16 %v3464, %v3461
    %v3870 = vpack.c.b16 %v3465, %v3462
    %v3871 = vpack.c.b16 %v3466, %v3463
    %v3872 = vpack.c.b16 %v3470, %v3467
    %v3873 = vpack.c.b16 %v3471, %v3468
    %v3874 = vpack.c.b16 %v3472, %v3469
    %v3875 = vpack.c.b16 %v3476, %v3473
    %v3876 = vpack.c.b16 %v3477, %v3474
    %v3877 = vpack.c.b16 %v3478, %v3475
    %v3878 = vpack.c.b16 %v3482, %v3479
    %v3879 = vpack.c.b16 %v3483, %v3480
    %v3880 = vpack.c.b16 %v3484, %v3481
    %v3881 = vpack.c.b16 %v3488, %v3485
    %v3882 = vpack.c.b16 %v3489, %v3486
    %v3883 = vpack.c.b16 %v3490, %v3487
    %v3884 = vpack.c.b16 %v3494, %v3491
    %v3885 = vpack.c.b16 %v3495, %v3492
    %v3886 = vpack.c.b16 %v3496, %v3493
    %v3887 = vpack.c.b16 %v3500, %v3497
    %v3888 = vpack.c.b16 %v3501, %v3498
    %v3889 = vpack.c.b16 %v3502, %v3499
    %v3890 = vpack.c.b16 %v3506, %v3503
    %v3891 = vpack.c.b16 %v3507, %v3504
    %v3892 = vpack.c.b16 %v3508, %v3505
    %v3893 = vpack.c.b16 %v3512, %v3509
    %v3894 = vpack.c.b16 %v3513, %v3510
    %v3895 = vpack.c.b16 %v3514, %v3511
    %v3896 = vpack.c.b16 %v3518, %v3515
    %v3897 = vpack.c.b16 %v3519, %v3516
    %v3898 = vpack.c.b16 %v3520, %v3517
    %v3899 = vpack.c.b16 %v3524, %v3521
    %v3900 = vpack.c.b16 %v3525, %v3522
    %v3901 = vpack.c.b16 %v3526, %v3523
    %v3902 = vpack.c.b16 %v3530, %v3527
    %v3903 = vpack.c.b16 %v3531, %v3528
    %v3904 = vpack.c.b16 %v3532, %v3529
    %v3905 = vpack.c.b16 %v3536, %v3533
    %v3906 = vpack.c.b16 %v3537, %v3534
    %v3907 = vpack.c.b16 %v3538, %v3535
    %v3908 = vpack.c.b16 %v3542, %v3539
    %v3909 = vpack.c.b16 %v3543, %v3540
    %v3910 = vpack.c.b16 %v3544, %v3541
    %v3911 = vpack.c.b16 %v3548, %v3545
    %v3912 = vpack.c.b16 %v3549, %v3546
    %v3913 = vpack.c.b16 %v3550, %v3547
    %v3914 = vpack.c.b16 %v3554, %v3551
    %v3915 = vpack.c.b16 %v3555, %v3552
    %v3916 = vpack.c.b16 %v3556, %v3553
    %v3917 = vpack.c.b16 %v3560, %v3557
    %v3918 = vpack.c.b16 %v3561, %v3558
    %v3919 = vpack.c.b16 %v3562, %v3559
    %v3920 = vpack.c.b16 %v3566, %v3563
    %v3921 = vpack.c.b16 %v3567, %v3564
    %v3922 = vpack.c.b16 %v3568, %v3565
    %v3923 = vpack.c.b16 %v3572, %v3569
    %v3924 = vpack.c.b16 %v3573, %v3570
    %v3925 = vpack.c.b16 %v3574, %v3571
    %v3926 = vpack.c.b16 %v3578, %v3575
    %v3927 = vpack.c.b16 %v3579, %v3576
    %v3928 = vpack.c.b16 %v3580, %v3577
    %v3929 = vpack.c.b16 %v3584, %v3581
    %v3930 = vpack.c.b16 %v3585, %v3582
    %v3931 = vpack.c.b16 %v3586, %v3583
    %v3932 = vpack.c.b16 %v3590, %v3587
    %v3933 = vpack.c.b16 %v3591, %v3588
    %v3934 = vpack.c.b16 %v3592, %v3589
    %v3935 = vpack.c.b16 %v3596, %v3593
    %v3936 = vpack.c.b16 %v3597, %v3594
    %v3937 = vpack.c.b16 %v3598, %v3595
    %v3938 = vpack.c.b16 %v3602, %v3599
    %v3939 = vpack.c.b16 %v3603, %v3600
    %v3940 = vpack.c.b16 %v3604, %v3601
    %v3941 = vpack.c.b16 %v3608, %v3605
    %v3942 = vpack.c.b16 %v3609, %v3606
    %v3943 = vpack.c.b16 %v3610, %v3607
    %v3944 = vpack.c.b16 %v3614, %v3611
    %v3945 = vpack.c.b16 %v3615, %v3612
    %v3946 = vpack.c.b16 %v3616, %v3613
    %v3947 = vpack.c.b16 %v3620, %v3617
    %v3948 = vpack.c.b16 %v3621, %v3618
    %v3949 = vpack.c.b16 %v3622, %v3619
    %v3950 = vpack.c.b16 %v3626, %v3623
    %v3951 = vpack.c.b16 %v3627, %v3624
    %v3952 = vpack.c.b16 %v3628, %v3625
    %v3953 = vpack.c.b16 %v3632, %v3629
    %v3954 = vpack.c.b16 %v3633, %v3630
    %v3955 = vpack.c.b16 %v3634, %v3631
    %v3956 = vpack.c.b16 %v3638, %v3635
    %v3957 = vpack.c.b16 %v3639, %v3636
    %v3958 = vpack.c.b16 %v3640, %v3637
    %v3959 = vpack.c.b16 %v3644, %v3641
    %v3960 = vpack.c.b16 %v3645, %v3642
    %v3961 = vpack.c.b16 %v3646, %v3643
    %v3962 = vpack.c.b16 %v3650, %v3647
    %v3963 = vpack.c.b16 %v3651, %v3648
    %v3964 = vpack.c.b16 %v3652, %v3649
    %v3965 = vpack.c.b16 %v3656, %v3653
    %v3966 = vpack.c.b16 %v3657, %v3654
    %v3967 = vpack.c.b16 %v3658, %v3655
    %v3968 = vpack.c.b16 %v3662, %v3659
    %v3969 = vpack.c.b16 %v3663, %v3660
    %v3970 = vpack.c.b16 %v3664, %v3661
    %v3971 = vpack.c.b16 %v3668, %v3665
    %v3972 = vpack.c.b16 %v3669, %v3666
    %v3973 = vpack.c.b16 %v3670, %v3667
    %v3974 = vpack.c.b16 %v3674, %v3671
    %v3975 = vpack.c.b16 %v3675, %v3672
    %v3976 = vpack.c.b16 %v3676, %v3673
    %v3977 = vpack.c.b16 %v3680, %v3677
    %v3978 = vpack.c.b16 %v3681, %v3678
    %v3979 = vpack.c.b16 %v3682, %v3679
    %v3980 = vpack.c.b16 %v3686, %v3683
    %v3981 = vpack.c.b16 %v3687, %v3684
    %v3982 = vpack.c.b16 %v3688, %v3685
    %v3983 = vpack.c.b16 %v3692, %v3689
    %v3984 = vpack.c.b16 %v3693, %v3690
    %v3985 = vpack.c.b16 %v3694, %v3691
    %v3986 = vpack.c.b16 %v3698, %v3695
    %v3987 = vpack.c.b16 %v3699, %v3696
    %v3988 = vpack.c.b16 %v3700, %v3697
    %4277 = vmatprep.subr.bf16.mxu0 %v3702
    %4278 = vmatpush1.bf16.msra.mxu0 %v3701
    %4279 = vmatprep.subr.bf16.mxu0 %v3705
    %4280 = vmatpush1.bf16.msra.mxu0 %v3704
    %4281 = vmatprep.subr.bf16.mxu0 %v3708
    %4282 = vmatpush1.bf16.msra.mxu0 %v3707
    %4283 = vmatprep.subr.bf16.mxu0 %v3711
    %4284 = vmatpush1.bf16.msra.mxu0 %v3710
    %4285 = vmatprep.subr.bf16.mxu0 %v3714
    %4286 = vmatpush1.bf16.msra.mxu0 %v3713
    %4287 = vmatprep.subr.bf16.mxu0 %v3717
    %4288 = vmatpush1.bf16.msra.mxu0 %v3716
    %4289 = vmatprep.subr.bf16.mxu0 %v3720
    %4290 = vmatpush1.bf16.msra.mxu0 %v3719
    %4291 = vmatprep.subr.bf16.mxu0 %v3723
    %4292 = vmatpush1.bf16.msra.mxu0 %v3722
    %4293 = vmatprep.subr.bf16.mxu0 %v3726
    %4294 = vmatpush1.bf16.msra.mxu0 %v3725
    %4295 = vmatprep.subr.bf16.mxu0 %v3729
    %4296 = vmatpush1.bf16.msra.mxu0 %v3728
    %4297 = vmatprep.subr.bf16.mxu0 %v3732
    %4298 = vmatpush1.bf16.msra.mxu0 %v3731
    %4299 = vmatprep.subr.bf16.mxu0 %v3735
    %4300 = vmatpush1.bf16.msra.mxu0 %v3734
    %4301 = vmatprep.subr.bf16.mxu0 %v3738
    %4302 = vmatpush1.bf16.msra.mxu0 %v3737
    %4303 = vmatprep.subr.bf16.mxu0 %v3741
    %4304 = vmatpush1.bf16.msra.mxu0 %v3740
    %4305 = vmatprep.subr.bf16.mxu0 %v3744
    %4306 = vmatpush1.bf16.msra.mxu0 %v3743
    %4307 = vmatprep.subr.bf16.mxu0 %v3747
    %4308 = vmatpush1.bf16.msra.mxu0 %v3746
    %4309 = vmatprep.mubr.bf16.mxu0 %v2346
    %4310 = vmatmul.mubr.bf16.gmra.mrb[0].mxu0 %v2345
    %v4311 = vpop.f32.mrb[0].mxu0
    %v4312 = vadd.f32 0.0, %v4311
    %v4313 = vpop.f32.mrb[0].mxu0
    %v4314 = vadd.f32 0.0, %v4313
    %v4315 = vpop.f32.mrb[0].mxu0
    %v4316 = vadd.f32 0.0, %v4315
    %v4317 = vpop.f32.mrb[0].mxu0
    %v4318 = vadd.f32 0.0, %v4317
    %4319 = vdwg.mxu0
    %4320 = vmatprep.subr.bf16.mxu0 %v3750
    %4321 = vmatpush1.bf16.msra.mxu0 %v3749
    %4322 = vmatprep.subr.bf16.mxu0 %v3753
    %4323 = vmatpush1.bf16.msra.mxu0 %v3752
    %4324 = vmatprep.subr.bf16.mxu0 %v3756
    %4325 = vmatpush1.bf16.msra.mxu0 %v3755
    %4326 = vmatprep.subr.bf16.mxu0 %v3759
    %4327 = vmatpush1.bf16.msra.mxu0 %v3758
    %4328 = vmatprep.subr.bf16.mxu0 %v3762
    %4329 = vmatpush1.bf16.msra.mxu0 %v3761
    %4330 = vmatprep.subr.bf16.mxu0 %v3765
    %4331 = vmatpush1.bf16.msra.mxu0 %v3764
    %4332 = vmatprep.subr.bf16.mxu0 %v3768
    %4333 = vmatpush1.bf16.msra.mxu0 %v3767
    %4334 = vmatprep.subr.bf16.mxu0 %v3771
    %4335 = vmatpush1.bf16.msra.mxu0 %v3770
    %4336 = vmatprep.subr.bf16.mxu0 %v3774
    %4337 = vmatpush1.bf16.msra.mxu0 %v3773
    %4338 = vmatprep.subr.bf16.mxu0 %v3777
    %4339 = vmatpush1.bf16.msra.mxu0 %v3776
    %4340 = vmatprep.subr.bf16.mxu0 %v3780
    %4341 = vmatpush1.bf16.msra.mxu0 %v3779
    %4342 = vmatprep.subr.bf16.mxu0 %v3783
    %4343 = vmatpush1.bf16.msra.mxu0 %v3782
    %4344 = vmatprep.subr.bf16.mxu0 %v3786
    %4345 = vmatpush1.bf16.msra.mxu0 %v3785
    %4346 = vmatprep.subr.bf16.mxu0 %v3789
    %4347 = vmatpush1.bf16.msra.mxu0 %v3788
    %4348 = vmatprep.subr.bf16.mxu0 %v3792
    %4349 = vmatpush1.bf16.msra.mxu0 %v3791
    %4350 = vmatprep.subr.bf16.mxu0 %v3795
    %4351 = vmatpush1.bf16.msra.mxu0 %v3794
    %4352 = vmatprep.mubr.bf16.mxu0 %v2348
    %4353 = vmatmul.mubr.bf16.gmra.mrb[0].mxu0 %v2347
    %v4354 = vpop.f32.mrb[0].mxu0
    %v4355 = vadd.f32 %v4312, %v4354
    %v4356 = vpop.f32.mrb[0].mxu0
    %v4357 = vadd.f32 %v4314, %v4356
    %v4358 = vpop.f32.mrb[0].mxu0
    %v4359 = vadd.f32 %v4316, %v4358
    %v4360 = vpop.f32.mrb[0].mxu0
    %v4361 = vadd.f32 %v4318, %v4360
    %4362 = vdwg.mxu0
    %4363 = vmatprep.subr.bf16.mxu0 %v3798
    %4364 = vmatpush1.bf16.msra.mxu0 %v3797
    %4365 = vmatprep.subr.bf16.mxu0 %v3801
    %4366 = vmatpush1.bf16.msra.mxu0 %v3800
    %4367 = vmatprep.subr.bf16.mxu0 %v3804
    %4368 = vmatpush1.bf16.msra.mxu0 %v3803
    %4369 = vmatprep.subr.bf16.mxu0 %v3807
    %4370 = vmatpush1.bf16.msra.mxu0 %v3806
    %4371 = vmatprep.subr.bf16.mxu0 %v3810
    %4372 = vmatpush1.bf16.msra.mxu0 %v3809
    %4373 = vmatprep.subr.bf16.mxu0 %v3813
    %4374 = vmatpush1.bf16.msra.mxu0 %v3812
    %4375 = vmatprep.subr.bf16.mxu0 %v3816
    %4376 = vmatpush1.bf16.msra.mxu0 %v3815
    %4377 = vmatprep.subr.bf16.mxu0 %v3819
    %4378 = vmatpush1.bf16.msra.mxu0 %v3818
    %4379 = vmatprep.subr.bf16.mxu0 %v3822
    %4380 = vmatpush1.bf16.msra.mxu0 %v3821
    %4381 = vmatprep.subr.bf16.mxu0 %v3825
    %4382 = vmatpush1.bf16.msra.mxu0 %v3824
    %4383 = vmatprep.subr.bf16.mxu0 %v3828
    %4384 = vmatpush1.bf16.msra.mxu0 %v3827
    %4385 = vmatprep.subr.bf16.mxu0 %v3831
    %4386 = vmatpush1.bf16.msra.mxu0 %v3830
    %4387 = vmatprep.subr.bf16.mxu0 %v3834
    %4388 = vmatpush1.bf16.msra.mxu0 %v3833
    %4389 = vmatprep.subr.bf16.mxu0 %v3837
    %4390 = vmatpush1.bf16.msra.mxu0 %v3836
    %4391 = vmatprep.subr.bf16.mxu0 %v3840
    %4392 = vmatpush1.bf16.msra.mxu0 %v3839
    %4393 = vmatprep.subr.bf16.mxu0 %v3843
    %4394 = vmatpush1.bf16.msra.mxu0 %v3842
    %4395 = vmatprep.mubr.bf16.mxu0 %v2350
    %4396 = vmatmul.mubr.bf16.gmra.mrb[0].mxu0 %v2349
    %v4397 = vpop.f32.mrb[0].mxu0
    %v4398 = vadd.f32 %v4355, %v4397
    %v4399 = vpop.f32.mrb[0].mxu0
    %v4400 = vadd.f32 %v4357, %v4399
    %v4401 = vpop.f32.mrb[0].mxu0
    %v4402 = vadd.f32 %v4359, %v4401
    %v4403 = vpop.f32.mrb[0].mxu0
    %v4404 = vadd.f32 %v4361, %v4403
    %4405 = vdwg.mxu0
    %4406 = vmatprep.subr.bf16.mxu0 %v3846
    %4407 = vmatpush1.bf16.msra.mxu0 %v3845
    %4408 = vmatprep.subr.bf16.mxu0 %v3849
    %4409 = vmatpush1.bf16.msra.mxu0 %v3848
    %4410 = vmatprep.subr.bf16.mxu0 %v3852
    %4411 = vmatpush1.bf16.msra.mxu0 %v3851
    %4412 = vmatprep.subr.bf16.mxu0 %v3855
    %4413 = vmatpush1.bf16.msra.mxu0 %v3854
    %4414 = vmatprep.subr.bf16.mxu0 %v3858
    %4415 = vmatpush1.bf16.msra.mxu0 %v3857
    %4416 = vmatprep.subr.bf16.mxu0 %v3861
    %4417 = vmatpush1.bf16.msra.mxu0 %v3860
    %4418 = vmatprep.subr.bf16.mxu0 %v3864
    %4419 = vmatpush1.bf16.msra.mxu0 %v3863
    %4420 = vmatprep.subr.bf16.mxu0 %v3867
    %4421 = vmatpush1.bf16.msra.mxu0 %v3866
    %4422 = vmatprep.subr.bf16.mxu0 %v3870
    %4423 = vmatpush1.bf16.msra.mxu0 %v3869
    %4424 = vmatprep.subr.bf16.mxu0 %v3873
    %4425 = vmatpush1.bf16.msra.mxu0 %v3872
    %4426 = vmatprep.subr.bf16.mxu0 %v3876
    %4427 = vmatpush1.bf16.msra.mxu0 %v3875
    %4428 = vmatprep.subr.bf16.mxu0 %v3879
    %4429 = vmatpush1.bf16.msra.mxu0 %v3878
    %4430 = vmatprep.subr.bf16.mxu0 %v3882
    %4431 = vmatpush1.bf16.msra.mxu0 %v3881
    %4432 = vmatprep.subr.bf16.mxu0 %v3885
    %4433 = vmatpush1.bf16.msra.mxu0 %v3884
    %4434 = vmatprep.subr.bf16.mxu0 %v3888
    %4435 = vmatpush1.bf16.msra.mxu0 %v3887
    %4436 = vmatprep.subr.bf16.mxu0 %v3891
    %4437 = vmatpush1.bf16.msra.mxu0 %v3890
    %4438 = vmatprep.mubr.bf16.mxu0 %v2352
    %4439 = vmatmul.mubr.bf16.gmra.mrb[0].mxu0 %v2351
    %v4440 = vpop.f32.mrb[0].mxu0
    %v4441 = vadd.f32 %v4398, %v4440
    %v4442 = vpop.f32.mrb[0].mxu0
    %v4443 = vadd.f32 %v4400, %v4442
    %v4444 = vpop.f32.mrb[0].mxu0
    %v4445 = vadd.f32 %v4402, %v4444
    %v4446 = vpop.f32.mrb[0].mxu0
    %v4447 = vadd.f32 %v4404, %v4446
    %4448 = vdwg.mxu0
    %4449 = vmatprep.subr.bf16.mxu0 %v3894
    %4450 = vmatpush1.bf16.msra.mxu0 %v3893
    %4451 = vmatprep.subr.bf16.mxu0 %v3897
    %4452 = vmatpush1.bf16.msra.mxu0 %v3896
    %4453 = vmatprep.subr.bf16.mxu0 %v3900
    %4454 = vmatpush1.bf16.msra.mxu0 %v3899
    %4455 = vmatprep.subr.bf16.mxu0 %v3903
    %4456 = vmatpush1.bf16.msra.mxu0 %v3902
    %4457 = vmatprep.subr.bf16.mxu0 %v3906
    %4458 = vmatpush1.bf16.msra.mxu0 %v3905
    %4459 = vmatprep.subr.bf16.mxu0 %v3909
    %4460 = vmatpush1.bf16.msra.mxu0 %v3908
    %4461 = vmatprep.subr.bf16.mxu0 %v3912
    %4462 = vmatpush1.bf16.msra.mxu0 %v3911
    %4463 = vmatprep.subr.bf16.mxu0 %v3915
    %4464 = vmatpush1.bf16.msra.mxu0 %v3914
    %4465 = vmatprep.subr.bf16.mxu0 %v3918
    %4466 = vmatpush1.bf16.msra.mxu0 %v3917
    %4467 = vmatprep.subr.bf16.mxu0 %v3921
    %4468 = vmatpush1.bf16.msra.mxu0 %v3920
    %4469 = vmatprep.subr.bf16.mxu0 %v3924
    %4470 = vmatpush1.bf16.msra.mxu0 %v3923
    %4471 = vmatprep.subr.bf16.mxu0 %v3927
    %4472 = vmatpush1.bf16.msra.mxu0 %v3926
    %4473 = vmatprep.subr.bf16.mxu0 %v3930
    %4474 = vmatpush1.bf16.msra.mxu0 %v3929
    %4475 = vmatprep.subr.bf16.mxu0 %v3933
    %4476 = vmatpush1.bf16.msra.mxu0 %v3932
    %4477 = vmatprep.subr.bf16.mxu0 %v3936
    %4478 = vmatpush1.bf16.msra.mxu0 %v3935
    %4479 = vmatprep.subr.bf16.mxu0 %v3939
    %4480 = vmatpush1.bf16.msra.mxu0 %v3938
    %4481 = vmatprep.mubr.bf16.mxu0 %v2354
    %4482 = vmatmul.mubr.bf16.gmra.mrb[0].mxu0 %v2353
    %v4483 = vpop.f32.mrb[0].mxu0
    %v4484 = vadd.f32 %v4441, %v4483
    %v4485 = vpop.f32.mrb[0].mxu0
    %v4486 = vadd.f32 %v4443, %v4485
    %v4487 = vpop.f32.mrb[0].mxu0
    %v4488 = vadd.f32 %v4445, %v4487
    %v4489 = vpop.f32.mrb[0].mxu0
    %v4490 = vadd.f32 %v4447, %v4489
    %4491 = vdwg.mxu0
    %4492 = vmatprep.subr.bf16.mxu0 %v3942
    %4493 = vmatpush1.bf16.msra.mxu0 %v3941
    %4494 = vmatprep.subr.bf16.mxu0 %v3945
    %4495 = vmatpush1.bf16.msra.mxu0 %v3944
    %4496 = vmatprep.subr.bf16.mxu0 %v3948
    %4497 = vmatpush1.bf16.msra.mxu0 %v3947
    %4498 = vmatprep.subr.bf16.mxu0 %v3951
    %4499 = vmatpush1.bf16.msra.mxu0 %v3950
    %4500 = vmatprep.subr.bf16.mxu0 %v3954
    %4501 = vmatpush1.bf16.msra.mxu0 %v3953
    %4502 = vmatprep.subr.bf16.mxu0 %v3957
    %4503 = vmatpush1.bf16.msra.mxu0 %v3956
    %4504 = vmatprep.subr.bf16.mxu0 %v3960
    %4505 = vmatpush1.bf16.msra.mxu0 %v3959
    %4506 = vmatprep.subr.bf16.mxu0 %v3963
    %4507 = vmatpush1.bf16.msra.mxu0 %v3962
    %4508 = vmatprep.subr.bf16.mxu0 %v3966
    %4509 = vmatpush1.bf16.msra.mxu0 %v3965
    %4510 = vmatprep.subr.bf16.mxu0 %v3969
    %4511 = vmatpush1.bf16.msra.mxu0 %v3968
    %4512 = vmatprep.subr.bf16.mxu0 %v3972
    %4513 = vmatpush1.bf16.msra.mxu0 %v3971
    %4514 = vmatprep.subr.bf16.mxu0 %v3975
    %4515 = vmatpush1.bf16.msra.mxu0 %v3974
    %4516 = vmatprep.subr.bf16.mxu0 %v3978
    %4517 = vmatpush1.bf16.msra.mxu0 %v3977
    %4518 = vmatprep.subr.bf16.mxu0 %v3981
    %4519 = vmatpush1.bf16.msra.mxu0 %v3980
    %4520 = vmatprep.subr.bf16.mxu0 %v3984
    %4521 = vmatpush1.bf16.msra.mxu0 %v3983
    %4522 = vmatprep.subr.bf16.mxu0 %v3987
    %4523 = vmatpush1.bf16.msra.mxu0 %v3986
    %4524 = vmatprep.mubr.bf16.mxu0 %v2356
    %4525 = vmatmul.mubr.bf16.gmra.mrb[0].mxu0 %v2355
    %v4526 = vpop.f32.mrb[0].mxu0
    %v4527 = vadd.f32 %v4484, %v4526
    %v4528 = vpop.f32.mrb[0].mxu0
    %v4529 = vadd.f32 %v4486, %v4528
    %v4530 = vpop.f32.mrb[0].mxu0
    %v4531 = vadd.f32 %v4488, %v4530
    %v4532 = vpop.f32.mrb[0].mxu0
    %v4533 = vadd.f32 %v4490, %v4532
    %4534 = vdwg.mxu0
    %4535 = vmatprep.subr.bf16.mxu0 0
    %4536 = vmatpush1.bf16.msra.mxu0 %v3703
    %4537 = vmatprep.subr.bf16.mxu0 0
    %4538 = vmatpush1.bf16.msra.mxu0 %v3706
    %4539 = vmatprep.subr.bf16.mxu0 0
    %4540 = vmatpush1.bf16.msra.mxu0 %v3709
    %4541 = vmatprep.subr.bf16.mxu0 0
    %4542 = vmatpush1.bf16.msra.mxu0 %v3712
    %4543 = vmatprep.subr.bf16.mxu0 0
    %4544 = vmatpush1.bf16.msra.mxu0 %v3715
    %4545 = vmatprep.subr.bf16.mxu0 0
    %4546 = vmatpush1.bf16.msra.mxu0 %v3718
    %4547 = vmatprep.subr.bf16.mxu0 0
    %4548 = vmatpush1.bf16.msra.mxu0 %v3721
    %4549 = vmatprep.subr.bf16.mxu0 0
    %4550 = vmatpush1.bf16.msra.mxu0 %v3724
    %4551 = vmatprep.subr.bf16.mxu0 0
    %4552 = vmatpush1.bf16.msra.mxu0 %v3727
    %4553 = vmatprep.subr.bf16.mxu0 0
    %4554 = vmatpush1.bf16.msra.mxu0 %v3730
    %4555 = vmatprep.subr.bf16.mxu0 0
    %4556 = vmatpush1.bf16.msra.mxu0 %v3733
    %4557 = vmatprep.subr.bf16.mxu0 0
    %4558 = vmatpush1.bf16.msra.mxu0 %v3736
    %4559 = vmatprep.subr.bf16.mxu0 0
    %4560 = vmatpush1.bf16.msra.mxu0 %v3739
    %4561 = vmatprep.subr.bf16.mxu0 0
    %4562 = vmatpush1.bf16.msra.mxu0 %v3742
    %4563 = vmatprep.subr.bf16.mxu0 0
    %4564 = vmatpush1.bf16.msra.mxu0 %v3745
    %4565 = vmatprep.subr.bf16.mxu0 0
    %4566 = vmatpush1.bf16.msra.mxu0 %v3748
    %4567 = vmatprep.mubr.bf16.mxu0 %v2346
    %4568 = vmatmul.mubr.bf16.gmra.mrb[0].mxu0 %v2345
    %v4569 = vpop.f32.mrb[0].mxu0
    %v4570 = vadd.f32 0.0, %v4569
    %v4571 = vpop.f32.mrb[0].mxu0
    %v4572 = vpop.f32.mrb[0].mxu0
    %v4573 = vadd.f32 0.0, %v4572
    %v4574 = vpop.f32.mrb[0].mxu0
    %4575 = vdwg.mxu0
    %4576 = vmatprep.subr.bf16.mxu0 0
    %4577 = vmatpush1.bf16.msra.mxu0 %v3751
    %4578 = vmatprep.subr.bf16.mxu0 0
    %4579 = vmatpush1.bf16.msra.mxu0 %v3754
    %4580 = vmatprep.subr.bf16.mxu0 0
    %4581 = vmatpush1.bf16.msra.mxu0 %v3757
    %4582 = vmatprep.subr.bf16.mxu0 0
    %4583 = vmatpush1.bf16.msra.mxu0 %v3760
    %4584 = vmatprep.subr.bf16.mxu0 0
    %4585 = vmatpush1.bf16.msra.mxu0 %v3763
    %4586 = vmatprep.subr.bf16.mxu0 0
    %4587 = vmatpush1.bf16.msra.mxu0 %v3766
    %4588 = vmatprep.subr.bf16.mxu0 0
    %4589 = vmatpush1.bf16.msra.mxu0 %v3769
    %4590 = vmatprep.subr.bf16.mxu0 0
    %4591 = vmatpush1.bf16.msra.mxu0 %v3772
    %4592 = vmatprep.subr.bf16.mxu0 0
    %4593 = vmatpush1.bf16.msra.mxu0 %v3775
    %4594 = vmatprep.subr.bf16.mxu0 0
    %4595 = vmatpush1.bf16.msra.mxu0 %v3778
    %4596 = vmatprep.subr.bf16.mxu0 0
    %4597 = vmatpush1.bf16.msra.mxu0 %v3781
    %4598 = vmatprep.subr.bf16.mxu0 0
    %4599 = vmatpush1.bf16.msra.mxu0 %v3784
    %4600 = vmatprep.subr.bf16.mxu0 0
    %4601 = vmatpush1.bf16.msra.mxu0 %v3787
    %4602 = vmatprep.subr.bf16.mxu0 0
    %4603 = vmatpush1.bf16.msra.mxu0 %v3790
    %4604 = vmatprep.subr.bf16.mxu0 0
    %4605 = vmatpush1.bf16.msra.mxu0 %v3793
    %4606 = vmatprep.subr.bf16.mxu0 0
    %4607 = vmatpush1.bf16.msra.mxu0 %v3796
    %4608 = vmatprep.mubr.bf16.mxu0 %v2348
    %4609 = vmatmul.mubr.bf16.gmra.mrb[0].mxu0 %v2347
    %v4610 = vpop.f32.mrb[0].mxu0
    %v4611 = vadd.f32 %v4570, %v4610
    %v4612 = vpop.f32.mrb[0].mxu0
    %v4613 = vpop.f32.mrb[0].mxu0
    %v4614 = vadd.f32 %v4573, %v4613
    %v4615 = vpop.f32.mrb[0].mxu0
    %4616 = vdwg.mxu0
    %4617 = vmatprep.subr.bf16.mxu0 0
    %4618 = vmatpush1.bf16.msra.mxu0 %v3799
    %4619 = vmatprep.subr.bf16.mxu0 0
    %4620 = vmatpush1.bf16.msra.mxu0 %v3802
    %4621 = vmatprep.subr.bf16.mxu0 0
    %4622 = vmatpush1.bf16.msra.mxu0 %v3805
    %4623 = vmatprep.subr.bf16.mxu0 0
    %4624 = vmatpush1.bf16.msra.mxu0 %v3808
    %4625 = vmatprep.subr.bf16.mxu0 0
    %4626 = vmatpush1.bf16.msra.mxu0 %v3811
    %4627 = vmatprep.subr.bf16.mxu0 0
    %4628 = vmatpush1.bf16.msra.mxu0 %v3814
    %4629 = vmatprep.subr.bf16.mxu0 0
    %4630 = vmatpush1.bf16.msra.mxu0 %v3817
    %4631 = vmatprep.subr.bf16.mxu0 0
    %4632 = vmatpush1.bf16.msra.mxu0 %v3820
    %4633 = vmatprep.subr.bf16.mxu0 0
    %4634 = vmatpush1.bf16.msra.mxu0 %v3823
    %4635 = vmatprep.subr.bf16.mxu0 0
    %4636 = vmatpush1.bf16.msra.mxu0 %v3826
    %4637 = vmatprep.subr.bf16.mxu0 0
    %4638 = vmatpush1.bf16.msra.mxu0 %v3829
    %4639 = vmatprep.subr.bf16.mxu0 0
    %4640 = vmatpush1.bf16.msra.mxu0 %v3832
    %4641 = vmatprep.subr.bf16.mxu0 0
    %4642 = vmatpush1.bf16.msra.mxu0 %v3835
    %4643 = vmatprep.subr.bf16.mxu0 0
    %4644 = vmatpush1.bf16.msra.mxu0 %v3838
    %4645 = vmatprep.subr.bf16.mxu0 0
    %4646 = vmatpush1.bf16.msra.mxu0 %v3841
    %4647 = vmatprep.subr.bf16.mxu0 0
    %4648 = vmatpush1.bf16.msra.mxu0 %v3844
    %4649 = vmatprep.mubr.bf16.mxu0 %v2350
    %4650 = vmatmul.mubr.bf16.gmra.mrb[0].mxu0 %v2349
    %v4651 = vpop.f32.mrb[0].mxu0
    %v4652 = vadd.f32 %v4611, %v4651
    %v4653 = vpop.f32.mrb[0].mxu0
    %v4654 = vpop.f32.mrb[0].mxu0
    %v4655 = vadd.f32 %v4614, %v4654
    %v4656 = vpop.f32.mrb[0].mxu0
    %4657 = vdwg.mxu0
    %4658 = vmatprep.subr.bf16.mxu0 0
    %4659 = vmatpush1.bf16.msra.mxu0 %v3847
    %4660 = vmatprep.subr.bf16.mxu0 0
    %4661 = vmatpush1.bf16.msra.mxu0 %v3850
    %4662 = vmatprep.subr.bf16.mxu0 0
    %4663 = vmatpush1.bf16.msra.mxu0 %v3853
    %4664 = vmatprep.subr.bf16.mxu0 0
    %4665 = vmatpush1.bf16.msra.mxu0 %v3856
    %4666 = vmatprep.subr.bf16.mxu0 0
    %4667 = vmatpush1.bf16.msra.mxu0 %v3859
    %4668 = vmatprep.subr.bf16.mxu0 0
    %4669 = vmatpush1.bf16.msra.mxu0 %v3862
    %4670 = vmatprep.subr.bf16.mxu0 0
    %4671 = vmatpush1.bf16.msra.mxu0 %v3865
    %4672 = vmatprep.subr.bf16.mxu0 0
    %4673 = vmatpush1.bf16.msra.mxu0 %v3868
    %4674 = vmatprep.subr.bf16.mxu0 0
    %4675 = vmatpush1.bf16.msra.mxu0 %v3871
    %4676 = vmatprep.subr.bf16.mxu0 0
    %4677 = vmatpush1.bf16.msra.mxu0 %v3874
    %4678 = vmatprep.subr.bf16.mxu0 0
    %4679 = vmatpush1.bf16.msra.mxu0 %v3877
    %4680 = vmatprep.subr.bf16.mxu0 0
    %4681 = vmatpush1.bf16.msra.mxu0 %v3880
    %4682 = vmatprep.subr.bf16.mxu0 0
    %4683 = vmatpush1.bf16.msra.mxu0 %v3883
    %4684 = vmatprep.subr.bf16.mxu0 0
    %4685 = vmatpush1.bf16.msra.mxu0 %v3886
    %4686 = vmatprep.subr.bf16.mxu0 0
    %4687 = vmatpush1.bf16.msra.mxu0 %v3889
    %4688 = vmatprep.subr.bf16.mxu0 0
    %4689 = vmatpush1.bf16.msra.mxu0 %v3892
    %4690 = vmatprep.mubr.bf16.mxu0 %v2352
    %4691 = vmatmul.mubr.bf16.gmra.mrb[0].mxu0 %v2351
    %v4692 = vpop.f32.mrb[0].mxu0
    %v4693 = vadd.f32 %v4652, %v4692
    %v4694 = vpop.f32.mrb[0].mxu0
    %v4695 = vpop.f32.mrb[0].mxu0
    %v4696 = vadd.f32 %v4655, %v4695
    %v4697 = vpop.f32.mrb[0].mxu0
    %4698 = vdwg.mxu0
    %4699 = vmatprep.subr.bf16.mxu0 0
    %4700 = vmatpush1.bf16.msra.mxu0 %v3895
    %4701 = vmatprep.subr.bf16.mxu0 0
    %4702 = vmatpush1.bf16.msra.mxu0 %v3898
    %4703 = vmatprep.subr.bf16.mxu0 0
    %4704 = vmatpush1.bf16.msra.mxu0 %v3901
    %4705 = vmatprep.subr.bf16.mxu0 0
    %4706 = vmatpush1.bf16.msra.mxu0 %v3904
    %4707 = vmatprep.subr.bf16.mxu0 0
    %4708 = vmatpush1.bf16.msra.mxu0 %v3907
    %4709 = vmatprep.subr.bf16.mxu0 0
    %4710 = vmatpush1.bf16.msra.mxu0 %v3910
    %4711 = vmatprep.subr.bf16.mxu0 0
    %4712 = vmatpush1.bf16.msra.mxu0 %v3913
    %4713 = vmatprep.subr.bf16.mxu0 0
    %4714 = vmatpush1.bf16.msra.mxu0 %v3916
    %4715 = vmatprep.subr.bf16.mxu0 0
    %4716 = vmatpush1.bf16.msra.mxu0 %v3919
    %4717 = vmatprep.subr.bf16.mxu0 0
    %4718 = vmatpush1.bf16.msra.mxu0 %v3922
    %4719 = vmatprep.subr.bf16.mxu0 0
    %4720 = vmatpush1.bf16.msra.mxu0 %v3925
    %4721 = vmatprep.subr.bf16.mxu0 0
    %4722 = vmatpush1.bf16.msra.mxu0 %v3928
    %4723 = vmatprep.subr.bf16.mxu0 0
    %4724 = vmatpush1.bf16.msra.mxu0 %v3931
    %4725 = vmatprep.subr.bf16.mxu0 0
    %4726 = vmatpush1.bf16.msra.mxu0 %v3934
    %4727 = vmatprep.subr.bf16.mxu0 0
    %4728 = vmatpush1.bf16.msra.mxu0 %v3937
    %4729 = vmatprep.subr.bf16.mxu0 0
    %4730 = vmatpush1.bf16.msra.mxu0 %v3940
    %4731 = vmatprep.mubr.bf16.mxu0 %v2354
    %4732 = vmatmul.mubr.bf16.gmra.mrb[0].mxu0 %v2353
    %v4733 = vpop.f32.mrb[0].mxu0
    %v4734 = vadd.f32 %v4693, %v4733
    %v4735 = vpop.f32.mrb[0].mxu0
    %v4736 = vpop.f32.mrb[0].mxu0
    %v4737 = vadd.f32 %v4696, %v4736
    %v4738 = vpop.f32.mrb[0].mxu0
    %4739 = vdwg.mxu0
    %4740 = vmatprep.subr.bf16.mxu0 0
    %4741 = vmatpush1.bf16.msra.mxu0 %v3943
    %4742 = vmatprep.subr.bf16.mxu0 0
    %4743 = vmatpush1.bf16.msra.mxu0 %v3946
    %4744 = vmatprep.subr.bf16.mxu0 0
    %4745 = vmatpush1.bf16.msra.mxu0 %v3949
    %4746 = vmatprep.subr.bf16.mxu0 0
    %4747 = vmatpush1.bf16.msra.mxu0 %v3952
    %4748 = vmatprep.subr.bf16.mxu0 0
    %4749 = vmatpush1.bf16.msra.mxu0 %v3955
    %4750 = vmatprep.subr.bf16.mxu0 0
    %4751 = vmatpush1.bf16.msra.mxu0 %v3958
    %4752 = vmatprep.subr.bf16.mxu0 0
    %4753 = vmatpush1.bf16.msra.mxu0 %v3961
    %4754 = vmatprep.subr.bf16.mxu0 0
    %4755 = vmatpush1.bf16.msra.mxu0 %v3964
    %4756 = vmatprep.subr.bf16.mxu0 0
    %4757 = vmatpush1.bf16.msra.mxu0 %v3967
    %4758 = vmatprep.subr.bf16.mxu0 0
    %4759 = vmatpush1.bf16.msra.mxu0 %v3970
    %4760 = vmatprep.subr.bf16.mxu0 0
    %4761 = vmatpush1.bf16.msra.mxu0 %v3973
    %4762 = vmatprep.subr.bf16.mxu0 0
    %4763 = vmatpush1.bf16.msra.mxu0 %v3976
    %4764 = vmatprep.subr.bf16.mxu0 0
    %4765 = vmatpush1.bf16.msra.mxu0 %v3979
    %4766 = vmatprep.subr.bf16.mxu0 0
    %4767 = vmatpush1.bf16.msra.mxu0 %v3982
    %4768 = vmatprep.subr.bf16.mxu0 0
    %4769 = vmatpush1.bf16.msra.mxu0 %v3985
    %4770 = vmatprep.subr.bf16.mxu0 0
    %4771 = vmatpush1.bf16.msra.mxu0 %v3988
    %4772 = vmatprep.mubr.bf16.mxu0 %v2356
    %4773 = vmatmul.mubr.bf16.gmra.mrb[0].mxu0 %v2355
    %v4774 = vpop.f32.mrb[0].mxu0
    %v4775 = vadd.f32 %v4734, %v4774
    %v4776 = vpop.f32.mrb[0].mxu0
    %v4777 = vpop.f32.mrb[0].mxu0
    %v4778 = vadd.f32 %v4737, %v4777
    %v4779 = vpop.f32.mrb[0].mxu0
    %4780 = vdwg.mxu0
    %4781 = vst [vmem:[#allocation8] sm:$0xff] %v4527
    %4782 = vst [vmem:[#allocation8 + $0x8] sm:$0xff] %v4529
    %4783 = vst [vmem:[#allocation8 + $0x10] sm:$0xff] %v4775
    %4784 = vst [vmem:[#allocation8 + $0x18] sm:$0xff] %v4531
    %4785 = vst [vmem:[#allocation8 + $0x20] sm:$0xff] %v4533
    %4786 = vst [vmem:[#allocation8 + $0x28] sm:$0xff] %v4778
    // Predicated region
    $region26: #{tpu_custom_call.1} parent=1 // pred_check
      _
    $region27: #{tpu_custom_call.1} parent=1 // pred_check_branch
      %4788 = sbr.rel (0) target = $region29
    $region28: #{tpu_custom_call.1} parent=1 // pred_region
      %s4790 = ssub.s32 768, 768
      %4791 = vsyncadd [#allocation4], %s4790
      %s4792 = sshll.u32 [#allocation8], 4
      %s4793 = int_to_ptr.vmem [resolvable:$true] %s4792
      %4798 = dma.vmem_to_hbm [thread:$0]  %s4793, 768, %s3, [#allocation4], 384, 384, 24
    $region29: #{tpu_custom_call.1} parent=1 // pred_fallthru
      _
    // Predicated region
    $region30: #{tpu_custom_call.1} parent=1 // pred_check
      _
    $region31: #{tpu_custom_call.1} parent=1 // pred_check_branch
      %4800 = sbr.rel (0) target = $region33
    $region32: #{tpu_custom_call.1} parent=1 // pred_region
      %4801 = dma.done [#allocation4], 768
    $region33: #{tpu_custom_call.1} parent=1 // pred_fallthru
      _
    %4802 = vsyncpa [#allocation3], 1
    %4803 = vsyncpa [#allocation6], 1
    %4804 = vsyncpa [#allocation4], 1

// kernel: tpu_custom_call.1
$region0: #{tpu_custom_call.1}
  #allocation0 [shape = 'u32[]', space=smem, size = 0x4, offset = 0x4, fixed_abs, tag = 'smem constant byte address 0x4 - core index']
  #allocation1 [shape = 'u32[144,128]{1,0:T(1,128)}', space=vmem, size = 0x12000, scoped, tag = 'internal scratch']
  %s0 = inlined_call_operand.hbm [shape: bf16[16,384], index: 0, kind: input, shape index: {}]
  %s1 = inlined_call_operand.hbm [shape: bf16[384,1536], index: 1, kind: input, shape index: {}]
  %s2 = inlined_call_operand.hbm [shape: bf16[1536,384], index: 2, kind: input, shape index: {}]
  %s3 = inlined_call_operand.hbm [shape: f32[16,384], index: 3, kind: output, shape index: {}]
  %s4 = sld [smem:[#allocation0]]
  $region34: #{tpu_custom_call.1} parent=0
    _
  %s6 = ssub.s32 1, %s4
  %s7 = scalar_select 0, %s6, %s4
  $region1: #{tpu_custom_call.1} parent=0
    #allocation2 [shape = 'u8[12288]{0}', space=vmem, size = 0x3000, scoped, tag = 'input window, operand 0, single buffered']
    #allocation3 [shape = 's32[1]{0}', space=sflag, size = 0x4, scoped, tag = 'scoped memory for tpu_custom_call.1']
    #allocation4 [shape = 's32[1]{0}', space=sflag, size = 0x4, scoped, tag = 'scoped memory for tpu_custom_call.1']
    #allocation5 [shape = 'u8[1179648]{0}', space=vmem, size = 0x120000, scoped, tag = 'input window, operand 1, single buffered']
    #allocation6 [shape = 's32[1]{0}', space=sflag, size = 0x4, scoped, tag = 'scoped memory for tpu_custom_call.1']
    #allocation7 [shape = 'u8[1179648]{0}', space=vmem, size = 0x120000, scoped, tag = 'input window, operand 2, single buffered']
    #allocation8 [shape = 'u8[24576]{0}', space=vmem, size = 0x6000, scoped, tag = 'output window, operand 0, single buffered']
    %8 = vsyncpa [#allocation3], 0
    %9 = vsyncpa [#allocation6], 0
    %10 = vsyncpa [#allocation4], 0
    // Predicated region
    $region2: #{tpu_custom_call.1} parent=1 // pred_check
      _
    $region3: #{tpu_custom_call.1} parent=1 // pred_check_branch
      %12 = sbr.rel (0) target = $region5
    $region4: #{tpu_custom_call.1} parent=1 // pred_region
      %s14 = ssub.s32 384, 384
      %15 = vsyncadd [#allocation3], %s14
      %s16 = sshll.u32 [#allocation2], 4
      %s17 = int_to_ptr.vmem [resolvable:$true] %s16
      %22 = dma.hbm_to_vmem [thread:$0]  %s0, 384, %s17, [#allocation3], 192, 192, 12
    $region5: #{tpu_custom_call.1} parent=1 // pred_fallthru
      _
    // Predicated region
    $region6: #{tpu_custom_call.1} parent=1 // pred_check
      _
    $region7: #{tpu_custom_call.1} parent=1 // pred_check_branch
      %24 = sbr.rel (0) target = $region9
    $region8: #{tpu_custom_call.1} parent=1 // pred_region
      %s26 = ssub.s32 36864, 36864
      %27 = vsyncadd [#allocation6], %s26
      %s28 = sshll.u32 [#allocation5], 4
      %s29 = int_to_ptr.vmem [resolvable:$true] %s28
      %34 = dma.hbm_to_vmem [thread:$0]  %s1, 36864, %s29, [#allocation6], 768, 768, 48
    $region9: #{tpu_custom_call.1} parent=1 // pred_fallthru
      _
    // Predicated region
    $region10: #{tpu_custom_call.1} parent=1 // pred_check
      _
    $region11: #{tpu_custom_call.1} parent=1 // pred_check_branch
      %36 = sbr.rel (0) target = $region13
    $region12: #{tpu_custom_call.1} parent=1 // pred_region
      %s38 = ssub.s32 36864, 36864
      %39 = vsyncadd [#allocation6], %s38
      %s40 = sshll.u32 [#allocation7], 4
      %s41 = int_to_ptr.vmem [resolvable:$true] %s40
      %46 = dma.hbm_to_vmem [thread:$0]  %s2, 36864, %s41, [#allocation6], 192, 192, 12
    $region13: #{tpu_custom_call.1} parent=1 // pred_fallthru
      _
    // Predicated region
    $region14: #{tpu_custom_call.1} parent=1 // pred_check
      _
    $region15: #{tpu_custom_call.1} parent=1 // pred_check_branch
      %48 = sbr.rel (0) target = $region17
    $region16: #{tpu_custom_call.1} parent=1 // pred_region
      %49 = dma.done [#allocation3], 384
    $region17: #{tpu_custom_call.1} parent=1 // pred_fallthru
      _
    // Predicated region
    $region18: #{tpu_custom_call.1} parent=1 // pred_check
      _
    $region19: #{tpu_custom_call.1} parent=1 // pred_check_branch
      %51 = sbr.rel (0) target = $region21
    $region20: #{tpu_custom_call.1} parent=1 // pred_region
      %52 = dma.done [#allocation6], 36864
    $region21: #{tpu_custom_call.1} parent=1 // pred_fallthru
      _
    // Predicated region
    $region22: #{tpu_custom_call.1} parent=1 // pred_check
      _
    $region23: #{tpu_custom_call.1} parent=1 // pred_check_branch
      %54 = sbr.rel (0) target = $region25
    $region24: #{tpu_custom_call.1} parent=1 // pred_region
      %55 = dma.done [#allocation6], 36864
    $region25: #{tpu_custom_call.1} parent=1 // pred_fallthru
      _
    %v57 = vld [vmem:[#allocation2] sm:$0xff]
    %v58 = vld [vmem:[#allocation2 + $0x8] sm:$0xf]
    %v59 = vld [vmem:[#allocation2 + $0xc] sm:$0xff]
    %v60 = vld [vmem:[#allocation2 + $0x14] sm:$0xf]
    %v61 = vld [vmem:[#allocation5] sm:$0xff]
    %v62 = vld [vmem:[#allocation5 + $0x8] sm:$0xff]
    %v63 = vld [vmem:[#allocation5 + $0x10] sm:$0xff]
    %v64 = vld [vmem:[#allocation5 + $0x18] sm:$0xff]
    %v65 = vld [vmem:[#allocation5 + $0x20] sm:$0xff]
    %v66 = vld [vmem:[#allocation5 + $0x28] sm:$0xff]
    %v67 = vld [vmem:[#allocation5 + $0x30] sm:$0xff]
    %v68 = vld [vmem:[#allocation5 + $0x38] sm:$0xff]
    %v69 = vld [vmem:[#allocation5 + $0x40] sm:$0xff]
    %v70 = vld [vmem:[#allocation5 + $0x48] sm:$0xff]
    %v71 = vld [vmem:[#allocation5 + $0x50] sm:$0xff]
    %v72 = vld [vmem:[#allocation5 + $0x58] sm:$0xff]
    %v73 = vld [vmem:[#allocation5 + $0x60] sm:$0xff]
    %v74 = vld [vmem:[#allocation5 + $0x68] sm:$0xff]
    %v75 = vld [vmem:[#allocation5 + $0x70] sm:$0xff]
    %v76 = vld [vmem:[#allocation5 + $0x78] sm:$0xff]
    %v77 = vld [vmem:[#allocation5 + $0x80] sm:$0xff]
    %v78 = vld [vmem:[#allocation5 + $0x88] sm:$0xff]
    %v79 = vld [vmem:[#allocation5 + $0x90] sm:$0xff]
    %v80 = vld [vmem:[#allocation5 + $0x98] sm:$0xff]
    %v81 = vld [vmem:[#allocation5 + $0xa0] sm:$0xff]
    %v82 = vld [vmem:[#allocation5 + $0xa8] sm:$0xff]
    %v83 = vld [vmem:[#allocation5 + $0xb0] sm:$0xff]
    %v84 = vld [vmem:[#allocation5 + $0xb8] sm:$0xff]
    %v85 = vld [vmem:[#allocation5 + $0xc0] sm:$0xff]
    %v86 = vld [vmem:[#allocation5 + $0xc8] sm:$0xff]
    %v87 = vld [vmem:[#allocation5 + $0xd0] sm:$0xff]
    %v88 = vld [vmem:[#allocation5 + $0xd8] sm:$0xff]
    %v89 = vld [vmem:[#allocation5 + $0xe0] sm:$0xff]
    %v90 = vld [vmem:[#allocation5 + $0xe8] sm:$0xff]
    %v91 = vld [vmem:[#allocation5 + $0xf0] sm:$0xff]
    %v92 = vld [vmem:[#allocation5 + $0xf8] sm:$0xff]
    %v93 = vld [vmem:[#allocation5 + $0x100] sm:$0xff]
    %v94 = vld [vmem:[#allocation5 + $0x108] sm:$0xff]
    %v95 = vld [vmem:[#allocation5 + $0x110] sm:$0xff]
    %v96 = vld [vmem:[#allocation5 + $0x118] sm:$0xff]
    %v97 = vld [vmem:[#allocation5 + $0x120] sm:$0xff]
    %v98 = vld [vmem:[#allocation5 + $0x128] sm:$0xff]
    %v99 = vld [vmem:[#allocation5 + $0x130] sm:$0xff]
    %v100 = vld [vmem:[#allocation5 + $0x138] sm:$0xff]
    %v101 = vld [vmem:[#allocation5 + $0x140] sm:$0xff]
    %v102 = vld [vmem:[#allocation5 + $0x148] sm:$0xff]
    %v103 = vld [vmem:[#allocation5 + $0x150] sm:$0xff]
    %v104 = vld [vmem:[#allocation5 + $0x158] sm:$0xff]
    %v105 = vld [vmem:[#allocation5 + $0x160] sm:$0xff]
    %v106 = vld [vmem:[#allocation5 + $0x168] sm:$0xff]
    %v107 = vld [vmem:[#allocation5 + $0x170] sm:$0xff]
    %v108 = vld [vmem:[#allocation5 + $0x178] sm:$0xff]
    %v109 = vld [vmem:[#allocation5 + $0x180] sm:$0xff]
    %v110 = vld [vmem:[#allocation5 + $0x188] sm:$0xff]
    %v111 = vld [vmem:[#allocation5 + $0x190] sm:$0xff]
    %v112 = vld [vmem:[#allocation5 + $0x198] sm:$0xff]
    %v113 = vld [vmem:[#allocation5 + $0x1a0] sm:$0xff]
    %v114 = vld [vmem:[#allocation5 + $0x1a8] sm:$0xff]
    %v115 = vld [vmem:[#allocation5 + $0x1b0] sm:$0xff]
    %v116 = vld [vmem:[#allocation5 + $0x1b8] sm:$0xff]
    %v117 = vld [vmem:[#allocation5 + $0x1c0] sm:$0xff]
    %v118 = vld [vmem:[#allocation5 + $0x1c8] sm:$0xff]
    %v119 = vld [vmem:[#allocation5 + $0x1d0] sm:$0xff]
    %v120 = vld [vmem:[#allocation5 + $0x1d8] sm:$0xff]
    %v121 = vld [vmem:[#allocation5 + $0x1e0] sm:$0xff]
    %v122 = vld [vmem:[#allocation5 + $0x1e8] sm:$0xff]
    %v123 = vld [vmem:[#allocation5 + $0x1f0] sm:$0xff]
    %v124 = vld [vmem:[#allocation5 + $0x1f8] sm:$0xff]
    %v125 = vld [vmem:[#allocation5 + $0x200] sm:$0xff]
    %v126 = vld [vmem:[#allocation5 + $0x208] sm:$0xff]
    %v127 = vld [vmem:[#allocation5 + $0x210] sm:$0xff]
    %v128 = vld [vmem:[#allocation5 + $0x218] sm:$0xff]
    %v129 = vld [vmem:[#allocation5 + $0x220] sm:$0xff]
    %v130 = vld [vmem:[#allocation5 + $0x228] sm:$0xff]
    %v131 = vld [vmem:[#allocation5 + $0x230] sm:$0xff]
    %v132 = vld [vmem:[#allocation5 + $0x238] sm:$0xff]
    %v133 = vld [vmem:[#allocation5 + $0x240] sm:$0xff]
    %v134 = vld [vmem:[#allocation5 + $0x248] sm:$0xff]
    %v135 = vld [vmem:[#allocation5 + $0x250] sm:$0xff]
    %v136 = vld [vmem:[#allocation5 + $0x258] sm:$0xff]
    %v137 = vld [vmem:[#allocation5 + $0x260] sm:$0xff]
    %v138 = vld [vmem:[#allocation5 + $0x268] sm:$0xff]
    %v139 = vld [vmem:[#allocation5 + $0x270] sm:$0xff]
    %v140 = vld [vmem:[#allocation5 + $0x278] sm:$0xff]
    %v141 = vld [vmem:[#allocation5 + $0x280] sm:$0xff]
    %v142 = vld [vmem:[#allocation5 + $0x288] sm:$0xff]
    %v143 = vld [vmem:[#allocation5 + $0x290] sm:$0xff]
    %v144 = vld [vmem:[#allocation5 + $0x298] sm:$0xff]
    %v145 = vld [vmem:[#allocation5 + $0x2a0] sm:$0xff]
    %v146 = vld [vmem:[#allocation5 + $0x2a8] sm:$0xff]
    %v147 = vld [vmem:[#allocation5 + $0x2b0] sm:$0xff]
    %v148 = vld [vmem:[#allocation5 + $0x2b8] sm:$0xff]
    %v149 = vld [vmem:[#allocation5 + $0x2c0] sm:$0xff]
    %v150 = vld [vmem:[#allocation5 + $0x2c8] sm:$0xff]
    %v151 = vld [vmem:[#allocation5 + $0x2d0] sm:$0xff]
    %v152 = vld [vmem:[#allocation5 + $0x2d8] sm:$0xff]
    %v153 = vld [vmem:[#allocation5 + $0x2e0] sm:$0xff]
    %v154 = vld [vmem:[#allocation5 + $0x2e8] sm:$0xff]
    %v155 = vld [vmem:[#allocation5 + $0x2f0] sm:$0xff]
    %v156 = vld [vmem:[#allocation5 + $0x2f8] sm:$0xff]
    %v157 = vld [vmem:[#allocation5 + $0x300] sm:$0xff]
    %v158 = vld [vmem:[#allocation5 + $0x308] sm:$0xff]
    %v159 = vld [vmem:[#allocation5 + $0x310] sm:$0xff]
    %v160 = vld [vmem:[#allocation5 + $0x318] sm:$0xff]
    %v161 = vld [vmem:[#allocation5 + $0x320] sm:$0xff]
    %v162 = vld [vmem:[#allocation5 + $0x328] sm:$0xff]
    %v163 = vld [vmem:[#allocation5 + $0x330] sm:$0xff]
    %v164 = vld [vmem:[#allocation5 + $0x338] sm:$0xff]
    %v165 = vld [vmem:[#allocation5 + $0x340] sm:$0xff]
    %v166 = vld [vmem:[#allocation5 + $0x348] sm:$0xff]
    %v167 = vld [vmem:[#allocation5 + $0x350] sm:$0xff]
    %v168 = vld [vmem:[#allocation5 + $0x358] sm:$0xff]
    %v169 = vld [vmem:[#allocation5 + $0x360] sm:$0xff]
    %v170 = vld [vmem:[#allocation5 + $0x368] sm:$0xff]
    %v171 = vld [vmem:[#allocation5 + $0x370] sm:$0xff]
    %v172 = vld [vmem:[#allocation5 + $0x378] sm:$0xff]
    %v173 = vld [vmem:[#allocation5 + $0x380] sm:$0xff]
    %v174 = vld [vmem:[#allocation5 + $0x388] sm:$0xff]
    %v175 = vld [vmem:[#allocation5 + $0x390] sm:$0xff]
    %v176 = vld [vmem:[#allocation5 + $0x398] sm:$0xff]
    %v177 = vld [vmem:[#allocation5 + $0x3a0] sm:$0xff]
    %v178 = vld [vmem:[#allocation5 + $0x3a8] sm:$0xff]
    %v179 = vld [vmem:[#allocation5 + $0x3b0] sm:$0xff]
    %v180 = vld [vmem:[#allocation5 + $0x3b8] sm:$0xff]
    %v181 = vld [vmem:[#allocation5 + $0x3c0] sm:$0xff]
    %v182 = vld [vmem:[#allocation5 + $0x3c8] sm:$0xff]
    %v183 = vld [vmem:[#allocation5 + $0x3d0] sm:$0xff]
    %v184 = vld [vmem:[#allocation5 + $0x3d8] sm:$0xff]
    %v185 = vld [vmem:[#allocation5 + $0x3e0] sm:$0xff]
    %v186 = vld [vmem:[#allocation5 + $0x3e8] sm:$0xff]
    %v187 = vld [vmem:[#allocation5 + $0x3f0] sm:$0xff]
    %v188 = vld [vmem:[#allocation5 + $0x3f8] sm:$0xff]
    %v189 = vld [vmem:[#allocation5 + $0x400] sm:$0xff]
    %v190 = vld [vmem:[#allocation5 + $0x408] sm:$0xff]
    %v191 = vld [vmem:[#allocation5 + $0x410] sm:$0xff]
    %v192 = vld [vmem:[#allocation5 + $0x418] sm:$0xff]
    %v193 = vld [vmem:[#allocation5 + $0x420] sm:$0xff]
    %v194 = vld [vmem:[#allocation5 + $0x428] sm:$0xff]
    %v195 = vld [vmem:[#allocation5 + $0x430] sm:$0xff]
    %v196 = vld [vmem:[#allocation5 + $0x438] sm:$0xff]
    %v197 = vld [vmem:[#allocation5 + $0x440] sm:$0xff]
    %v198 = vld [vmem:[#allocation5 + $0x448] sm:$0xff]
    %v199 = vld [vmem:[#allocation5 + $0x450] sm:$0xff]
    %v200 = vld [vmem:[#allocation5 + $0x458] sm:$0xff]
    %v201 = vld [vmem:[#allocation5 + $0x460] sm:$0xff]
    %v202 = vld [vmem:[#allocation5 + $0x468] sm:$0xff]
    %v203 = vld [vmem:[#allocation5 + $0x470] sm:$0xff]
    %v204 = vld [vmem:[#allocation5 + $0x478] sm:$0xff]
    %v205 = vld [vmem:[#allocation5 + $0x480] sm:$0xff]
    %v206 = vld [vmem:[#allocation5 + $0x488] sm:$0xff]
    %v207 = vld [vmem:[#allocation5 + $0x490] sm:$0xff]
    %v208 = vld [vmem:[#allocation5 + $0x498] sm:$0xff]
    %v209 = vld [vmem:[#allocation5 + $0x4a0] sm:$0xff]
    %v210 = vld [vmem:[#allocation5 + $0x4a8] sm:$0xff]
    %v211 = vld [vmem:[#allocation5 + $0x4b0] sm:$0xff]
    %v212 = vld [vmem:[#allocation5 + $0x4b8] sm:$0xff]
    %v213 = vld [vmem:[#allocation5 + $0x4c0] sm:$0xff]
    %v214 = vld [vmem:[#allocation5 + $0x4c8] sm:$0xff]
    %v215 = vld [vmem:[#allocation5 + $0x4d0] sm:$0xff]
    %v216 = vld [vmem:[#allocation5 + $0x4d8] sm:$0xff]
    %v217 = vld [vmem:[#allocation5 + $0x4e0] sm:$0xff]
    %v218 = vld [vmem:[#allocation5 + $0x4e8] sm:$0xff]
    %v219 = vld [vmem:[#allocation5 + $0x4f0] sm:$0xff]
    %v220 = vld [vmem:[#allocation5 + $0x4f8] sm:$0xff]
    %v221 = vld [vmem:[#allocation5 + $0x500] sm:$0xff]
    %v222 = vld [vmem:[#allocation5 + $0x508] sm:$0xff]
    %v223 = vld [vmem:[#allocation5 + $0x510] sm:$0xff]
    %v224 = vld [vmem:[#allocation5 + $0x518] sm:$0xff]
    %v225 = vld [vmem:[#allocation5 + $0x520] sm:$0xff]
    %v226 = vld [vmem:[#allocation5 + $0x528] sm:$0xff]
    %v227 = vld [vmem:[#allocation5 + $0x530] sm:$0xff]
    %v228 = vld [vmem:[#allocation5 + $0x538] sm:$0xff]
    %v229 = vld [vmem:[#allocation5 + $0x540] sm:$0xff]
    %v230 = vld [vmem:[#allocation5 + $0x548] sm:$0xff]
    %v231 = vld [vmem:[#allocation5 + $0x550] sm:$0xff]
    %v232 = vld [vmem:[#allocation5 + $0x558] sm:$0xff]
    %v233 = vld [vmem:[#allocation5 + $0x560] sm:$0xff]
    %v234 = vld [vmem:[#allocation5 + $0x568] sm:$0xff]
    %v235 = vld [vmem:[#allocation5 + $0x570] sm:$0xff]
    %v236 = vld [vmem:[#allocation5 + $0x578] sm:$0xff]
    %v237 = vld [vmem:[#allocation5 + $0x580] sm:$0xff]
    %v238 = vld [vmem:[#allocation5 + $0x588] sm:$0xff]
    %v239 = vld [vmem:[#allocation5 + $0x590] sm:$0xff]
    %v240 = vld [vmem:[#allocation5 + $0x598] sm:$0xff]
    %v241 = vld [vmem:[#allocation5 + $0x5a0] sm:$0xff]
    %v242 = vld [vmem:[#allocation5 + $0x5a8] sm:$0xff]
    %v243 = vld [vmem:[#allocation5 + $0x5b0] sm:$0xff]
    %v244 = vld [vmem:[#allocation5 + $0x5b8] sm:$0xff]
    %v245 = vld [vmem:[#allocation5 + $0x5c0] sm:$0xff]
    %v246 = vld [vmem:[#allocation5 + $0x5c8] sm:$0xff]
    %v247 = vld [vmem:[#allocation5 + $0x5d0] sm:$0xff]
    %v248 = vld [vmem:[#allocation5 + $0x5d8] sm:$0xff]
    %v249 = vld [vmem:[#allocation5 + $0x5e0] sm:$0xff]
    %v250 = vld [vmem:[#allocation5 + $0x5e8] sm:$0xff]
    %v251 = vld [vmem:[#allocation5 + $0x5f0] sm:$0xff]
    %v252 = vld [vmem:[#allocation5 + $0x5f8] sm:$0xff]
    %v253 = vld [vmem:[#allocation5 + $0x600] sm:$0xff]
    %v254 = vld [vmem:[#allocation5 + $0x608] sm:$0xff]
    %v255 = vld [vmem:[#allocation5 + $0x610] sm:$0xff]
    %v256 = vld [vmem:[#allocation5 + $0x618] sm:$0xff]
    %v257 = vld [vmem:[#allocation5 + $0x620] sm:$0xff]
    %v258 = vld [vmem:[#allocation5 + $0x628] sm:$0xff]
    %v259 = vld [vmem:[#allocation5 + $0x630] sm:$0xff]
    %v260 = vld [vmem:[#allocation5 + $0x638] sm:$0xff]
    %v261 = vld [vmem:[#allocation5 + $0x640] sm:$0xff]
    %v262 = vld [vmem:[#allocation5 + $0x648] sm:$0xff]
    %v263 = vld [vmem:[#allocation5 + $0x650] sm:$0xff]
    %v264 = vld [vmem:[#allocation5 + $0x658] sm:$0xff]
    %v265 = vld [vmem:[#allocation5 + $0x660] sm:$0xff]
    %v266 = vld [vmem:[#allocation5 + $0x668] sm:$0xff]
    %v267 = vld [vmem:[#allocation5 + $0x670] sm:$0xff]
    %v268 = vld [vmem:[#allocation5 + $0x678] sm:$0xff]
    %v269 = vld [vmem:[#allocation5 + $0x680] sm:$0xff]
    %v270 = vld [vmem:[#allocation5 + $0x688] sm:$0xff]
    %v271 = vld [vmem:[#allocation5 + $0x690] sm:$0xff]
    %v272 = vld [vmem:[#allocation5 + $0x698] sm:$0xff]
    %v273 = vld [vmem:[#allocation5 + $0x6a0] sm:$0xff]
    %v274 = vld [vmem:[#allocation5 + $0x6a8] sm:$0xff]
    %v275 = vld [vmem:[#allocation5 + $0x6b0] sm:$0xff]
    %v276 = vld [vmem:[#allocation5 + $0x6b8] sm:$0xff]
    %v277 = vld [vmem:[#allocation5 + $0x6c0] sm:$0xff]
    %v278 = vld [vmem:[#allocation5 + $0x6c8] sm:$0xff]
    %v279 = vld [vmem:[#allocation5 + $0x6d0] sm:$0xff]
    %v280 = vld [vmem:[#allocation5 + $0x6d8] sm:$0xff]
    %v281 = vld [vmem:[#allocation5 + $0x6e0] sm:$0xff]
    %v282 = vld [vmem:[#allocation5 + $0x6e8] sm:$0xff]
    %v283 = vld [vmem:[#allocation5 + $0x6f0] sm:$0xff]
    %v284 = vld [vmem:[#allocation5 + $0x6f8] sm:$0xff]
    %v285 = vld [vmem:[#allocation5 + $0x700] sm:$0xff]
    %v286 = vld [vmem:[#allocation5 + $0x708] sm:$0xff]
    %v287 = vld [vmem:[#allocation5 + $0x710] sm:$0xff]
    %v288 = vld [vmem:[#allocation5 + $0x718] sm:$0xff]
    %v289 = vld [vmem:[#allocation5 + $0x720] sm:$0xff]
    %v290 = vld [vmem:[#allocation5 + $0x728] sm:$0xff]
    %v291 = vld [vmem:[#allocation5 + $0x730] sm:$0xff]
    %v292 = vld [vmem:[#allocation5 + $0x738] sm:$0xff]
    %v293 = vld [vmem:[#allocation5 + $0x740] sm:$0xff]
    %v294 = vld [vmem:[#allocation5 + $0x748] sm:$0xff]
    %v295 = vld [vmem:[#allocation5 + $0x750] sm:$0xff]
    %v296 = vld [vmem:[#allocation5 + $0x758] sm:$0xff]
    %v297 = vld [vmem:[#allocation5 + $0x760] sm:$0xff]
    %v298 = vld [vmem:[#allocation5 + $0x768] sm:$0xff]
    %v299 = vld [vmem:[#allocation5 + $0x770] sm:$0xff]
    %v300 = vld [vmem:[#allocation5 + $0x778] sm:$0xff]
    %v301 = vld [vmem:[#allocation5 + $0x780] sm:$0xff]
    %v302 = vld [vmem:[#allocation5 + $0x788] sm:$0xff]
    %v303 = vld [vmem:[#allocation5 + $0x790] sm:$0xff]
    %v304 = vld [vmem:[#allocation5 + $0x798] sm:$0xff]
    %v305 = vld [vmem:[#allocation5 + $0x7a0] sm:$0xff]
    %v306 = vld [vmem:[#allocation5 + $0x7a8] sm:$0xff]
    %v307 = vld [vmem:[#allocation5 + $0x7b0] sm:$0xff]
    %v308 = vld [vmem:[#allocation5 + $0x7b8] sm:$0xff]
    %v309 = vld [vmem:[#allocation5 + $0x7c0] sm:$0xff]
    %v310 = vld [vmem:[#allocation5 + $0x7c8] sm:$0xff]
    %v311 = vld [vmem:[#allocation5 + $0x7d0] sm:$0xff]
    %v312 = vld [vmem:[#allocation5 + $0x7d8] sm:$0xff]
    %v313 = vld [vmem:[#allocation5 + $0x7e0] sm:$0xff]
    %v314 = vld [vmem:[#allocation5 + $0x7e8] sm:$0xff]
    %v315 = vld [vmem:[#allocation5 + $0x7f0] sm:$0xff]
    %v316 = vld [vmem:[#allocation5 + $0x7f8] sm:$0xff]
    %v317 = vld [vmem:[#allocation5 + $0x800] sm:$0xff]
    %v318 = vld [vmem:[#allocation5 + $0x808] sm:$0xff]
    %v319 = vld [vmem:[#allocation5 + $0x810] sm:$0xff]
    %v320 = vld [vmem:[#allocation5 + $0x818] sm:$0xff]
    %v321 = vld [vmem:[#allocation5 + $0x820] sm:$0xff]
    %v322 = vld [vmem:[#allocation5 + $0x828] sm:$0xff]
    %v323 = vld [vmem:[#allocation5 + $0x830] sm:$0xff]
    %v324 = vld [vmem:[#allocation5 + $0x838] sm:$0xff]
    %v325 = vld [vmem:[#allocation5 + $0x840] sm:$0xff]
    %v326 = vld [vmem:[#allocation5 + $0x848] sm:$0xff]
    %v327 = vld [vmem:[#allocation5 + $0x850] sm:$0xff]
    %v328 = vld [vmem:[#allocation5 + $0x858] sm:$0xff]
    %v329 = vld [vmem:[#allocation5 + $0x860] sm:$0xff]
    %v330 = vld [vmem:[#allocation5 + $0x868] sm:$0xff]
    %v331 = vld [vmem:[#allocation5 + $0x870] sm:$0xff]
    %v332 = vld [vmem:[#allocation5 + $0x878] sm:$0xff]
    %v333 = vld [vmem:[#allocation5 + $0x880] sm:$0xff]
    %v334 = vld [vmem:[#allocation5 + $0x888] sm:$0xff]
    %v335 = vld [vmem:[#allocation5 + $0x890] sm:$0xff]
    %v336 = vld [vmem:[#allocation5 + $0x898] sm:$0xff]
    %v337 = vld [vmem:[#allocation5 + $0x8a0] sm:$0xff]
    %v338 = vld [vmem:[#allocation5 + $0x8a8] sm:$0xff]
    %v339 = vld [vmem:[#allocation5 + $0x8b0] sm:$0xff]
    %v340 = vld [vmem:[#allocation5 + $0x8b8] sm:$0xff]
    %v341 = vld [vmem:[#allocation5 + $0x8c0] sm:$0xff]
    %v342 = vld [vmem:[#allocation5 + $0x8c8] sm:$0xff]
    %v343 = vld [vmem:[#allocation5 + $0x8d0] sm:$0xff]
    %v344 = vld [vmem:[#allocation5 + $0x8d8] sm:$0xff]
    %v345 = vld [vmem:[#allocation5 + $0x8e0] sm:$0xff]
    %v346 = vld [vmem:[#allocation5 + $0x8e8] sm:$0xff]
    %v347 = vld [vmem:[#allocation5 + $0x8f0] sm:$0xff]
    %v348 = vld [vmem:[#allocation5 + $0x8f8] sm:$0xff]
    %v353 = vunpack.c.l.b16 %v57
    %v354 = vunpack.c.h.b16 %v57
    %v355 = vunpack.c.l.b16 %v58
    %v356 = vunpack.c.l.b16 %v59
    %v357 = vunpack.c.h.b16 %v59
    %v358 = vunpack.c.l.b16 %v60
    %v359 = vpack.c.b16 %v356, %v353
    %v360 = vpack.c.b16 %v357, %v354
    %v361 = vpack.c.b16 %v358, %v355
    %v653 = vunpack.c.l.b16 %v61
    %v654 = vunpack.c.h.b16 %v61
    %v655 = vunpack.c.l.b16 %v62
    %v656 = vunpack.c.h.b16 %v62
    %v657 = vunpack.c.l.b16 %v63
    %v658 = vunpack.c.h.b16 %v63
    %v659 = vunpack.c.l.b16 %v64
    %v660 = vunpack.c.h.b16 %v64
    %v661 = vunpack.c.l.b16 %v65
    %v662 = vunpack.c.h.b16 %v65
    %v663 = vunpack.c.l.b16 %v66
    %v664 = vunpack.c.h.b16 %v66
    %v665 = vunpack.c.l.b16 %v67
    %v666 = vunpack.c.h.b16 %v67
    %v667 = vunpack.c.l.b16 %v68
    %v668 = vunpack.c.h.b16 %v68
    %v669 = vunpack.c.l.b16 %v69
    %v670 = vunpack.c.h.b16 %v69
    %v671 = vunpack.c.l.b16 %v70
    %v672 = vunpack.c.h.b16 %v70
    %v673 = vunpack.c.l.b16 %v71
    %v674 = vunpack.c.h.b16 %v71
    %v675 = vunpack.c.l.b16 %v72
    %v676 = vunpack.c.h.b16 %v72
    %v677 = vunpack.c.l.b16 %v73
    %v678 = vunpack.c.h.b16 %v73
    %v679 = vunpack.c.l.b16 %v74
    %v680 = vunpack.c.h.b16 %v74
    %v681 = vunpack.c.l.b16 %v75
    %v682 = vunpack.c.h.b16 %v75
    %v683 = vunpack.c.l.b16 %v76
    %v684 = vunpack.c.h.b16 %v76
    %v685 = vunpack.c.l.b16 %v77
    %v686 = vunpack.c.h.b16 %v77
    %v687 = vunpack.c.l.b16 %v78
    %v688 = vunpack.c.h.b16 %v78
    %v689 = vunpack.c.l.b16 %v79
    %v690 = vunpack.c.h.b16 %v79
    %v691 = vunpack.c.l.b16 %v80
    %v692 = vunpack.c.h.b16 %v80
    %v693 = vunpack.c.l.b16 %v81
    %v694 = vunpack.c.h.b16 %v81
    %v695 = vunpack.c.l.b16 %v82
    %v696 = vunpack.c.h.b16 %v82
    %v697 = vunpack.c.l.b16 %v83
    %v698 = vunpack.c.h.b16 %v83
    %v699 = vunpack.c.l.b16 %v84
    %v700 = vunpack.c.h.b16 %v84
    %v701 = vunpack.c.l.b16 %v85
    %v702 = vunpack.c.h.b16 %v85
    %v703 = vunpack.c.l.b16 %v86
    %v704 = vunpack.c.h.b16 %v86
    %v705 = vunpack.c.l.b16 %v87
    %v706 = vunpack.c.h.b16 %v87
    %v707 = vunpack.c.l.b16 %v88
    %v708 = vunpack.c.h.b16 %v88
    %v709 = vunpack.c.l.b16 %v89
    %v710 = vunpack.c.h.b16 %v89
    %v711 = vunpack.c.l.b16 %v90
    %v712 = vunpack.c.h.b16 %v90
    %v713 = vunpack.c.l.b16 %v91
    %v714 = vunpack.c.h.b16 %v91
    %v715 = vunpack.c.l.b16 %v92
    %v716 = vunpack.c.h.b16 %v92
    %v717 = vunpack.c.l.b16 %v93
    %v718 = vunpack.c.h.b16 %v93
    %v719 = vunpack.c.l.b16 %v94
    %v720 = vunpack.c.h.b16 %v94
    %v721 = vunpack.c.l.b16 %v95
    %v722 = vunpack.c.h.b16 %v95
    %v723 = vunpack.c.l.b16 %v96
    %v724 = vunpack.c.h.b16 %v96
    %v725 = vunpack.c.l.b16 %v97
    %v726 = vunpack.c.h.b16 %v97
    %v727 = vunpack.c.l.b16 %v98
    %v728 = vunpack.c.h.b16 %v98
    %v729 = vunpack.c.l.b16 %v99
    %v730 = vunpack.c.h.b16 %v99
    %v731 = vunpack.c.l.b16 %v100
    %v732 = vunpack.c.h.b16 %v100
    %v733 = vunpack.c.l.b16 %v101
    %v734 = vunpack.c.h.b16 %v101
    %v735 = vunpack.c.l.b16 %v102
    %v736 = vunpack.c.h.b16 %v102
    %v737 = vunpack.c.l.b16 %v103
    %v738 = vunpack.c.h.b16 %v103
    %v739 = vunpack.c.l.b16 %v104
    %v740 = vunpack.c.h.b16 %v104
    %v741 = vunpack.c.l.b16 %v105
    %v742 = vunpack.c.h.b16 %v105
    %v743 = vunpack.c.l.b16 %v106
    %v744 = vunpack.c.h.b16 %v106
    %v745 = vunpack.c.l.b16 %v107
    %v746 = vunpack.c.h.b16 %v107
    %v747 = vunpack.c.l.b16 %v108
    %v748 = vunpack.c.h.b16 %v108
    %v749 = vunpack.c.l.b16 %v109
    %v750 = vunpack.c.h.b16 %v109
    %v751 = vunpack.c.l.b16 %v110
    %v752 = vunpack.c.h.b16 %v110
    %v753 = vunpack.c.l.b16 %v111
    %v754 = vunpack.c.h.b16 %v111
    %v755 = vunpack.c.l.b16 %v112
    %v756 = vunpack.c.h.b16 %v112
    %v757 = vunpack.c.l.b16 %v113
    %v758 = vunpack.c.h.b16 %v113
    %v759 = vunpack.c.l.b16 %v114
    %v760 = vunpack.c.h.b16 %v114
    %v761 = vunpack.c.l.b16 %v115
    %v762 = vunpack.c.h.b16 %v115
    %v763 = vunpack.c.l.b16 %v116
    %v764 = vunpack.c.h.b16 %v116
    %v765 = vunpack.c.l.b16 %v117
    %v766 = vunpack.c.h.b16 %v117
    %v767 = vunpack.c.l.b16 %v118
    %v768 = vunpack.c.h.b16 %v118
    %v769 = vunpack.c.l.b16 %v119
    %v770 = vunpack.c.h.b16 %v119
    %v771 = vunpack.c.l.b16 %v120
    %v772 = vunpack.c.h.b16 %v120
    %v773 = vunpack.c.l.b16 %v121
    %v774 = vunpack.c.h.b16 %v121
    %v775 = vunpack.c.l.b16 %v122
    %v776 = vunpack.c.h.b16 %v122
    %v777 = vunpack.c.l.b16 %v123
    %v778 = vunpack.c.h.b16 %v123
    %v779 = vunpack.c.l.b16 %v124
    %v780 = vunpack.c.h.b16 %v124
    %v781 = vunpack.c.l.b16 %v125
    %v782 = vunpack.c.h.b16 %v125
    %v783 = vunpack.c.l.b16 %v126
    %v784 = vunpack.c.h.b16 %v126
    %v785 = vunpack.c.l.b16 %v127
    %v786 = vunpack.c.h.b16 %v127
    %v787 = vunpack.c.l.b16 %v128
    %v788 = vunpack.c.h.b16 %v128
    %v789 = vunpack.c.l.b16 %v129
    %v790 = vunpack.c.h.b16 %v129
    %v791 = vunpack.c.l.b16 %v130
    %v792 = vunpack.c.h.b16 %v130
    %v793 = vunpack.c.l.b16 %v131
    %v794 = vunpack.c.h.b16 %v131
    %v795 = vunpack.c.l.b16 %v132
    %v796 = vunpack.c.h.b16 %v132
    %v797 = vunpack.c.l.b16 %v133
    %v798 = vunpack.c.h.b16 %v133
    %v799 = vunpack.c.l.b16 %v134
    %v800 = vunpack.c.h.b16 %v134
    %v801 = vunpack.c.l.b16 %v135
    %v802 = vunpack.c.h.b16 %v135
    %v803 = vunpack.c.l.b16 %v136
    %v804 = vunpack.c.h.b16 %v136
    %v805 = vunpack.c.l.b16 %v137
    %v806 = vunpack.c.h.b16 %v137
    %v807 = vunpack.c.l.b16 %v138
    %v808 = vunpack.c.h.b16 %v138
    %v809 = vunpack.c.l.b16 %v139
    %v810 = vunpack.c.h.b16 %v139
    %v811 = vunpack.c.l.b16 %v140
    %v812 = vunpack.c.h.b16 %v140
    %v813 = vunpack.c.l.b16 %v141
    %v814 = vunpack.c.h.b16 %v141
    %v815 = vunpack.c.l.b16 %v142
    %v816 = vunpack.c.h.b16 %v142
    %v817 = vunpack.c.l.b16 %v143
    %v818 = vunpack.c.h.b16 %v143
    %v819 = vunpack.c.l.b16 %v144
    %v820 = vunpack.c.h.b16 %v144
    %v821 = vunpack.c.l.b16 %v145
    %v822 = vunpack.c.h.b16 %v145
    %v823 = vunpack.c.l.b16 %v146
    %v824 = vunpack.c.h.b16 %v146
    %v825 = vunpack.c.l.b16 %v147
    %v826 = vunpack.c.h.b16 %v147
    %v827 = vunpack.c.l.b16 %v148
    %v828 = vunpack.c.h.b16 %v148
    %v829 = vunpack.c.l.b16 %v149
    %v830 = vunpack.c.h.b16 %v149
    %v831 = vunpack.c.l.b16 %v150
    %v832 = vunpack.c.h.b16 %v150
    %v833 = vunpack.c.l.b16 %v151
    %v834 = vunpack.c.h.b16 %v151
    %v835 = vunpack.c.l.b16 %v152
    %v836 = vunpack.c.h.b16 %v152
    %v837 = vunpack.c.l.b16 %v153
    %v838 = vunpack.c.h.b16 %v153
    %v839 = vunpack.c.l.b16 %v154
    %v840 = vunpack.c.h.b16 %v154
    %v841 = vunpack.c.l.b16 %v155
    %v842 = vunpack.c.h.b16 %v155
    %v843 = vunpack.c.l.b16 %v156
    %v844 = vunpack.c.h.b16 %v156
    %v845 = vunpack.c.l.b16 %v157
    %v846 = vunpack.c.h.b16 %v157
    %v847 = vunpack.c.l.b16 %v158
    %v848 = vunpack.c.h.b16 %v158
    %v849 = vunpack.c.l.b16 %v159
    %v850 = vunpack.c.h.b16 %v159
    %v851 = vunpack.c.l.b16 %v160
    %v852 = vunpack.c.h.b16 %v160
    %v853 = vunpack.c.l.b16 %v161
    %v854 = vunpack.c.h.b16 %v161
    %v855 = vunpack.c.l.b16 %v162
    %v856 = vunpack.c.h.b16 %v162
    %v857 = vunpack.c.l.b16 %v163
    %v858 = vunpack.c.h.b16 %v163
    %v859 = vunpack.c.l.b16 %v164
    %v860 = vunpack.c.h.b16 %v164
    %v861 = vunpack.c.l.b16 %v165
    %v862 = vunpack.c.h.b16 %v165
    %v863 = vunpack.c.l.b16 %v166
    %v864 = vunpack.c.h.b16 %v166
    %v865 = vunpack.c.l.b16 %v167
    %v866 = vunpack.c.h.b16 %v167
    %v867 = vunpack.c.l.b16 %v168
    %v868 = vunpack.c.h.b16 %v168
    %v869 = vunpack.c.l.b16 %v169
    %v870 = vunpack.c.h.b16 %v169
    %v871 = vunpack.c.l.b16 %v170
    %v872 = vunpack.c.h.b16 %v170
    %v873 = vunpack.c.l.b16 %v171
    %v874 = vunpack.c.h.b16 %v171
    %v875 = vunpack.c.l.b16 %v172
    %v876 = vunpack.c.h.b16 %v172
    %v877 = vunpack.c.l.b16 %v173
    %v878 = vunpack.c.h.b16 %v173
    %v879 = vunpack.c.l.b16 %v174
    %v880 = vunpack.c.h.b16 %v174
    %v881 = vunpack.c.l.b16 %v175
    %v882 = vunpack.c.h.b16 %v175
    %v883 = vunpack.c.l.b16 %v176
    %v884 = vunpack.c.h.b16 %v176
    %v885 = vunpack.c.l.b16 %v177
    %v886 = vunpack.c.h.b16 %v177
    %v887 = vunpack.c.l.b16 %v178
    %v888 = vunpack.c.h.b16 %v178
    %v889 = vunpack.c.l.b16 %v179
    %v890 = vunpack.c.h.b16 %v179
    %v891 = vunpack.c.l.b16 %v180
    %v892 = vunpack.c.h.b16 %v180
    %v893 = vunpack.c.l.b16 %v181
    %v894 = vunpack.c.h.b16 %v181
    %v895 = vunpack.c.l.b16 %v182
    %v896 = vunpack.c.h.b16 %v182
    %v897 = vunpack.c.l.b16 %v183
    %v898 = vunpack.c.h.b16 %v183
    %v899 = vunpack.c.l.b16 %v184
    %v900 = vunpack.c.h.b16 %v184
    %v901 = vunpack.c.l.b16 %v185
    %v902 = vunpack.c.h.b16 %v185
    %v903 = vunpack.c.l.b16 %v186
    %v904 = vunpack.c.h.b16 %v186
    %v905 = vunpack.c.l.b16 %v187
    %v906 = vunpack.c.h.b16 %v187
    %v907 = vunpack.c.l.b16 %v188
    %v908 = vunpack.c.h.b16 %v188
    %v909 = vunpack.c.l.b16 %v189
    %v910 = vunpack.c.h.b16 %v189
    %v911 = vunpack.c.l.b16 %v190
    %v912 = vunpack.c.h.b16 %v190
    %v913 = vunpack.c.l.b16 %v191
    %v914 = vunpack.c.h.b16 %v191
    %v915 = vunpack.c.l.b16 %v192
    %v916 = vunpack.c.h.b16 %v192
    %v917 = vunpack.c.l.b16 %v193
    %v918 = vunpack.c.h.b16 %v193
    %v919 = vunpack.c.l.b16 %v194
    %v920 = vunpack.c.h.b16 %v194
    %v921 = vunpack.c.l.b16 %v195
    %v922 = vunpack.c.h.b16 %v195
    %v923 = vunpack.c.l.b16 %v196
    %v924 = vunpack.c.h.b16 %v196
    %v925 = vunpack.c.l.b16 %v197
    %v926 = vunpack.c.h.b16 %v197
    %v927 = vunpack.c.l.b16 %v198
    %v928 = vunpack.c.h.b16 %v198
    %v929 = vunpack.c.l.b16 %v199
    %v930 = vunpack.c.h.b16 %v199
    %v931 = vunpack.c.l.b16 %v200
    %v932 = vunpack.c.h.b16 %v200
    %v933 = vunpack.c.l.b16 %v201
    %v934 = vunpack.c.h.b16 %v201
    %v935 = vunpack.c.l.b16 %v202
    %v936 = vunpack.c.h.b16 %v202
    %v937 = vunpack.c.l.b16 %v203
    %v938 = vunpack.c.h.b16 %v203
    %v939 = vunpack.c.l.b16 %v204
    %v940 = vunpack.c.h.b16 %v204
    %v941 = vunpack.c.l.b16 %v205
    %v942 = vunpack.c.h.b16 %v205
    %v943 = vunpack.c.l.b16 %v206
    %v944 = vunpack.c.h.b16 %v206
    %v945 = vunpack.c.l.b16 %v207
    %v946 = vunpack.c.h.b16 %v207
    %v947 = vunpack.c.l.b16 %v208
    %v948 = vunpack.c.h.b16 %v208
    %v949 = vunpack.c.l.b16 %v209
    %v950 = vunpack.c.h.b16 %v209
    %v951 = vunpack.c.l.b16 %v210
    %v952 = vunpack.c.h.b16 %v210
    %v953 = vunpack.c.l.b16 %v211
    %v954 = vunpack.c.h.b16 %v211
    %v955 = vunpack.c.l.b16 %v212
    %v956 = vunpack.c.h.b16 %v212
    %v957 = vunpack.c.l.b16 %v213
    %v958 = vunpack.c.h.b16 %v213
    %v959 = vunpack.c.l.b16 %v214
    %v960 = vunpack.c.h.b16 %v214
    %v961 = vunpack.c.l.b16 %v215
    %v962 = vunpack.c.h.b16 %v215
    %v963 = vunpack.c.l.b16 %v216
    %v964 = vunpack.c.h.b16 %v216
    %v965 = vunpack.c.l.b16 %v217
    %v966 = vunpack.c.h.b16 %v217
    %v967 = vunpack.c.l.b16 %v218
    %v968 = vunpack.c.h.b16 %v218
    %v969 = vunpack.c.l.b16 %v219
    %v970 = vunpack.c.h.b16 %v219
    %v971 = vunpack.c.l.b16 %v220
    %v972 = vunpack.c.h.b16 %v220
    %v973 = vunpack.c.l.b16 %v221
    %v974 = vunpack.c.h.b16 %v221
    %v975 = vunpack.c.l.b16 %v222
    %v976 = vunpack.c.h.b16 %v222
    %v977 = vunpack.c.l.b16 %v223
    %v978 = vunpack.c.h.b16 %v223
    %v979 = vunpack.c.l.b16 %v224
    %v980 = vunpack.c.h.b16 %v224
    %v981 = vunpack.c.l.b16 %v225
    %v982 = vunpack.c.h.b16 %v225
    %v983 = vunpack.c.l.b16 %v226
    %v984 = vunpack.c.h.b16 %v226
    %v985 = vunpack.c.l.b16 %v227
    %v986 = vunpack.c.h.b16 %v227
    %v987 = vunpack.c.l.b16 %v228
    %v988 = vunpack.c.h.b16 %v228
    %v989 = vunpack.c.l.b16 %v229
    %v990 = vunpack.c.h.b16 %v229
    %v991 = vunpack.c.l.b16 %v230
    %v992 = vunpack.c.h.b16 %v230
    %v993 = vunpack.c.l.b16 %v231
    %v994 = vunpack.c.h.b16 %v231
    %v995 = vunpack.c.l.b16 %v232
    %v996 = vunpack.c.h.b16 %v232
    %v997 = vunpack.c.l.b16 %v233
    %v998 = vunpack.c.h.b16 %v233
    %v999 = vunpack.c.l.b16 %v234
    %v1000 = vunpack.c.h.b16 %v234
    %v1001 = vunpack.c.l.b16 %v235
    %v1002 = vunpack.c.h.b16 %v235
    %v1003 = vunpack.c.l.b16 %v236
    %v1004 = vunpack.c.h.b16 %v236
    %v1005 = vunpack.c.l.b16 %v237
    %v1006 = vunpack.c.h.b16 %v237
    %v1007 = vunpack.c.l.b16 %v238
    %v1008 = vunpack.c.h.b16 %v238
    %v1009 = vunpack.c.l.b16 %v239
    %v1010 = vunpack.c.h.b16 %v239
    %v1011 = vunpack.c.l.b16 %v240
    %v1012 = vunpack.c.h.b16 %v240
    %v1013 = vunpack.c.l.b16 %v241
    %v1014 = vunpack.c.h.b16 %v241
    %v1015 = vunpack.c.l.b16 %v242
    %v1016 = vunpack.c.h.b16 %v242
    %v1017 = vunpack.c.l.b16 %v243
    %v1018 = vunpack.c.h.b16 %v243
    %v1019 = vunpack.c.l.b16 %v244
    %v1020 = vunpack.c.h.b16 %v244
    %v1021 = vunpack.c.l.b16 %v245
    %v1022 = vunpack.c.h.b16 %v245
    %v1023 = vunpack.c.l.b16 %v246
    %v1024 = vunpack.c.h.b16 %v246
    %v1025 = vunpack.c.l.b16 %v247
    %v1026 = vunpack.c.h.b16 %v247
    %v1027 = vunpack.c.l.b16 %v248
    %v1028 = vunpack.c.h.b16 %v248
    %v1029 = vunpack.c.l.b16 %v249
    %v1030 = vunpack.c.h.b16 %v249
    %v1031 = vunpack.c.l.b16 %v250
    %v1032 = vunpack.c.h.b16 %v250
    %v1033 = vunpack.c.l.b16 %v251
    %v1034 = vunpack.c.h.b16 %v251
    %v1035 = vunpack.c.l.b16 %v252
    %v1036 = vunpack.c.h.b16 %v252
    %v1037 = vunpack.c.l.b16 %v253
    %v1038 = vunpack.c.h.b16 %v253
    %v1039 = vunpack.c.l.b16 %v254
    %v1040 = vunpack.c.h.b16 %v254
    %v1041 = vunpack.c.l.b16 %v255
    %v1042 = vunpack.c.h.b16 %v255
    %v1043 = vunpack.c.l.b16 %v256
    %v1044 = vunpack.c.h.b16 %v256
    %v1045 = vunpack.c.l.b16 %v257
    %v1046 = vunpack.c.h.b16 %v257
    %v1047 = vunpack.c.l.b16 %v258
    %v1048 = vunpack.c.h.b16 %v258
    %v1049 = vunpack.c.l.b16 %v259
    %v1050 = vunpack.c.h.b16 %v259
    %v1051 = vunpack.c.l.b16 %v260
    %v1052 = vunpack.c.h.b16 %v260
    %v1053 = vunpack.c.l.b16 %v261
    %v1054 = vunpack.c.h.b16 %v261
    %v1055 = vunpack.c.l.b16 %v262
    %v1056 = vunpack.c.h.b16 %v262
    %v1057 = vunpack.c.l.b16 %v263
    %v1058 = vunpack.c.h.b16 %v263
    %v1059 = vunpack.c.l.b16 %v264
    %v1060 = vunpack.c.h.b16 %v264
    %v1061 = vunpack.c.l.b16 %v265
    %v1062 = vunpack.c.h.b16 %v265
    %v1063 = vunpack.c.l.b16 %v266
    %v1064 = vunpack.c.h.b16 %v266
    %v1065 = vunpack.c.l.b16 %v267
    %v1066 = vunpack.c.h.b16 %v267
    %v1067 = vunpack.c.l.b16 %v268
    %v1068 = vunpack.c.h.b16 %v268
    %v1069 = vunpack.c.l.b16 %v269
    %v1070 = vunpack.c.h.b16 %v269
    %v1071 = vunpack.c.l.b16 %v270
    %v1072 = vunpack.c.h.b16 %v270
    %v1073 = vunpack.c.l.b16 %v271
    %v1074 = vunpack.c.h.b16 %v271
    %v1075 = vunpack.c.l.b16 %v272
    %v1076 = vunpack.c.h.b16 %v272
    %v1077 = vunpack.c.l.b16 %v273
    %v1078 = vunpack.c.h.b16 %v273
    %v1079 = vunpack.c.l.b16 %v274
    %v1080 = vunpack.c.h.b16 %v274
    %v1081 = vunpack.c.l.b16 %v275
    %v1082 = vunpack.c.h.b16 %v275
    %v1083 = vunpack.c.l.b16 %v276
    %v1084 = vunpack.c.h.b16 %v276
    %v1085 = vunpack.c.l.b16 %v277
    %v1086 = vunpack.c.h.b16 %v277
    %v1087 = vunpack.c.l.b16 %v278
    %v1088 = vunpack.c.h.b16 %v278
    %v1089 = vunpack.c.l.b16 %v279
    %v1090 = vunpack.c.h.b16 %v279
    %v1091 = vunpack.c.l.b16 %v280
    %v1092 = vunpack.c.h.b16 %v280
    %v1093 = vunpack.c.l.b16 %v281
    %v1094 = vunpack.c.h.b16 %v281
    %v1095 = vunpack.c.l.b16 %v282
    %v1096 = vunpack.c.h.b16 %v282
    %v1097 = vunpack.c.l.b16 %v283
    %v1098 = vunpack.c.h.b16 %v283
    %v1099 = vunpack.c.l.b16 %v284
    %v1100 = vunpack.c.h.b16 %v284
    %v1101 = vunpack.c.l.b16 %v285
    %v1102 = vunpack.c.h.b16 %v285
    %v1103 = vunpack.c.l.b16 %v286
    %v1104 = vunpack.c.h.b16 %v286
    %v1105 = vunpack.c.l.b16 %v287
    %v1106 = vunpack.c.h.b16 %v287
    %v1107 = vunpack.c.l.b16 %v288
    %v1108 = vunpack.c.h.b16 %v288
    %v1109 = vunpack.c.l.b16 %v289
    %v1110 = vunpack.c.h.b16 %v289
    %v1111 = vunpack.c.l.b16 %v290
    %v1112 = vunpack.c.h.b16 %v290
    %v1113 = vunpack.c.l.b16 %v291
    %v1114 = vunpack.c.h.b16 %v291
    %v1115 = vunpack.c.l.b16 %v292
    %v1116 = vunpack.c.h.b16 %v292
    %v1117 = vunpack.c.l.b16 %v293
    %v1118 = vunpack.c.h.b16 %v293
    %v1119 = vunpack.c.l.b16 %v294
    %v1120 = vunpack.c.h.b16 %v294
    %v1121 = vunpack.c.l.b16 %v295
    %v1122 = vunpack.c.h.b16 %v295
    %v1123 = vunpack.c.l.b16 %v296
    %v1124 = vunpack.c.h.b16 %v296
    %v1125 = vunpack.c.l.b16 %v297
    %v1126 = vunpack.c.h.b16 %v297
    %v1127 = vunpack.c.l.b16 %v298
    %v1128 = vunpack.c.h.b16 %v298
    %v1129 = vunpack.c.l.b16 %v299
    %v1130 = vunpack.c.h.b16 %v299
    %v1131 = vunpack.c.l.b16 %v300
    %v1132 = vunpack.c.h.b16 %v300
    %v1133 = vunpack.c.l.b16 %v301
    %v1134 = vunpack.c.h.b16 %v301
    %v1135 = vunpack.c.l.b16 %v302
    %v1136 = vunpack.c.h.b16 %v302
    %v1137 = vunpack.c.l.b16 %v303
    %v1138 = vunpack.c.h.b16 %v303
    %v1139 = vunpack.c.l.b16 %v304
    %v1140 = vunpack.c.h.b16 %v304
    %v1141 = vunpack.c.l.b16 %v305
    %v1142 = vunpack.c.h.b16 %v305
    %v1143 = vunpack.c.l.b16 %v306
    %v1144 = vunpack.c.h.b16 %v306
    %v1145 = vunpack.c.l.b16 %v307
    %v1146 = vunpack.c.h.b16 %v307
    %v1147 = vunpack.c.l.b16 %v308
    %v1148 = vunpack.c.h.b16 %v308
    %v1149 = vunpack.c.l.b16 %v309
    %v1150 = vunpack.c.h.b16 %v309
    %v1151 = vunpack.c.l.b16 %v310
    %v1152 = vunpack.c.h.b16 %v310
    %v1153 = vunpack.c.l.b16 %v311
    %v1154 = vunpack.c.h.b16 %v311
    %v1155 = vunpack.c.l.b16 %v312
    %v1156 = vunpack.c.h.b16 %v312
    %v1157 = vunpack.c.l.b16 %v313
    %v1158 = vunpack.c.h.b16 %v313
    %v1159 = vunpack.c.l.b16 %v314
    %v1160 = vunpack.c.h.b16 %v314
    %v1161 = vunpack.c.l.b16 %v315
    %v1162 = vunpack.c.h.b16 %v315
    %v1163 = vunpack.c.l.b16 %v316
    %v1164 = vunpack.c.h.b16 %v316
    %v1165 = vunpack.c.l.b16 %v317
    %v1166 = vunpack.c.h.b16 %v317
    %v1167 = vunpack.c.l.b16 %v318
    %v1168 = vunpack.c.h.b16 %v318
    %v1169 = vunpack.c.l.b16 %v319
    %v1170 = vunpack.c.h.b16 %v319
    %v1171 = vunpack.c.l.b16 %v320
    %v1172 = vunpack.c.h.b16 %v320
    %v1173 = vunpack.c.l.b16 %v321
    %v1174 = vunpack.c.h.b16 %v321
    %v1175 = vunpack.c.l.b16 %v322
    %v1176 = vunpack.c.h.b16 %v322
    %v1177 = vunpack.c.l.b16 %v323
    %v1178 = vunpack.c.h.b16 %v323
    %v1179 = vunpack.c.l.b16 %v324
    %v1180 = vunpack.c.h.b16 %v324
    %v1181 = vunpack.c.l.b16 %v325
    %v1182 = vunpack.c.h.b16 %v325
    %v1183 = vunpack.c.l.b16 %v326
    %v1184 = vunpack.c.h.b16 %v326
    %v1185 = vunpack.c.l.b16 %v327
    %v1186 = vunpack.c.h.b16 %v327
    %v1187 = vunpack.c.l.b16 %v328
    %v1188 = vunpack.c.h.b16 %v328
    %v1189 = vunpack.c.l.b16 %v329
    %v1190 = vunpack.c.h.b16 %v329
    %v1191 = vunpack.c.l.b16 %v330
    %v1192 = vunpack.c.h.b16 %v330
    %v1193 = vunpack.c.l.b16 %v331
    %v1194 = vunpack.c.h.b16 %v331
    %v1195 = vunpack.c.l.b16 %v332
    %v1196 = vunpack.c.h.b16 %v332
    %v1197 = vunpack.c.l.b16 %v333
    %v1198 = vunpack.c.h.b16 %v333
    %v1199 = vunpack.c.l.b16 %v334
    %v1200 = vunpack.c.h.b16 %v334
    %v1201 = vunpack.c.l.b16 %v335
    %v1202 = vunpack.c.h.b16 %v335
    %v1203 = vunpack.c.l.b16 %v336
    %v1204 = vunpack.c.h.b16 %v336
    %v1205 = vunpack.c.l.b16 %v337
    %v1206 = vunpack.c.h.b16 %v337
    %v1207 = vunpack.c.l.b16 %v338
    %v1208 = vunpack.c.h.b16 %v338
    %v1209 = vunpack.c.l.b16 %v339
    %v1210 = vunpack.c.h.b16 %v339
    %v1211 = vunpack.c.l.b16 %v340
    %v1212 = vunpack.c.h.b16 %v340
    %v1213 = vunpack.c.l.b16 %v341
    %v1214 = vunpack.c.h.b16 %v341
    %v1215 = vunpack.c.l.b16 %v342
    %v1216 = vunpack.c.h.b16 %v342
    %v1217 = vunpack.c.l.b16 %v343
    %v1218 = vunpack.c.h.b16 %v343
    %v1219 = vunpack.c.l.b16 %v344
    %v1220 = vunpack.c.h.b16 %v344
    %v1221 = vunpack.c.l.b16 %v345
    %v1222 = vunpack.c.h.b16 %v345
    %v1223 = vunpack.c.l.b16 %v346
    %v1224 = vunpack.c.h.b16 %v346
    %v1225 = vunpack.c.l.b16 %v347
    %v1226 = vunpack.c.h.b16 %v347
    %v1227 = vunpack.c.l.b16 %v348
    %v1228 = vunpack.c.h.b16 %v348
    %v1229 = vpack.c.b16 %v665, %v653
    %v1230 = vpack.c.b16 %v666, %v654
    %v1231 = vpack.c.b16 %v667, %v655
    %v1232 = vpack.c.b16 %v668, %v656
    %v1233 = vpack.c.b16 %v669, %v657
    %v1234 = vpack.c.b16 %v670, %v658
    %v1235 = vpack.c.b16 %v671, %v659
    %v1236 = vpack.c.b16 %v672, %v660
    %v1237 = vpack.c.b16 %v673, %v661
    %v1238 = vpack.c.b16 %v674, %v662
    %v1239 = vpack.c.b16 %v675, %v663
    %v1240 = vpack.c.b16 %v676, %v664
    %v1241 = vpack.c.b16 %v689, %v677
    %v1242 = vpack.c.b16 %v690, %v678
    %v1243 = vpack.c.b16 %v691, %v679
    %v1244 = vpack.c.b16 %v692, %v680
    %v1245 = vpack.c.b16 %v693, %v681
    %v1246 = vpack.c.b16 %v694, %v682
    %v1247 = vpack.c.b16 %v695, %v683
    %v1248 = vpack.c.b16 %v696, %v684
    %v1249 = vpack.c.b16 %v697, %v685
    %v1250 = vpack.c.b16 %v698, %v686
    %v1251 = vpack.c.b16 %v699, %v687
    %v1252 = vpack.c.b16 %v700, %v688
    %v1253 = vpack.c.b16 %v713, %v701
    %v1254 = vpack.c.b16 %v714, %v702
    %v1255 = vpack.c.b16 %v715, %v703
    %v1256 = vpack.c.b16 %v716, %v704
    %v1257 = vpack.c.b16 %v717, %v705
    %v1258 = vpack.c.b16 %v718, %v706
    %v1259 = vpack.c.b16 %v719, %v707
    %v1260 = vpack.c.b16 %v720, %v708
    %v1261 = vpack.c.b16 %v721, %v709
    %v1262 = vpack.c.b16 %v722, %v710
    %v1263 = vpack.c.b16 %v723, %v711
    %v1264 = vpack.c.b16 %v724, %v712
    %v1265 = vpack.c.b16 %v737, %v725
    %v1266 = vpack.c.b16 %v738, %v726
    %v1267 = vpack.c.b16 %v739, %v727
    %v1268 = vpack.c.b16 %v740, %v728
    %v1269 = vpack.c.b16 %v741, %v729
    %v1270 = vpack.c.b16 %v742, %v730
    %v1271 = vpack.c.b16 %v743, %v731
    %v1272 = vpack.c.b16 %v744, %v732
    %v1273 = vpack.c.b16 %v745, %v733
    %v1274 = vpack.c.b16 %v746, %v734
    %v1275 = vpack.c.b16 %v747, %v735
    %v1276 = vpack.c.b16 %v748, %v736
    %v1277 = vpack.c.b16 %v761, %v749
    %v1278 = vpack.c.b16 %v762, %v750
    %v1279 = vpack.c.b16 %v763, %v751
    %v1280 = vpack.c.b16 %v764, %v752
    %v1281 = vpack.c.b16 %v765, %v753
    %v1282 = vpack.c.b16 %v766, %v754
    %v1283 = vpack.c.b16 %v767, %v755
    %v1284 = vpack.c.b16 %v768, %v756
    %v1285 = vpack.c.b16 %v769, %v757
    %v1286 = vpack.c.b16 %v770, %v758
    %v1287 = vpack.c.b16 %v771, %v759
    %v1288 = vpack.c.b16 %v772, %v760
    %v1289 = vpack.c.b16 %v785, %v773
    %v1290 = vpack.c.b16 %v786, %v774
    %v1291 = vpack.c.b16 %v787, %v775
    %v1292 = vpack.c.b16 %v788, %v776
    %v1293 = vpack.c.b16 %v789, %v777
    %v1294 = vpack.c.b16 %v790, %v778
    %v1295 = vpack.c.b16 %v791, %v779
    %v1296 = vpack.c.b16 %v792, %v780
    %v1297 = vpack.c.b16 %v793, %v781
    %v1298 = vpack.c.b16 %v794, %v782
    %v1299 = vpack.c.b16 %v795, %v783
    %v1300 = vpack.c.b16 %v796, %v784
    %v1301 = vpack.c.b16 %v809, %v797
    %v1302 = vpack.c.b16 %v810, %v798
    %v1303 = vpack.c.b16 %v811, %v799
    %v1304 = vpack.c.b16 %v812, %v800
    %v1305 = vpack.c.b16 %v813, %v801
    %v1306 = vpack.c.b16 %v814, %v802
    %v1307 = vpack.c.b16 %v815, %v803
    %v1308 = vpack.c.b16 %v816, %v804
    %v1309 = vpack.c.b16 %v817, %v805
    %v1310 = vpack.c.b16 %v818, %v806
    %v1311 = vpack.c.b16 %v819, %v807
    %v1312 = vpack.c.b16 %v820, %v808
    %v1313 = vpack.c.b16 %v833, %v821
    %v1314 = vpack.c.b16 %v834, %v822
    %v1315 = vpack.c.b16 %v835, %v823
    %v1316 = vpack.c.b16 %v836, %v824
    %v1317 = vpack.c.b16 %v837, %v825
    %v1318 = vpack.c.b16 %v838, %v826
    %v1319 = vpack.c.b16 %v839, %v827
    %v1320 = vpack.c.b16 %v840, %v828
    %v1321 = vpack.c.b16 %v841, %v829
    %v1322 = vpack.c.b16 %v842, %v830
    %v1323 = vpack.c.b16 %v843, %v831
    %v1324 = vpack.c.b16 %v844, %v832
    %v1325 = vpack.c.b16 %v857, %v845
    %v1326 = vpack.c.b16 %v858, %v846
    %v1327 = vpack.c.b16 %v859, %v847
    %v1328 = vpack.c.b16 %v860, %v848
    %v1329 = vpack.c.b16 %v861, %v849
    %v1330 = vpack.c.b16 %v862, %v850
    %v1331 = vpack.c.b16 %v863, %v851
    %v1332 = vpack.c.b16 %v864, %v852
    %v1333 = vpack.c.b16 %v865, %v853
    %v1334 = vpack.c.b16 %v866, %v854
    %v1335 = vpack.c.b16 %v867, %v855
    %v1336 = vpack.c.b16 %v868, %v856
    %v1337 = vpack.c.b16 %v881, %v869
    %v1338 = vpack.c.b16 %v882, %v870
    %v1339 = vpack.c.b16 %v883, %v871
    %v1340 = vpack.c.b16 %v884, %v872
    %v1341 = vpack.c.b16 %v885, %v873
    %v1342 = vpack.c.b16 %v886, %v874
    %v1343 = vpack.c.b16 %v887, %v875
    %v1344 = vpack.c.b16 %v888, %v876
    %v1345 = vpack.c.b16 %v889, %v877
    %v1346 = vpack.c.b16 %v890, %v878
    %v1347 = vpack.c.b16 %v891, %v879
    %v1348 = vpack.c.b16 %v892, %v880
    %v1349 = vpack.c.b16 %v905, %v893
    %v1350 = vpack.c.b16 %v906, %v894
    %v1351 = vpack.c.b16 %v907, %v895
    %v1352 = vpack.c.b16 %v908, %v896
    %v1353 = vpack.c.b16 %v909, %v897
    %v1354 = vpack.c.b16 %v910, %v898
    %v1355 = vpack.c.b16 %v911, %v899
    %v1356 = vpack.c.b16 %v912, %v900
    %v1357 = vpack.c.b16 %v913, %v901
    %v1358 = vpack.c.b16 %v914, %v902
    %v1359 = vpack.c.b16 %v915, %v903
    %v1360 = vpack.c.b16 %v916, %v904
    %v1361 = vpack.c.b16 %v929, %v917
    %v1362 = vpack.c.b16 %v930, %v918
    %v1363 = vpack.c.b16 %v931, %v919
    %v1364 = vpack.c.b16 %v932, %v920
    %v1365 = vpack.c.b16 %v933, %v921
    %v1366 = vpack.c.b16 %v934, %v922
    %v1367 = vpack.c.b16 %v935, %v923
    %v1368 = vpack.c.b16 %v936, %v924
    %v1369 = vpack.c.b16 %v937, %v925
    %v1370 = vpack.c.b16 %v938, %v926
    %v1371 = vpack.c.b16 %v939, %v927
    %v1372 = vpack.c.b16 %v940, %v928
    %v1373 = vpack.c.b16 %v953, %v941
    %v1374 = vpack.c.b16 %v954, %v942
    %v1375 = vpack.c.b16 %v955, %v943
    %v1376 = vpack.c.b16 %v956, %v944
    %v1377 = vpack.c.b16 %v957, %v945
    %v1378 = vpack.c.b16 %v958, %v946
    %v1379 = vpack.c.b16 %v959, %v947
    %v1380 = vpack.c.b16 %v960, %v948
    %v1381 = vpack.c.b16 %v961, %v949
    %v1382 = vpack.c.b16 %v962, %v950
    %v1383 = vpack.c.b16 %v963, %v951
    %v1384 = vpack.c.b16 %v964, %v952
    %v1385 = vpack.c.b16 %v977, %v965
    %v1386 = vpack.c.b16 %v978, %v966
    %v1387 = vpack.c.b16 %v979, %v967
    %v1388 = vpack.c.b16 %v980, %v968
    %v1389 = vpack.c.b16 %v981, %v969
    %v1390 = vpack.c.b16 %v982, %v970
    %v1391 = vpack.c.b16 %v983, %v971
    %v1392 = vpack.c.b16 %v984, %v972
    %v1393 = vpack.c.b16 %v985, %v973
    %v1394 = vpack.c.b16 %v986, %v974
    %v1395 = vpack.c.b16 %v987, %v975
    %v1396 = vpack.c.b16 %v988, %v976
    %v1397 = vpack.c.b16 %v1001, %v989
    %v1398 = vpack.c.b16 %v1002, %v990
    %v1399 = vpack.c.b16 %v1003, %v991
    %v1400 = vpack.c.b16 %v1004, %v992
    %v1401 = vpack.c.b16 %v1005, %v993
    %v1402 = vpack.c.b16 %v1006, %v994
    %v1403 = vpack.c.b16 %v1007, %v995
    %v1404 = vpack.c.b16 %v1008, %v996
    %v1405 = vpack.c.b16 %v1009, %v997
    %v1406 = vpack.c.b16 %v1010, %v998
    %v1407 = vpack.c.b16 %v1011, %v999
    %v1408 = vpack.c.b16 %v1012, %v1000
    %v1409 = vpack.c.b16 %v1025, %v1013
    %v1410 = vpack.c.b16 %v1026, %v1014
    %v1411 = vpack.c.b16 %v1027, %v1015
    %v1412 = vpack.c.b16 %v1028, %v1016
    %v1413 = vpack.c.b16 %v1029, %v1017
    %v1414 = vpack.c.b16 %v1030, %v1018
    %v1415 = vpack.c.b16 %v1031, %v1019
    %v1416 = vpack.c.b16 %v1032, %v1020
    %v1417 = vpack.c.b16 %v1033, %v1021
    %v1418 = vpack.c.b16 %v1034, %v1022
    %v1419 = vpack.c.b16 %v1035, %v1023
    %v1420 = vpack.c.b16 %v1036, %v1024
    %v1421 = vpack.c.b16 %v1049, %v1037
    %v1422 = vpack.c.b16 %v1050, %v1038
    %v1423 = vpack.c.b16 %v1051, %v1039
    %v1424 = vpack.c.b16 %v1052, %v1040
    %v1425 = vpack.c.b16 %v1053, %v1041
    %v1426 = vpack.c.b16 %v1054, %v1042
    %v1427 = vpack.c.b16 %v1055, %v1043
    %v1428 = vpack.c.b16 %v1056, %v1044
    %v1429 = vpack.c.b16 %v1057, %v1045
    %v1430 = vpack.c.b16 %v1058, %v1046
    %v1431 = vpack.c.b16 %v1059, %v1047
    %v1432 = vpack.c.b16 %v1060, %v1048
    %v1433 = vpack.c.b16 %v1073, %v1061
    %v1434 = vpack.c.b16 %v1074, %v1062
    %v1435 = vpack.c.b16 %v1075, %v1063
    %v1436 = vpack.c.b16 %v1076, %v1064
    %v1437 = vpack.c.b16 %v1077, %v1065
    %v1438 = vpack.c.b16 %v1078, %v1066
    %v1439 = vpack.c.b16 %v1079, %v1067
    %v1440 = vpack.c.b16 %v1080, %v1068
    %v1441 = vpack.c.b16 %v1081, %v1069
    %v1442 = vpack.c.b16 %v1082, %v1070
    %v1443 = vpack.c.b16 %v1083, %v1071
    %v1444 = vpack.c.b16 %v1084, %v1072
    %v1445 = vpack.c.b16 %v1097, %v1085
    %v1446 = vpack.c.b16 %v1098, %v1086
    %v1447 = vpack.c.b16 %v1099, %v1087
    %v1448 = vpack.c.b16 %v1100, %v1088
    %v1449 = vpack.c.b16 %v1101, %v1089
    %v1450 = vpack.c.b16 %v1102, %v1090
    %v1451 = vpack.c.b16 %v1103, %v1091
    %v1452 = vpack.c.b16 %v1104, %v1092
    %v1453 = vpack.c.b16 %v1105, %v1093
    %v1454 = vpack.c.b16 %v1106, %v1094
    %v1455 = vpack.c.b16 %v1107, %v1095
    %v1456 = vpack.c.b16 %v1108, %v1096
    %v1457 = vpack.c.b16 %v1121, %v1109
    %v1458 = vpack.c.b16 %v1122, %v1110
    %v1459 = vpack.c.b16 %v1123, %v1111
    %v1460 = vpack.c.b16 %v1124, %v1112
    %v1461 = vpack.c.b16 %v1125, %v1113
    %v1462 = vpack.c.b16 %v1126, %v1114
    %v1463 = vpack.c.b16 %v1127, %v1115
    %v1464 = vpack.c.b16 %v1128, %v1116
    %v1465 = vpack.c.b16 %v1129, %v1117
    %v1466 = vpack.c.b16 %v1130, %v1118
    %v1467 = vpack.c.b16 %v1131, %v1119
    %v1468 = vpack.c.b16 %v1132, %v1120
    %v1469 = vpack.c.b16 %v1145, %v1133
    %v1470 = vpack.c.b16 %v1146, %v1134
    %v1471 = vpack.c.b16 %v1147, %v1135
    %v1472 = vpack.c.b16 %v1148, %v1136
    %v1473 = vpack.c.b16 %v1149, %v1137
    %v1474 = vpack.c.b16 %v1150, %v1138
    %v1475 = vpack.c.b16 %v1151, %v1139
    %v1476 = vpack.c.b16 %v1152, %v1140
    %v1477 = vpack.c.b16 %v1153, %v1141
    %v1478 = vpack.c.b16 %v1154, %v1142
    %v1479 = vpack.c.b16 %v1155, %v1143
    %v1480 = vpack.c.b16 %v1156, %v1144
    %v1481 = vpack.c.b16 %v1169, %v1157
    %v1482 = vpack.c.b16 %v1170, %v1158
    %v1483 = vpack.c.b16 %v1171, %v1159
    %v1484 = vpack.c.b16 %v1172, %v1160
    %v1485 = vpack.c.b16 %v1173, %v1161
    %v1486 = vpack.c.b16 %v1174, %v1162
    %v1487 = vpack.c.b16 %v1175, %v1163
    %v1488 = vpack.c.b16 %v1176, %v1164
    %v1489 = vpack.c.b16 %v1177, %v1165
    %v1490 = vpack.c.b16 %v1178, %v1166
    %v1491 = vpack.c.b16 %v1179, %v1167
    %v1492 = vpack.c.b16 %v1180, %v1168
    %v1493 = vpack.c.b16 %v1193, %v1181
    %v1494 = vpack.c.b16 %v1194, %v1182
    %v1495 = vpack.c.b16 %v1195, %v1183
    %v1496 = vpack.c.b16 %v1196, %v1184
    %v1497 = vpack.c.b16 %v1197, %v1185
    %v1498 = vpack.c.b16 %v1198, %v1186
    %v1499 = vpack.c.b16 %v1199, %v1187
    %v1500 = vpack.c.b16 %v1200, %v1188
    %v1501 = vpack.c.b16 %v1201, %v1189
    %v1502 = vpack.c.b16 %v1202, %v1190
    %v1503 = vpack.c.b16 %v1203, %v1191
    %v1504 = vpack.c.b16 %v1204, %v1192
    %v1505 = vpack.c.b16 %v1217, %v1205
    %v1506 = vpack.c.b16 %v1218, %v1206
    %v1507 = vpack.c.b16 %v1219, %v1207
    %v1508 = vpack.c.b16 %v1220, %v1208
    %v1509 = vpack.c.b16 %v1221, %v1209
    %v1510 = vpack.c.b16 %v1222, %v1210
    %v1511 = vpack.c.b16 %v1223, %v1211
    %v1512 = vpack.c.b16 %v1224, %v1212
    %v1513 = vpack.c.b16 %v1225, %v1213
    %v1514 = vpack.c.b16 %v1226, %v1214
    %v1515 = vpack.c.b16 %v1227, %v1215
    %v1516 = vpack.c.b16 %v1228, %v1216
    %1805 = vmatprep.subr.bf16.mxu0 %v1230
    %1806 = vmatpush1.bf16.msra.mxu0 %v1229
    %1807 = vmatprep.subr.bf16.mxu0 %v1242
    %1808 = vmatpush1.bf16.msra.mxu0 %v1241
    %1809 = vmatprep.subr.bf16.mxu0 %v1254
    %1810 = vmatpush1.bf16.msra.mxu0 %v1253
    %1811 = vmatprep.subr.bf16.mxu0 %v1266
    %1812 = vmatpush1.bf16.msra.mxu0 %v1265
    %1813 = vmatprep.subr.bf16.mxu0 %v1278
    %1814 = vmatpush1.bf16.msra.mxu0 %v1277
    %1815 = vmatprep.subr.bf16.mxu0 %v1290
    %1816 = vmatpush1.bf16.msra.mxu0 %v1289
    %1817 = vmatprep.subr.bf16.mxu0 %v1302
    %1818 = vmatpush1.bf16.msra.mxu0 %v1301
    %1819 = vmatprep.subr.bf16.mxu0 %v1314
    %1820 = vmatpush1.bf16.msra.mxu0 %v1313
    %1821 = vmatprep.subr.bf16.mxu0 %v1326
    %1822 = vmatpush1.bf16.msra.mxu0 %v1325
    %1823 = vmatprep.subr.bf16.mxu0 %v1338
    %1824 = vmatpush1.bf16.msra.mxu0 %v1337
    %1825 = vmatprep.subr.bf16.mxu0 %v1350
    %1826 = vmatpush1.bf16.msra.mxu0 %v1349
    %1827 = vmatprep.subr.bf16.mxu0 %v1362
    %1828 = vmatpush1.bf16.msra.mxu0 %v1361
    %1829 = vmatprep.subr.bf16.mxu0 %v1374
    %1830 = vmatpush1.bf16.msra.mxu0 %v1373
    %1831 = vmatprep.subr.bf16.mxu0 %v1386
    %1832 = vmatpush1.bf16.msra.mxu0 %v1385
    %1833 = vmatprep.subr.bf16.mxu0 %v1398
    %1834 = vmatpush1.bf16.msra.mxu0 %v1397
    %1835 = vmatprep.subr.bf16.mxu0 %v1410
    %1836 = vmatpush1.bf16.msra.mxu0 %v1409
    %1837 = vmatprep.mubr.bf16.mxu0 %v360
    %1838 = vmatmul.mubr.bf16.gmra.mrb[0].mxu0 %v359
    %v1839 = vpop.f32.mrb[0].mxu0
    %v1840 = vadd.f32 0.0, %v1839
    %v1841 = vpop.f32.mrb[0].mxu0
    %v1842 = vadd.f32 0.0, %v1841
    %v1843 = vpop.f32.mrb[0].mxu0
    %v1844 = vadd.f32 0.0, %v1843
    %v1845 = vpop.f32.mrb[0].mxu0
    %v1846 = vadd.f32 0.0, %v1845
    %1847 = vdwg.mxu0
    %1848 = vmatprep.subr.bf16.mxu0 %v1422
    %1849 = vmatpush1.bf16.msra.mxu0 %v1421
    %1850 = vmatprep.subr.bf16.mxu0 %v1434
    %1851 = vmatpush1.bf16.msra.mxu0 %v1433
    %1852 = vmatprep.subr.bf16.mxu0 %v1446
    %1853 = vmatpush1.bf16.msra.mxu0 %v1445
    %1854 = vmatprep.subr.bf16.mxu0 %v1458
    %1855 = vmatpush1.bf16.msra.mxu0 %v1457
    %1856 = vmatprep.subr.bf16.mxu0 %v1470
    %1857 = vmatpush1.bf16.msra.mxu0 %v1469
    %1858 = vmatprep.subr.bf16.mxu0 %v1482
    %1859 = vmatpush1.bf16.msra.mxu0 %v1481
    %1860 = vmatprep.subr.bf16.mxu0 %v1494
    %1861 = vmatpush1.bf16.msra.mxu0 %v1493
    %1862 = vmatprep.subr.bf16.mxu0 %v1506
    %1863 = vmatpush1.bf16.msra.mxu0 %v1505
    %1864 = vmatprep.subr.bf16.mxu0 0
    %1865 = vmatpush1.bf16.msra.mxu0 0
    %1866 = vmatprep.subr.bf16.mxu0 0
    %1867 = vmatpush1.bf16.msra.mxu0 0
    %1868 = vmatprep.subr.bf16.mxu0 0
    %1869 = vmatpush1.bf16.msra.mxu0 0
    %1870 = vmatprep.subr.bf16.mxu0 0
    %1871 = vmatpush1.bf16.msra.mxu0 0
    %1872 = vmatprep.subr.bf16.mxu0 0
    %1873 = vmatpush1.bf16.msra.mxu0 0
    %1874 = vmatprep.subr.bf16.mxu0 0
    %1875 = vmatpush1.bf16.msra.mxu0 0
    %1876 = vmatprep.subr.bf16.mxu0 0
    %1877 = vmatpush1.bf16.msra.mxu0 0
    %1878 = vmatprep.subr.bf16.mxu0 0
    %1879 = vmatpush1.bf16.msra.mxu0 0
    %1880 = vmatprep.mubr.bf16.mxu0 0
    %1881 = vmatmul.mubr.bf16.gmra.mrb[0].mxu0 %v361
    %v1882 = vpop.f32.mrb[0].mxu0
    %v1883 = vadd.f32 %v1840, %v1882
    %v1884 = vpop.f32.mrb[0].mxu0
    %v1885 = vadd.f32 %v1842, %v1884
    %v1886 = vpop.f32.mrb[0].mxu0
    %v1887 = vadd.f32 %v1844, %v1886
    %v1888 = vpop.f32.mrb[0].mxu0
    %v1889 = vadd.f32 %v1846, %v1888
    %1890 = vdwg.mxu0
    %1891 = vmatprep.subr.bf16.mxu0 %v1232
    %1892 = vmatpush1.bf16.msra.mxu0 %v1231
    %1893 = vmatprep.subr.bf16.mxu0 %v1244
    %1894 = vmatpush1.bf16.msra.mxu0 %v1243
    %1895 = vmatprep.subr.bf16.mxu0 %v1256
    %1896 = vmatpush1.bf16.msra.mxu0 %v1255
    %1897 = vmatprep.subr.bf16.mxu0 %v1268
    %1898 = vmatpush1.bf16.msra.mxu0 %v1267
    %1899 = vmatprep.subr.bf16.mxu0 %v1280
    %1900 = vmatpush1.bf16.msra.mxu0 %v1279
    %1901 = vmatprep.subr.bf16.mxu0 %v1292
    %1902 = vmatpush1.bf16.msra.mxu0 %v1291
    %1903 = vmatprep.subr.bf16.mxu0 %v1304
    %1904 = vmatpush1.bf16.msra.mxu0 %v1303
    %1905 = vmatprep.subr.bf16.mxu0 %v1316
    %1906 = vmatpush1.bf16.msra.mxu0 %v1315
    %1907 = vmatprep.subr.bf16.mxu0 %v1328
    %1908 = vmatpush1.bf16.msra.mxu0 %v1327
    %1909 = vmatprep.subr.bf16.mxu0 %v1340
    %1910 = vmatpush1.bf16.msra.mxu0 %v1339
    %1911 = vmatprep.subr.bf16.mxu0 %v1352
    %1912 = vmatpush1.bf16.msra.mxu0 %v1351
    %1913 = vmatprep.subr.bf16.mxu0 %v1364
    %1914 = vmatpush1.bf16.msra.mxu0 %v1363
    %1915 = vmatprep.subr.bf16.mxu0 %v1376
    %1916 = vmatpush1.bf16.msra.mxu0 %v1375
    %1917 = vmatprep.subr.bf16.mxu0 %v1388
    %1918 = vmatpush1.bf16.msra.mxu0 %v1387
    %1919 = vmatprep.subr.bf16.mxu0 %v1400
    %1920 = vmatpush1.bf16.msra.mxu0 %v1399
    %1921 = vmatprep.subr.bf16.mxu0 %v1412
    %1922 = vmatpush1.bf16.msra.mxu0 %v1411
    %1923 = vmatprep.mubr.bf16.mxu0 %v360
    %1924 = vmatmul.mubr.bf16.gmra.mrb[0].mxu0 %v359
    %v1925 = vpop.f32.mrb[0].mxu0
    %v1926 = vadd.f32 0.0, %v1925
    %v1927 = vpop.f32.mrb[0].mxu0
    %v1928 = vadd.f32 0.0, %v1927
    %v1929 = vpop.f32.mrb[0].mxu0
    %v1930 = vadd.f32 0.0, %v1929
    %v1931 = vpop.f32.mrb[0].mxu0
    %v1932 = vadd.f32 0.0, %v1931
    %1933 = vdwg.mxu0
    %1934 = vmatprep.subr.bf16.mxu0 %v1424
    %1935 = vmatpush1.bf16.msra.mxu0 %v1423
    %1936 = vmatprep.subr.bf16.mxu0 %v1436
    %1937 = vmatpush1.bf16.msra.mxu0 %v1435
    %1938 = vmatprep.subr.bf16.mxu0 %v1448
    %1939 = vmatpush1.bf16.msra.mxu0 %v1447
    %1940 = vmatprep.subr.bf16.mxu0 %v1460
    %1941 = vmatpush1.bf16.msra.mxu0 %v1459
    %1942 = vmatprep.subr.bf16.mxu0 %v1472
    %1943 = vmatpush1.bf16.msra.mxu0 %v1471
    %1944 = vmatprep.subr.bf16.mxu0 %v1484
    %1945 = vmatpush1.bf16.msra.mxu0 %v1483
    %1946 = vmatprep.subr.bf16.mxu0 %v1496
    %1947 = vmatpush1.bf16.msra.mxu0 %v1495
    %1948 = vmatprep.subr.bf16.mxu0 %v1508
    %1949 = vmatpush1.bf16.msra.mxu0 %v1507
    %1950 = vmatprep.subr.bf16.mxu0 0
    %1951 = vmatpush1.bf16.msra.mxu0 0
    %1952 = vmatprep.subr.bf16.mxu0 0
    %1953 = vmatpush1.bf16.msra.mxu0 0
    %1954 = vmatprep.subr.bf16.mxu0 0
    %1955 = vmatpush1.bf16.msra.mxu0 0
    %1956 = vmatprep.subr.bf16.mxu0 0
    %1957 = vmatpush1.bf16.msra.mxu0 0
    %1958 = vmatprep.subr.bf16.mxu0 0
    %1959 = vmatpush1.bf16.msra.mxu0 0
    %1960 = vmatprep.subr.bf16.mxu0 0
    %1961 = vmatpush1.bf16.msra.mxu0 0
    %1962 = vmatprep.subr.bf16.mxu0 0
    %1963 = vmatpush1.bf16.msra.mxu0 0
    %1964 = vmatprep.subr.bf16.mxu0 0
    %1965 = vmatpush1.bf16.msra.mxu0 0
    %1966 = vmatprep.mubr.bf16.mxu0 0
    %1967 = vmatmul.mubr.bf16.gmra.mrb[0].mxu0 %v361
    %v1968 = vpop.f32.mrb[0].mxu0
    %v1969 = vadd.f32 %v1926, %v1968
    %v1970 = vpop.f32.mrb[0].mxu0
    %v1971 = vadd.f32 %v1928, %v1970
    %v1972 = vpop.f32.mrb[0].mxu0
    %v1973 = vadd.f32 %v1930, %v1972
    %v1974 = vpop.f32.mrb[0].mxu0
    %v1975 = vadd.f32 %v1932, %v1974
    %1976 = vdwg.mxu0
    %1977 = vmatprep.subr.bf16.mxu0 %v1234
    %1978 = vmatpush1.bf16.msra.mxu0 %v1233
    %1979 = vmatprep.subr.bf16.mxu0 %v1246
    %1980 = vmatpush1.bf16.msra.mxu0 %v1245
    %1981 = vmatprep.subr.bf16.mxu0 %v1258
    %1982 = vmatpush1.bf16.msra.mxu0 %v1257
    %1983 = vmatprep.subr.bf16.mxu0 %v1270
    %1984 = vmatpush1.bf16.msra.mxu0 %v1269
    %1985 = vmatprep.subr.bf16.mxu0 %v1282
    %1986 = vmatpush1.bf16.msra.mxu0 %v1281
    %1987 = vmatprep.subr.bf16.mxu0 %v1294
    %1988 = vmatpush1.bf16.msra.mxu0 %v1293
    %1989 = vmatprep.subr.bf16.mxu0 %v1306
    %1990 = vmatpush1.bf16.msra.mxu0 %v1305
    %1991 = vmatprep.subr.bf16.mxu0 %v1318
    %1992 = vmatpush1.bf16.msra.mxu0 %v1317
    %1993 = vmatprep.subr.bf16.mxu0 %v1330
    %1994 = vmatpush1.bf16.msra.mxu0 %v1329
    %1995 = vmatprep.subr.bf16.mxu0 %v1342
    %1996 = vmatpush1.bf16.msra.mxu0 %v1341
    %1997 = vmatprep.subr.bf16.mxu0 %v1354
    %1998 = vmatpush1.bf16.msra.mxu0 %v1353
    %1999 = vmatprep.subr.bf16.mxu0 %v1366
    %2000 = vmatpush1.bf16.msra.mxu0 %v1365
    %2001 = vmatprep.subr.bf16.mxu0 %v1378
    %2002 = vmatpush1.bf16.msra.mxu0 %v1377
    %2003 = vmatprep.subr.bf16.mxu0 %v1390
    %2004 = vmatpush1.bf16.msra.mxu0 %v1389
    %2005 = vmatprep.subr.bf16.mxu0 %v1402
    %2006 = vmatpush1.bf16.msra.mxu0 %v1401
    %2007 = vmatprep.subr.bf16.mxu0 %v1414
    %2008 = vmatpush1.bf16.msra.mxu0 %v1413
    %2009 = vmatprep.mubr.bf16.mxu0 %v360
    %2010 = vmatmul.mubr.bf16.gmra.mrb[0].mxu0 %v359
    %v2011 = vpop.f32.mrb[0].mxu0
    %v2012 = vadd.f32 0.0, %v2011
    %v2013 = vpop.f32.mrb[0].mxu0
    %v2014 = vadd.f32 0.0, %v2013
    %v2015 = vpop.f32.mrb[0].mxu0
    %v2016 = vadd.f32 0.0, %v2015
    %v2017 = vpop.f32.mrb[0].mxu0
    %v2018 = vadd.f32 0.0, %v2017
    %2019 = vdwg.mxu0
    %2020 = vmatprep.subr.bf16.mxu0 %v1426
    %2021 = vmatpush1.bf16.msra.mxu0 %v1425
    %2022 = vmatprep.subr.bf16.mxu0 %v1438
    %2023 = vmatpush1.bf16.msra.mxu0 %v1437
    %2024 = vmatprep.subr.bf16.mxu0 %v1450
    %2025 = vmatpush1.bf16.msra.mxu0 %v1449
    %2026 = vmatprep.subr.bf16.mxu0 %v1462
    %2027 = vmatpush1.bf16.msra.mxu0 %v1461
    %2028 = vmatprep.subr.bf16.mxu0 %v1474
    %2029 = vmatpush1.bf16.msra.mxu0 %v1473
    %2030 = vmatprep.subr.bf16.mxu0 %v1486
    %2031 = vmatpush1.bf16.msra.mxu0 %v1485
    %2032 = vmatprep.subr.bf16.mxu0 %v1498
    %2033 = vmatpush1.bf16.msra.mxu0 %v1497
    %2034 = vmatprep.subr.bf16.mxu0 %v1510
    %2035 = vmatpush1.bf16.msra.mxu0 %v1509
    %2036 = vmatprep.subr.bf16.mxu0 0
    %2037 = vmatpush1.bf16.msra.mxu0 0
    %2038 = vmatprep.subr.bf16.mxu0 0
    %2039 = vmatpush1.bf16.msra.mxu0 0
    %2040 = vmatprep.subr.bf16.mxu0 0
    %2041 = vmatpush1.bf16.msra.mxu0 0
    %2042 = vmatprep.subr.bf16.mxu0 0
    %2043 = vmatpush1.bf16.msra.mxu0 0
    %2044 = vmatprep.subr.bf16.mxu0 0
    %2045 = vmatpush1.bf16.msra.mxu0 0
    %2046 = vmatprep.subr.bf16.mxu0 0
    %2047 = vmatpush1.bf16.msra.mxu0 0
    %2048 = vmatprep.subr.bf16.mxu0 0
    %2049 = vmatpush1.bf16.msra.mxu0 0
    %2050 = vmatprep.subr.bf16.mxu0 0
    %2051 = vmatpush1.bf16.msra.mxu0 0
    %2052 = vmatprep.mubr.bf16.mxu0 0
    %2053 = vmatmul.mubr.bf16.gmra.mrb[0].mxu0 %v361
    %v2054 = vpop.f32.mrb[0].mxu0
    %v2055 = vadd.f32 %v2012, %v2054
    %v2056 = vpop.f32.mrb[0].mxu0
    %v2057 = vadd.f32 %v2014, %v2056
    %v2058 = vpop.f32.mrb[0].mxu0
    %v2059 = vadd.f32 %v2016, %v2058
    %v2060 = vpop.f32.mrb[0].mxu0
    %v2061 = vadd.f32 %v2018, %v2060
    %2062 = vdwg.mxu0
    %2063 = vmatprep.subr.bf16.mxu0 %v1236
    %2064 = vmatpush1.bf16.msra.mxu0 %v1235
    %2065 = vmatprep.subr.bf16.mxu0 %v1248
    %2066 = vmatpush1.bf16.msra.mxu0 %v1247
    %2067 = vmatprep.subr.bf16.mxu0 %v1260
    %2068 = vmatpush1.bf16.msra.mxu0 %v1259
    %2069 = vmatprep.subr.bf16.mxu0 %v1272
    %2070 = vmatpush1.bf16.msra.mxu0 %v1271
    %2071 = vmatprep.subr.bf16.mxu0 %v1284
    %2072 = vmatpush1.bf16.msra.mxu0 %v1283
    %2073 = vmatprep.subr.bf16.mxu0 %v1296
    %2074 = vmatpush1.bf16.msra.mxu0 %v1295
    %2075 = vmatprep.subr.bf16.mxu0 %v1308
    %2076 = vmatpush1.bf16.msra.mxu0 %v1307
    %2077 = vmatprep.subr.bf16.mxu0 %v1320
    %2078 = vmatpush1.bf16.msra.mxu0 %v1319
    %2079 = vmatprep.subr.bf16.mxu0 %v1332
    %2080 = vmatpush1.bf16.msra.mxu0 %v1331
    %2081 = vmatprep.subr.bf16.mxu0 %v1344
    %2082 = vmatpush1.bf16.msra.mxu0 %v1343
    %2083 = vmatprep.subr.bf16.mxu0 %v1356
    %2084 = vmatpush1.bf16.msra.mxu0 %v1355
    %2085 = vmatprep.subr.bf16.mxu0 %v1368
    %2086 = vmatpush1.bf16.msra.mxu0 %v1367
    %2087 = vmatprep.subr.bf16.mxu0 %v1380
    %2088 = vmatpush1.bf16.msra.mxu0 %v1379
    %2089 = vmatprep.subr.bf16.mxu0 %v1392
    %2090 = vmatpush1.bf16.msra.mxu0 %v1391
    %2091 = vmatprep.subr.bf16.mxu0 %v1404
    %2092 = vmatpush1.bf16.msra.mxu0 %v1403
    %2093 = vmatprep.subr.bf16.mxu0 %v1416
    %2094 = vmatpush1.bf16.msra.mxu0 %v1415
    %2095 = vmatprep.mubr.bf16.mxu0 %v360
    %2096 = vmatmul.mubr.bf16.gmra.mrb[0].mxu0 %v359
    %v2097 = vpop.f32.mrb[0].mxu0
    %v2098 = vadd.f32 0.0, %v2097
    %v2099 = vpop.f32.mrb[0].mxu0
    %v2100 = vadd.f32 0.0, %v2099
    %v2101 = vpop.f32.mrb[0].mxu0
    %v2102 = vadd.f32 0.0, %v2101
    %v2103 = vpop.f32.mrb[0].mxu0
    %v2104 = vadd.f32 0.0, %v2103
    %2105 = vdwg.mxu0
    %2106 = vmatprep.subr.bf16.mxu0 %v1428
    %2107 = vmatpush1.bf16.msra.mxu0 %v1427
    %2108 = vmatprep.subr.bf16.mxu0 %v1440
    %2109 = vmatpush1.bf16.msra.mxu0 %v1439
    %2110 = vmatprep.subr.bf16.mxu0 %v1452
    %2111 = vmatpush1.bf16.msra.mxu0 %v1451
    %2112 = vmatprep.subr.bf16.mxu0 %v1464
    %2113 = vmatpush1.bf16.msra.mxu0 %v1463
    %2114 = vmatprep.subr.bf16.mxu0 %v1476
    %2115 = vmatpush1.bf16.msra.mxu0 %v1475
    %2116 = vmatprep.subr.bf16.mxu0 %v1488
    %2117 = vmatpush1.bf16.msra.mxu0 %v1487
    %2118 = vmatprep.subr.bf16.mxu0 %v1500
    %2119 = vmatpush1.bf16.msra.mxu0 %v1499
    %2120 = vmatprep.subr.bf16.mxu0 %v1512
    %2121 = vmatpush1.bf16.msra.mxu0 %v1511
    %2122 = vmatprep.subr.bf16.mxu0 0
    %2123 = vmatpush1.bf16.msra.mxu0 0
    %2124 = vmatprep.subr.bf16.mxu0 0
    %2125 = vmatpush1.bf16.msra.mxu0 0
    %2126 = vmatprep.subr.bf16.mxu0 0
    %2127 = vmatpush1.bf16.msra.mxu0 0
    %2128 = vmatprep.subr.bf16.mxu0 0
    %2129 = vmatpush1.bf16.msra.mxu0 0
    %2130 = vmatprep.subr.bf16.mxu0 0
    %2131 = vmatpush1.bf16.msra.mxu0 0
    %2132 = vmatprep.subr.bf16.mxu0 0
    %2133 = vmatpush1.bf16.msra.mxu0 0
    %2134 = vmatprep.subr.bf16.mxu0 0
    %2135 = vmatpush1.bf16.msra.mxu0 0
    %2136 = vmatprep.subr.bf16.mxu0 0
    %2137 = vmatpush1.bf16.msra.mxu0 0
    %2138 = vmatprep.mubr.bf16.mxu0 0
    %2139 = vmatmul.mubr.bf16.gmra.mrb[0].mxu0 %v361
    %v2140 = vpop.f32.mrb[0].mxu0
    %v2141 = vadd.f32 %v2098, %v2140
    %v2142 = vpop.f32.mrb[0].mxu0
    %v2143 = vadd.f32 %v2100, %v2142
    %v2144 = vpop.f32.mrb[0].mxu0
    %v2145 = vadd.f32 %v2102, %v2144
    %v2146 = vpop.f32.mrb[0].mxu0
    %v2147 = vadd.f32 %v2104, %v2146
    %2148 = vdwg.mxu0
    %2149 = vmatprep.subr.bf16.mxu0 %v1238
    %2150 = vmatpush1.bf16.msra.mxu0 %v1237
    %2151 = vmatprep.subr.bf16.mxu0 %v1250
    %2152 = vmatpush1.bf16.msra.mxu0 %v1249
    %2153 = vmatprep.subr.bf16.mxu0 %v1262
    %2154 = vmatpush1.bf16.msra.mxu0 %v1261
    %2155 = vmatprep.subr.bf16.mxu0 %v1274
    %2156 = vmatpush1.bf16.msra.mxu0 %v1273
    %2157 = vmatprep.subr.bf16.mxu0 %v1286
    %2158 = vmatpush1.bf16.msra.mxu0 %v1285
    %2159 = vmatprep.subr.bf16.mxu0 %v1298
    %2160 = vmatpush1.bf16.msra.mxu0 %v1297
    %2161 = vmatprep.subr.bf16.mxu0 %v1310
    %2162 = vmatpush1.bf16.msra.mxu0 %v1309
    %2163 = vmatprep.subr.bf16.mxu0 %v1322
    %2164 = vmatpush1.bf16.msra.mxu0 %v1321
    %2165 = vmatprep.subr.bf16.mxu0 %v1334
    %2166 = vmatpush1.bf16.msra.mxu0 %v1333
    %2167 = vmatprep.subr.bf16.mxu0 %v1346
    %2168 = vmatpush1.bf16.msra.mxu0 %v1345
    %2169 = vmatprep.subr.bf16.mxu0 %v1358
    %2170 = vmatpush1.bf16.msra.mxu0 %v1357
    %2171 = vmatprep.subr.bf16.mxu0 %v1370
    %2172 = vmatpush1.bf16.msra.mxu0 %v1369
    %2173 = vmatprep.subr.bf16.mxu0 %v1382
    %2174 = vmatpush1.bf16.msra.mxu0 %v1381
    %2175 = vmatprep.subr.bf16.mxu0 %v1394
    %2176 = vmatpush1.bf16.msra.mxu0 %v1393
    %2177 = vmatprep.subr.bf16.mxu0 %v1406
    %2178 = vmatpush1.bf16.msra.mxu0 %v1405
    %2179 = vmatprep.subr.bf16.mxu0 %v1418
    %2180 = vmatpush1.bf16.msra.mxu0 %v1417
    %2181 = vmatprep.mubr.bf16.mxu0 %v360
    %2182 = vmatmul.mubr.bf16.gmra.mrb[0].mxu0 %v359
    %v2183 = vpop.f32.mrb[0].mxu0
    %v2184 = vadd.f32 0.0, %v2183
    %v2185 = vpop.f32.mrb[0].mxu0
    %v2186 = vadd.f32 0.0, %v2185
    %v2187 = vpop.f32.mrb[0].mxu0
    %v2188 = vadd.f32 0.0, %v2187
    %v2189 = vpop.f32.mrb[0].mxu0
    %v2190 = vadd.f32 0.0, %v2189
    %2191 = vdwg.mxu0
    %2192 = vmatprep.subr.bf16.mxu0 %v1430
    %2193 = vmatpush1.bf16.msra.mxu0 %v1429
    %2194 = vmatprep.subr.bf16.mxu0 %v1442
    %2195 = vmatpush1.bf16.msra.mxu0 %v1441
    %2196 = vmatprep.subr.bf16.mxu0 %v1454
    %2197 = vmatpush1.bf16.msra.mxu0 %v1453
    %2198 = vmatprep.subr.bf16.mxu0 %v1466
    %2199 = vmatpush1.bf16.msra.mxu0 %v1465
    %2200 = vmatprep.subr.bf16.mxu0 %v1478
    %2201 = vmatpush1.bf16.msra.mxu0 %v1477
    %2202 = vmatprep.subr.bf16.mxu0 %v1490
    %2203 = vmatpush1.bf16.msra.mxu0 %v1489
    %2204 = vmatprep.subr.bf16.mxu0 %v1502
    %2205 = vmatpush1.bf16.msra.mxu0 %v1501
    %2206 = vmatprep.subr.bf16.mxu0 %v1514
    %2207 = vmatpush1.bf16.msra.mxu0 %v1513
    %2208 = vmatprep.subr.bf16.mxu0 0
    %2209 = vmatpush1.bf16.msra.mxu0 0
    %2210 = vmatprep.subr.bf16.mxu0 0
    %2211 = vmatpush1.bf16.msra.mxu0 0
    %2212 = vmatprep.subr.bf16.mxu0 0
    %2213 = vmatpush1.bf16.msra.mxu0 0
    %2214 = vmatprep.subr.bf16.mxu0 0
    %2215 = vmatpush1.bf16.msra.mxu0 0
    %2216 = vmatprep.subr.bf16.mxu0 0
    %2217 = vmatpush1.bf16.msra.mxu0 0
    %2218 = vmatprep.subr.bf16.mxu0 0
    %2219 = vmatpush1.bf16.msra.mxu0 0
    %2220 = vmatprep.subr.bf16.mxu0 0
    %2221 = vmatpush1.bf16.msra.mxu0 0
    %2222 = vmatprep.subr.bf16.mxu0 0
    %2223 = vmatpush1.bf16.msra.mxu0 0
    %2224 = vmatprep.mubr.bf16.mxu0 0
    %2225 = vmatmul.mubr.bf16.gmra.mrb[0].mxu0 %v361
    %v2226 = vpop.f32.mrb[0].mxu0
    %v2227 = vadd.f32 %v2184, %v2226
    %v2228 = vpop.f32.mrb[0].mxu0
    %v2229 = vadd.f32 %v2186, %v2228
    %v2230 = vpop.f32.mrb[0].mxu0
    %v2231 = vadd.f32 %v2188, %v2230
    %v2232 = vpop.f32.mrb[0].mxu0
    %v2233 = vadd.f32 %v2190, %v2232
    %2234 = vdwg.mxu0
    %2235 = vmatprep.subr.bf16.mxu0 %v1240
    %2236 = vmatpush1.bf16.msra.mxu0 %v1239
    %2237 = vmatprep.subr.bf16.mxu0 %v1252
    %2238 = vmatpush1.bf16.msra.mxu0 %v1251
    %2239 = vmatprep.subr.bf16.mxu0 %v1264
    %2240 = vmatpush1.bf16.msra.mxu0 %v1263
    %2241 = vmatprep.subr.bf16.mxu0 %v1276
    %2242 = vmatpush1.bf16.msra.mxu0 %v1275
    %2243 = vmatprep.subr.bf16.mxu0 %v1288
    %2244 = vmatpush1.bf16.msra.mxu0 %v1287
    %2245 = vmatprep.subr.bf16.mxu0 %v1300
    %2246 = vmatpush1.bf16.msra.mxu0 %v1299
    %2247 = vmatprep.subr.bf16.mxu0 %v1312
    %2248 = vmatpush1.bf16.msra.mxu0 %v1311
    %2249 = vmatprep.subr.bf16.mxu0 %v1324
    %2250 = vmatpush1.bf16.msra.mxu0 %v1323
    %2251 = vmatprep.subr.bf16.mxu0 %v1336
    %2252 = vmatpush1.bf16.msra.mxu0 %v1335
    %2253 = vmatprep.subr.bf16.mxu0 %v1348
    %2254 = vmatpush1.bf16.msra.mxu0 %v1347
    %2255 = vmatprep.subr.bf16.mxu0 %v1360
    %2256 = vmatpush1.bf16.msra.mxu0 %v1359
    %2257 = vmatprep.subr.bf16.mxu0 %v1372
    %2258 = vmatpush1.bf16.msra.mxu0 %v1371
    %2259 = vmatprep.subr.bf16.mxu0 %v1384
    %2260 = vmatpush1.bf16.msra.mxu0 %v1383
    %2261 = vmatprep.subr.bf16.mxu0 %v1396
    %2262 = vmatpush1.bf16.msra.mxu0 %v1395
    %2263 = vmatprep.subr.bf16.mxu0 %v1408
    %2264 = vmatpush1.bf16.msra.mxu0 %v1407
    %2265 = vmatprep.subr.bf16.mxu0 %v1420
    %2266 = vmatpush1.bf16.msra.mxu0 %v1419
    %2267 = vmatprep.mubr.bf16.mxu0 %v360
    %2268 = vmatmul.mubr.bf16.gmra.mrb[0].mxu0 %v359
    %v2269 = vpop.f32.mrb[0].mxu0
    %v2270 = vadd.f32 0.0, %v2269
    %v2271 = vpop.f32.mrb[0].mxu0
    %v2272 = vadd.f32 0.0, %v2271
    %v2273 = vpop.f32.mrb[0].mxu0
    %v2274 = vadd.f32 0.0, %v2273
    %v2275 = vpop.f32.mrb[0].mxu0
    %v2276 = vadd.f32 0.0, %v2275
    %2277 = vdwg.mxu0
    %2278 = vmatprep.subr.bf16.mxu0 %v1432
    %2279 = vmatpush1.bf16.msra.mxu0 %v1431
    %2280 = vmatprep.subr.bf16.mxu0 %v1444
    %2281 = vmatpush1.bf16.msra.mxu0 %v1443
    %2282 = vmatprep.subr.bf16.mxu0 %v1456
    %2283 = vmatpush1.bf16.msra.mxu0 %v1455
    %2284 = vmatprep.subr.bf16.mxu0 %v1468
    %2285 = vmatpush1.bf16.msra.mxu0 %v1467
    %2286 = vmatprep.subr.bf16.mxu0 %v1480
    %2287 = vmatpush1.bf16.msra.mxu0 %v1479
    %2288 = vmatprep.subr.bf16.mxu0 %v1492
    %2289 = vmatpush1.bf16.msra.mxu0 %v1491
    %2290 = vmatprep.subr.bf16.mxu0 %v1504
    %2291 = vmatpush1.bf16.msra.mxu0 %v1503
    %2292 = vmatprep.subr.bf16.mxu0 %v1516
    %2293 = vmatpush1.bf16.msra.mxu0 %v1515
    %2294 = vmatprep.subr.bf16.mxu0 0
    %2295 = vmatpush1.bf16.msra.mxu0 0
    %2296 = vmatprep.subr.bf16.mxu0 0
    %2297 = vmatpush1.bf16.msra.mxu0 0
    %2298 = vmatprep.subr.bf16.mxu0 0
    %2299 = vmatpush1.bf16.msra.mxu0 0
    %2300 = vmatprep.subr.bf16.mxu0 0
    %2301 = vmatpush1.bf16.msra.mxu0 0
    %2302 = vmatprep.subr.bf16.mxu0 0
    %2303 = vmatpush1.bf16.msra.mxu0 0
    %2304 = vmatprep.subr.bf16.mxu0 0
    %2305 = vmatpush1.bf16.msra.mxu0 0
    %2306 = vmatprep.subr.bf16.mxu0 0
    %2307 = vmatpush1.bf16.msra.mxu0 0
    %2308 = vmatprep.subr.bf16.mxu0 0
    %2309 = vmatpush1.bf16.msra.mxu0 0
    %2310 = vmatprep.mubr.bf16.mxu0 0
    %2311 = vmatmul.mubr.bf16.gmra.mrb[0].mxu0 %v361
    %v2312 = vpop.f32.mrb[0].mxu0
    %v2313 = vadd.f32 %v2270, %v2312
    %v2314 = vpop.f32.mrb[0].mxu0
    %v2315 = vadd.f32 %v2272, %v2314
    %v2316 = vpop.f32.mrb[0].mxu0
    %v2317 = vadd.f32 %v2274, %v2316
    %v2318 = vpop.f32.mrb[0].mxu0
    %v2319 = vadd.f32 %v2276, %v2318
    %2320 = vdwg.mxu0
    %v2321 = vmax.f32 %v1883, 0.0
    %v2322 = vmax.f32 %v1885, 0.0
    %v2323 = vmax.f32 %v1969, 0.0
    %v2324 = vmax.f32 %v1971, 0.0
    %v2325 = vmax.f32 %v2055, 0.0
    %v2326 = vmax.f32 %v2057, 0.0
    %v2327 = vmax.f32 %v2141, 0.0
    %v2328 = vmax.f32 %v2143, 0.0
    %v2329 = vmax.f32 %v2227, 0.0
    %v2330 = vmax.f32 %v2229, 0.0
    %v2331 = vmax.f32 %v2313, 0.0
    %v2332 = vmax.f32 %v2315, 0.0
    %v2333 = vmax.f32 %v1887, 0.0
    %v2334 = vmax.f32 %v1889, 0.0
    %v2335 = vmax.f32 %v1973, 0.0
    %v2336 = vmax.f32 %v1975, 0.0
    %v2337 = vmax.f32 %v2059, 0.0
    %v2338 = vmax.f32 %v2061, 0.0
    %v2339 = vmax.f32 %v2145, 0.0
    %v2340 = vmax.f32 %v2147, 0.0
    %v2341 = vmax.f32 %v2231, 0.0
    %v2342 = vmax.f32 %v2233, 0.0
    %v2343 = vmax.f32 %v2317, 0.0
    %v2344 = vmax.f32 %v2319, 0.0
    %v2345 = vpack.c.bf16 %v2333, %v2321
    %v2346 = vpack.c.bf16 %v2334, %v2322
    %v2347 = vpack.c.bf16 %v2335, %v2323
    %v2348 = vpack.c.bf16 %v2336, %v2324
    %v2349 = vpack.c.bf16 %v2337, %v2325
    %v2350 = vpack.c.bf16 %v2338, %v2326
    %v2351 = vpack.c.bf16 %v2339, %v2327
    %v2352 = vpack.c.bf16 %v2340, %v2328
    %v2353 = vpack.c.bf16 %v2341, %v2329
    %v2354 = vpack.c.bf16 %v2342, %v2330
    %v2355 = vpack.c.bf16 %v2343, %v2331
    %v2356 = vpack.c.bf16 %v2344, %v2332
    %v2357 = vld [vmem:[#allocation7] sm:$0xff]
    %v2358 = vld [vmem:[#allocation7 + $0x8] sm:$0xf]
    %v2359 = vld [vmem:[#allocation7 + $0xc] sm:$0xff]
    %v2360 = vld [vmem:[#allocation7 + $0x14] sm:$0xf]
    %v2361 = vld [vmem:[#allocation7 + $0x18] sm:$0xff]
    %v2362 = vld [vmem:[#allocation7 + $0x20] sm:$0xf]
    %v2363 = vld [vmem:[#allocation7 + $0x24] sm:$0xff]
    %v2364 = vld [vmem:[#allocation7 + $0x2c] sm:$0xf]
    %v2365 = vld [vmem:[#allocation7 + $0x30] sm:$0xff]
    %v2366 = vld [vmem:[#allocation7 + $0x38] sm:$0xf]
    %v2367 = vld [vmem:[#allocation7 + $0x3c] sm:$0xff]
    %v2368 = vld [vmem:[#allocation7 + $0x44] sm:$0xf]
    %v2369 = vld [vmem:[#allocation7 + $0x48] sm:$0xff]
    %v2370 = vld [vmem:[#allocation7 + $0x50] sm:$0xf]
    %v2371 = vld [vmem:[#allocation7 + $0x54] sm:$0xff]
    %v2372 = vld [vmem:[#allocation7 + $0x5c] sm:$0xf]
    %v2373 = vld [vmem:[#allocation7 + $0x60] sm:$0xff]
    %v2374 = vld [vmem:[#allocation7 + $0x68] sm:$0xf]
    %v2375 = vld [vmem:[#allocation7 + $0x6c] sm:$0xff]
    %v2376 = vld [vmem:[#allocation7 + $0x74] sm:$0xf]
    %v2377 = vld [vmem:[#allocation7 + $0x78] sm:$0xff]
    %v2378 = vld [vmem:[#allocation7 + $0x80] sm:$0xf]
    %v2379 = vld [vmem:[#allocation7 + $0x84] sm:$0xff]
    %v2380 = vld [vmem:[#allocation7 + $0x8c] sm:$0xf]
    %v2381 = vld [vmem:[#allocation7 + $0x90] sm:$0xff]
    %v2382 = vld [vmem:[#allocation7 + $0x98] sm:$0xf]
    %v2383 = vld [vmem:[#allocation7 + $0x9c] sm:$0xff]
    %v2384 = vld [vmem:[#allocation7 + $0xa4] sm:$0xf]
    %v2385 = vld [vmem:[#allocation7 + $0xa8] sm:$0xff]
    %v2386 = vld [vmem:[#allocation7 + $0xb0] sm:$0xf]
    %v2387 = vld [vmem:[#allocation7 + $0xb4] sm:$0xff]
    %v2388 = vld [vmem:[#allocation7 + $0xbc] sm:$0xf]
    %v2389 = vld [vmem:[#allocation7 + $0xc0] sm:$0xff]
    %v2390 = vld [vmem:[#allocation7 + $0xc8] sm:$0xf]
    %v2391 = vld [vmem:[#allocation7 + $0xcc] sm:$0xff]
    %v2392 = vld [vmem:[#allocation7 + $0xd4] sm:$0xf]
    %v2393 = vld [vmem:[#allocation7 + $0xd8] sm:$0xff]
    %v2394 = vld [vmem:[#allocation7 + $0xe0] sm:$0xf]
    %v2395 = vld [vmem:[#allocation7 + $0xe4] sm:$0xff]
    %v2396 = vld [vmem:[#allocation7 + $0xec] sm:$0xf]
    %v2397 = vld [vmem:[#allocation7 + $0xf0] sm:$0xff]
    %v2398 = vld [vmem:[#allocation7 + $0xf8] sm:$0xf]
    %v2399 = vld [vmem:[#allocation7 + $0xfc] sm:$0xff]
    %v2400 = vld [vmem:[#allocation7 + $0x104] sm:$0xf]
    %v2401 = vld [vmem:[#allocation7 + $0x108] sm:$0xff]
    %v2402 = vld [vmem:[#allocation7 + $0x110] sm:$0xf]
    %v2403 = vld [vmem:[#allocation7 + $0x114] sm:$0xff]
    %v2404 = vld [vmem:[#allocation7 + $0x11c] sm:$0xf]
    %v2405 = vld [vmem:[#allocation7 + $0x120] sm:$0xff]
    %v2406 = vld [vmem:[#allocation7 + $0x128] sm:$0xf]
    %v2407 = vld [vmem:[#allocation7 + $0x12c] sm:$0xff]
    %v2408 = vld [vmem:[#allocation7 + $0x134] sm:$0xf]
    %v2409 = vld [vmem:[#allocation7 + $0x138] sm:$0xff]
    %v2410 = vld [vmem:[#allocation7 + $0x140] sm:$0xf]
    %v2411 = vld [vmem:[#allocation7 + $0x144] sm:$0xff]
    %v2412 = vld [vmem:[#allocation7 + $0x14c] sm:$0xf]
    %v2413 = vld [vmem:[#allocation7 + $0x150] sm:$0xff]
    %v2414 = vld [vmem:[#allocation7 + $0x158] sm:$0xf]
    %v2415 = vld [vmem:[#allocation7 + $0x15c] sm:$0xff]
    %v2416 = vld [vmem:[#allocation7 + $0x164] sm:$0xf]
    %v2417 = vld [vmem:[#allocation7 + $0x168] sm:$0xff]
    %v2418 = vld [vmem:[#allocation7 + $0x170] sm:$0xf]
    %v2419 = vld [vmem:[#allocation7 + $0x174] sm:$0xff]
    %v2420 = vld [vmem:[#allocation7 + $0x17c] sm:$0xf]
    %v2421 = vld [vmem:[#allocation7 + $0x180] sm:$0xff]
    %v2422 = vld [vmem:[#allocation7 + $0x188] sm:$0xf]
    %v2423 = vld [vmem:[#allocation7 + $0x18c] sm:$0xff]
    %v2424 = vld [vmem:[#allocation7 + $0x194] sm:$0xf]
    %v2425 = vld [vmem:[#allocation7 + $0x198] sm:$0xff]
    %v2426 = vld [vmem:[#allocation7 + $0x1a0] sm:$0xf]
    %v2427 = vld [vmem:[#allocation7 + $0x1a4] sm:$0xff]
    %v2428 = vld [vmem:[#allocation7 + $0x1ac] sm:$0xf]
    %v2429 = vld [vmem:[#allocation7 + $0x1b0] sm:$0xff]
    %v2430 = vld [vmem:[#allocation7 + $0x1b8] sm:$0xf]
    %v2431 = vld [vmem:[#allocation7 + $0x1bc] sm:$0xff]
    %v2432 = vld [vmem:[#allocation7 + $0x1c4] sm:$0xf]
    %v2433 = vld [vmem:[#allocation7 + $0x1c8] sm:$0xff]
    %v2434 = vld [vmem:[#allocation7 + $0x1d0] sm:$0xf]
    %v2435 = vld [vmem:[#allocation7 + $0x1d4] sm:$0xff]
    %v2436 = vld [vmem:[#allocation7 + $0x1dc] sm:$0xf]
    %v2437 = vld [vmem:[#allocation7 + $0x1e0] sm:$0xff]
    %v2438 = vld [vmem:[#allocation7 + $0x1e8] sm:$0xf]
    %v2439 = vld [vmem:[#allocation7 + $0x1ec] sm:$0xff]
    %v2440 = vld [vmem:[#allocation7 + $0x1f4] sm:$0xf]
    %v2441 = vld [vmem:[#allocation7 + $0x1f8] sm:$0xff]
    %v2442 = vld [vmem:[#allocation7 + $0x200] sm:$0xf]
    %v2443 = vld [vmem:[#allocation7 + $0x204] sm:$0xff]
    %v2444 = vld [vmem:[#allocation7 + $0x20c] sm:$0xf]
    %v2445 = vld [vmem:[#allocation7 + $0x210] sm:$0xff]
    %v2446 = vld [vmem:[#allocation7 + $0x218] sm:$0xf]
    %v2447 = vld [vmem:[#allocation7 + $0x21c] sm:$0xff]
    %v2448 = vld [vmem:[#allocation7 + $0x224] sm:$0xf]
    %v2449 = vld [vmem:[#allocation7 + $0x228] sm:$0xff]
    %v2450 = vld [vmem:[#allocation7 + $0x230] sm:$0xf]
    %v2451 = vld [vmem:[#allocation7 + $0x234] sm:$0xff]
    %v2452 = vld [vmem:[#allocation7 + $0x23c] sm:$0xf]
    %v2453 = vld [vmem:[#allocation7 + $0x240] sm:$0xff]
    %v2454 = vld [vmem:[#allocation7 + $0x248] sm:$0xf]
    %v2455 = vld [vmem:[#allocation7 + $0x24c] sm:$0xff]
    %v2456 = vld [vmem:[#allocation7 + $0x254] sm:$0xf]
    %v2457 = vld [vmem:[#allocation7 + $0x258] sm:$0xff]
    %v2458 = vld [vmem:[#allocation7 + $0x260] sm:$0xf]
    %v2459 = vld [vmem:[#allocation7 + $0x264] sm:$0xff]
    %v2460 = vld [vmem:[#allocation7 + $0x26c] sm:$0xf]
    %v2461 = vld [vmem:[#allocation7 + $0x270] sm:$0xff]
    %v2462 = vld [vmem:[#allocation7 + $0x278] sm:$0xf]
    %v2463 = vld [vmem:[#allocation7 + $0x27c] sm:$0xff]
    %v2464 = vld [vmem:[#allocation7 + $0x284] sm:$0xf]
    %v2465 = vld [vmem:[#allocation7 + $0x288] sm:$0xff]
    %v2466 = vld [vmem:[#allocation7 + $0x290] sm:$0xf]
    %v2467 = vld [vmem:[#allocation7 + $0x294] sm:$0xff]
    %v2468 = vld [vmem:[#allocation7 + $0x29c] sm:$0xf]
    %v2469 = vld [vmem:[#allocation7 + $0x2a0] sm:$0xff]
    %v2470 = vld [vmem:[#allocation7 + $0x2a8] sm:$0xf]
    %v2471 = vld [vmem:[#allocation7 + $0x2ac] sm:$0xff]
    %v2472 = vld [vmem:[#allocation7 + $0x2b4] sm:$0xf]
    %v2473 = vld [vmem:[#allocation7 + $0x2b8] sm:$0xff]
    %v2474 = vld [vmem:[#allocation7 + $0x2c0] sm:$0xf]
    %v2475 = vld [vmem:[#allocation7 + $0x2c4] sm:$0xff]
    %v2476 = vld [vmem:[#allocation7 + $0x2cc] sm:$0xf]
    %v2477 = vld [vmem:[#allocation7 + $0x2d0] sm:$0xff]
    %v2478 = vld [vmem:[#allocation7 + $0x2d8] sm:$0xf]
    %v2479 = vld [vmem:[#allocation7 + $0x2dc] sm:$0xff]
    %v2480 = vld [vmem:[#allocation7 + $0x2e4] sm:$0xf]
    %v2481 = vld [vmem:[#allocation7 + $0x2e8] sm:$0xff]
    %v2482 = vld [vmem:[#allocation7 + $0x2f0] sm:$0xf]
    %v2483 = vld [vmem:[#allocation7 + $0x2f4] sm:$0xff]
    %v2484 = vld [vmem:[#allocation7 + $0x2fc] sm:$0xf]
    %v2485 = vld [vmem:[#allocation7 + $0x300] sm:$0xff]
    %v2486 = vld [vmem:[#allocation7 + $0x308] sm:$0xf]
    %v2487 = vld [vmem:[#allocation7 + $0x30c] sm:$0xff]
    %v2488 = vld [vmem:[#allocation7 + $0x314] sm:$0xf]
    %v2489 = vld [vmem:[#allocation7 + $0x318] sm:$0xff]
    %v2490 = vld [vmem:[#allocation7 + $0x320] sm:$0xf]
    %v2491 = vld [vmem:[#allocation7 + $0x324] sm:$0xff]
    %v2492 = vld [vmem:[#allocation7 + $0x32c] sm:$0xf]
    %v2493 = vld [vmem:[#allocation7 + $0x330] sm:$0xff]
    %v2494 = vld [vmem:[#allocation7 + $0x338] sm:$0xf]
    %v2495 = vld [vmem:[#allocation7 + $0x33c] sm:$0xff]
    %v2496 = vld [vmem:[#allocation7 + $0x344] sm:$0xf]
    %v2497 = vld [vmem:[#allocation7 + $0x348] sm:$0xff]
    %v2498 = vld [vmem:[#allocation7 + $0x350] sm:$0xf]
    %v2499 = vld [vmem:[#allocation7 + $0x354] sm:$0xff]
    %v2500 = vld [vmem:[#allocation7 + $0x35c] sm:$0xf]
    %v2501 = vld [vmem:[#allocation7 + $0x360] sm:$0xff]
    %v2502 = vld [vmem:[#allocation7 + $0x368] sm:$0xf]
    %v2503 = vld [vmem:[#allocation7 + $0x36c] sm:$0xff]
    %v2504 = vld [vmem:[#allocation7 + $0x374] sm:$0xf]
    %v2505 = vld [vmem:[#allocation7 + $0x378] sm:$0xff]
    %v2506 = vld [vmem:[#allocation7 + $0x380] sm:$0xf]
    %v2507 = vld [vmem:[#allocation7 + $0x384] sm:$0xff]
    %v2508 = vld [vmem:[#allocation7 + $0x38c] sm:$0xf]
    %v2509 = vld [vmem:[#allocation7 + $0x390] sm:$0xff]
    %v2510 = vld [vmem:[#allocation7 + $0x398] sm:$0xf]
    %v2511 = vld [vmem:[#allocation7 + $0x39c] sm:$0xff]
    %v2512 = vld [vmem:[#allocation7 + $0x3a4] sm:$0xf]
    %v2513 = vld [vmem:[#allocation7 + $0x3a8] sm:$0xff]
    %v2514 = vld [vmem:[#allocation7 + $0x3b0] sm:$0xf]
    %v2515 = vld [vmem:[#allocation7 + $0x3b4] sm:$0xff]
    %v2516 = vld [vmem:[#allocation7 + $0x3bc] sm:$0xf]
    %v2517 = vld [vmem:[#allocation7 + $0x3c0] sm:$0xff]
    %v2518 = vld [vmem:[#allocation7 + $0x3c8] sm:$0xf]
    %v2519 = vld [vmem:[#allocation7 + $0x3cc] sm:$0xff]
    %v2520 = vld [vmem:[#allocation7 + $0x3d4] sm:$0xf]
    %v2521 = vld [vmem:[#allocation7 + $0x3d8] sm:$0xff]
    %v2522 = vld [vmem:[#allocation7 + $0x3e0] sm:$0xf]
    %v2523 = vld [vmem:[#allocation7 + $0x3e4] sm:$0xff]
    %v2524 = vld [vmem:[#allocation7 + $0x3ec] sm:$0xf]
    %v2525 = vld [vmem:[#allocation7 + $0x3f0] sm:$0xff]
    %v2526 = vld [vmem:[#allocation7 + $0x3f8] sm:$0xf]
    %v2527 = vld [vmem:[#allocation7 + $0x3fc] sm:$0xff]
    %v2528 = vld [vmem:[#allocation7 + $0x404] sm:$0xf]
    %v2529 = vld [vmem:[#allocation7 + $0x408] sm:$0xff]
    %v2530 = vld [vmem:[#allocation7 + $0x410] sm:$0xf]
    %v2531 = vld [vmem:[#allocation7 + $0x414] sm:$0xff]
    %v2532 = vld [vmem:[#allocation7 + $0x41c] sm:$0xf]
    %v2533 = vld [vmem:[#allocation7 + $0x420] sm:$0xff]
    %v2534 = vld [vmem:[#allocation7 + $0x428] sm:$0xf]
    %v2535 = vld [vmem:[#allocation7 + $0x42c] sm:$0xff]
    %v2536 = vld [vmem:[#allocation7 + $0x434] sm:$0xf]
    %v2537 = vld [vmem:[#allocation7 + $0x438] sm:$0xff]
    %v2538 = vld [vmem:[#allocation7 + $0x440] sm:$0xf]
    %v2539 = vld [vmem:[#allocation7 + $0x444] sm:$0xff]
    %v2540 = vld [vmem:[#allocation7 + $0x44c] sm:$0xf]
    %v2541 = vld [vmem:[#allocation7 + $0x450] sm:$0xff]
    %v2542 = vld [vmem:[#allocation7 + $0x458] sm:$0xf]
    %v2543 = vld [vmem:[#allocation7 + $0x45c] sm:$0xff]
    %v2544 = vld [vmem:[#allocation7 + $0x464] sm:$0xf]
    %v2545 = vld [vmem:[#allocation7 + $0x468] sm:$0xff]
    %v2546 = vld [vmem:[#allocation7 + $0x470] sm:$0xf]
    %v2547 = vld [vmem:[#allocation7 + $0x474] sm:$0xff]
    %v2548 = vld [vmem:[#allocation7 + $0x47c] sm:$0xf]
    %v2549 = vld [vmem:[#allocation7 + $0x480] sm:$0xff]
    %v2550 = vld [vmem:[#allocation7 + $0x488] sm:$0xf]
    %v2551 = vld [vmem:[#allocation7 + $0x48c] sm:$0xff]
    %v2552 = vld [vmem:[#allocation7 + $0x494] sm:$0xf]
    %v2553 = vld [vmem:[#allocation7 + $0x498] sm:$0xff]
    %v2554 = vld [vmem:[#allocation7 + $0x4a0] sm:$0xf]
    %v2555 = vld [vmem:[#allocation7 + $0x4a4] sm:$0xff]
    %v2556 = vld [vmem:[#allocation7 + $0x4ac] sm:$0xf]
    %v2557 = vld [vmem:[#allocation7 + $0x4b0] sm:$0xff]
    %v2558 = vld [vmem:[#allocation7 + $0x4b8] sm:$0xf]
    %v2559 = vld [vmem:[#allocation7 + $0x4bc] sm:$0xff]
    %v2560 = vld [vmem:[#allocation7 + $0x4c4] sm:$0xf]
    %v2561 = vld [vmem:[#allocation7 + $0x4c8] sm:$0xff]
    %v2562 = vld [vmem:[#allocation7 + $0x4d0] sm:$0xf]
    %v2563 = vld [vmem:[#allocation7 + $0x4d4] sm:$0xff]
    %v2564 = vld [vmem:[#allocation7 + $0x4dc] sm:$0xf]
    %v2565 = vld [vmem:[#allocation7 + $0x4e0] sm:$0xff]
    %v2566 = vld [vmem:[#allocation7 + $0x4e8] sm:$0xf]
    %v2567 = vld [vmem:[#allocation7 + $0x4ec] sm:$0xff]
    %v2568 = vld [vmem:[#allocation7 + $0x4f4] sm:$0xf]
    %v2569 = vld [vmem:[#allocation7 + $0x4f8] sm:$0xff]
    %v2570 = vld [vmem:[#allocation7 + $0x500] sm:$0xf]
    %v2571 = vld [vmem:[#allocation7 + $0x504] sm:$0xff]
    %v2572 = vld [vmem:[#allocation7 + $0x50c] sm:$0xf]
    %v2573 = vld [vmem:[#allocation7 + $0x510] sm:$0xff]
    %v2574 = vld [vmem:[#allocation7 + $0x518] sm:$0xf]
    %v2575 = vld [vmem:[#allocation7 + $0x51c] sm:$0xff]
    %v2576 = vld [vmem:[#allocation7 + $0x524] sm:$0xf]
    %v2577 = vld [vmem:[#allocation7 + $0x528] sm:$0xff]
    %v2578 = vld [vmem:[#allocation7 + $0x530] sm:$0xf]
    %v2579 = vld [vmem:[#allocation7 + $0x534] sm:$0xff]
    %v2580 = vld [vmem:[#allocation7 + $0x53c] sm:$0xf]
    %v2581 = vld [vmem:[#allocation7 + $0x540] sm:$0xff]
    %v2582 = vld [vmem:[#allocation7 + $0x548] sm:$0xf]
    %v2583 = vld [vmem:[#allocation7 + $0x54c] sm:$0xff]
    %v2584 = vld [vmem:[#allocation7 + $0x554] sm:$0xf]
    %v2585 = vld [vmem:[#allocation7 + $0x558] sm:$0xff]
    %v2586 = vld [vmem:[#allocation7 + $0x560] sm:$0xf]
    %v2587 = vld [vmem:[#allocation7 + $0x564] sm:$0xff]
    %v2588 = vld [vmem:[#allocation7 + $0x56c] sm:$0xf]
    %v2589 = vld [vmem:[#allocation7 + $0x570] sm:$0xff]
    %v2590 = vld [vmem:[#allocation7 + $0x578] sm:$0xf]
    %v2591 = vld [vmem:[#allocation7 + $0x57c] sm:$0xff]
    %v2592 = vld [vmem:[#allocation7 + $0x584] sm:$0xf]
    %v2593 = vld [vmem:[#allocation7 + $0x588] sm:$0xff]
    %v2594 = vld [vmem:[#allocation7 + $0x590] sm:$0xf]
    %v2595 = vld [vmem:[#allocation7 + $0x594] sm:$0xff]
    %v2596 = vld [vmem:[#allocation7 + $0x59c] sm:$0xf]
    %v2597 = vld [vmem:[#allocation7 + $0x5a0] sm:$0xff]
    %v2598 = vld [vmem:[#allocation7 + $0x5a8] sm:$0xf]
    %v2599 = vld [vmem:[#allocation7 + $0x5ac] sm:$0xff]
    %v2600 = vld [vmem:[#allocation7 + $0x5b4] sm:$0xf]
    %v2601 = vld [vmem:[#allocation7 + $0x5b8] sm:$0xff]
    %v2602 = vld [vmem:[#allocation7 + $0x5c0] sm:$0xf]
    %v2603 = vld [vmem:[#allocation7 + $0x5c4] sm:$0xff]
    %v2604 = vld [vmem:[#allocation7 + $0x5cc] sm:$0xf]
    %v2605 = vld [vmem:[#allocation7 + $0x5d0] sm:$0xff]
    %v2606 = vld [vmem:[#allocation7 + $0x5d8] sm:$0xf]
    %v2607 = vld [vmem:[#allocation7 + $0x5dc] sm:$0xff]
    %v2608 = vld [vmem:[#allocation7 + $0x5e4] sm:$0xf]
    %v2609 = vld [vmem:[#allocation7 + $0x5e8] sm:$0xff]
    %v2610 = vld [vmem:[#allocation7 + $0x5f0] sm:$0xf]
    %v2611 = vld [vmem:[#allocation7 + $0x5f4] sm:$0xff]
    %v2612 = vld [vmem:[#allocation7 + $0x5fc] sm:$0xf]
    %v2613 = vld [vmem:[#allocation7 + $0x600] sm:$0xff]
    %v2614 = vld [vmem:[#allocation7 + $0x608] sm:$0xf]
    %v2615 = vld [vmem:[#allocation7 + $0x60c] sm:$0xff]
    %v2616 = vld [vmem:[#allocation7 + $0x614] sm:$0xf]
    %v2617 = vld [vmem:[#allocation7 + $0x618] sm:$0xff]
    %v2618 = vld [vmem:[#allocation7 + $0x620] sm:$0xf]
    %v2619 = vld [vmem:[#allocation7 + $0x624] sm:$0xff]
    %v2620 = vld [vmem:[#allocation7 + $0x62c] sm:$0xf]
    %v2621 = vld [vmem:[#allocation7 + $0x630] sm:$0xff]
    %v2622 = vld [vmem:[#allocation7 + $0x638] sm:$0xf]
    %v2623 = vld [vmem:[#allocation7 + $0x63c] sm:$0xff]
    %v2624 = vld [vmem:[#allocation7 + $0x644] sm:$0xf]
    %v2625 = vld [vmem:[#allocation7 + $0x648] sm:$0xff]
    %v2626 = vld [vmem:[#allocation7 + $0x650] sm:$0xf]
    %v2627 = vld [vmem:[#allocation7 + $0x654] sm:$0xff]
    %v2628 = vld [vmem:[#allocation7 + $0x65c] sm:$0xf]
    %v2629 = vld [vmem:[#allocation7 + $0x660] sm:$0xff]
    %v2630 = vld [vmem:[#allocation7 + $0x668] sm:$0xf]
    %v2631 = vld [vmem:[#allocation7 + $0x66c] sm:$0xff]
    %v2632 = vld [vmem:[#allocation7 + $0x674] sm:$0xf]
    %v2633 = vld [vmem:[#allocation7 + $0x678] sm:$0xff]
    %v2634 = vld [vmem:[#allocation7 + $0x680] sm:$0xf]
    %v2635 = vld [vmem:[#allocation7 + $0x684] sm:$0xff]
    %v2636 = vld [vmem:[#allocation7 + $0x68c] sm:$0xf]
    %v2637 = vld [vmem:[#allocation7 + $0x690] sm:$0xff]
    %v2638 = vld [vmem:[#allocation7 + $0x698] sm:$0xf]
    %v2639 = vld [vmem:[#allocation7 + $0x69c] sm:$0xff]
    %v2640 = vld [vmem:[#allocation7 + $0x6a4] sm:$0xf]
    %v2641 = vld [vmem:[#allocation7 + $0x6a8] sm:$0xff]
    %v2642 = vld [vmem:[#allocation7 + $0x6b0] sm:$0xf]
    %v2643 = vld [vmem:[#allocation7 + $0x6b4] sm:$0xff]
    %v2644 = vld [vmem:[#allocation7 + $0x6bc] sm:$0xf]
    %v2645 = vld [vmem:[#allocation7 + $0x6c0] sm:$0xff]
    %v2646 = vld [vmem:[#allocation7 + $0x6c8] sm:$0xf]
    %v2647 = vld [vmem:[#allocation7 + $0x6cc] sm:$0xff]
    %v2648 = vld [vmem:[#allocation7 + $0x6d4] sm:$0xf]
    %v2649 = vld [vmem:[#allocation7 + $0x6d8] sm:$0xff]
    %v2650 = vld [vmem:[#allocation7 + $0x6e0] sm:$0xf]
    %v2651 = vld [vmem:[#allocation7 + $0x6e4] sm:$0xff]
    %v2652 = vld [vmem:[#allocation7 + $0x6ec] sm:$0xf]
    %v2653 = vld [vmem:[#allocation7 + $0x6f0] sm:$0xff]
    %v2654 = vld [vmem:[#allocation7 + $0x6f8] sm:$0xf]
    %v2655 = vld [vmem:[#allocation7 + $0x6fc] sm:$0xff]
    %v2656 = vld [vmem:[#allocation7 + $0x704] sm:$0xf]
    %v2657 = vld [vmem:[#allocation7 + $0x708] sm:$0xff]
    %v2658 = vld [vmem:[#allocation7 + $0x710] sm:$0xf]
    %v2659 = vld [vmem:[#allocation7 + $0x714] sm:$0xff]
    %v2660 = vld [vmem:[#allocation7 + $0x71c] sm:$0xf]
    %v2661 = vld [vmem:[#allocation7 + $0x720] sm:$0xff]
    %v2662 = vld [vmem:[#allocation7 + $0x728] sm:$0xf]
    %v2663 = vld [vmem:[#allocation7 + $0x72c] sm:$0xff]
    %v2664 = vld [vmem:[#allocation7 + $0x734] sm:$0xf]
    %v2665 = vld [vmem:[#allocation7 + $0x738] sm:$0xff]
    %v2666 = vld [vmem:[#allocation7 + $0x740] sm:$0xf]
    %v2667 = vld [vmem:[#allocation7 + $0x744] sm:$0xff]
    %v2668 = vld [vmem:[#allocation7 + $0x74c] sm:$0xf]
    %v2669 = vld [vmem:[#allocation7 + $0x750] sm:$0xff]
    %v2670 = vld [vmem:[#allocation7 + $0x758] sm:$0xf]
    %v2671 = vld [vmem:[#allocation7 + $0x75c] sm:$0xff]
    %v2672 = vld [vmem:[#allocation7 + $0x764] sm:$0xf]
    %v2673 = vld [vmem:[#allocation7 + $0x768] sm:$0xff]
    %v2674 = vld [vmem:[#allocation7 + $0x770] sm:$0xf]
    %v2675 = vld [vmem:[#allocation7 + $0x774] sm:$0xff]
    %v2676 = vld [vmem:[#allocation7 + $0x77c] sm:$0xf]
    %v2677 = vld [vmem:[#allocation7 + $0x780] sm:$0xff]
    %v2678 = vld [vmem:[#allocation7 + $0x788] sm:$0xf]
    %v2679 = vld [vmem:[#allocation7 + $0x78c] sm:$0xff]
    %v2680 = vld [vmem:[#allocation7 + $0x794] sm:$0xf]
    %v2681 = vld [vmem:[#allocation7 + $0x798] sm:$0xff]
    %v2682 = vld [vmem:[#allocation7 + $0x7a0] sm:$0xf]
    %v2683 = vld [vmem:[#allocation7 + $0x7a4] sm:$0xff]
    %v2684 = vld [vmem:[#allocation7 + $0x7ac] sm:$0xf]
    %v2685 = vld [vmem:[#allocation7 + $0x7b0] sm:$0xff]
    %v2686 = vld [vmem:[#allocation7 + $0x7b8] sm:$0xf]
    %v2687 = vld [vmem:[#allocation7 + $0x7bc] sm:$0xff]
    %v2688 = vld [vmem:[#allocation7 + $0x7c4] sm:$0xf]
    %v2689 = vld [vmem:[#allocation7 + $0x7c8] sm:$0xff]
    %v2690 = vld [vmem:[#allocation7 + $0x7d0] sm:$0xf]
    %v2691 = vld [vmem:[#allocation7 + $0x7d4] sm:$0xff]
    %v2692 = vld [vmem:[#allocation7 + $0x7dc] sm:$0xf]
    %v2693 = vld [vmem:[#allocation7 + $0x7e0] sm:$0xff]
    %v2694 = vld [vmem:[#allocation7 + $0x7e8] sm:$0xf]
    %v2695 = vld [vmem:[#allocation7 + $0x7ec] sm:$0xff]
    %v2696 = vld [vmem:[#allocation7 + $0x7f4] sm:$0xf]
    %v2697 = vld [vmem:[#allocation7 + $0x7f8] sm:$0xff]
    %v2698 = vld [vmem:[#allocation7 + $0x800] sm:$0xf]
    %v2699 = vld [vmem:[#allocation7 + $0x804] sm:$0xff]
    %v2700 = vld [vmem:[#allocation7 + $0x80c] sm:$0xf]
    %v2701 = vld [vmem:[#allocation7 + $0x810] sm:$0xff]
    %v2702 = vld [vmem:[#allocation7 + $0x818] sm:$0xf]
    %v2703 = vld [vmem:[#allocation7 + $0x81c] sm:$0xff]
    %v2704 = vld [vmem:[#allocation7 + $0x824] sm:$0xf]
    %v2705 = vld [vmem:[#allocation7 + $0x828] sm:$0xff]
    %v2706 = vld [vmem:[#allocation7 + $0x830] sm:$0xf]
    %v2707 = vld [vmem:[#allocation7 + $0x834] sm:$0xff]
    %v2708 = vld [vmem:[#allocation7 + $0x83c] sm:$0xf]
    %v2709 = vld [vmem:[#allocation7 + $0x840] sm:$0xff]
    %v2710 = vld [vmem:[#allocation7 + $0x848] sm:$0xf]
    %v2711 = vld [vmem:[#allocation7 + $0x84c] sm:$0xff]
    %v2712 = vld [vmem:[#allocation7 + $0x854] sm:$0xf]
    %v2713 = vld [vmem:[#allocation7 + $0x858] sm:$0xff]
    %v2714 = vld [vmem:[#allocation7 + $0x860] sm:$0xf]
    %v2715 = vld [vmem:[#allocation7 + $0x864] sm:$0xff]
    %v2716 = vld [vmem:[#allocation7 + $0x86c] sm:$0xf]
    %v2717 = vld [vmem:[#allocation7 + $0x870] sm:$0xff]
    %v2718 = vld [vmem:[#allocation7 + $0x878] sm:$0xf]
    %v2719 = vld [vmem:[#allocation7 + $0x87c] sm:$0xff]
    %v2720 = vld [vmem:[#allocation7 + $0x884] sm:$0xf]
    %v2721 = vld [vmem:[#allocation7 + $0x888] sm:$0xff]
    %v2722 = vld [vmem:[#allocation7 + $0x890] sm:$0xf]
    %v2723 = vld [vmem:[#allocation7 + $0x894] sm:$0xff]
    %v2724 = vld [vmem:[#allocation7 + $0x89c] sm:$0xf]
    %v2725 = vld [vmem:[#allocation7 + $0x8a0] sm:$0xff]
    %v2726 = vld [vmem:[#allocation7 + $0x8a8] sm:$0xf]
    %v2727 = vld [vmem:[#allocation7 + $0x8ac] sm:$0xff]
    %v2728 = vld [vmem:[#allocation7 + $0x8b4] sm:$0xf]
    %v2729 = vld [vmem:[#allocation7 + $0x8b8] sm:$0xff]
    %v2730 = vld [vmem:[#allocation7 + $0x8c0] sm:$0xf]
    %v2731 = vld [vmem:[#allocation7 + $0x8c4] sm:$0xff]
    %v2732 = vld [vmem:[#allocation7 + $0x8cc] sm:$0xf]
    %v2733 = vld [vmem:[#allocation7 + $0x8d0] sm:$0xff]
    %v2734 = vld [vmem:[#allocation7 + $0x8d8] sm:$0xf]
    %v2735 = vld [vmem:[#allocation7 + $0x8dc] sm:$0xff]
    %v2736 = vld [vmem:[#allocation7 + $0x8e4] sm:$0xf]
    %v2737 = vld [vmem:[#allocation7 + $0x8e8] sm:$0xff]
    %v2738 = vld [vmem:[#allocation7 + $0x8f0] sm:$0xf]
    %v2739 = vld [vmem:[#allocation7 + $0x8f4] sm:$0xff]
    %v2740 = vld [vmem:[#allocation7 + $0x8fc] sm:$0xf]
    %v3125 = vunpack.c.l.b16 %v2357
    %v3126 = vunpack.c.h.b16 %v2357
    %v3127 = vunpack.c.l.b16 %v2358
    %v3128 = vunpack.c.l.b16 %v2359
    %v3129 = vunpack.c.h.b16 %v2359
    %v3130 = vunpack.c.l.b16 %v2360
    %v3131 = vunpack.c.l.b16 %v2361
    %v3132 = vunpack.c.h.b16 %v2361
    %v3133 = vunpack.c.l.b16 %v2362
    %v3134 = vunpack.c.l.b16 %v2363
    %v3135 = vunpack.c.h.b16 %v2363
    %v3136 = vunpack.c.l.b16 %v2364
    %v3137 = vunpack.c.l.b16 %v2365
    %v3138 = vunpack.c.h.b16 %v2365
    %v3139 = vunpack.c.l.b16 %v2366
    %v3140 = vunpack.c.l.b16 %v2367
    %v3141 = vunpack.c.h.b16 %v2367
    %v3142 = vunpack.c.l.b16 %v2368
    %v3143 = vunpack.c.l.b16 %v2369
    %v3144 = vunpack.c.h.b16 %v2369
    %v3145 = vunpack.c.l.b16 %v2370
    %v3146 = vunpack.c.l.b16 %v2371
    %v3147 = vunpack.c.h.b16 %v2371
    %v3148 = vunpack.c.l.b16 %v2372
    %v3149 = vunpack.c.l.b16 %v2373
    %v3150 = vunpack.c.h.b16 %v2373
    %v3151 = vunpack.c.l.b16 %v2374
    %v3152 = vunpack.c.l.b16 %v2375
    %v3153 = vunpack.c.h.b16 %v2375
    %v3154 = vunpack.c.l.b16 %v2376
    %v3155 = vunpack.c.l.b16 %v2377
    %v3156 = vunpack.c.h.b16 %v2377
    %v3157 = vunpack.c.l.b16 %v2378
    %v3158 = vunpack.c.l.b16 %v2379
    %v3159 = vunpack.c.h.b16 %v2379
    %v3160 = vunpack.c.l.b16 %v2380
    %v3161 = vunpack.c.l.b16 %v2381
    %v3162 = vunpack.c.h.b16 %v2381
    %v3163 = vunpack.c.l.b16 %v2382
    %v3164 = vunpack.c.l.b16 %v2383
    %v3165 = vunpack.c.h.b16 %v2383
    %v3166 = vunpack.c.l.b16 %v2384
    %v3167 = vunpack.c.l.b16 %v2385
    %v3168 = vunpack.c.h.b16 %v2385
    %v3169 = vunpack.c.l.b16 %v2386
    %v3170 = vunpack.c.l.b16 %v2387
    %v3171 = vunpack.c.h.b16 %v2387
    %v3172 = vunpack.c.l.b16 %v2388
    %v3173 = vunpack.c.l.b16 %v2389
    %v3174 = vunpack.c.h.b16 %v2389
    %v3175 = vunpack.c.l.b16 %v2390
    %v3176 = vunpack.c.l.b16 %v2391
    %v3177 = vunpack.c.h.b16 %v2391
    %v3178 = vunpack.c.l.b16 %v2392
    %v3179 = vunpack.c.l.b16 %v2393
    %v3180 = vunpack.c.h.b16 %v2393
    %v3181 = vunpack.c.l.b16 %v2394
    %v3182 = vunpack.c.l.b16 %v2395
    %v3183 = vunpack.c.h.b16 %v2395
    %v3184 = vunpack.c.l.b16 %v2396
    %v3185 = vunpack.c.l.b16 %v2397
    %v3186 = vunpack.c.h.b16 %v2397
    %v3187 = vunpack.c.l.b16 %v2398
    %v3188 = vunpack.c.l.b16 %v2399
    %v3189 = vunpack.c.h.b16 %v2399
    %v3190 = vunpack.c.l.b16 %v2400
    %v3191 = vunpack.c.l.b16 %v2401
    %v3192 = vunpack.c.h.b16 %v2401
    %v3193 = vunpack.c.l.b16 %v2402
    %v3194 = vunpack.c.l.b16 %v2403
    %v3195 = vunpack.c.h.b16 %v2403
    %v3196 = vunpack.c.l.b16 %v2404
    %v3197 = vunpack.c.l.b16 %v2405
    %v3198 = vunpack.c.h.b16 %v2405
    %v3199 = vunpack.c.l.b16 %v2406
    %v3200 = vunpack.c.l.b16 %v2407
    %v3201 = vunpack.c.h.b16 %v2407
    %v3202 = vunpack.c.l.b16 %v2408
    %v3203 = vunpack.c.l.b16 %v2409
    %v3204 = vunpack.c.h.b16 %v2409
    %v3205 = vunpack.c.l.b16 %v2410
    %v3206 = vunpack.c.l.b16 %v2411
    %v3207 = vunpack.c.h.b16 %v2411
    %v3208 = vunpack.c.l.b16 %v2412
    %v3209 = vunpack.c.l.b16 %v2413
    %v3210 = vunpack.c.h.b16 %v2413
    %v3211 = vunpack.c.l.b16 %v2414
    %v3212 = vunpack.c.l.b16 %v2415
    %v3213 = vunpack.c.h.b16 %v2415
    %v3214 = vunpack.c.l.b16 %v2416
    %v3215 = vunpack.c.l.b16 %v2417
    %v3216 = vunpack.c.h.b16 %v2417
    %v3217 = vunpack.c.l.b16 %v2418
    %v3218 = vunpack.c.l.b16 %v2419
    %v3219 = vunpack.c.h.b16 %v2419
    %v3220 = vunpack.c.l.b16 %v2420
    %v3221 = vunpack.c.l.b16 %v2421
    %v3222 = vunpack.c.h.b16 %v2421
    %v3223 = vunpack.c.l.b16 %v2422
    %v3224 = vunpack.c.l.b16 %v2423
    %v3225 = vunpack.c.h.b16 %v2423
    %v3226 = vunpack.c.l.b16 %v2424
    %v3227 = vunpack.c.l.b16 %v2425
    %v3228 = vunpack.c.h.b16 %v2425
    %v3229 = vunpack.c.l.b16 %v2426
    %v3230 = vunpack.c.l.b16 %v2427
    %v3231 = vunpack.c.h.b16 %v2427
    %v3232 = vunpack.c.l.b16 %v2428
    %v3233 = vunpack.c.l.b16 %v2429
    %v3234 = vunpack.c.h.b16 %v2429
    %v3235 = vunpack.c.l.b16 %v2430
    %v3236 = vunpack.c.l.b16 %v2431
    %v3237 = vunpack.c.h.b16 %v2431
    %v3238 = vunpack.c.l.b16 %v2432
    %v3239 = vunpack.c.l.b16 %v2433
    %v3240 = vunpack.c.h.b16 %v2433
    %v3241 = vunpack.c.l.b16 %v2434
    %v3242 = vunpack.c.l.b16 %v2435
    %v3243 = vunpack.c.h.b16 %v2435
    %v3244 = vunpack.c.l.b16 %v2436
    %v3245 = vunpack.c.l.b16 %v2437
    %v3246 = vunpack.c.h.b16 %v2437
    %v3247 = vunpack.c.l.b16 %v2438
    %v3248 = vunpack.c.l.b16 %v2439
    %v3249 = vunpack.c.h.b16 %v2439
    %v3250 = vunpack.c.l.b16 %v2440
    %v3251 = vunpack.c.l.b16 %v2441
    %v3252 = vunpack.c.h.b16 %v2441
    %v3253 = vunpack.c.l.b16 %v2442
    %v3254 = vunpack.c.l.b16 %v2443
    %v3255 = vunpack.c.h.b16 %v2443
    %v3256 = vunpack.c.l.b16 %v2444
    %v3257 = vunpack.c.l.b16 %v2445
    %v3258 = vunpack.c.h.b16 %v2445
    %v3259 = vunpack.c.l.b16 %v2446
    %v3260 = vunpack.c.l.b16 %v2447
    %v3261 = vunpack.c.h.b16 %v2447
    %v3262 = vunpack.c.l.b16 %v2448
    %v3263 = vunpack.c.l.b16 %v2449
    %v3264 = vunpack.c.h.b16 %v2449
    %v3265 = vunpack.c.l.b16 %v2450
    %v3266 = vunpack.c.l.b16 %v2451
    %v3267 = vunpack.c.h.b16 %v2451
    %v3268 = vunpack.c.l.b16 %v2452
    %v3269 = vunpack.c.l.b16 %v2453
    %v3270 = vunpack.c.h.b16 %v2453
    %v3271 = vunpack.c.l.b16 %v2454
    %v3272 = vunpack.c.l.b16 %v2455
    %v3273 = vunpack.c.h.b16 %v2455
    %v3274 = vunpack.c.l.b16 %v2456
    %v3275 = vunpack.c.l.b16 %v2457
    %v3276 = vunpack.c.h.b16 %v2457
    %v3277 = vunpack.c.l.b16 %v2458
    %v3278 = vunpack.c.l.b16 %v2459
    %v3279 = vunpack.c.h.b16 %v2459
    %v3280 = vunpack.c.l.b16 %v2460
    %v3281 = vunpack.c.l.b16 %v2461
    %v3282 = vunpack.c.h.b16 %v2461
    %v3283 = vunpack.c.l.b16 %v2462
    %v3284 = vunpack.c.l.b16 %v2463
    %v3285 = vunpack.c.h.b16 %v2463
    %v3286 = vunpack.c.l.b16 %v2464
    %v3287 = vunpack.c.l.b16 %v2465
    %v3288 = vunpack.c.h.b16 %v2465
    %v3289 = vunpack.c.l.b16 %v2466
    %v3290 = vunpack.c.l.b16 %v2467
    %v3291 = vunpack.c.h.b16 %v2467
    %v3292 = vunpack.c.l.b16 %v2468
    %v3293 = vunpack.c.l.b16 %v2469
    %v3294 = vunpack.c.h.b16 %v2469
    %v3295 = vunpack.c.l.b16 %v2470
    %v3296 = vunpack.c.l.b16 %v2471
    %v3297 = vunpack.c.h.b16 %v2471
    %v3298 = vunpack.c.l.b16 %v2472
    %v3299 = vunpack.c.l.b16 %v2473
    %v3300 = vunpack.c.h.b16 %v2473
    %v3301 = vunpack.c.l.b16 %v2474
    %v3302 = vunpack.c.l.b16 %v2475
    %v3303 = vunpack.c.h.b16 %v2475
    %v3304 = vunpack.c.l.b16 %v2476
    %v3305 = vunpack.c.l.b16 %v2477
    %v3306 = vunpack.c.h.b16 %v2477
    %v3307 = vunpack.c.l.b16 %v2478
    %v3308 = vunpack.c.l.b16 %v2479
    %v3309 = vunpack.c.h.b16 %v2479
    %v3310 = vunpack.c.l.b16 %v2480
    %v3311 = vunpack.c.l.b16 %v2481
    %v3312 = vunpack.c.h.b16 %v2481
    %v3313 = vunpack.c.l.b16 %v2482
    %v3314 = vunpack.c.l.b16 %v2483
    %v3315 = vunpack.c.h.b16 %v2483
    %v3316 = vunpack.c.l.b16 %v2484
    %v3317 = vunpack.c.l.b16 %v2485
    %v3318 = vunpack.c.h.b16 %v2485
    %v3319 = vunpack.c.l.b16 %v2486
    %v3320 = vunpack.c.l.b16 %v2487
    %v3321 = vunpack.c.h.b16 %v2487
    %v3322 = vunpack.c.l.b16 %v2488
    %v3323 = vunpack.c.l.b16 %v2489
    %v3324 = vunpack.c.h.b16 %v2489
    %v3325 = vunpack.c.l.b16 %v2490
    %v3326 = vunpack.c.l.b16 %v2491
    %v3327 = vunpack.c.h.b16 %v2491
    %v3328 = vunpack.c.l.b16 %v2492
    %v3329 = vunpack.c.l.b16 %v2493
    %v3330 = vunpack.c.h.b16 %v2493
    %v3331 = vunpack.c.l.b16 %v2494
    %v3332 = vunpack.c.l.b16 %v2495
    %v3333 = vunpack.c.h.b16 %v2495
    %v3334 = vunpack.c.l.b16 %v2496
    %v3335 = vunpack.c.l.b16 %v2497
    %v3336 = vunpack.c.h.b16 %v2497
    %v3337 = vunpack.c.l.b16 %v2498
    %v3338 = vunpack.c.l.b16 %v2499
    %v3339 = vunpack.c.h.b16 %v2499
    %v3340 = vunpack.c.l.b16 %v2500
    %v3341 = vunpack.c.l.b16 %v2501
    %v3342 = vunpack.c.h.b16 %v2501
    %v3343 = vunpack.c.l.b16 %v2502
    %v3344 = vunpack.c.l.b16 %v2503
    %v3345 = vunpack.c.h.b16 %v2503
    %v3346 = vunpack.c.l.b16 %v2504
    %v3347 = vunpack.c.l.b16 %v2505
    %v3348 = vunpack.c.h.b16 %v2505
    %v3349 = vunpack.c.l.b16 %v2506
    %v3350 = vunpack.c.l.b16 %v2507
    %v3351 = vunpack.c.h.b16 %v2507
    %v3352 = vunpack.c.l.b16 %v2508
    %v3353 = vunpack.c.l.b16 %v2509
    %v3354 = vunpack.c.h.b16 %v2509
    %v3355 = vunpack.c.l.b16 %v2510
    %v3356 = vunpack.c.l.b16 %v2511
    %v3357 = vunpack.c.h.b16 %v2511
    %v3358 = vunpack.c.l.b16 %v2512
    %v3359 = vunpack.c.l.b16 %v2513
    %v3360 = vunpack.c.h.b16 %v2513
    %v3361 = vunpack.c.l.b16 %v2514
    %v3362 = vunpack.c.l.b16 %v2515
    %v3363 = vunpack.c.h.b16 %v2515
    %v3364 = vunpack.c.l.b16 %v2516
    %v3365 = vunpack.c.l.b16 %v2517
    %v3366 = vunpack.c.h.b16 %v2517
    %v3367 = vunpack.c.l.b16 %v2518
    %v3368 = vunpack.c.l.b16 %v2519
    %v3369 = vunpack.c.h.b16 %v2519
    %v3370 = vunpack.c.l.b16 %v2520
    %v3371 = vunpack.c.l.b16 %v2521
    %v3372 = vunpack.c.h.b16 %v2521
    %v3373 = vunpack.c.l.b16 %v2522
    %v3374 = vunpack.c.l.b16 %v2523
    %v3375 = vunpack.c.h.b16 %v2523
    %v3376 = vunpack.c.l.b16 %v2524
    %v3377 = vunpack.c.l.b16 %v2525
    %v3378 = vunpack.c.h.b16 %v2525
    %v3379 = vunpack.c.l.b16 %v2526
    %v3380 = vunpack.c.l.b16 %v2527
    %v3381 = vunpack.c.h.b16 %v2527
    %v3382 = vunpack.c.l.b16 %v2528
    %v3383 = vunpack.c.l.b16 %v2529
    %v3384 = vunpack.c.h.b16 %v2529
    %v3385 = vunpack.c.l.b16 %v2530
    %v3386 = vunpack.c.l.b16 %v2531
    %v3387 = vunpack.c.h.b16 %v2531
    %v3388 = vunpack.c.l.b16 %v2532
    %v3389 = vunpack.c.l.b16 %v2533
    %v3390 = vunpack.c.h.b16 %v2533
    %v3391 = vunpack.c.l.b16 %v2534
    %v3392 = vunpack.c.l.b16 %v2535
    %v3393 = vunpack.c.h.b16 %v2535
    %v3394 = vunpack.c.l.b16 %v2536
    %v3395 = vunpack.c.l.b16 %v2537
    %v3396 = vunpack.c.h.b16 %v2537
    %v3397 = vunpack.c.l.b16 %v2538
    %v3398 = vunpack.c.l.b16 %v2539
    %v3399 = vunpack.c.h.b16 %v2539
    %v3400 = vunpack.c.l.b16 %v2540
    %v3401 = vunpack.c.l.b16 %v2541
    %v3402 = vunpack.c.h.b16 %v2541
    %v3403 = vunpack.c.l.b16 %v2542
    %v3404 = vunpack.c.l.b16 %v2543
    %v3405 = vunpack.c.h.b16 %v2543
    %v3406 = vunpack.c.l.b16 %v2544
    %v3407 = vunpack.c.l.b16 %v2545
    %v3408 = vunpack.c.h.b16 %v2545
    %v3409 = vunpack.c.l.b16 %v2546
    %v3410 = vunpack.c.l.b16 %v2547
    %v3411 = vunpack.c.h.b16 %v2547
    %v3412 = vunpack.c.l.b16 %v2548
    %v3413 = vunpack.c.l.b16 %v2549
    %v3414 = vunpack.c.h.b16 %v2549
    %v3415 = vunpack.c.l.b16 %v2550
    %v3416 = vunpack.c.l.b16 %v2551
    %v3417 = vunpack.c.h.b16 %v2551
    %v3418 = vunpack.c.l.b16 %v2552
    %v3419 = vunpack.c.l.b16 %v2553
    %v3420 = vunpack.c.h.b16 %v2553
    %v3421 = vunpack.c.l.b16 %v2554
    %v3422 = vunpack.c.l.b16 %v2555
    %v3423 = vunpack.c.h.b16 %v2555
    %v3424 = vunpack.c.l.b16 %v2556
    %v3425 = vunpack.c.l.b16 %v2557
    %v3426 = vunpack.c.h.b16 %v2557
    %v3427 = vunpack.c.l.b16 %v2558
    %v3428 = vunpack.c.l.b16 %v2559
    %v3429 = vunpack.c.h.b16 %v2559
    %v3430 = vunpack.c.l.b16 %v2560
    %v3431 = vunpack.c.l.b16 %v2561
    %v3432 = vunpack.c.h.b16 %v2561
    %v3433 = vunpack.c.l.b16 %v2562
    %v3434 = vunpack.c.l.b16 %v2563
    %v3435 = vunpack.c.h.b16 %v2563
    %v3436 = vunpack.c.l.b16 %v2564
    %v3437 = vunpack.c.l.b16 %v2565
    %v3438 = vunpack.c.h.b16 %v2565
    %v3439 = vunpack.c.l.b16 %v2566
    %v3440 = vunpack.c.l.b16 %v2567
    %v3441 = vunpack.c.h.b16 %v2567
    %v3442 = vunpack.c.l.b16 %v2568
    %v3443 = vunpack.c.l.b16 %v2569
    %v3444 = vunpack.c.h.b16 %v2569
    %v3445 = vunpack.c.l.b16 %v2570
    %v3446 = vunpack.c.l.b16 %v2571
    %v3447 = vunpack.c.h.b16 %v2571
    %v3448 = vunpack.c.l.b16 %v2572
    %v3449 = vunpack.c.l.b16 %v2573
    %v3450 = vunpack.c.h.b16 %v2573
    %v3451 = vunpack.c.l.b16 %v2574
    %v3452 = vunpack.c.l.b16 %v2575
    %v3453 = vunpack.c.h.b16 %v2575
    %v3454 = vunpack.c.l.b16 %v2576
    %v3455 = vunpack.c.l.b16 %v2577
    %v3456 = vunpack.c.h.b16 %v2577
    %v3457 = vunpack.c.l.b16 %v2578
    %v3458 = vunpack.c.l.b16 %v2579
    %v3459 = vunpack.c.h.b16 %v2579
    %v3460 = vunpack.c.l.b16 %v2580
    %v3461 = vunpack.c.l.b16 %v2581
    %v3462 = vunpack.c.h.b16 %v2581
    %v3463 = vunpack.c.l.b16 %v2582
    %v3464 = vunpack.c.l.b16 %v2583
    %v3465 = vunpack.c.h.b16 %v2583
    %v3466 = vunpack.c.l.b16 %v2584
    %v3467 = vunpack.c.l.b16 %v2585
    %v3468 = vunpack.c.h.b16 %v2585
    %v3469 = vunpack.c.l.b16 %v2586
    %v3470 = vunpack.c.l.b16 %v2587
    %v3471 = vunpack.c.h.b16 %v2587
    %v3472 = vunpack.c.l.b16 %v2588
    %v3473 = vunpack.c.l.b16 %v2589
    %v3474 = vunpack.c.h.b16 %v2589
    %v3475 = vunpack.c.l.b16 %v2590
    %v3476 = vunpack.c.l.b16 %v2591
    %v3477 = vunpack.c.h.b16 %v2591
    %v3478 = vunpack.c.l.b16 %v2592
    %v3479 = vunpack.c.l.b16 %v2593
    %v3480 = vunpack.c.h.b16 %v2593
    %v3481 = vunpack.c.l.b16 %v2594
    %v3482 = vunpack.c.l.b16 %v2595
    %v3483 = vunpack.c.h.b16 %v2595
    %v3484 = vunpack.c.l.b16 %v2596
    %v3485 = vunpack.c.l.b16 %v2597
    %v3486 = vunpack.c.h.b16 %v2597
    %v3487 = vunpack.c.l.b16 %v2598
    %v3488 = vunpack.c.l.b16 %v2599
    %v3489 = vunpack.c.h.b16 %v2599
    %v3490 = vunpack.c.l.b16 %v2600
    %v3491 = vunpack.c.l.b16 %v2601
    %v3492 = vunpack.c.h.b16 %v2601
    %v3493 = vunpack.c.l.b16 %v2602
    %v3494 = vunpack.c.l.b16 %v2603
    %v3495 = vunpack.c.h.b16 %v2603
    %v3496 = vunpack.c.l.b16 %v2604
    %v3497 = vunpack.c.l.b16 %v2605
    %v3498 = vunpack.c.h.b16 %v2605
    %v3499 = vunpack.c.l.b16 %v2606
    %v3500 = vunpack.c.l.b16 %v2607
    %v3501 = vunpack.c.h.b16 %v2607
    %v3502 = vunpack.c.l.b16 %v2608
    %v3503 = vunpack.c.l.b16 %v2609
    %v3504 = vunpack.c.h.b16 %v2609
    %v3505 = vunpack.c.l.b16 %v2610
    %v3506 = vunpack.c.l.b16 %v2611
    %v3507 = vunpack.c.h.b16 %v2611
    %v3508 = vunpack.c.l.b16 %v2612
    %v3509 = vunpack.c.l.b16 %v2613
    %v3510 = vunpack.c.h.b16 %v2613
    %v3511 = vunpack.c.l.b16 %v2614
    %v3512 = vunpack.c.l.b16 %v2615
    %v3513 = vunpack.c.h.b16 %v2615
    %v3514 = vunpack.c.l.b16 %v2616
    %v3515 = vunpack.c.l.b16 %v2617
    %v3516 = vunpack.c.h.b16 %v2617
    %v3517 = vunpack.c.l.b16 %v2618
    %v3518 = vunpack.c.l.b16 %v2619
    %v3519 = vunpack.c.h.b16 %v2619
    %v3520 = vunpack.c.l.b16 %v2620
    %v3521 = vunpack.c.l.b16 %v2621
    %v3522 = vunpack.c.h.b16 %v2621
    %v3523 = vunpack.c.l.b16 %v2622
    %v3524 = vunpack.c.l.b16 %v2623
    %v3525 = vunpack.c.h.b16 %v2623
    %v3526 = vunpack.c.l.b16 %v2624
    %v3527 = vunpack.c.l.b16 %v2625
    %v3528 = vunpack.c.h.b16 %v2625
    %v3529 = vunpack.c.l.b16 %v2626
    %v3530 = vunpack.c.l.b16 %v2627
    %v3531 = vunpack.c.h.b16 %v2627
    %v3532 = vunpack.c.l.b16 %v2628
    %v3533 = vunpack.c.l.b16 %v2629
    %v3534 = vunpack.c.h.b16 %v2629
    %v3535 = vunpack.c.l.b16 %v2630
    %v3536 = vunpack.c.l.b16 %v2631
    %v3537 = vunpack.c.h.b16 %v2631
    %v3538 = vunpack.c.l.b16 %v2632
    %v3539 = vunpack.c.l.b16 %v2633
    %v3540 = vunpack.c.h.b16 %v2633
    %v3541 = vunpack.c.l.b16 %v2634
    %v3542 = vunpack.c.l.b16 %v2635
    %v3543 = vunpack.c.h.b16 %v2635
    %v3544 = vunpack.c.l.b16 %v2636
    %v3545 = vunpack.c.l.b16 %v2637
    %v3546 = vunpack.c.h.b16 %v2637
    %v3547 = vunpack.c.l.b16 %v2638
    %v3548 = vunpack.c.l.b16 %v2639
    %v3549 = vunpack.c.h.b16 %v2639
    %v3550 = vunpack.c.l.b16 %v2640
    %v3551 = vunpack.c.l.b16 %v2641
    %v3552 = vunpack.c.h.b16 %v2641
    %v3553 = vunpack.c.l.b16 %v2642
    %v3554 = vunpack.c.l.b16 %v2643
    %v3555 = vunpack.c.h.b16 %v2643
    %v3556 = vunpack.c.l.b16 %v2644
    %v3557 = vunpack.c.l.b16 %v2645
    %v3558 = vunpack.c.h.b16 %v2645
    %v3559 = vunpack.c.l.b16 %v2646
    %v3560 = vunpack.c.l.b16 %v2647
    %v3561 = vunpack.c.h.b16 %v2647
    %v3562 = vunpack.c.l.b16 %v2648
    %v3563 = vunpack.c.l.b16 %v2649
    %v3564 = vunpack.c.h.b16 %v2649
    %v3565 = vunpack.c.l.b16 %v2650
    %v3566 = vunpack.c.l.b16 %v2651
    %v3567 = vunpack.c.h.b16 %v2651
    %v3568 = vunpack.c.l.b16 %v2652
    %v3569 = vunpack.c.l.b16 %v2653
    %v3570 = vunpack.c.h.b16 %v2653
    %v3571 = vunpack.c.l.b16 %v2654
    %v3572 = vunpack.c.l.b16 %v2655
    %v3573 = vunpack.c.h.b16 %v2655
    %v3574 = vunpack.c.l.b16 %v2656
    %v3575 = vunpack.c.l.b16 %v2657
    %v3576 = vunpack.c.h.b16 %v2657
    %v3577 = vunpack.c.l.b16 %v2658
    %v3578 = vunpack.c.l.b16 %v2659
    %v3579 = vunpack.c.h.b16 %v2659
    %v3580 = vunpack.c.l.b16 %v2660
    %v3581 = vunpack.c.l.b16 %v2661
    %v3582 = vunpack.c.h.b16 %v2661
    %v3583 = vunpack.c.l.b16 %v2662
    %v3584 = vunpack.c.l.b16 %v2663
    %v3585 = vunpack.c.h.b16 %v2663
    %v3586 = vunpack.c.l.b16 %v2664
    %v3587 = vunpack.c.l.b16 %v2665
    %v3588 = vunpack.c.h.b16 %v2665
    %v3589 = vunpack.c.l.b16 %v2666
    %v3590 = vunpack.c.l.b16 %v2667
    %v3591 = vunpack.c.h.b16 %v2667
    %v3592 = vunpack.c.l.b16 %v2668
    %v3593 = vunpack.c.l.b16 %v2669
    %v3594 = vunpack.c.h.b16 %v2669
    %v3595 = vunpack.c.l.b16 %v2670
    %v3596 = vunpack.c.l.b16 %v2671
    %v3597 = vunpack.c.h.b16 %v2671
    %v3598 = vunpack.c.l.b16 %v2672
    %v3599 = vunpack.c.l.b16 %v2673
    %v3600 = vunpack.c.h.b16 %v2673
    %v3601 = vunpack.c.l.b16 %v2674
    %v3602 = vunpack.c.l.b16 %v2675
    %v3603 = vunpack.c.h.b16 %v2675
    %v3604 = vunpack.c.l.b16 %v2676
    %v3605 = vunpack.c.l.b16 %v2677
    %v3606 = vunpack.c.h.b16 %v2677
    %v3607 = vunpack.c.l.b16 %v2678
    %v3608 = vunpack.c.l.b16 %v2679
    %v3609 = vunpack.c.h.b16 %v2679
    %v3610 = vunpack.c.l.b16 %v2680
    %v3611 = vunpack.c.l.b16 %v2681
    %v3612 = vunpack.c.h.b16 %v2681
    %v3613 = vunpack.c.l.b16 %v2682
    %v3614 = vunpack.c.l.b16 %v2683
    %v3615 = vunpack.c.h.b16 %v2683
    %v3616 = vunpack.c.l.b16 %v2684
    %v3617 = vunpack.c.l.b16 %v2685
    %v3618 = vunpack.c.h.b16 %v2685
    %v3619 = vunpack.c.l.b16 %v2686
    %v3620 = vunpack.c.l.b16 %v2687
    %v3621 = vunpack.c.h.b16 %v2687
    %v3622 = vunpack.c.l.b16 %v2688
    %v3623 = vunpack.c.l.b16 %v2689
    %v3624 = vunpack.c.h.b16 %v2689
    %v3625 = vunpack.c.l.b16 %v2690
    %v3626 = vunpack.c.l.b16 %v2691
    %v3627 = vunpack.c.h.b16 %v2691
    %v3628 = vunpack.c.l.b16 %v2692
    %v3629 = vunpack.c.l.b16 %v2693
    %v3630 = vunpack.c.h.b16 %v2693
    %v3631 = vunpack.c.l.b16 %v2694
    %v3632 = vunpack.c.l.b16 %v2695
    %v3633 = vunpack.c.h.b16 %v2695
    %v3634 = vunpack.c.l.b16 %v2696
    %v3635 = vunpack.c.l.b16 %v2697
    %v3636 = vunpack.c.h.b16 %v2697
    %v3637 = vunpack.c.l.b16 %v2698
    %v3638 = vunpack.c.l.b16 %v2699
    %v3639 = vunpack.c.h.b16 %v2699
    %v3640 = vunpack.c.l.b16 %v2700
    %v3641 = vunpack.c.l.b16 %v2701
    %v3642 = vunpack.c.h.b16 %v2701
    %v3643 = vunpack.c.l.b16 %v2702
    %v3644 = vunpack.c.l.b16 %v2703
    %v3645 = vunpack.c.h.b16 %v2703
    %v3646 = vunpack.c.l.b16 %v2704
    %v3647 = vunpack.c.l.b16 %v2705
    %v3648 = vunpack.c.h.b16 %v2705
    %v3649 = vunpack.c.l.b16 %v2706
    %v3650 = vunpack.c.l.b16 %v2707
    %v3651 = vunpack.c.h.b16 %v2707
    %v3652 = vunpack.c.l.b16 %v2708
    %v3653 = vunpack.c.l.b16 %v2709
    %v3654 = vunpack.c.h.b16 %v2709
    %v3655 = vunpack.c.l.b16 %v2710
    %v3656 = vunpack.c.l.b16 %v2711
    %v3657 = vunpack.c.h.b16 %v2711
    %v3658 = vunpack.c.l.b16 %v2712
    %v3659 = vunpack.c.l.b16 %v2713
    %v3660 = vunpack.c.h.b16 %v2713
    %v3661 = vunpack.c.l.b16 %v2714
    %v3662 = vunpack.c.l.b16 %v2715
    %v3663 = vunpack.c.h.b16 %v2715
    %v3664 = vunpack.c.l.b16 %v2716
    %v3665 = vunpack.c.l.b16 %v2717
    %v3666 = vunpack.c.h.b16 %v2717
    %v3667 = vunpack.c.l.b16 %v2718
    %v3668 = vunpack.c.l.b16 %v2719
    %v3669 = vunpack.c.h.b16 %v2719
    %v3670 = vunpack.c.l.b16 %v2720
    %v3671 = vunpack.c.l.b16 %v2721
    %v3672 = vunpack.c.h.b16 %v2721
    %v3673 = vunpack.c.l.b16 %v2722
    %v3674 = vunpack.c.l.b16 %v2723
    %v3675 = vunpack.c.h.b16 %v2723
    %v3676 = vunpack.c.l.b16 %v2724
    %v3677 = vunpack.c.l.b16 %v2725
    %v3678 = vunpack.c.h.b16 %v2725
    %v3679 = vunpack.c.l.b16 %v2726
    %v3680 = vunpack.c.l.b16 %v2727
    %v3681 = vunpack.c.h.b16 %v2727
    %v3682 = vunpack.c.l.b16 %v2728
    %v3683 = vunpack.c.l.b16 %v2729
    %v3684 = vunpack.c.h.b16 %v2729
    %v3685 = vunpack.c.l.b16 %v2730
    %v3686 = vunpack.c.l.b16 %v2731
    %v3687 = vunpack.c.h.b16 %v2731
    %v3688 = vunpack.c.l.b16 %v2732
    %v3689 = vunpack.c.l.b16 %v2733
    %v3690 = vunpack.c.h.b16 %v2733
    %v3691 = vunpack.c.l.b16 %v2734
    %v3692 = vunpack.c.l.b16 %v2735
    %v3693 = vunpack.c.h.b16 %v2735
    %v3694 = vunpack.c.l.b16 %v2736
    %v3695 = vunpack.c.l.b16 %v2737
    %v3696 = vunpack.c.h.b16 %v2737
    %v3697 = vunpack.c.l.b16 %v2738
    %v3698 = vunpack.c.l.b16 %v2739
    %v3699 = vunpack.c.h.b16 %v2739
    %v3700 = vunpack.c.l.b16 %v2740
    %v3701 = vpack.c.b16 %v3128, %v3125
    %v3702 = vpack.c.b16 %v3129, %v3126
    %v3703 = vpack.c.b16 %v3130, %v3127
    %v3704 = vpack.c.b16 %v3134, %v3131
    %v3705 = vpack.c.b16 %v3135, %v3132
    %v3706 = vpack.c.b16 %v3136, %v3133
    %v3707 = vpack.c.b16 %v3140, %v3137
    %v3708 = vpack.c.b16 %v3141, %v3138
    %v3709 = vpack.c.b16 %v3142, %v3139
    %v3710 = vpack.c.b16 %v3146, %v3143
    %v3711 = vpack.c.b16 %v3147, %v3144
    %v3712 = vpack.c.b16 %v3148, %v3145
    %v3713 = vpack.c.b16 %v3152, %v3149
    %v3714 = vpack.c.b16 %v3153, %v3150
    %v3715 = vpack.c.b16 %v3154, %v3151
    %v3716 = vpack.c.b16 %v3158, %v3155
    %v3717 = vpack.c.b16 %v3159, %v3156
    %v3718 = vpack.c.b16 %v3160, %v3157
    %v3719 = vpack.c.b16 %v3164, %v3161
    %v3720 = vpack.c.b16 %v3165, %v3162
    %v3721 = vpack.c.b16 %v3166, %v3163
    %v3722 = vpack.c.b16 %v3170, %v3167
    %v3723 = vpack.c.b16 %v3171, %v3168
    %v3724 = vpack.c.b16 %v3172, %v3169
    %v3725 = vpack.c.b16 %v3176, %v3173
    %v3726 = vpack.c.b16 %v3177, %v3174
    %v3727 = vpack.c.b16 %v3178, %v3175
    %v3728 = vpack.c.b16 %v3182, %v3179
    %v3729 = vpack.c.b16 %v3183, %v3180
    %v3730 = vpack.c.b16 %v3184, %v3181
    %v3731 = vpack.c.b16 %v3188, %v3185
    %v3732 = vpack.c.b16 %v3189, %v3186
    %v3733 = vpack.c.b16 %v3190, %v3187
    %v3734 = vpack.c.b16 %v3194, %v3191
    %v3735 = vpack.c.b16 %v3195, %v3192
    %v3736 = vpack.c.b16 %v3196, %v3193
    %v3737 = vpack.c.b16 %v3200, %v3197
    %v3738 = vpack.c.b16 %v3201, %v3198
    %v3739 = vpack.c.b16 %v3202, %v3199
    %v3740 = vpack.c.b16 %v3206, %v3203
    %v3741 = vpack.c.b16 %v3207, %v3204
    %v3742 = vpack.c.b16 %v3208, %v3205
    %v3743 = vpack.c.b16 %v3212, %v3209
    %v3744 = vpack.c.b16 %v3213, %v3210
    %v3745 = vpack.c.b16 %v3214, %v3211
    %v3746 = vpack.c.b16 %v3218, %v3215
    %v3747 = vpack.c.b16 %v3219, %v3216
    %v3748 = vpack.c.b16 %v3220, %v3217
    %v3749 = vpack.c.b16 %v3224, %v3221
    %v3750 = vpack.c.b16 %v3225, %v3222
    %v3751 = vpack.c.b16 %v3226, %v3223
    %v3752 = vpack.c.b16 %v3230, %v3227
    %v3753 = vpack.c.b16 %v3231, %v3228
    %v3754 = vpack.c.b16 %v3232, %v3229
    %v3755 = vpack.c.b16 %v3236, %v3233
    %v3756 = vpack.c.b16 %v3237, %v3234
    %v3757 = vpack.c.b16 %v3238, %v3235
    %v3758 = vpack.c.b16 %v3242, %v3239
    %v3759 = vpack.c.b16 %v3243, %v3240
    %v3760 = vpack.c.b16 %v3244, %v3241
    %v3761 = vpack.c.b16 %v3248, %v3245
    %v3762 = vpack.c.b16 %v3249, %v3246
    %v3763 = vpack.c.b16 %v3250, %v3247
    %v3764 = vpack.c.b16 %v3254, %v3251
    %v3765 = vpack.c.b16 %v3255, %v3252
    %v3766 = vpack.c.b16 %v3256, %v3253
    %v3767 = vpack.c.b16 %v3260, %v3257
    %v3768 = vpack.c.b16 %v3261, %v3258
    %v3769 = vpack.c.b16 %v3262, %v3259
    %v3770 = vpack.c.b16 %v3266, %v3263
    %v3771 = vpack.c.b16 %v3267, %v3264
    %v3772 = vpack.c.b16 %v3268, %v3265
    %v3773 = vpack.c.b16 %v3272, %v3269
    %v3774 = vpack.c.b16 %v3273, %v3270
    %v3775 = vpack.c.b16 %v3274, %v3271
    %v3776 = vpack.c.b16 %v3278, %v3275
    %v3777 = vpack.c.b16 %v3279, %v3276
    %v3778 = vpack.c.b16 %v3280, %v3277
    %v3779 = vpack.c.b16 %v3284, %v3281
    %v3780 = vpack.c.b16 %v3285, %v3282
    %v3781 = vpack.c.b16 %v3286, %v3283
    %v3782 = vpack.c.b16 %v3290, %v3287
    %v3783 = vpack.c.b16 %v3291, %v3288
    %v3784 = vpack.c.b16 %v3292, %v3289
    %v3785 = vpack.c.b16 %v3296, %v3293
    %v3786 = vpack.c.b16 %v3297, %v3294
    %v3787 = vpack.c.b16 %v3298, %v3295
    %v3788 = vpack.c.b16 %v3302, %v3299
    %v3789 = vpack.c.b16 %v3303, %v3300
    %v3790 = vpack.c.b16 %v3304, %v3301
    %v3791 = vpack.c.b16 %v3308, %v3305
    %v3792 = vpack.c.b16 %v3309, %v3306
    %v3793 = vpack.c.b16 %v3310, %v3307
    %v3794 = vpack.c.b16 %v3314, %v3311
    %v3795 = vpack.c.b16 %v3315, %v3312
    %v3796 = vpack.c.b16 %v3316, %v3313
    %v3797 = vpack.c.b16 %v3320, %v3317
    %v3798 = vpack.c.b16 %v3321, %v3318
    %v3799 = vpack.c.b16 %v3322, %v3319
    %v3800 = vpack.c.b16 %v3326, %v3323
    %v3801 = vpack.c.b16 %v3327, %v3324
    %v3802 = vpack.c.b16 %v3328, %v3325
    %v3803 = vpack.c.b16 %v3332, %v3329
    %v3804 = vpack.c.b16 %v3333, %v3330
    %v3805 = vpack.c.b16 %v3334, %v3331
    %v3806 = vpack.c.b16 %v3338, %v3335
    %v3807 = vpack.c.b16 %v3339, %v3336
    %v3808 = vpack.c.b16 %v3340, %v3337
    %v3809 = vpack.c.b16 %v3344, %v3341
    %v3810 = vpack.c.b16 %v3345, %v3342
    %v3811 = vpack.c.b16 %v3346, %v3343
    %v3812 = vpack.c.b16 %v3350, %v3347
    %v3813 = vpack.c.b16 %v3351, %v3348
    %v3814 = vpack.c.b16 %v3352, %v3349
    %v3815 = vpack.c.b16 %v3356, %v3353
    %v3816 = vpack.c.b16 %v3357, %v3354
    %v3817 = vpack.c.b16 %v3358, %v3355
    %v3818 = vpack.c.b16 %v3362, %v3359
    %v3819 = vpack.c.b16 %v3363, %v3360
    %v3820 = vpack.c.b16 %v3364, %v3361
    %v3821 = vpack.c.b16 %v3368, %v3365
    %v3822 = vpack.c.b16 %v3369, %v3366
    %v3823 = vpack.c.b16 %v3370, %v3367
    %v3824 = vpack.c.b16 %v3374, %v3371
    %v3825 = vpack.c.b16 %v3375, %v3372
    %v3826 = vpack.c.b16 %v3376, %v3373
    %v3827 = vpack.c.b16 %v3380, %v3377
    %v3828 = vpack.c.b16 %v3381, %v3378
    %v3829 = vpack.c.b16 %v3382, %v3379
    %v3830 = vpack.c.b16 %v3386, %v3383
    %v3831 = vpack.c.b16 %v3387, %v3384
    %v3832 = vpack.c.b16 %v3388, %v3385
    %v3833 = vpack.c.b16 %v3392, %v3389
    %v3834 = vpack.c.b16 %v3393, %v3390
    %v3835 = vpack.c.b16 %v3394, %v3391
    %v3836 = vpack.c.b16 %v3398, %v3395
    %v3837 = vpack.c.b16 %v3399, %v3396
    %v3838 = vpack.c.b16 %v3400, %v3397
    %v3839 = vpack.c.b16 %v3404, %v3401
    %v3840 = vpack.c.b16 %v3405, %v3402
    %v3841 = vpack.c.b16 %v3406, %v3403
    %v3842 = vpack.c.b16 %v3410, %v3407
    %v3843 = vpack.c.b16 %v3411, %v3408
    %v3844 = vpack.c.b16 %v3412, %v3409
    %v3845 = vpack.c.b16 %v3416, %v3413
    %v3846 = vpack.c.b16 %v3417, %v3414
    %v3847 = vpack.c.b16 %v3418, %v3415
    %v3848 = vpack.c.b16 %v3422, %v3419
    %v3849 = vpack.c.b16 %v3423, %v3420
    %v3850 = vpack.c.b16 %v3424, %v3421
    %v3851 = vpack.c.b16 %v3428, %v3425
    %v3852 = vpack.c.b16 %v3429, %v3426
    %v3853 = vpack.c.b16 %v3430, %v3427
    %v3854 = vpack.c.b16 %v3434, %v3431
    %v3855 = vpack.c.b16 %v3435, %v3432
    %v3856 = vpack.c.b16 %v3436, %v3433
    %v3857 = vpack.c.b16 %v3440, %v3437
    %v3858 = vpack.c.b16 %v3441, %v3438
    %v3859 = vpack.c.b16 %v3442, %v3439
    %v3860 = vpack.c.b16 %v3446, %v3443
    %v3861 = vpack.c.b16 %v3447, %v3444
    %v3862 = vpack.c.b16 %v3448, %v3445
    %v3863 = vpack.c.b16 %v3452, %v3449
    %v3864 = vpack.c.b16 %v3453, %v3450
    %v3865 = vpack.c.b16 %v3454, %v3451
    %v3866 = vpack.c.b16 %v3458, %v3455
    %v3867 = vpack.c.b16 %v3459, %v3456
    %v3868 = vpack.c.b16 %v3460, %v3457
    %v3869 = vpack.c.b16 %v3464, %v3461
    %v3870 = vpack.c.b16 %v3465, %v3462
    %v3871 = vpack.c.b16 %v3466, %v3463
    %v3872 = vpack.c.b16 %v3470, %v3467
    %v3873 = vpack.c.b16 %v3471, %v3468
    %v3874 = vpack.c.b16 %v3472, %v3469
    %v3875 = vpack.c.b16 %v3476, %v3473
    %v3876 = vpack.c.b16 %v3477, %v3474
    %v3877 = vpack.c.b16 %v3478, %v3475
    %v3878 = vpack.c.b16 %v3482, %v3479
    %v3879 = vpack.c.b16 %v3483, %v3480
    %v3880 = vpack.c.b16 %v3484, %v3481
    %v3881 = vpack.c.b16 %v3488, %v3485
    %v3882 = vpack.c.b16 %v3489, %v3486
    %v3883 = vpack.c.b16 %v3490, %v3487
    %v3884 = vpack.c.b16 %v3494, %v3491
    %v3885 = vpack.c.b16 %v3495, %v3492
    %v3886 = vpack.c.b16 %v3496, %v3493
    %v3887 = vpack.c.b16 %v3500, %v3497
    %v3888 = vpack.c.b16 %v3501, %v3498
    %v3889 = vpack.c.b16 %v3502, %v3499
    %v3890 = vpack.c.b16 %v3506, %v3503
    %v3891 = vpack.c.b16 %v3507, %v3504
    %v3892 = vpack.c.b16 %v3508, %v3505
    %v3893 = vpack.c.b16 %v3512, %v3509
    %v3894 = vpack.c.b16 %v3513, %v3510
    %v3895 = vpack.c.b16 %v3514, %v3511
    %v3896 = vpack.c.b16 %v3518, %v3515
    %v3897 = vpack.c.b16 %v3519, %v3516
    %v3898 = vpack.c.b16 %v3520, %v3517
    %v3899 = vpack.c.b16 %v3524, %v3521
    %v3900 = vpack.c.b16 %v3525, %v3522
    %v3901 = vpack.c.b16 %v3526, %v3523
    %v3902 = vpack.c.b16 %v3530, %v3527
    %v3903 = vpack.c.b16 %v3531, %v3528
    %v3904 = vpack.c.b16 %v3532, %v3529
    %v3905 = vpack.c.b16 %v3536, %v3533
    %v3906 = vpack.c.b16 %v3537, %v3534
    %v3907 = vpack.c.b16 %v3538, %v3535
    %v3908 = vpack.c.b16 %v3542, %v3539
    %v3909 = vpack.c.b16 %v3543, %v3540
    %v3910 = vpack.c.b16 %v3544, %v3541
    %v3911 = vpack.c.b16 %v3548, %v3545
    %v3912 = vpack.c.b16 %v3549, %v3546
    %v3913 = vpack.c.b16 %v3550, %v3547
    %v3914 = vpack.c.b16 %v3554, %v3551
    %v3915 = vpack.c.b16 %v3555, %v3552
    %v3916 = vpack.c.b16 %v3556, %v3553
    %v3917 = vpack.c.b16 %v3560, %v3557
    %v3918 = vpack.c.b16 %v3561, %v3558
    %v3919 = vpack.c.b16 %v3562, %v3559
    %v3920 = vpack.c.b16 %v3566, %v3563
    %v3921 = vpack.c.b16 %v3567, %v3564
    %v3922 = vpack.c.b16 %v3568, %v3565
    %v3923 = vpack.c.b16 %v3572, %v3569
    %v3924 = vpack.c.b16 %v3573, %v3570
    %v3925 = vpack.c.b16 %v3574, %v3571
    %v3926 = vpack.c.b16 %v3578, %v3575
    %v3927 = vpack.c.b16 %v3579, %v3576
    %v3928 = vpack.c.b16 %v3580, %v3577
    %v3929 = vpack.c.b16 %v3584, %v3581
    %v3930 = vpack.c.b16 %v3585, %v3582
    %v3931 = vpack.c.b16 %v3586, %v3583
    %v3932 = vpack.c.b16 %v3590, %v3587
    %v3933 = vpack.c.b16 %v3591, %v3588
    %v3934 = vpack.c.b16 %v3592, %v3589
    %v3935 = vpack.c.b16 %v3596, %v3593
    %v3936 = vpack.c.b16 %v3597, %v3594
    %v3937 = vpack.c.b16 %v3598, %v3595
    %v3938 = vpack.c.b16 %v3602, %v3599
    %v3939 = vpack.c.b16 %v3603, %v3600
    %v3940 = vpack.c.b16 %v3604, %v3601
    %v3941 = vpack.c.b16 %v3608, %v3605
    %v3942 = vpack.c.b16 %v3609, %v3606
    %v3943 = vpack.c.b16 %v3610, %v3607
    %v3944 = vpack.c.b16 %v3614, %v3611
    %v3945 = vpack.c.b16 %v3615, %v3612
    %v3946 = vpack.c.b16 %v3616, %v3613
    %v3947 = vpack.c.b16 %v3620, %v3617
    %v3948 = vpack.c.b16 %v3621, %v3618
    %v3949 = vpack.c.b16 %v3622, %v3619
    %v3950 = vpack.c.b16 %v3626, %v3623
    %v3951 = vpack.c.b16 %v3627, %v3624
    %v3952 = vpack.c.b16 %v3628, %v3625
    %v3953 = vpack.c.b16 %v3632, %v3629
    %v3954 = vpack.c.b16 %v3633, %v3630
    %v3955 = vpack.c.b16 %v3634, %v3631
    %v3956 = vpack.c.b16 %v3638, %v3635
    %v3957 = vpack.c.b16 %v3639, %v3636
    %v3958 = vpack.c.b16 %v3640, %v3637
    %v3959 = vpack.c.b16 %v3644, %v3641
    %v3960 = vpack.c.b16 %v3645, %v3642
    %v3961 = vpack.c.b16 %v3646, %v3643
    %v3962 = vpack.c.b16 %v3650, %v3647
    %v3963 = vpack.c.b16 %v3651, %v3648
    %v3964 = vpack.c.b16 %v3652, %v3649
    %v3965 = vpack.c.b16 %v3656, %v3653
    %v3966 = vpack.c.b16 %v3657, %v3654
    %v3967 = vpack.c.b16 %v3658, %v3655
    %v3968 = vpack.c.b16 %v3662, %v3659
    %v3969 = vpack.c.b16 %v3663, %v3660
    %v3970 = vpack.c.b16 %v3664, %v3661
    %v3971 = vpack.c.b16 %v3668, %v3665
    %v3972 = vpack.c.b16 %v3669, %v3666
    %v3973 = vpack.c.b16 %v3670, %v3667
    %v3974 = vpack.c.b16 %v3674, %v3671
    %v3975 = vpack.c.b16 %v3675, %v3672
    %v3976 = vpack.c.b16 %v3676, %v3673
    %v3977 = vpack.c.b16 %v3680, %v3677
    %v3978 = vpack.c.b16 %v3681, %v3678
    %v3979 = vpack.c.b16 %v3682, %v3679
    %v3980 = vpack.c.b16 %v3686, %v3683
    %v3981 = vpack.c.b16 %v3687, %v3684
    %v3982 = vpack.c.b16 %v3688, %v3685
    %v3983 = vpack.c.b16 %v3692, %v3689
    %v3984 = vpack.c.b16 %v3693, %v3690
    %v3985 = vpack.c.b16 %v3694, %v3691
    %v3986 = vpack.c.b16 %v3698, %v3695
    %v3987 = vpack.c.b16 %v3699, %v3696
    %v3988 = vpack.c.b16 %v3700, %v3697
    %4277 = vmatprep.subr.bf16.mxu0 %v3702
    %4278 = vmatpush1.bf16.msra.mxu0 %v3701
    %4279 = vmatprep.subr.bf16.mxu0 %v3705
    %4280 = vmatpush1.bf16.msra.mxu0 %v3704
    %4281 = vmatprep.subr.bf16.mxu0 %v3708
    %4282 = vmatpush1.bf16.msra.mxu0 %v3707
    %4283 = vmatprep.subr.bf16.mxu0 %v3711
    %4284 = vmatpush1.bf16.msra.mxu0 %v3710
    %4285 = vmatprep.subr.bf16.mxu0 %v3714
    %4286 = vmatpush1.bf16.msra.mxu0 %v3713
    %4287 = vmatprep.subr.bf16.mxu0 %v3717
    %4288 = vmatpush1.bf16.msra.mxu0 %v3716
    %4289 = vmatprep.subr.bf16.mxu0 %v3720
    %4290 = vmatpush1.bf16.msra.mxu0 %v3719
    %4291 = vmatprep.subr.bf16.mxu0 %v3723
    %4292 = vmatpush1.bf16.msra.mxu0 %v3722
    %4293 = vmatprep.subr.bf16.mxu0 %v3726
    %4294 = vmatpush1.bf16.msra.mxu0 %v3725
    %4295 = vmatprep.subr.bf16.mxu0 %v3729
    %4296 = vmatpush1.bf16.msra.mxu0 %v3728
    %4297 = vmatprep.subr.bf16.mxu0 %v3732
    %4298 = vmatpush1.bf16.msra.mxu0 %v3731
    %4299 = vmatprep.subr.bf16.mxu0 %v3735
    %4300 = vmatpush1.bf16.msra.mxu0 %v3734
    %4301 = vmatprep.subr.bf16.mxu0 %v3738
    %4302 = vmatpush1.bf16.msra.mxu0 %v3737
    %4303 = vmatprep.subr.bf16.mxu0 %v3741
    %4304 = vmatpush1.bf16.msra.mxu0 %v3740
    %4305 = vmatprep.subr.bf16.mxu0 %v3744
    %4306 = vmatpush1.bf16.msra.mxu0 %v3743
    %4307 = vmatprep.subr.bf16.mxu0 %v3747
    %4308 = vmatpush1.bf16.msra.mxu0 %v3746
    %4309 = vmatprep.mubr.bf16.mxu0 %v2346
    %4310 = vmatmul.mubr.bf16.gmra.mrb[0].mxu0 %v2345
    %v4311 = vpop.f32.mrb[0].mxu0
    %v4312 = vadd.f32 0.0, %v4311
    %v4313 = vpop.f32.mrb[0].mxu0
    %v4314 = vadd.f32 0.0, %v4313
    %v4315 = vpop.f32.mrb[0].mxu0
    %v4316 = vadd.f32 0.0, %v4315
    %v4317 = vpop.f32.mrb[0].mxu0
    %v4318 = vadd.f32 0.0, %v4317
    %4319 = vdwg.mxu0
    %4320 = vmatprep.subr.bf16.mxu0 %v3750
    %4321 = vmatpush1.bf16.msra.mxu0 %v3749
    %4322 = vmatprep.subr.bf16.mxu0 %v3753
    %4323 = vmatpush1.bf16.msra.mxu0 %v3752
    %4324 = vmatprep.subr.bf16.mxu0 %v3756
    %4325 = vmatpush1.bf16.msra.mxu0 %v3755
    %4326 = vmatprep.subr.bf16.mxu0 %v3759
    %4327 = vmatpush1.bf16.msra.mxu0 %v3758
    %4328 = vmatprep.subr.bf16.mxu0 %v3762
    %4329 = vmatpush1.bf16.msra.mxu0 %v3761
    %4330 = vmatprep.subr.bf16.mxu0 %v3765
    %4331 = vmatpush1.bf16.msra.mxu0 %v3764
    %4332 = vmatprep.subr.bf16.mxu0 %v3768
    %4333 = vmatpush1.bf16.msra.mxu0 %v3767
    %4334 = vmatprep.subr.bf16.mxu0 %v3771
    %4335 = vmatpush1.bf16.msra.mxu0 %v3770
    %4336 = vmatprep.subr.bf16.mxu0 %v3774
    %4337 = vmatpush1.bf16.msra.mxu0 %v3773
    %4338 = vmatprep.subr.bf16.mxu0 %v3777
    %4339 = vmatpush1.bf16.msra.mxu0 %v3776
    %4340 = vmatprep.subr.bf16.mxu0 %v3780
    %4341 = vmatpush1.bf16.msra.mxu0 %v3779
    %4342 = vmatprep.subr.bf16.mxu0 %v3783
    %4343 = vmatpush1.bf16.msra.mxu0 %v3782
    %4344 = vmatprep.subr.bf16.mxu0 %v3786
    %4345 = vmatpush1.bf16.msra.mxu0 %v3785
    %4346 = vmatprep.subr.bf16.mxu0 %v3789
    %4347 = vmatpush1.bf16.msra.mxu0 %v3788
    %4348 = vmatprep.subr.bf16.mxu0 %v3792
    %4349 = vmatpush1.bf16.msra.mxu0 %v3791
    %4350 = vmatprep.subr.bf16.mxu0 %v3795
    %4351 = vmatpush1.bf16.msra.mxu0 %v3794
    %4352 = vmatprep.mubr.bf16.mxu0 %v2348
    %4353 = vmatmul.mubr.bf16.gmra.mrb[0].mxu0 %v2347
    %v4354 = vpop.f32.mrb[0].mxu0
    %v4355 = vadd.f32 %v4312, %v4354
    %v4356 = vpop.f32.mrb[0].mxu0
    %v4357 = vadd.f32 %v4314, %v4356
    %v4358 = vpop.f32.mrb[0].mxu0
    %v4359 = vadd.f32 %v4316, %v4358
    %v4360 = vpop.f32.mrb[0].mxu0
    %v4361 = vadd.f32 %v4318, %v4360
    %4362 = vdwg.mxu0
    %4363 = vmatprep.subr.bf16.mxu0 %v3798
    %4364 = vmatpush1.bf16.msra.mxu0 %v3797
    %4365 = vmatprep.subr.bf16.mxu0 %v3801
    %4366 = vmatpush1.bf16.msra.mxu0 %v3800
    %4367 = vmatprep.subr.bf16.mxu0 %v3804
    %4368 = vmatpush1.bf16.msra.mxu0 %v3803
    %4369 = vmatprep.subr.bf16.mxu0 %v3807
    %4370 = vmatpush1.bf16.msra.mxu0 %v3806
    %4371 = vmatprep.subr.bf16.mxu0 %v3810
    %4372 = vmatpush1.bf16.msra.mxu0 %v3809
    %4373 = vmatprep.subr.bf16.mxu0 %v3813
    %4374 = vmatpush1.bf16.msra.mxu0 %v3812
    %4375 = vmatprep.subr.bf16.mxu0 %v3816
    %4376 = vmatpush1.bf16.msra.mxu0 %v3815
    %4377 = vmatprep.subr.bf16.mxu0 %v3819
    %4378 = vmatpush1.bf16.msra.mxu0 %v3818
    %4379 = vmatprep.subr.bf16.mxu0 %v3822
    %4380 = vmatpush1.bf16.msra.mxu0 %v3821
    %4381 = vmatprep.subr.bf16.mxu0 %v3825
    %4382 = vmatpush1.bf16.msra.mxu0 %v3824
    %4383 = vmatprep.subr.bf16.mxu0 %v3828
    %4384 = vmatpush1.bf16.msra.mxu0 %v3827
    %4385 = vmatprep.subr.bf16.mxu0 %v3831
    %4386 = vmatpush1.bf16.msra.mxu0 %v3830
    %4387 = vmatprep.subr.bf16.mxu0 %v3834
    %4388 = vmatpush1.bf16.msra.mxu0 %v3833
    %4389 = vmatprep.subr.bf16.mxu0 %v3837
    %4390 = vmatpush1.bf16.msra.mxu0 %v3836
    %4391 = vmatprep.subr.bf16.mxu0 %v3840
    %4392 = vmatpush1.bf16.msra.mxu0 %v3839
    %4393 = vmatprep.subr.bf16.mxu0 %v3843
    %4394 = vmatpush1.bf16.msra.mxu0 %v3842
    %4395 = vmatprep.mubr.bf16.mxu0 %v2350
    %4396 = vmatmul.mubr.bf16.gmra.mrb[0].mxu0 %v2349
    %v4397 = vpop.f32.mrb[0].mxu0
    %v4398 = vadd.f32 %v4355, %v4397
    %v4399 = vpop.f32.mrb[0].mxu0
    %v4400 = vadd.f32 %v4357, %v4399
    %v4401 = vpop.f32.mrb[0].mxu0
    %v4402 = vadd.f32 %v4359, %v4401
    %v4403 = vpop.f32.mrb[0].mxu0
    %v4404 = vadd.f32 %v4361, %v4403
    %4405 = vdwg.mxu0
    %4406 = vmatprep.subr.bf16.mxu0 %v3846
    %4407 = vmatpush1.bf16.msra.mxu0 %v3845
    %4408 = vmatprep.subr.bf16.mxu0 %v3849
    %4409 = vmatpush1.bf16.msra.mxu0 %v3848
    %4410 = vmatprep.subr.bf16.mxu0 %v3852
    %4411 = vmatpush1.bf16.msra.mxu0 %v3851
    %4412 = vmatprep.subr.bf16.mxu0 %v3855
    %4413 = vmatpush1.bf16.msra.mxu0 %v3854
    %4414 = vmatprep.subr.bf16.mxu0 %v3858
    %4415 = vmatpush1.bf16.msra.mxu0 %v3857
    %4416 = vmatprep.subr.bf16.mxu0 %v3861
    %4417 = vmatpush1.bf16.msra.mxu0 %v3860
    %4418 = vmatprep.subr.bf16.mxu0 %v3864
    %4419 = vmatpush1.bf16.msra.mxu0 %v3863
    %4420 = vmatprep.subr.bf16.mxu0 %v3867
    %4421 = vmatpush1.bf16.msra.mxu0 %v3866
    %4422 = vmatprep.subr.bf16.mxu0 %v3870
    %4423 = vmatpush1.bf16.msra.mxu0 %v3869
    %4424 = vmatprep.subr.bf16.mxu0 %v3873
    %4425 = vmatpush1.bf16.msra.mxu0 %v3872
    %4426 = vmatprep.subr.bf16.mxu0 %v3876
    %4427 = vmatpush1.bf16.msra.mxu0 %v3875
    %4428 = vmatprep.subr.bf16.mxu0 %v3879
    %4429 = vmatpush1.bf16.msra.mxu0 %v3878
    %4430 = vmatprep.subr.bf16.mxu0 %v3882
    %4431 = vmatpush1.bf16.msra.mxu0 %v3881
    %4432 = vmatprep.subr.bf16.mxu0 %v3885
    %4433 = vmatpush1.bf16.msra.mxu0 %v3884
    %4434 = vmatprep.subr.bf16.mxu0 %v3888
    %4435 = vmatpush1.bf16.msra.mxu0 %v3887
    %4436 = vmatprep.subr.bf16.mxu0 %v3891
    %4437 = vmatpush1.bf16.msra.mxu0 %v3890
    %4438 = vmatprep.mubr.bf16.mxu0 %v2352
    %4439 = vmatmul.mubr.bf16.gmra.mrb[0].mxu0 %v2351
    %v4440 = vpop.f32.mrb[0].mxu0
    %v4441 = vadd.f32 %v4398, %v4440
    %v4442 = vpop.f32.mrb[0].mxu0
    %v4443 = vadd.f32 %v4400, %v4442
    %v4444 = vpop.f32.mrb[0].mxu0
    %v4445 = vadd.f32 %v4402, %v4444
    %v4446 = vpop.f32.mrb[0].mxu0
    %v4447 = vadd.f32 %v4404, %v4446
    %4448 = vdwg.mxu0
    %4449 = vmatprep.subr.bf16.mxu0 %v3894
    %4450 = vmatpush1.bf16.msra.mxu0 %v3893
    %4451 = vmatprep.subr.bf16.mxu0 %v3897
    %4452 = vmatpush1.bf16.msra.mxu0 %v3896
    %4453 = vmatprep.subr.bf16.mxu0 %v3900
    %4454 = vmatpush1.bf16.msra.mxu0 %v3899
    %4455 = vmatprep.subr.bf16.mxu0 %v3903
    %4456 = vmatpush1.bf16.msra.mxu0 %v3902
    %4457 = vmatprep.subr.bf16.mxu0 %v3906
    %4458 = vmatpush1.bf16.msra.mxu0 %v3905
    %4459 = vmatprep.subr.bf16.mxu0 %v3909
    %4460 = vmatpush1.bf16.msra.mxu0 %v3908
    %4461 = vmatprep.subr.bf16.mxu0 %v3912
    %4462 = vmatpush1.bf16.msra.mxu0 %v3911
    %4463 = vmatprep.subr.bf16.mxu0 %v3915
    %4464 = vmatpush1.bf16.msra.mxu0 %v3914
    %4465 = vmatprep.subr.bf16.mxu0 %v3918
    %4466 = vmatpush1.bf16.msra.mxu0 %v3917
    %4467 = vmatprep.subr.bf16.mxu0 %v3921
    %4468 = vmatpush1.bf16.msra.mxu0 %v3920
    %4469 = vmatprep.subr.bf16.mxu0 %v3924
    %4470 = vmatpush1.bf16.msra.mxu0 %v3923
    %4471 = vmatprep.subr.bf16.mxu0 %v3927
    %4472 = vmatpush1.bf16.msra.mxu0 %v3926
    %4473 = vmatprep.subr.bf16.mxu0 %v3930
    %4474 = vmatpush1.bf16.msra.mxu0 %v3929
    %4475 = vmatprep.subr.bf16.mxu0 %v3933
    %4476 = vmatpush1.bf16.msra.mxu0 %v3932
    %4477 = vmatprep.subr.bf16.mxu0 %v3936
    %4478 = vmatpush1.bf16.msra.mxu0 %v3935
    %4479 = vmatprep.subr.bf16.mxu0 %v3939
    %4480 = vmatpush1.bf16.msra.mxu0 %v3938
    %4481 = vmatprep.mubr.bf16.mxu0 %v2354
    %4482 = vmatmul.mubr.bf16.gmra.mrb[0].mxu0 %v2353
    %v4483 = vpop.f32.mrb[0].mxu0
    %v4484 = vadd.f32 %v4441, %v4483
    %v4485 = vpop.f32.mrb[0].mxu0
    %v4486 = vadd.f32 %v4443, %v4485
    %v4487 = vpop.f32.mrb[0].mxu0
    %v4488 = vadd.f32 %v4445, %v4487
    %v4489 = vpop.f32.mrb[0].mxu0
    %v4490 = vadd.f32 %v4447, %v4489
    %4491 = vdwg.mxu0
    %4492 = vmatprep.subr.bf16.mxu0 %v3942
    %4493 = vmatpush1.bf16.msra.mxu0 %v3941
    %4494 = vmatprep.subr.bf16.mxu0 %v3945
    %4495 = vmatpush1.bf16.msra.mxu0 %v3944
    %4496 = vmatprep.subr.bf16.mxu0 %v3948
    %4497 = vmatpush1.bf16.msra.mxu0 %v3947
    %4498 = vmatprep.subr.bf16.mxu0 %v3951
    %4499 = vmatpush1.bf16.msra.mxu0 %v3950
    %4500 = vmatprep.subr.bf16.mxu0 %v3954
    %4501 = vmatpush1.bf16.msra.mxu0 %v3953
    %4502 = vmatprep.subr.bf16.mxu0 %v3957
    %4503 = vmatpush1.bf16.msra.mxu0 %v3956
    %4504 = vmatprep.subr.bf16.mxu0 %v3960
    %4505 = vmatpush1.bf16.msra.mxu0 %v3959
    %4506 = vmatprep.subr.bf16.mxu0 %v3963
    %4507 = vmatpush1.bf16.msra.mxu0 %v3962
    %4508 = vmatprep.subr.bf16.mxu0 %v3966
    %4509 = vmatpush1.bf16.msra.mxu0 %v3965
    %4510 = vmatprep.subr.bf16.mxu0 %v3969
    %4511 = vmatpush1.bf16.msra.mxu0 %v3968
    %4512 = vmatprep.subr.bf16.mxu0 %v3972
    %4513 = vmatpush1.bf16.msra.mxu0 %v3971
    %4514 = vmatprep.subr.bf16.mxu0 %v3975
    %4515 = vmatpush1.bf16.msra.mxu0 %v3974
    %4516 = vmatprep.subr.bf16.mxu0 %v3978
    %4517 = vmatpush1.bf16.msra.mxu0 %v3977
    %4518 = vmatprep.subr.bf16.mxu0 %v3981
    %4519 = vmatpush1.bf16.msra.mxu0 %v3980
    %4520 = vmatprep.subr.bf16.mxu0 %v3984
    %4521 = vmatpush1.bf16.msra.mxu0 %v3983
    %4522 = vmatprep.subr.bf16.mxu0 %v3987
    %4523 = vmatpush1.bf16.msra.mxu0 %v3986
    %4524 = vmatprep.mubr.bf16.mxu0 %v2356
    %4525 = vmatmul.mubr.bf16.gmra.mrb[0].mxu0 %v2355
    %v4526 = vpop.f32.mrb[0].mxu0
    %v4527 = vadd.f32 %v4484, %v4526
    %v4528 = vpop.f32.mrb[0].mxu0
    %v4529 = vadd.f32 %v4486, %v4528
    %v4530 = vpop.f32.mrb[0].mxu0
    %v4531 = vadd.f32 %v4488, %v4530
    %v4532 = vpop.f32.mrb[0].mxu0
    %v4533 = vadd.f32 %v4490, %v4532
    %4534 = vdwg.mxu0
    %4535 = vmatprep.subr.bf16.mxu0 0
    %4536 = vmatpush1.bf16.msra.mxu0 %v3703
    %4537 = vmatprep.subr.bf16.mxu0 0
    %4538 = vmatpush1.bf16.msra.mxu0 %v3706
    %4539 = vmatprep.subr.bf16.mxu0 0
    %4540 = vmatpush1.bf16.msra.mxu0 %v3709
    %4541 = vmatprep.subr.bf16.mxu0 0
    %4542 = vmatpush1.bf16.msra.mxu0 %v3712
    %4543 = vmatprep.subr.bf16.mxu0 0
    %4544 = vmatpush1.bf16.msra.mxu0 %v3715
    %4545 = vmatprep.subr.bf16.mxu0 0
    %4546 = vmatpush1.bf16.msra.mxu0 %v3718
    %4547 = vmatprep.subr.bf16.mxu0 0
    %4548 = vmatpush1.bf16.msra.mxu0 %v3721
    %4549 = vmatprep.subr.bf16.mxu0 0
    %4550 = vmatpush1.bf16.msra.mxu0 %v3724
    %4551 = vmatprep.subr.bf16.mxu0 0
    %4552 = vmatpush1.bf16.msra.mxu0 %v3727
    %4553 = vmatprep.subr.bf16.mxu0 0
    %4554 = vmatpush1.bf16.msra.mxu0 %v3730
    %4555 = vmatprep.subr.bf16.mxu0 0
    %4556 = vmatpush1.bf16.msra.mxu0 %v3733
    %4557 = vmatprep.subr.bf16.mxu0 0
    %4558 = vmatpush1.bf16.msra.mxu0 %v3736
    %4559 = vmatprep.subr.bf16.mxu0 0
    %4560 = vmatpush1.bf16.msra.mxu0 %v3739
    %4561 = vmatprep.subr.bf16.mxu0 0
    %4562 = vmatpush1.bf16.msra.mxu0 %v3742
    %4563 = vmatprep.subr.bf16.mxu0 0
    %4564 = vmatpush1.bf16.msra.mxu0 %v3745
    %4565 = vmatprep.subr.bf16.mxu0 0
    %4566 = vmatpush1.bf16.msra.mxu0 %v3748
    %4567 = vmatprep.mubr.bf16.mxu0 %v2346
    %4568 = vmatmul.mubr.bf16.gmra.mrb[0].mxu0 %v2345
    %v4569 = vpop.f32.mrb[0].mxu0
    %v4570 = vadd.f32 0.0, %v4569
    %v4571 = vpop.f32.mrb[0].mxu0
    %v4572 = vpop.f32.mrb[0].mxu0
    %v4573 = vadd.f32 0.0, %v4572
    %v4574 = vpop.f32.mrb[0].mxu0
    %4575 = vdwg.mxu0
    %4576 = vmatprep.subr.bf16.mxu0 0
    %4577 = vmatpush1.bf16.msra.mxu0 %v3751
    %4578 = vmatprep.subr.bf16.mxu0 0
    %4579 = vmatpush1.bf16.msra.mxu0 %v3754
    %4580 = vmatprep.subr.bf16.mxu0 0
    %4581 = vmatpush1.bf16.msra.mxu0 %v3757
    %4582 = vmatprep.subr.bf16.mxu0 0
    %4583 = vmatpush1.bf16.msra.mxu0 %v3760
    %4584 = vmatprep.subr.bf16.mxu0 0
    %4585 = vmatpush1.bf16.msra.mxu0 %v3763
    %4586 = vmatprep.subr.bf16.mxu0 0
    %4587 = vmatpush1.bf16.msra.mxu0 %v3766
    %4588 = vmatprep.subr.bf16.mxu0 0
    %4589 = vmatpush1.bf16.msra.mxu0 %v3769
    %4590 = vmatprep.subr.bf16.mxu0 0
    %4591 = vmatpush1.bf16.msra.mxu0 %v3772
    %4592 = vmatprep.subr.bf16.mxu0 0
    %4593 = vmatpush1.bf16.msra.mxu0 %v3775
    %4594 = vmatprep.subr.bf16.mxu0 0
    %4595 = vmatpush1.bf16.msra.mxu0 %v3778
    %4596 = vmatprep.subr.bf16.mxu0 0
    %4597 = vmatpush1.bf16.msra.mxu0 %v3781
    %4598 = vmatprep.subr.bf16.mxu0 0
    %4599 = vmatpush1.bf16.msra.mxu0 %v3784
    %4600 = vmatprep.subr.bf16.mxu0 0
    %4601 = vmatpush1.bf16.msra.mxu0 %v3787
    %4602 = vmatprep.subr.bf16.mxu0 0
    %4603 = vmatpush1.bf16.msra.mxu0 %v3790
    %4604 = vmatprep.subr.bf16.mxu0 0
    %4605 = vmatpush1.bf16.msra.mxu0 %v3793
    %4606 = vmatprep.subr.bf16.mxu0 0
    %4607 = vmatpush1.bf16.msra.mxu0 %v3796
    %4608 = vmatprep.mubr.bf16.mxu0 %v2348
    %4609 = vmatmul.mubr.bf16.gmra.mrb[0].mxu0 %v2347
    %v4610 = vpop.f32.mrb[0].mxu0
    %v4611 = vadd.f32 %v4570, %v4610
    %v4612 = vpop.f32.mrb[0].mxu0
    %v4613 = vpop.f32.mrb[0].mxu0
    %v4614 = vadd.f32 %v4573, %v4613
    %v4615 = vpop.f32.mrb[0].mxu0
    %4616 = vdwg.mxu0
    %4617 = vmatprep.subr.bf16.mxu0 0
    %4618 = vmatpush1.bf16.msra.mxu0 %v3799
    %4619 = vmatprep.subr.bf16.mxu0 0
    %4620 = vmatpush1.bf16.msra.mxu0 %v3802
    %4621 = vmatprep.subr.bf16.mxu0 0
    %4622 = vmatpush1.bf16.msra.mxu0 %v3805
    %4623 = vmatprep.subr.bf16.mxu0 0
    %4624 = vmatpush1.bf16.msra.mxu0 %v3808
    %4625 = vmatprep.subr.bf16.mxu0 0
    %4626 = vmatpush1.bf16.msra.mxu0 %v3811
    %4627 = vmatprep.subr.bf16.mxu0 0
    %4628 = vmatpush1.bf16.msra.mxu0 %v3814
    %4629 = vmatprep.subr.bf16.mxu0 0
    %4630 = vmatpush1.bf16.msra.mxu0 %v3817
    %4631 = vmatprep.subr.bf16.mxu0 0
    %4632 = vmatpush1.bf16.msra.mxu0 %v3820
    %4633 = vmatprep.subr.bf16.mxu0 0
    %4634 = vmatpush1.bf16.msra.mxu0 %v3823
    %4635 = vmatprep.subr.bf16.mxu0 0
    %4636 = vmatpush1.bf16.msra.mxu0 %v3826
    %4637 = vmatprep.subr.bf16.mxu0 0
    %4638 = vmatpush1.bf16.msra.mxu0 %v3829
    %4639 = vmatprep.subr.bf16.mxu0 0
    %4640 = vmatpush1.bf16.msra.mxu0 %v3832
    %4641 = vmatprep.subr.bf16.mxu0 0
    %4642 = vmatpush1.bf16.msra.mxu0 %v3835
    %4643 = vmatprep.subr.bf16.mxu0 0
    %4644 = vmatpush1.bf16.msra.mxu0 %v3838
    %4645 = vmatprep.subr.bf16.mxu0 0
    %4646 = vmatpush1.bf16.msra.mxu0 %v3841
    %4647 = vmatprep.subr.bf16.mxu0 0
    %4648 = vmatpush1.bf16.msra.mxu0 %v3844
    %4649 = vmatprep.mubr.bf16.mxu0 %v2350
    %4650 = vmatmul.mubr.bf16.gmra.mrb[0].mxu0 %v2349
    %v4651 = vpop.f32.mrb[0].mxu0
    %v4652 = vadd.f32 %v4611, %v4651
    %v4653 = vpop.f32.mrb[0].mxu0
    %v4654 = vpop.f32.mrb[0].mxu0
    %v4655 = vadd.f32 %v4614, %v4654
    %v4656 = vpop.f32.mrb[0].mxu0
    %4657 = vdwg.mxu0
    %4658 = vmatprep.subr.bf16.mxu0 0
    %4659 = vmatpush1.bf16.msra.mxu0 %v3847
    %4660 = vmatprep.subr.bf16.mxu0 0
    %4661 = vmatpush1.bf16.msra.mxu0 %v3850
    %4662 = vmatprep.subr.bf16.mxu0 0
    %4663 = vmatpush1.bf16.msra.mxu0 %v3853
    %4664 = vmatprep.subr.bf16.mxu0 0
    %4665 = vmatpush1.bf16.msra.mxu0 %v3856
    %4666 = vmatprep.subr.bf16.mxu0 0
    %4667 = vmatpush1.bf16.msra.mxu0 %v3859
    %4668 = vmatprep.subr.bf16.mxu0 0
    %4669 = vmatpush1.bf16.msra.mxu0 %v3862
    %4670 = vmatprep.subr.bf16.mxu0 0
    %4671 = vmatpush1.bf16.msra.mxu0 %v3865
    %4672 = vmatprep.subr.bf16.mxu0 0
    %4673 = vmatpush1.bf16.msra.mxu0 %v3868
    %4674 = vmatprep.subr.bf16.mxu0 0
    %4675 = vmatpush1.bf16.msra.mxu0 %v3871
    %4676 = vmatprep.subr.bf16.mxu0 0
    %4677 = vmatpush1.bf16.msra.mxu0 %v3874
    %4678 = vmatprep.subr.bf16.mxu0 0
    %4679 = vmatpush1.bf16.msra.mxu0 %v3877
    %4680 = vmatprep.subr.bf16.mxu0 0
    %4681 = vmatpush1.bf16.msra.mxu0 %v3880
    %4682 = vmatprep.subr.bf16.mxu0 0
    %4683 = vmatpush1.bf16.msra.mxu0 %v3883
    %4684 = vmatprep.subr.bf16.mxu0 0
    %4685 = vmatpush1.bf16.msra.mxu0 %v3886
    %4686 = vmatprep.subr.bf16.mxu0 0
    %4687 = vmatpush1.bf16.msra.mxu0 %v3889
    %4688 = vmatprep.subr.bf16.mxu0 0
    %4689 = vmatpush1.bf16.msra.mxu0 %v3892
    %4690 = vmatprep.mubr.bf16.mxu0 %v2352
    %4691 = vmatmul.mubr.bf16.gmra.mrb[0].mxu0 %v2351
    %v4692 = vpop.f32.mrb[0].mxu0
    %v4693 = vadd.f32 %v4652, %v4692
    %v4694 = vpop.f32.mrb[0].mxu0
    %v4695 = vpop.f32.mrb[0].mxu0
    %v4696 = vadd.f32 %v4655, %v4695
    %v4697 = vpop.f32.mrb[0].mxu0
    %4698 = vdwg.mxu0
    %4699 = vmatprep.subr.bf16.mxu0 0
    %4700 = vmatpush1.bf16.msra.mxu0 %v3895
    %4701 = vmatprep.subr.bf16.mxu0 0
    %4702 = vmatpush1.bf16.msra.mxu0 %v3898
    %4703 = vmatprep.subr.bf16.mxu0 0
    %4704 = vmatpush1.bf16.msra.mxu0 %v3901
    %4705 = vmatprep.subr.bf16.mxu0 0
    %4706 = vmatpush1.bf16.msra.mxu0 %v3904
    %4707 = vmatprep.subr.bf16.mxu0 0
    %4708 = vmatpush1.bf16.msra.mxu0 %v3907
    %4709 = vmatprep.subr.bf16.mxu0 0
    %4710 = vmatpush1.bf16.msra.mxu0 %v3910
    %4711 = vmatprep.subr.bf16.mxu0 0
    %4712 = vmatpush1.bf16.msra.mxu0 %v3913
    %4713 = vmatprep.subr.bf16.mxu0 0
    %4714 = vmatpush1.bf16.msra.mxu0 %v3916
    %4715 = vmatprep.subr.bf16.mxu0 0
    %4716 = vmatpush1.bf16.msra.mxu0 %v3919
    %4717 = vmatprep.subr.bf16.mxu0 0
    %4718 = vmatpush1.bf16.msra.mxu0 %v3922
    %4719 = vmatprep.subr.bf16.mxu0 0
    %4720 = vmatpush1.bf16.msra.mxu0 %v3925
    %4721 = vmatprep.subr.bf16.mxu0 0
    %4722 = vmatpush1.bf16.msra.mxu0 %v3928
    %4723 = vmatprep.subr.bf16.mxu0 0
    %4724 = vmatpush1.bf16.msra.mxu0 %v3931
    %4725 = vmatprep.subr.bf16.mxu0 0
    %4726 = vmatpush1.bf16.msra.mxu0 %v3934
    %4727 = vmatprep.subr.bf16.mxu0 0
    %4728 = vmatpush1.bf16.msra.mxu0 %v3937
    %4729 = vmatprep.subr.bf16.mxu0 0
    %4730 = vmatpush1.bf16.msra.mxu0 %v3940
    %4731 = vmatprep.mubr.bf16.mxu0 %v2354
    %4732 = vmatmul.mubr.bf16.gmra.mrb[0].mxu0 %v2353
    %v4733 = vpop.f32.mrb[0].mxu0
    %v4734 = vadd.f32 %v4693, %v4733
    %v4735 = vpop.f32.mrb[0].mxu0
    %v4736 = vpop.f32.mrb[0].mxu0
    %v4737 = vadd.f32 %v4696, %v4736
    %v4738 = vpop.f32.mrb[0].mxu0
    %4739 = vdwg.mxu0
    %4740 = vmatprep.subr.bf16.mxu0 0
    %4741 = vmatpush1.bf16.msra.mxu0 %v3943
    %4742 = vmatprep.subr.bf16.mxu0 0
    %4743 = vmatpush1.bf16.msra.mxu0 %v3946
    %4744 = vmatprep.subr.bf16.mxu0 0
    %4745 = vmatpush1.bf16.msra.mxu0 %v3949
    %4746 = vmatprep.subr.bf16.mxu0 0
    %4747 = vmatpush1.bf16.msra.mxu0 %v3952
    %4748 = vmatprep.subr.bf16.mxu0 0
    %4749 = vmatpush1.bf16.msra.mxu0 %v3955
    %4750 = vmatprep.subr.bf16.mxu0 0
    %4751 = vmatpush1.bf16.msra.mxu0 %v3958
    %4752 = vmatprep.subr.bf16.mxu0 0
    %4753 = vmatpush1.bf16.msra.mxu0 %v3961
    %4754 = vmatprep.subr.bf16.mxu0 0
    %4755 = vmatpush1.bf16.msra.mxu0 %v3964
    %4756 = vmatprep.subr.bf16.mxu0 0
    %4757 = vmatpush1.bf16.msra.mxu0 %v3967
    %4758 = vmatprep.subr.bf16.mxu0 0
    %4759 = vmatpush1.bf16.msra.mxu0 %v3970
    %4760 = vmatprep.subr.bf16.mxu0 0
    %4761 = vmatpush1.bf16.msra.mxu0 %v3973
    %4762 = vmatprep.subr.bf16.mxu0 0
    %4763 = vmatpush1.bf16.msra.mxu0 %v3976
    %4764 = vmatprep.subr.bf16.mxu0 0
    %4765 = vmatpush1.bf16.msra.mxu0 %v3979
    %4766 = vmatprep.subr.bf16.mxu0 0
    %4767 = vmatpush1.bf16.msra.mxu0 %v3982
    %4768 = vmatprep.subr.bf16.mxu0 0
    %4769 = vmatpush1.bf16.msra.mxu0 %v3985
    %4770 = vmatprep.subr.bf16.mxu0 0
    %4771 = vmatpush1.bf16.msra.mxu0 %v3988
    %4772 = vmatprep.mubr.bf16.mxu0 %v2356
    %4773 = vmatmul.mubr.bf16.gmra.mrb[0].mxu0 %v2355
    %v4774 = vpop.f32.mrb[0].mxu0
    %v4775 = vadd.f32 %v4734, %v4774
    %v4776 = vpop.f32.mrb[0].mxu0
    %v4777 = vpop.f32.mrb[0].mxu0
    %v4778 = vadd.f32 %v4737, %v4777
    %v4779 = vpop.f32.mrb[0].mxu0
    %4780 = vdwg.mxu0
    %4781 = vst [vmem:[#allocation8] sm:$0xff] %v4527
    %4782 = vst [vmem:[#allocation8 + $0x8] sm:$0xff] %v4529
    %4783 = vst [vmem:[#allocation8 + $0x10] sm:$0xff] %v4775
    %4784 = vst [vmem:[#allocation8 + $0x18] sm:$0xff] %v4531
    %4785 = vst [vmem:[#allocation8 + $0x20] sm:$0xff] %v4533
    %4786 = vst [vmem:[#allocation8 + $0x28] sm:$0xff] %v4778
    // Predicated region
    $region26: #{tpu_custom_call.1} parent=1 // pred_check
      _
    $region27: #{tpu_custom_call.1} parent=1 // pred_check_branch
      %4788 = sbr.rel (0) target = $region29
    $region28: #{tpu_custom_call.1} parent=1 // pred_region
      %s4790 = ssub.s32 768, 768
      %4791 = vsyncadd [#allocation4], %s4790
      %s4792 = sshll.u32 [#allocation8], 4
      %s4793 = int_to_ptr.vmem [resolvable:$true] %s4792
      %4798 = dma.vmem_to_hbm [thread:$0]  %s4793, 768, %s3, [#allocation4], 384, 384, 24
    $region29: #{tpu_custom_call.1} parent=1 // pred_fallthru
      _
    // Predicated region
    $region30: #{tpu_custom_call.1} parent=1 // pred_check
      _
    $region31: #{tpu_custom_call.1} parent=1 // pred_check_branch
      %4800 = sbr.rel (0) target = $region33
    $region32: #{tpu_custom_call.1} parent=1 // pred_region
      %4801 = dma.done [#allocation4], 768
    $region33: #{tpu_custom_call.1} parent=1 // pred_fallthru
      _
    %4802 = vsyncpa [#allocation3], 1
    %4803 = vsyncpa [#allocation6], 1
    %4804 = vsyncpa [#allocation4], 1

</llo_original>
